<compile_context>
chip_gen: v5e
topology: v5e:2x2
jax: 0.10.0
libtpu: 0.0.40
codegen_flags: <defaults>
</compile_context>

<pallas_src>
import jax
import jax.numpy as jnp
from jax.experimental import pallas as pl
from jax.experimental.pallas import tpu as pltpu


def _conv4_fused_kernel(x0_ref, w0_ref, w1_ref, w2_ref, w3_ref, bn_ref, o_ref,
                        y_ref, col_ref, a1_ref, a2_ref, a3_ref):
    # x0_ref : (B*H*W, 32)  wrapper-side im2col of layer-0 input (27 real cols)
    # wL_ref : packed conv weights, (32, 64) for layer 0, (576, 64) for 1..3
    # bn_ref : (8, 64) rows [gamma0, beta0, gamma1, beta1, ...]
    # y_ref  : (B*H*W, 64) VMEM scratch holding the current layer's conv output
    # col_ref: (B*(H/2)*(W/2), 576) VMEM scratch for the merged-tap im2col slab
    # aL_ref : zero-halo padded NHWC activations kept resident in VMEM
    b, cout = o_ref.shape
    eps = 1e-5

    def bn_pool_relu(r, h, w, layer):
        # BatchNorm (training-mode batch stats, biased variance) folded into a
        # single scale/shift pass, then 2x2/2 max-pool, then ReLU.
        inv_r = 1.0 / r
        yv = y_ref[0:r, :]
        mean = jnp.sum(yv, axis=0, keepdims=True) * inv_r
        var = jnp.sum(yv * yv, axis=0, keepdims=True) * inv_r - mean * mean
        gamma = bn_ref[2 * layer:2 * layer + 1, :]
        beta = bn_ref[2 * layer + 1:2 * layer + 2, :]
        scale = jax.lax.rsqrt(var + eps) * gamma
        shift = beta - mean * scale
        # Fresh ref read for the normalize pass so the stats operand can die.
        yn = y_ref[0:r, :] * scale + shift                      # rows (b, h, w)
        hh, wh = h // 2, w // 2
        yw = jnp.max(yn.reshape(b * h * wh, 2, cout), axis=1)   # pool over w
        pooled = jnp.max(yw.reshape(b * hh, 2, wh, cout), axis=1)  # pool over h
        pooled = jnp.maximum(pooled, 0.0)                       # ReLU after pool
        return pooled.reshape(b, hh, wh, cout)

    def write_padded(dst_ref, pooled):
        # Zero only the 1-pixel halo (the interior is fully overwritten), then
        # store the pooled activation into the interior of the padded scratch.
        _, hh, wh, c = pooled.shape
        zrow = jnp.zeros((b, 1, wh + 2, c), jnp.float32)
        zcol = jnp.zeros((b, hh, 1, c), jnp.float32)
        dst_ref[:, 0:1, :, :] = zrow
        dst_ref[:, hh + 1:hh + 2, :, :] = zrow
        dst_ref[:, 1:1 + hh, 0:1, :] = zcol
        dst_ref[:, 1:1 + hh, wh + 1:wh + 2, :] = zcol
        dst_ref[:, 1:1 + hh, 1:1 + wh, :] = pooled

    def conv_merged(src_ref, w_ref):
        # Tap-merged conv: build the (r, 9*cin) im2col slab once in VMEM, then
        # a single K=9*cin MXU matmul against the host-packed weight.
        _, hp, wp, c = src_ref.shape
        h, w = hp - 2, wp - 2
        r = b * h * w
        for ky in range(3):
            for kx in range(3):
                t = ky * 3 + kx
                col_ref[0:r, t * c:(t + 1) * c] = (
                    src_ref[:, ky:ky + h, kx:kx + w, :].reshape(r, c))
        y_ref[0:r, :] = jnp.dot(col_ref[0:r, :], w_ref[...],
                                preferred_element_type=jnp.float32)
        return h, w, r

    # ---- layer 0: wrapper im2col'd input, one (B*H*W, 32) x (32, 64) matmul.
    h0 = (a1_ref.shape[1] - 2) * 2
    w0_ = (a1_ref.shape[2] - 2) * 2
    r0 = x0_ref.shape[0]
    y_ref[0:r0, :] = jnp.dot(x0_ref[...], w0_ref[...],
                             preferred_element_type=jnp.float32)
    pooled = bn_pool_relu(r0, h0, w0_, 0)
    write_padded(a1_ref, pooled)

    # ---- layers 1..3: padded input stays resident in VMEM, merged-tap conv.
    for layer, (src_ref, w_ref, dst_ref) in enumerate(
            ((a1_ref, w1_ref, a2_ref),
             (a2_ref, w2_ref, a3_ref),
             (a3_ref, w3_ref, None)), start=1):
        h, w, r = conv_merged(src_ref, w_ref)
        pooled = bn_pool_relu(r, h, w, layer)
        if dst_ref is not None:
            write_padded(dst_ref, pooled)

    # Global average pool over the remaining spatial positions -> (B, Cout).
    # TODO(synk): avgpool=False (flattened 1600-dim feature) path not implemented.
    _, hh, wh, c = pooled.shape
    o_ref[...] = jnp.sum(pooled.reshape(b, hh * wh, c), axis=1) * (1.0 / (hh * wh))


def conv4_forward(x_nchw, params):
    """params = (w0p, w1p, w2p, w3p, bn): wLp packed as (9*cin [lane-padded], cout)
    with row order (ky, kx, cin); bn of shape (8, 64), rows [gamma0, beta0, ...]."""
    *dim, c, h, w = x_nchw.shape
    assert h % 16 == 0 and w % 16 == 0, "spatial dims must survive four 2x2 pools"
    x = x_nchw.reshape(-1, c, h, w)                  # x.view(-1, c, h, w)
    x = jnp.transpose(x, (0, 2, 3, 1))               # NCHW -> NHWC (interface glue)
    b = x.shape[0]
    w0p, w1p, w2p, w3p, bn = params
    cout = w3p.shape[1]
    k0 = w0p.shape[0]                                # 32 (27 real + lane pad)
    k1 = w1p.shape[0]                                # 576 = 9 * 64

    # Layer-0 im2col in the wrapper: cin=3 would use 3/128 lanes in VMEM, so we
    # build a lane-padded (B*H*W, 32) patch matrix here (pure data movement,
    # fused by XLA) and the kernel does a single K=32 matmul for layer 0.
    xp = jnp.pad(x, ((0, 0), (1, 1), (1, 1), (0, 0)))
    cols = [xp[:, ky:ky + h, kx:kx + w, :] for ky in range(3) for kx in range(3)]
    x0 = jnp.concatenate(cols, axis=-1).reshape(b * h * w, 9 * c)
    x0 = jnp.pad(x0, ((0, 0), (0, k0 - 9 * c)))

    h1, w1 = h // 2, w // 2
    h2, w2 = h // 4, w // 4
    h3, w3 = h // 8, w // 8
    scratch = [
        pltpu.VMEM((b * h * w, cout), jnp.float32),      # conv output / BN source
        pltpu.VMEM((b * h1 * w1, k1), jnp.float32),      # merged-tap im2col slab
        pltpu.VMEM((b, h1 + 2, w1 + 2, cout), jnp.float32),  # padded layer-1 input
        pltpu.VMEM((b, h2 + 2, w2 + 2, cout), jnp.float32),  # padded layer-2 input
        pltpu.VMEM((b, h3 + 2, w3 + 2, cout), jnp.float32),  # padded layer-3 input
    ]
    out = pl.pallas_call(
        _conv4_fused_kernel,
        out_shape=jax.ShapeDtypeStruct((b, cout), jnp.float32),
        in_specs=[pl.BlockSpec(memory_space=pltpu.MemorySpace.VMEM)] * 6,
        out_specs=pl.BlockSpec(memory_space=pltpu.MemorySpace.VMEM),
        scratch_shapes=scratch,
    )(x0, w0p, w1p, w2p, w3p, bn)
    return out.reshape(*dim, cout)


def _pack_conv_weight(w4, k_pad=None):
    """Torch layout (cout, cin, 3, 3) -> (9*cin [zero-padded to k_pad], cout),
    row order (ky, kx, cin) matching the im2col tap order."""
    cout, cin = w4.shape[0], w4.shape[1]
    wp = jnp.transpose(w4, (2, 3, 1, 0)).reshape(9 * cin, cout)
    if k_pad is not None and k_pad > wp.shape[0]:
        wp = jnp.pad(wp, ((0, k_pad - wp.shape[0]), (0, 0)))
    return wp


def init_params(key):
    # Conv weights in torch layout (Cout, Cin, 3, 3) for the reference and
    # host-side packed (9*Cin, Cout) for the kernel; BN gamma/beta randomized
    # slightly so the affine path is actually exercised (PyTorch defaults 1/0).
    packed, raw, rows = [], [], []
    cin = 3
    for li in range(4):
        key, kw, kg, kb = jax.random.split(key, 4)
        w4 = jax.random.normal(kw, (64, cin, 3, 3), jnp.float32) * 0.1
        gamma = 1.0 + 0.1 * jax.random.normal(kg, (64,), jnp.float32)
        beta = 0.1 * jax.random.normal(kb, (64,), jnp.float32)
        packed.append(_pack_conv_weight(w4, k_pad=32 if li == 0 else None))
        raw.append((w4, gamma, beta))
        rows.extend([gamma, beta])
        cin = 64
    bn = jnp.stack(rows)                              # (8, 64)
    return (*packed, bn), raw


def reference_forward(x_nchw, raw_params):
    # Pure-JAX reference mirroring the PyTorch forward (training-mode BN).
    *dim, c, h, w = x_nchw.shape
    x = jnp.transpose(x_nchw.reshape(-1, c, h, w), (0, 2, 3, 1))
    for w4, gamma, beta in raw_params:
        wk = jnp.transpose(w4, (2, 3, 1, 0))          # HWIO
        y = jax.lax.conv_general_dilated(
            x, wk, window_strides=(1, 1), padding='SAME',
            dimension_numbers=('NHWC', 'HWIO', 'NHWC'))
        mean = jnp.mean(y, axis=(0, 1, 2), keepdims=True)
        var = jnp.mean(y * y, axis=(0, 1, 2), keepdims=True) - mean * mean
        y = (y - mean) * jax.lax.rsqrt(var + 1e-5) * gamma.reshape(1, 1, 1, -1) \
            + beta.reshape(1, 1, 1, -1)
        y = jnp.maximum(y, 0.0)
        bb, hh, ww, cc = y.shape
        y = y.reshape(bb, hh // 2, 2, ww // 2, 2, cc).max(axis=(2, 4))
        x = y
    return x.mean(axis=(1, 2)).reshape(*dim, 64)


if __name__ == "__main__":
    key = jax.random.PRNGKey(0)
    key, kx = jax.random.split(key)
    # NCHW input like the PyTorch module: batch=2, C=3, 16x16 spatial
    x = jax.random.normal(kx, (2, 3, 16, 16), jnp.float32)

    params, raw_params = init_params(key)

    out = jax.block_until_ready(jax.jit(conv4_forward)(x, params))
    assert out.shape == (2, 64), out.shape

    ref = jax.block_until_ready(reference_forward(x, raw_params))
    max_err = float(jnp.max(jnp.abs(out - ref)))
    assert max_err < 1e-2, f"max abs err {max_err}"

    print("KERNEL_OK")
</pallas_src>

<mosaic_0001>
module attributes {stable_mosaic.version = 11 : i64} {
  func.func @_conv4_fused_kernel(%arg0: memref<512x32xf32, #tpu.memory_space<vmem>>, %arg1: memref<32x64xf32, #tpu.memory_space<vmem>>, %arg2: memref<576x64xf32, #tpu.memory_space<vmem>>, %arg3: memref<576x64xf32, #tpu.memory_space<vmem>>, %arg4: memref<576x64xf32, #tpu.memory_space<vmem>>, %arg5: memref<8x64xf32, #tpu.memory_space<vmem>>, %arg6: memref<2x64xf32, #tpu.memory_space<vmem>>, %arg7: memref<512x64xf32, #tpu.memory_space<vmem>>, %arg8: memref<128x576xf32, #tpu.memory_space<vmem>>, %arg9: memref<2x10x10x64xf32, #tpu.memory_space<vmem>>, %arg10: memref<2x6x6x64xf32, #tpu.memory_space<vmem>>, %arg11: memref<2x4x4x64xf32, #tpu.memory_space<vmem>>) attributes {dimension_semantics = [], scalar_prefetch = 0 : i64, scratch_operands = 5 : i64, tpu.core_type = #tpu.core_type<tc>} {
    %c0 = arith.constant 0 : index
    %c0_0 = arith.constant 0 : index
    %0 = vector.load %arg0[%c0, %c0_0] : memref<512x32xf32, #tpu.memory_space<vmem>>, vector<512x32xf32>
    %c0_1 = arith.constant 0 : index
    %c0_2 = arith.constant 0 : index
    %1 = vector.load %arg1[%c0_1, %c0_2] : memref<32x64xf32, #tpu.memory_space<vmem>>, vector<32x64xf32>
    %cst = arith.constant dense<0.000000e+00> : vector<512x64xf32>
    %2 = tpu.matmul %0, %1, %cst {dimension_numbers = #tpu.dot_dimension_numbers<[1], [0], [0], [1], [0, 0, 1, 1], [], []>} : vector<512x32xf32>, vector<32x64xf32>, vector<512x64xf32> -> vector<512x64xf32>
    %c0_3 = arith.constant 0 : index
    %c0_4 = arith.constant 0 : index
    %3 = vector.load %arg7[%c0_3, %c0_4] : memref<512x64xf32, #tpu.memory_space<vmem>>, vector<512x64xf32>
    tpu.vector_store %arg7[%c0_3, %c0_4], %2 {strides = array<i32>} : memref<512x64xf32, #tpu.memory_space<vmem>>, vector<512x64xf32>,
    %c0_5 = arith.constant 0 : index
    %c0_6 = arith.constant 0 : index
    %4 = vector.load %arg7[%c0_5, %c0_6] : memref<512x64xf32, #tpu.memory_space<vmem>>, vector<512x64xf32>
    %cst_7 = arith.constant dense<0.000000e+00> : vector<64xf32>
    %5 = vector.multi_reduction <add>, %4, %cst_7 [0] : vector<512x64xf32> to vector<64xf32>
    %6 = vector.shape_cast %5 : vector<64xf32> to vector<1x64xf32>
    %cst_8 = arith.constant 0.001953125 : f32
    %7 = vector.broadcast %cst_8 : f32 to vector<1x64xf32>
    %8 = arith.mulf %6, %7 : vector<1x64xf32>
    %9 = arith.mulf %4, %4 : vector<512x64xf32>
    %cst_9 = arith.constant dense<0.000000e+00> : vector<64xf32>
    %10 = vector.multi_reduction <add>, %9, %cst_9 [0] : vector<512x64xf32> to vector<64xf32>
    %11 = vector.shape_cast %10 : vector<64xf32> to vector<1x64xf32>
    %cst_10 = arith.constant 0.001953125 : f32
    %12 = vector.broadcast %cst_10 : f32 to vector<1x64xf32>
    %13 = arith.mulf %11, %12 : vector<1x64xf32>
    %14 = arith.mulf %8, %8 : vector<1x64xf32>
    %15 = arith.subf %13, %14 : vector<1x64xf32>
    %c0_11 = arith.constant 0 : index
    %c0_12 = arith.constant 0 : index
    %16 = vector.load %arg5[%c0_11, %c0_12] : memref<8x64xf32, #tpu.memory_space<vmem>>, vector<1x64xf32>
    %c1 = arith.constant 1 : index
    %c0_13 = arith.constant 0 : index
    %17 = vector.load %arg5[%c1, %c0_13] : memref<8x64xf32, #tpu.memory_space<vmem>>, vector<1x64xf32>
    %cst_14 = arith.constant 9.99999974E-6 : f32
    %18 = vector.broadcast %cst_14 : f32 to vector<1x64xf32>
    %19 = arith.addf %15, %18 : vector<1x64xf32>
    %20 = math.rsqrt %19 : vector<1x64xf32>
    %21 = arith.mulf %20, %16 : vector<1x64xf32>
    %22 = arith.mulf %8, %21 : vector<1x64xf32>
    %23 = arith.subf %17, %22 : vector<1x64xf32>
    %c0_15 = arith.constant 0 : index
    %c0_16 = arith.constant 0 : index
    %24 = vector.load %arg7[%c0_15, %c0_16] : memref<512x64xf32, #tpu.memory_space<vmem>>, vector<512x64xf32>
    %25 = vector.broadcast %21 : vector<1x64xf32> to vector<512x64xf32>
    %26 = arith.mulf %24, %25 : vector<512x64xf32>
    %27 = vector.broadcast %23 : vector<1x64xf32> to vector<512x64xf32>
    %28 = arith.addf %26, %27 : vector<512x64xf32>
    %29 = vector.shape_cast %28 : vector<512x64xf32> to vector<256x2x64xf32>
    %cst_17 = arith.constant dense<0xFF800000> : vector<256x64xf32>
    %30 = vector.multi_reduction <maximumf>, %29, %cst_17 [1] : vector<256x2x64xf32> to vector<256x64xf32>
    %31 = vector.shape_cast %30 : vector<256x64xf32> to vector<16x2x8x64xf32>
    %cst_18 = arith.constant dense<0xFF800000> : vector<16x8x64xf32>
    %32 = vector.multi_reduction <maximumf>, %31, %cst_18 [1] : vector<16x2x8x64xf32> to vector<16x8x64xf32>
    %cst_19 = arith.constant 0.000000e+00 : f32
    %33 = vector.broadcast %cst_19 : f32 to vector<16x8x64xf32>
    %34 = arith.maximumf %32, %33 : vector<16x8x64xf32>
    %35 = vector.shape_cast %34 : vector<16x8x64xf32> to vector<2x8x8x64xf32>
    %cst_20 = arith.constant 0.000000e+00 : f32
    %36 = vector.broadcast %cst_20 : f32 to vector<2x1x10x64xf32>
    %cst_21 = arith.constant 0.000000e+00 : f32
    %37 = vector.broadcast %cst_21 : f32 to vector<2x8x1x64xf32>
    %c0_22 = arith.constant 0 : index
    %c0_23 = arith.constant 0 : index
    %c0_24 = arith.constant 0 : index
    %c0_25 = arith.constant 0 : index
    %38 = vector.load %arg9[%c0_22, %c0_23, %c0_24, %c0_25] : memref<2x10x10x64xf32, #tpu.memory_space<vmem>>, vector<2x1x10x64xf32>
    tpu.vector_store %arg9[%c0_22, %c0_23, %c0_24, %c0_25], %36 {strides = array<i32>} : memref<2x10x10x64xf32, #tpu.memory_space<vmem>>, vector<2x1x10x64xf32>,
    %c0_26 = arith.constant 0 : index
    %c9 = arith.constant 9 : index
    %c0_27 = arith.constant 0 : index
    %c0_28 = arith.constant 0 : index
    %39 = vector.load %arg9[%c0_26, %c9, %c0_27, %c0_28] : memref<2x10x10x64xf32, #tpu.memory_space<vmem>>, vector<2x1x10x64xf32>
    tpu.vector_store %arg9[%c0_26, %c9, %c0_27, %c0_28], %36 {strides = array<i32>} : memref<2x10x10x64xf32, #tpu.memory_space<vmem>>, vector<2x1x10x64xf32>,
    %c0_29 = arith.constant 0 : index
    %c1_30 = arith.constant 1 : index
    %c0_31 = arith.constant 0 : index
    %c0_32 = arith.constant 0 : index
    %40 = vector.load %arg9[%c0_29, %c1_30, %c0_31, %c0_32] : memref<2x10x10x64xf32, #tpu.memory_space<vmem>>, vector<2x8x1x64xf32>
    tpu.vector_store %arg9[%c0_29, %c1_30, %c0_31, %c0_32], %37 {strides = array<i32>} : memref<2x10x10x64xf32, #tpu.memory_space<vmem>>, vector<2x8x1x64xf32>,
    %c0_33 = arith.constant 0 : index
    %c1_34 = arith.constant 1 : index
    %c9_35 = arith.constant 9 : index
    %c0_36 = arith.constant 0 : index
    %41 = vector.load %arg9[%c0_33, %c1_34, %c9_35, %c0_36] : memref<2x10x10x64xf32, #tpu.memory_space<vmem>>, vector<2x8x1x64xf32>
    tpu.vector_store %arg9[%c0_33, %c1_34, %c9_35, %c0_36], %37 {strides = array<i32>} : memref<2x10x10x64xf32, #tpu.memory_space<vmem>>, vector<2x8x1x64xf32>,
    %c0_37 = arith.constant 0 : index
    %c1_38 = arith.constant 1 : index
    %c1_39 = arith.constant 1 : index
    %c0_40 = arith.constant 0 : index
    %42 = vector.load %arg9[%c0_37, %c1_38, %c1_39, %c0_40] : memref<2x10x10x64xf32, #tpu.memory_space<vmem>>, vector<2x8x8x64xf32>
    tpu.vector_store %arg9[%c0_37, %c1_38, %c1_39, %c0_40], %35 {strides = array<i32>} : memref<2x10x10x64xf32, #tpu.memory_space<vmem>>, vector<2x8x8x64xf32>,
    %c0_41 = arith.constant 0 : index
    %c0_42 = arith.constant 0 : index
    %c0_43 = arith.constant 0 : index
    %c0_44 = arith.constant 0 : index
    %43 = vector.load %arg9[%c0_41, %c0_42, %c0_43, %c0_44] : memref<2x10x10x64xf32, #tpu.memory_space<vmem>>, vector<2x8x8x64xf32>
    %44 = vector.shape_cast %43 : vector<2x8x8x64xf32> to vector<128x64xf32>
    %c0_45 = arith.constant 0 : index
    %c0_46 = arith.constant 0 : index
    %45 = vector.load %arg8[%c0_45, %c0_46] : memref<128x576xf32, #tpu.memory_space<vmem>>, vector<128x64xf32>
    tpu.vector_store %arg8[%c0_45, %c0_46], %44 {strides = array<i32>} : memref<128x576xf32, #tpu.memory_space<vmem>>, vector<128x64xf32>,
    %c0_47 = arith.constant 0 : index
    %c0_48 = arith.constant 0 : index
    %c1_49 = arith.constant 1 : index
    %c0_50 = arith.constant 0 : index
    %46 = vector.load %arg9[%c0_47, %c0_48, %c1_49, %c0_50] : memref<2x10x10x64xf32, #tpu.memory_space<vmem>>, vector<2x8x8x64xf32>
    %47 = vector.shape_cast %46 : vector<2x8x8x64xf32> to vector<128x64xf32>
    %c0_51 = arith.constant 0 : index
    %c64 = arith.constant 64 : index
    %48 = vector.load %arg8[%c0_51, %c64] : memref<128x576xf32, #tpu.memory_space<vmem>>, vector<128x64xf32>
    tpu.vector_store %arg8[%c0_51, %c64], %47 {strides = array<i32>} : memref<128x576xf32, #tpu.memory_space<vmem>>, vector<128x64xf32>,
    %c0_52 = arith.constant 0 : index
    %c0_53 = arith.constant 0 : index
    %c2 = arith.constant 2 : index
    %c0_54 = arith.constant 0 : index
    %49 = vector.load %arg9[%c0_52, %c0_53, %c2, %c0_54] : memref<2x10x10x64xf32, #tpu.memory_space<vmem>>, vector<2x8x8x64xf32>
    %50 = vector.shape_cast %49 : vector<2x8x8x64xf32> to vector<128x64xf32>
    %c0_55 = arith.constant 0 : index
    %c128 = arith.constant 128 : index
    %51 = vector.load %arg8[%c0_55, %c128] : memref<128x576xf32, #tpu.memory_space<vmem>>, vector<128x64xf32>
    tpu.vector_store %arg8[%c0_55, %c128], %50 {strides = array<i32>} : memref<128x576xf32, #tpu.memory_space<vmem>>, vector<128x64xf32>,
    %c0_56 = arith.constant 0 : index
    %c1_57 = arith.constant 1 : index
    %c0_58 = arith.constant 0 : index
    %c0_59 = arith.constant 0 : index
    %52 = vector.load %arg9[%c0_56, %c1_57, %c0_58, %c0_59] : memref<2x10x10x64xf32, #tpu.memory_space<vmem>>, vector<2x8x8x64xf32>
    %53 = vector.shape_cast %52 : vector<2x8x8x64xf32> to vector<128x64xf32>
    %c0_60 = arith.constant 0 : index
    %c192 = arith.constant 192 : index
    %54 = vector.load %arg8[%c0_60, %c192] : memref<128x576xf32, #tpu.memory_space<vmem>>, vector<128x64xf32>
    tpu.vector_store %arg8[%c0_60, %c192], %53 {strides = array<i32>} : memref<128x576xf32, #tpu.memory_space<vmem>>, vector<128x64xf32>,
    %c0_61 = arith.constant 0 : index
    %c1_62 = arith.constant 1 : index
    %c1_63 = arith.constant 1 : index
    %c0_64 = arith.constant 0 : index
    %55 = vector.load %arg9[%c0_61, %c1_62, %c1_63, %c0_64] : memref<2x10x10x64xf32, #tpu.memory_space<vmem>>, vector<2x8x8x64xf32>
    %56 = vector.shape_cast %55 : vector<2x8x8x64xf32> to vector<128x64xf32>
    %c0_65 = arith.constant 0 : index
    %c256 = arith.constant 256 : index
    %57 = vector.load %arg8[%c0_65, %c256] : memref<128x576xf32, #tpu.memory_space<vmem>>, vector<128x64xf32>
    tpu.vector_store %arg8[%c0_65, %c256], %56 {strides = array<i32>} : memref<128x576xf32, #tpu.memory_space<vmem>>, vector<128x64xf32>,
    %c0_66 = arith.constant 0 : index
    %c1_67 = arith.constant 1 : index
    %c2_68 = arith.constant 2 : index
    %c0_69 = arith.constant 0 : index
    %58 = vector.load %arg9[%c0_66, %c1_67, %c2_68, %c0_69] : memref<2x10x10x64xf32, #tpu.memory_space<vmem>>, vector<2x8x8x64xf32>
    %59 = vector.shape_cast %58 : vector<2x8x8x64xf32> to vector<128x64xf32>
    %c0_70 = arith.constant 0 : index
    %c320 = arith.constant 320 : index
    %60 = vector.load %arg8[%c0_70, %c320] : memref<128x576xf32, #tpu.memory_space<vmem>>, vector<128x64xf32>
    tpu.vector_store %arg8[%c0_70, %c320], %59 {strides = array<i32>} : memref<128x576xf32, #tpu.memory_space<vmem>>, vector<128x64xf32>,
    %c0_71 = arith.constant 0 : index
    %c2_72 = arith.constant 2 : index
    %c0_73 = arith.constant 0 : index
    %c0_74 = arith.constant 0 : index
    %61 = vector.load %arg9[%c0_71, %c2_72, %c0_73, %c0_74] : memref<2x10x10x64xf32, #tpu.memory_space<vmem>>, vector<2x8x8x64xf32>
    %62 = vector.shape_cast %61 : vector<2x8x8x64xf32> to vector<128x64xf32>
    %c0_75 = arith.constant 0 : index
    %c384 = arith.constant 384 : index
    %63 = vector.load %arg8[%c0_75, %c384] : memref<128x576xf32, #tpu.memory_space<vmem>>, vector<128x64xf32>
    tpu.vector_store %arg8[%c0_75, %c384], %62 {strides = array<i32>} : memref<128x576xf32, #tpu.memory_space<vmem>>, vector<128x64xf32>,
    %c0_76 = arith.constant 0 : index
    %c2_77 = arith.constant 2 : index
    %c1_78 = arith.constant 1 : index
    %c0_79 = arith.constant 0 : index
    %64 = vector.load %arg9[%c0_76, %c2_77, %c1_78, %c0_79] : memref<2x10x10x64xf32, #tpu.memory_space<vmem>>, vector<2x8x8x64xf32>
    %65 = vector.shape_cast %64 : vector<2x8x8x64xf32> to vector<128x64xf32>
    %c0_80 = arith.constant 0 : index
    %c448 = arith.constant 448 : index
    %66 = vector.load %arg8[%c0_80, %c448] : memref<128x576xf32, #tpu.memory_space<vmem>>, vector<128x64xf32>
    tpu.vector_store %arg8[%c0_80, %c448], %65 {strides = array<i32>} : memref<128x576xf32, #tpu.memory_space<vmem>>, vector<128x64xf32>,
    %c0_81 = arith.constant 0 : index
    %c2_82 = arith.constant 2 : index
    %c2_83 = arith.constant 2 : index
    %c0_84 = arith.constant 0 : index
    %67 = vector.load %arg9[%c0_81, %c2_82, %c2_83, %c0_84] : memref<2x10x10x64xf32, #tpu.memory_space<vmem>>, vector<2x8x8x64xf32>
    %68 = vector.shape_cast %67 : vector<2x8x8x64xf32> to vector<128x64xf32>
    %c0_85 = arith.constant 0 : index
    %c512 = arith.constant 512 : index
    %69 = vector.load %arg8[%c0_85, %c512] : memref<128x576xf32, #tpu.memory_space<vmem>>, vector<128x64xf32>
    tpu.vector_store %arg8[%c0_85, %c512], %68 {strides = array<i32>} : memref<128x576xf32, #tpu.memory_space<vmem>>, vector<128x64xf32>,
    %c0_86 = arith.constant 0 : index
    %c0_87 = arith.constant 0 : index
    %70 = vector.load %arg8[%c0_86, %c0_87] : memref<128x576xf32, #tpu.memory_space<vmem>>, vector<128x576xf32>
    %c0_88 = arith.constant 0 : index
    %c0_89 = arith.constant 0 : index
    %71 = vector.load %arg2[%c0_88, %c0_89] : memref<576x64xf32, #tpu.memory_space<vmem>>, vector<576x64xf32>
    %cst_90 = arith.constant dense<0.000000e+00> : vector<128x64xf32>
    %72 = tpu.matmul %70, %71, %cst_90 {dimension_numbers = #tpu.dot_dimension_numbers<[1], [0], [0], [1], [0, 0, 1, 1], [], []>} : vector<128x576xf32>, vector<576x64xf32>, vector<128x64xf32> -> vector<128x64xf32>
    %c0_91 = arith.constant 0 : index
    %c0_92 = arith.constant 0 : index
    %73 = vector.load %arg7[%c0_91, %c0_92] : memref<512x64xf32, #tpu.memory_space<vmem>>, vector<128x64xf32>
    tpu.vector_store %arg7[%c0_91, %c0_92], %72 {strides = array<i32>} : memref<512x64xf32, #tpu.memory_space<vmem>>, vector<128x64xf32>,
    %c0_93 = arith.constant 0 : index
    %c0_94 = arith.constant 0 : index
    %74 = vector.load %arg7[%c0_93, %c0_94] : memref<512x64xf32, #tpu.memory_space<vmem>>, vector<128x64xf32>
    %cst_95 = arith.constant dense<0.000000e+00> : vector<64xf32>
    %75 = vector.multi_reduction <add>, %74, %cst_95 [0] : vector<128x64xf32> to vector<64xf32>
    %76 = vector.shape_cast %75 : vector<64xf32> to vector<1x64xf32>
    %cst_96 = arith.constant 7.812500e-03 : f32
    %77 = vector.broadcast %cst_96 : f32 to vector<1x64xf32>
    %78 = arith.mulf %76, %77 : vector<1x64xf32>
    %79 = arith.mulf %74, %74 : vector<128x64xf32>
    %cst_97 = arith.constant dense<0.000000e+00> : vector<64xf32>
    %80 = vector.multi_reduction <add>, %79, %cst_97 [0] : vector<128x64xf32> to vector<64xf32>
    %81 = vector.shape_cast %80 : vector<64xf32> to vector<1x64xf32>
    %cst_98 = arith.constant 7.812500e-03 : f32
    %82 = vector.broadcast %cst_98 : f32 to vector<1x64xf32>
    %83 = arith.mulf %81, %82 : vector<1x64xf32>
    %84 = arith.mulf %78, %78 : vector<1x64xf32>
    %85 = arith.subf %83, %84 : vector<1x64xf32>
    %c2_99 = arith.constant 2 : index
    %c0_100 = arith.constant 0 : index
    %86 = vector.load %arg5[%c2_99, %c0_100] : memref<8x64xf32, #tpu.memory_space<vmem>>, vector<1x64xf32>
    %c3 = arith.constant 3 : index
    %c0_101 = arith.constant 0 : index
    %87 = vector.load %arg5[%c3, %c0_101] : memref<8x64xf32, #tpu.memory_space<vmem>>, vector<1x64xf32>
    %cst_102 = arith.constant 9.99999974E-6 : f32
    %88 = vector.broadcast %cst_102 : f32 to vector<1x64xf32>
    %89 = arith.addf %85, %88 : vector<1x64xf32>
    %90 = math.rsqrt %89 : vector<1x64xf32>
    %91 = arith.mulf %90, %86 : vector<1x64xf32>
    %92 = arith.mulf %78, %91 : vector<1x64xf32>
    %93 = arith.subf %87, %92 : vector<1x64xf32>
    %c0_103 = arith.constant 0 : index
    %c0_104 = arith.constant 0 : index
    %94 = vector.load %arg7[%c0_103, %c0_104] : memref<512x64xf32, #tpu.memory_space<vmem>>, vector<128x64xf32>
    %95 = vector.broadcast %91 : vector<1x64xf32> to vector<128x64xf32>
    %96 = arith.mulf %94, %95 : vector<128x64xf32>
    %97 = vector.broadcast %93 : vector<1x64xf32> to vector<128x64xf32>
    %98 = arith.addf %96, %97 : vector<128x64xf32>
    %99 = vector.shape_cast %98 : vector<128x64xf32> to vector<64x2x64xf32>
    %cst_105 = arith.constant dense<0xFF800000> : vector<64x64xf32>
    %100 = vector.multi_reduction <maximumf>, %99, %cst_105 [1] : vector<64x2x64xf32> to vector<64x64xf32>
    %101 = vector.shape_cast %100 : vector<64x64xf32> to vector<8x2x4x64xf32>
    %cst_106 = arith.constant dense<0xFF800000> : vector<8x4x64xf32>
    %102 = vector.multi_reduction <maximumf>, %101, %cst_106 [1] : vector<8x2x4x64xf32> to vector<8x4x64xf32>
    %cst_107 = arith.constant 0.000000e+00 : f32
    %103 = vector.broadcast %cst_107 : f32 to vector<8x4x64xf32>
    %104 = arith.maximumf %102, %103 : vector<8x4x64xf32>
    %105 = vector.shape_cast %104 : vector<8x4x64xf32> to vector<2x4x4x64xf32>
    %cst_108 = arith.constant 0.000000e+00 : f32
    %106 = vector.broadcast %cst_108 : f32 to vector<2x1x6x64xf32>
    %cst_109 = arith.constant 0.000000e+00 : f32
    %107 = vector.broadcast %cst_109 : f32 to vector<2x4x1x64xf32>
    %c0_110 = arith.constant 0 : index
    %c0_111 = arith.constant 0 : index
    %c0_112 = arith.constant 0 : index
    %c0_113 = arith.constant 0 : index
    %108 = vector.load %arg10[%c0_110, %c0_111, %c0_112, %c0_113] : memref<2x6x6x64xf32, #tpu.memory_space<vmem>>, vector<2x1x6x64xf32>
    tpu.vector_store %arg10[%c0_110, %c0_111, %c0_112, %c0_113], %106 {strides = array<i32>} : memref<2x6x6x64xf32, #tpu.memory_space<vmem>>, vector<2x1x6x64xf32>,
    %c0_114 = arith.constant 0 : index
    %c5 = arith.constant 5 : index
    %c0_115 = arith.constant 0 : index
    %c0_116 = arith.constant 0 : index
    %109 = vector.load %arg10[%c0_114, %c5, %c0_115, %c0_116] : memref<2x6x6x64xf32, #tpu.memory_space<vmem>>, vector<2x1x6x64xf32>
    tpu.vector_store %arg10[%c0_114, %c5, %c0_115, %c0_116], %106 {strides = array<i32>} : memref<2x6x6x64xf32, #tpu.memory_space<vmem>>, vector<2x1x6x64xf32>,
    %c0_117 = arith.constant 0 : index
    %c1_118 = arith.constant 1 : index
    %c0_119 = arith.constant 0 : index
    %c0_120 = arith.constant 0 : index
    %110 = vector.load %arg10[%c0_117, %c1_118, %c0_119, %c0_120] : memref<2x6x6x64xf32, #tpu.memory_space<vmem>>, vector<2x4x1x64xf32>
    tpu.vector_store %arg10[%c0_117, %c1_118, %c0_119, %c0_120], %107 {strides = array<i32>} : memref<2x6x6x64xf32, #tpu.memory_space<vmem>>, vector<2x4x1x64xf32>,
    %c0_121 = arith.constant 0 : index
    %c1_122 = arith.constant 1 : index
    %c5_123 = arith.constant 5 : index
    %c0_124 = arith.constant 0 : index
    %111 = vector.load %arg10[%c0_121, %c1_122, %c5_123, %c0_124] : memref<2x6x6x64xf32, #tpu.memory_space<vmem>>, vector<2x4x1x64xf32>
    tpu.vector_store %arg10[%c0_121, %c1_122, %c5_123, %c0_124], %107 {strides = array<i32>} : memref<2x6x6x64xf32, #tpu.memory_space<vmem>>, vector<2x4x1x64xf32>,
    %c0_125 = arith.constant 0 : index
    %c1_126 = arith.constant 1 : index
    %c1_127 = arith.constant 1 : index
    %c0_128 = arith.constant 0 : index
    %112 = vector.load %arg10[%c0_125, %c1_126, %c1_127, %c0_128] : memref<2x6x6x64xf32, #tpu.memory_space<vmem>>, vector<2x4x4x64xf32>
    tpu.vector_store %arg10[%c0_125, %c1_126, %c1_127, %c0_128], %105 {strides = array<i32>} : memref<2x6x6x64xf32, #tpu.memory_space<vmem>>, vector<2x4x4x64xf32>,
    %c0_129 = arith.constant 0 : index
    %c0_130 = arith.constant 0 : index
    %c0_131 = arith.constant 0 : index
    %c0_132 = arith.constant 0 : index
    %113 = vector.load %arg10[%c0_129, %c0_130, %c0_131, %c0_132] : memref<2x6x6x64xf32, #tpu.memory_space<vmem>>, vector<2x4x4x64xf32>
    %114 = vector.shape_cast %113 : vector<2x4x4x64xf32> to vector<32x64xf32>
    %c0_133 = arith.constant 0 : index
    %c0_134 = arith.constant 0 : index
    %115 = vector.load %arg8[%c0_133, %c0_134] : memref<128x576xf32, #tpu.memory_space<vmem>>, vector<32x64xf32>
    tpu.vector_store %arg8[%c0_133, %c0_134], %114 {strides = array<i32>} : memref<128x576xf32, #tpu.memory_space<vmem>>, vector<32x64xf32>,
    %c0_135 = arith.constant 0 : index
    %c0_136 = arith.constant 0 : index
    %c1_137 = arith.constant 1 : index
    %c0_138 = arith.constant 0 : index
    %116 = vector.load %arg10[%c0_135, %c0_136, %c1_137, %c0_138] : memref<2x6x6x64xf32, #tpu.memory_space<vmem>>, vector<2x4x4x64xf32>
    %117 = vector.shape_cast %116 : vector<2x4x4x64xf32> to vector<32x64xf32>
    %c0_139 = arith.constant 0 : index
    %c64_140 = arith.constant 64 : index
    %118 = vector.load %arg8[%c0_139, %c64_140] : memref<128x576xf32, #tpu.memory_space<vmem>>, vector<32x64xf32>
    tpu.vector_store %arg8[%c0_139, %c64_140], %117 {strides = array<i32>} : memref<128x576xf32, #tpu.memory_space<vmem>>, vector<32x64xf32>,
    %c0_141 = arith.constant 0 : index
    %c0_142 = arith.constant 0 : index
    %c2_143 = arith.constant 2 : index
    %c0_144 = arith.constant 0 : index
    %119 = vector.load %arg10[%c0_141, %c0_142, %c2_143, %c0_144] : memref<2x6x6x64xf32, #tpu.memory_space<vmem>>, vector<2x4x4x64xf32>
    %120 = vector.shape_cast %119 : vector<2x4x4x64xf32> to vector<32x64xf32>
    %c0_145 = arith.constant 0 : index
    %c128_146 = arith.constant 128 : index
    %121 = vector.load %arg8[%c0_145, %c128_146] : memref<128x576xf32, #tpu.memory_space<vmem>>, vector<32x64xf32>
    tpu.vector_store %arg8[%c0_145, %c128_146], %120 {strides = array<i32>} : memref<128x576xf32, #tpu.memory_space<vmem>>, vector<32x64xf32>,
    %c0_147 = arith.constant 0 : index
    %c1_148 = arith.constant 1 : index
    %c0_149 = arith.constant 0 : index
    %c0_150 = arith.constant 0 : index
    %122 = vector.load %arg10[%c0_147, %c1_148, %c0_149, %c0_150] : memref<2x6x6x64xf32, #tpu.memory_space<vmem>>, vector<2x4x4x64xf32>
    %123 = vector.shape_cast %122 : vector<2x4x4x64xf32> to vector<32x64xf32>
    %c0_151 = arith.constant 0 : index
    %c192_152 = arith.constant 192 : index
    %124 = vector.load %arg8[%c0_151, %c192_152] : memref<128x576xf32, #tpu.memory_space<vmem>>, vector<32x64xf32>
    tpu.vector_store %arg8[%c0_151, %c192_152], %123 {strides = array<i32>} : memref<128x576xf32, #tpu.memory_space<vmem>>, vector<32x64xf32>,
    %c0_153 = arith.constant 0 : index
    %c1_154 = arith.constant 1 : index
    %c1_155 = arith.constant 1 : index
    %c0_156 = arith.constant 0 : index
    %125 = vector.load %arg10[%c0_153, %c1_154, %c1_155, %c0_156] : memref<2x6x6x64xf32, #tpu.memory_space<vmem>>, vector<2x4x4x64xf32>
    %126 = vector.shape_cast %125 : vector<2x4x4x64xf32> to vector<32x64xf32>
    %c0_157 = arith.constant 0 : index
    %c256_158 = arith.constant 256 : index
    %127 = vector.load %arg8[%c0_157, %c256_158] : memref<128x576xf32, #tpu.memory_space<vmem>>, vector<32x64xf32>
    tpu.vector_store %arg8[%c0_157, %c256_158], %126 {strides = array<i32>} : memref<128x576xf32, #tpu.memory_space<vmem>>, vector<32x64xf32>,
    %c0_159 = arith.constant 0 : index
    %c1_160 = arith.constant 1 : index
    %c2_161 = arith.constant 2 : index
    %c0_162 = arith.constant 0 : index
    %128 = vector.load %arg10[%c0_159, %c1_160, %c2_161, %c0_162] : memref<2x6x6x64xf32, #tpu.memory_space<vmem>>, vector<2x4x4x64xf32>
    %129 = vector.shape_cast %128 : vector<2x4x4x64xf32> to vector<32x64xf32>
    %c0_163 = arith.constant 0 : index
    %c320_164 = arith.constant 320 : index
    %130 = vector.load %arg8[%c0_163, %c320_164] : memref<128x576xf32, #tpu.memory_space<vmem>>, vector<32x64xf32>
    tpu.vector_store %arg8[%c0_163, %c320_164], %129 {strides = array<i32>} : memref<128x576xf32, #tpu.memory_space<vmem>>, vector<32x64xf32>,
    %c0_165 = arith.constant 0 : index
    %c2_166 = arith.constant 2 : index
    %c0_167 = arith.constant 0 : index
    %c0_168 = arith.constant 0 : index
    %131 = vector.load %arg10[%c0_165, %c2_166, %c0_167, %c0_168] : memref<2x6x6x64xf32, #tpu.memory_space<vmem>>, vector<2x4x4x64xf32>
    %132 = vector.shape_cast %131 : vector<2x4x4x64xf32> to vector<32x64xf32>
    %c0_169 = arith.constant 0 : index
    %c384_170 = arith.constant 384 : index
    %133 = vector.load %arg8[%c0_169, %c384_170] : memref<128x576xf32, #tpu.memory_space<vmem>>, vector<32x64xf32>
    tpu.vector_store %arg8[%c0_169, %c384_170], %132 {strides = array<i32>} : memref<128x576xf32, #tpu.memory_space<vmem>>, vector<32x64xf32>,
    %c0_171 = arith.constant 0 : index
    %c2_172 = arith.constant 2 : index
    %c1_173 = arith.constant 1 : index
    %c0_174 = arith.constant 0 : index
    %134 = vector.load %arg10[%c0_171, %c2_172, %c1_173, %c0_174] : memref<2x6x6x64xf32, #tpu.memory_space<vmem>>, vector<2x4x4x64xf32>
    %135 = vector.shape_cast %134 : vector<2x4x4x64xf32> to vector<32x64xf32>
    %c0_175 = arith.constant 0 : index
    %c448_176 = arith.constant 448 : index
    %136 = vector.load %arg8[%c0_175, %c448_176] : memref<128x576xf32, #tpu.memory_space<vmem>>, vector<32x64xf32>
    tpu.vector_store %arg8[%c0_175, %c448_176], %135 {strides = array<i32>} : memref<128x576xf32, #tpu.memory_space<vmem>>, vector<32x64xf32>,
    %c0_177 = arith.constant 0 : index
    %c2_178 = arith.constant 2 : index
    %c2_179 = arith.constant 2 : index
    %c0_180 = arith.constant 0 : index
    %137 = vector.load %arg10[%c0_177, %c2_178, %c2_179, %c0_180] : memref<2x6x6x64xf32, #tpu.memory_space<vmem>>, vector<2x4x4x64xf32>
    %138 = vector.shape_cast %137 : vector<2x4x4x64xf32> to vector<32x64xf32>
    %c0_181 = arith.constant 0 : index
    %c512_182 = arith.constant 512 : index
    %139 = vector.load %arg8[%c0_181, %c512_182] : memref<128x576xf32, #tpu.memory_space<vmem>>, vector<32x64xf32>
    tpu.vector_store %arg8[%c0_181, %c512_182], %138 {strides = array<i32>} : memref<128x576xf32, #tpu.memory_space<vmem>>, vector<32x64xf32>,
    %c0_183 = arith.constant 0 : index
    %c0_184 = arith.constant 0 : index
    %140 = vector.load %arg8[%c0_183, %c0_184] : memref<128x576xf32, #tpu.memory_space<vmem>>, vector<32x576xf32>
    %c0_185 = arith.constant 0 : index
    %c0_186 = arith.constant 0 : index
    %141 = vector.load %arg3[%c0_185, %c0_186] : memref<576x64xf32, #tpu.memory_space<vmem>>, vector<576x64xf32>
    %cst_187 = arith.constant dense<0.000000e+00> : vector<32x64xf32>
    %142 = tpu.matmul %140, %141, %cst_187 {dimension_numbers = #tpu.dot_dimension_numbers<[1], [0], [0], [1], [0, 0, 1, 1], [], []>} : vector<32x576xf32>, vector<576x64xf32>, vector<32x64xf32> -> vector<32x64xf32>
    %c0_188 = arith.constant 0 : index
    %c0_189 = arith.constant 0 : index
    %143 = vector.load %arg7[%c0_188, %c0_189] : memref<512x64xf32, #tpu.memory_space<vmem>>, vector<32x64xf32>
    tpu.vector_store %arg7[%c0_188, %c0_189], %142 {strides = array<i32>} : memref<512x64xf32, #tpu.memory_space<vmem>>, vector<32x64xf32>,
    %c0_190 = arith.constant 0 : index
    %c0_191 = arith.constant 0 : index
    %144 = vector.load %arg7[%c0_190, %c0_191] : memref<512x64xf32, #tpu.memory_space<vmem>>, vector<32x64xf32>
    %cst_192 = arith.constant dense<0.000000e+00> : vector<64xf32>
    %145 = vector.multi_reduction <add>, %144, %cst_192 [0] : vector<32x64xf32> to vector<64xf32>
    %146 = vector.shape_cast %145 : vector<64xf32> to vector<1x64xf32>
    %cst_193 = arith.constant 3.125000e-02 : f32
    %147 = vector.broadcast %cst_193 : f32 to vector<1x64xf32>
    %148 = arith.mulf %146, %147 : vector<1x64xf32>
    %149 = arith.mulf %144, %144 : vector<32x64xf32>
    %cst_194 = arith.constant dense<0.000000e+00> : vector<64xf32>
    %150 = vector.multi_reduction <add>, %149, %cst_194 [0] : vector<32x64xf32> to vector<64xf32>
    %151 = vector.shape_cast %150 : vector<64xf32> to vector<1x64xf32>
    %cst_195 = arith.constant 3.125000e-02 : f32
    %152 = vector.broadcast %cst_195 : f32 to vector<1x64xf32>
    %153 = arith.mulf %151, %152 : vector<1x64xf32>
    %154 = arith.mulf %148, %148 : vector<1x64xf32>
    %155 = arith.subf %153, %154 : vector<1x64xf32>
    %c4 = arith.constant 4 : index
    %c0_196 = arith.constant 0 : index
    %156 = vector.load %arg5[%c4, %c0_196] : memref<8x64xf32, #tpu.memory_space<vmem>>, vector<1x64xf32>
    %c5_197 = arith.constant 5 : index
    %c0_198 = arith.constant 0 : index
    %157 = vector.load %arg5[%c5_197, %c0_198] : memref<8x64xf32, #tpu.memory_space<vmem>>, vector<1x64xf32>
    %cst_199 = arith.constant 9.99999974E-6 : f32
    %158 = vector.broadcast %cst_199 : f32 to vector<1x64xf32>
    %159 = arith.addf %155, %158 : vector<1x64xf32>
    %160 = math.rsqrt %159 : vector<1x64xf32>
    %161 = arith.mulf %160, %156 : vector<1x64xf32>
    %162 = arith.mulf %148, %161 : vector<1x64xf32>
    %163 = arith.subf %157, %162 : vector<1x64xf32>
    %c0_200 = arith.constant 0 : index
    %c0_201 = arith.constant 0 : index
    %164 = vector.load %arg7[%c0_200, %c0_201] : memref<512x64xf32, #tpu.memory_space<vmem>>, vector<32x64xf32>
    %165 = vector.broadcast %161 : vector<1x64xf32> to vector<32x64xf32>
    %166 = arith.mulf %164, %165 : vector<32x64xf32>
    %167 = vector.broadcast %163 : vector<1x64xf32> to vector<32x64xf32>
    %168 = arith.addf %166, %167 : vector<32x64xf32>
    %169 = vector.shape_cast %168 : vector<32x64xf32> to vector<16x2x64xf32>
    %cst_202 = arith.constant dense<0xFF800000> : vector<16x64xf32>
    %170 = vector.multi_reduction <maximumf>, %169, %cst_202 [1] : vector<16x2x64xf32> to vector<16x64xf32>
    %171 = vector.shape_cast %170 : vector<16x64xf32> to vector<4x2x2x64xf32>
    %cst_203 = arith.constant dense<0xFF800000> : vector<4x2x64xf32>
    %172 = vector.multi_reduction <maximumf>, %171, %cst_203 [1] : vector<4x2x2x64xf32> to vector<4x2x64xf32>
    %cst_204 = arith.constant 0.000000e+00 : f32
    %173 = vector.broadcast %cst_204 : f32 to vector<4x2x64xf32>
    %174 = arith.maximumf %172, %173 : vector<4x2x64xf32>
    %175 = vector.shape_cast %174 : vector<4x2x64xf32> to vector<2x2x2x64xf32>
    %cst_205 = arith.constant 0.000000e+00 : f32
    %176 = vector.broadcast %cst_205 : f32 to vector<2x1x4x64xf32>
    %cst_206 = arith.constant 0.000000e+00 : f32
    %177 = vector.broadcast %cst_206 : f32 to vector<2x2x1x64xf32>
    %c0_207 = arith.constant 0 : index
    %c0_208 = arith.constant 0 : index
    %c0_209 = arith.constant 0 : index
    %c0_210 = arith.constant 0 : index
    %178 = vector.load %arg11[%c0_207, %c0_208, %c0_209, %c0_210] : memref<2x4x4x64xf32, #tpu.memory_space<vmem>>, vector<2x1x4x64xf32>
    tpu.vector_store %arg11[%c0_207, %c0_208, %c0_209, %c0_210], %176 {strides = array<i32>} : memref<2x4x4x64xf32, #tpu.memory_space<vmem>>, vector<2x1x4x64xf32>,
    %c0_211 = arith.constant 0 : index
    %c3_212 = arith.constant 3 : index
    %c0_213 = arith.constant 0 : index
    %c0_214 = arith.constant 0 : index
    %179 = vector.load %arg11[%c0_211, %c3_212, %c0_213, %c0_214] : memref<2x4x4x64xf32, #tpu.memory_space<vmem>>, vector<2x1x4x64xf32>
    tpu.vector_store %arg11[%c0_211, %c3_212, %c0_213, %c0_214], %176 {strides = array<i32>} : memref<2x4x4x64xf32, #tpu.memory_space<vmem>>, vector<2x1x4x64xf32>,
    %c0_215 = arith.constant 0 : index
    %c1_216 = arith.constant 1 : index
    %c0_217 = arith.constant 0 : index
    %c0_218 = arith.constant 0 : index
    %180 = vector.load %arg11[%c0_215, %c1_216, %c0_217, %c0_218] : memref<2x4x4x64xf32, #tpu.memory_space<vmem>>, vector<2x2x1x64xf32>
    tpu.vector_store %arg11[%c0_215, %c1_216, %c0_217, %c0_218], %177 {strides = array<i32>} : memref<2x4x4x64xf32, #tpu.memory_space<vmem>>, vector<2x2x1x64xf32>,
    %c0_219 = arith.constant 0 : index
    %c1_220 = arith.constant 1 : index
    %c3_221 = arith.constant 3 : index
    %c0_222 = arith.constant 0 : index
    %181 = vector.load %arg11[%c0_219, %c1_220, %c3_221, %c0_222] : memref<2x4x4x64xf32, #tpu.memory_space<vmem>>, vector<2x2x1x64xf32>
    tpu.vector_store %arg11[%c0_219, %c1_220, %c3_221, %c0_222], %177 {strides = array<i32>} : memref<2x4x4x64xf32, #tpu.memory_space<vmem>>, vector<2x2x1x64xf32>,
    %c0_223 = arith.constant 0 : index
    %c1_224 = arith.constant 1 : index
    %c1_225 = arith.constant 1 : index
    %c0_226 = arith.constant 0 : index
    %182 = vector.load %arg11[%c0_223, %c1_224, %c1_225, %c0_226] : memref<2x4x4x64xf32, #tpu.memory_space<vmem>>, vector<2x2x2x64xf32>
    tpu.vector_store %arg11[%c0_223, %c1_224, %c1_225, %c0_226], %175 {strides = array<i32>} : memref<2x4x4x64xf32, #tpu.memory_space<vmem>>, vector<2x2x2x64xf32>,
    %c0_227 = arith.constant 0 : index
    %c0_228 = arith.constant 0 : index
    %c0_229 = arith.constant 0 : index
    %c0_230 = arith.constant 0 : index
    %183 = vector.load %arg11[%c0_227, %c0_228, %c0_229, %c0_230] : memref<2x4x4x64xf32, #tpu.memory_space<vmem>>, vector<2x2x2x64xf32>
    %184 = vector.shape_cast %183 : vector<2x2x2x64xf32> to vector<8x64xf32>
    %c0_231 = arith.constant 0 : index
    %c0_232 = arith.constant 0 : index
    %185 = vector.load %arg8[%c0_231, %c0_232] : memref<128x576xf32, #tpu.memory_space<vmem>>, vector<8x64xf32>
    tpu.vector_store %arg8[%c0_231, %c0_232], %184 {strides = array<i32>} : memref<128x576xf32, #tpu.memory_space<vmem>>, vector<8x64xf32>,
    %c0_233 = arith.constant 0 : index
    %c0_234 = arith.constant 0 : index
    %c1_235 = arith.constant 1 : index
    %c0_236 = arith.constant 0 : index
    %186 = vector.load %arg11[%c0_233, %c0_234, %c1_235, %c0_236] : memref<2x4x4x64xf32, #tpu.memory_space<vmem>>, vector<2x2x2x64xf32>
    %187 = vector.shape_cast %186 : vector<2x2x2x64xf32> to vector<8x64xf32>
    %c0_237 = arith.constant 0 : index
    %c64_238 = arith.constant 64 : index
    %188 = vector.load %arg8[%c0_237, %c64_238] : memref<128x576xf32, #tpu.memory_space<vmem>>, vector<8x64xf32>
    tpu.vector_store %arg8[%c0_237, %c64_238], %187 {strides = array<i32>} : memref<128x576xf32, #tpu.memory_space<vmem>>, vector<8x64xf32>,
    %c0_239 = arith.constant 0 : index
    %c0_240 = arith.constant 0 : index
    %c2_241 = arith.constant 2 : index
    %c0_242 = arith.constant 0 : index
    %189 = vector.load %arg11[%c0_239, %c0_240, %c2_241, %c0_242] : memref<2x4x4x64xf32, #tpu.memory_space<vmem>>, vector<2x2x2x64xf32>
    %190 = vector.shape_cast %189 : vector<2x2x2x64xf32> to vector<8x64xf32>
    %c0_243 = arith.constant 0 : index
    %c128_244 = arith.constant 128 : index
    %191 = vector.load %arg8[%c0_243, %c128_244] : memref<128x576xf32, #tpu.memory_space<vmem>>, vector<8x64xf32>
    tpu.vector_store %arg8[%c0_243, %c128_244], %190 {strides = array<i32>} : memref<128x576xf32, #tpu.memory_space<vmem>>, vector<8x64xf32>,
    %c0_245 = arith.constant 0 : index
    %c1_246 = arith.constant 1 : index
    %c0_247 = arith.constant 0 : index
    %c0_248 = arith.constant 0 : index
    %192 = vector.load %arg11[%c0_245, %c1_246, %c0_247, %c0_248] : memref<2x4x4x64xf32, #tpu.memory_space<vmem>>, vector<2x2x2x64xf32>
    %193 = vector.shape_cast %192 : vector<2x2x2x64xf32> to vector<8x64xf32>
    %c0_249 = arith.constant 0 : index
    %c192_250 = arith.constant 192 : index
    %194 = vector.load %arg8[%c0_249, %c192_250] : memref<128x576xf32, #tpu.memory_space<vmem>>, vector<8x64xf32>
    tpu.vector_store %arg8[%c0_249, %c192_250], %193 {strides = array<i32>} : memref<128x576xf32, #tpu.memory_space<vmem>>, vector<8x64xf32>,
    %c0_251 = arith.constant 0 : index
    %c1_252 = arith.constant 1 : index
    %c1_253 = arith.constant 1 : index
    %c0_254 = arith.constant 0 : index
    %195 = vector.load %arg11[%c0_251, %c1_252, %c1_253, %c0_254] : memref<2x4x4x64xf32, #tpu.memory_space<vmem>>, vector<2x2x2x64xf32>
    %196 = vector.shape_cast %195 : vector<2x2x2x64xf32> to vector<8x64xf32>
    %c0_255 = arith.constant 0 : index
    %c256_256 = arith.constant 256 : index
    %197 = vector.load %arg8[%c0_255, %c256_256] : memref<128x576xf32, #tpu.memory_space<vmem>>, vector<8x64xf32>
    tpu.vector_store %arg8[%c0_255, %c256_256], %196 {strides = array<i32>} : memref<128x576xf32, #tpu.memory_space<vmem>>, vector<8x64xf32>,
    %c0_257 = arith.constant 0 : index
    %c1_258 = arith.constant 1 : index
    %c2_259 = arith.constant 2 : index
    %c0_260 = arith.constant 0 : index
    %198 = vector.load %arg11[%c0_257, %c1_258, %c2_259, %c0_260] : memref<2x4x4x64xf32, #tpu.memory_space<vmem>>, vector<2x2x2x64xf32>
    %199 = vector.shape_cast %198 : vector<2x2x2x64xf32> to vector<8x64xf32>
    %c0_261 = arith.constant 0 : index
    %c320_262 = arith.constant 320 : index
    %200 = vector.load %arg8[%c0_261, %c320_262] : memref<128x576xf32, #tpu.memory_space<vmem>>, vector<8x64xf32>
    tpu.vector_store %arg8[%c0_261, %c320_262], %199 {strides = array<i32>} : memref<128x576xf32, #tpu.memory_space<vmem>>, vector<8x64xf32>,
    %c0_263 = arith.constant 0 : index
    %c2_264 = arith.constant 2 : index
    %c0_265 = arith.constant 0 : index
    %c0_266 = arith.constant 0 : index
    %201 = vector.load %arg11[%c0_263, %c2_264, %c0_265, %c0_266] : memref<2x4x4x64xf32, #tpu.memory_space<vmem>>, vector<2x2x2x64xf32>
    %202 = vector.shape_cast %201 : vector<2x2x2x64xf32> to vector<8x64xf32>
    %c0_267 = arith.constant 0 : index
    %c384_268 = arith.constant 384 : index
    %203 = vector.load %arg8[%c0_267, %c384_268] : memref<128x576xf32, #tpu.memory_space<vmem>>, vector<8x64xf32>
    tpu.vector_store %arg8[%c0_267, %c384_268], %202 {strides = array<i32>} : memref<128x576xf32, #tpu.memory_space<vmem>>, vector<8x64xf32>,
    %c0_269 = arith.constant 0 : index
    %c2_270 = arith.constant 2 : index
    %c1_271 = arith.constant 1 : index
    %c0_272 = arith.constant 0 : index
    %204 = vector.load %arg11[%c0_269, %c2_270, %c1_271, %c0_272] : memref<2x4x4x64xf32, #tpu.memory_space<vmem>>, vector<2x2x2x64xf32>
    %205 = vector.shape_cast %204 : vector<2x2x2x64xf32> to vector<8x64xf32>
    %c0_273 = arith.constant 0 : index
    %c448_274 = arith.constant 448 : index
    %206 = vector.load %arg8[%c0_273, %c448_274] : memref<128x576xf32, #tpu.memory_space<vmem>>, vector<8x64xf32>
    tpu.vector_store %arg8[%c0_273, %c448_274], %205 {strides = array<i32>} : memref<128x576xf32, #tpu.memory_space<vmem>>, vector<8x64xf32>,
    %c0_275 = arith.constant 0 : index
    %c2_276 = arith.constant 2 : index
    %c2_277 = arith.constant 2 : index
    %c0_278 = arith.constant 0 : index
    %207 = vector.load %arg11[%c0_275, %c2_276, %c2_277, %c0_278] : memref<2x4x4x64xf32, #tpu.memory_space<vmem>>, vector<2x2x2x64xf32>
    %208 = vector.shape_cast %207 : vector<2x2x2x64xf32> to vector<8x64xf32>
    %c0_279 = arith.constant 0 : index
    %c512_280 = arith.constant 512 : index
    %209 = vector.load %arg8[%c0_279, %c512_280] : memref<128x576xf32, #tpu.memory_space<vmem>>, vector<8x64xf32>
    tpu.vector_store %arg8[%c0_279, %c512_280], %208 {strides = array<i32>} : memref<128x576xf32, #tpu.memory_space<vmem>>, vector<8x64xf32>,
    %c0_281 = arith.constant 0 : index
    %c0_282 = arith.constant 0 : index
    %210 = vector.load %arg8[%c0_281, %c0_282] : memref<128x576xf32, #tpu.memory_space<vmem>>, vector<8x576xf32>
    %c0_283 = arith.constant 0 : index
    %c0_284 = arith.constant 0 : index
    %211 = vector.load %arg4[%c0_283, %c0_284] : memref<576x64xf32, #tpu.memory_space<vmem>>, vector<576x64xf32>
    %cst_285 = arith.constant dense<0.000000e+00> : vector<8x64xf32>
    %212 = tpu.matmul %210, %211, %cst_285 {dimension_numbers = #tpu.dot_dimension_numbers<[1], [0], [0], [1], [0, 0, 1, 1], [], []>} : vector<8x576xf32>, vector<576x64xf32>, vector<8x64xf32> -> vector<8x64xf32>
    %c0_286 = arith.constant 0 : index
    %c0_287 = arith.constant 0 : index
    %213 = vector.load %arg7[%c0_286, %c0_287] : memref<512x64xf32, #tpu.memory_space<vmem>>, vector<8x64xf32>
    tpu.vector_store %arg7[%c0_286, %c0_287], %212 {strides = array<i32>} : memref<512x64xf32, #tpu.memory_space<vmem>>, vector<8x64xf32>,
    %c0_288 = arith.constant 0 : index
    %c0_289 = arith.constant 0 : index
    %214 = vector.load %arg7[%c0_288, %c0_289] : memref<512x64xf32, #tpu.memory_space<vmem>>, vector<8x64xf32>
    %cst_290 = arith.constant dense<0.000000e+00> : vector<64xf32>
    %215 = vector.multi_reduction <add>, %214, %cst_290 [0] : vector<8x64xf32> to vector<64xf32>
    %216 = vector.shape_cast %215 : vector<64xf32> to vector<1x64xf32>
    %cst_291 = arith.constant 1.250000e-01 : f32
    %217 = vector.broadcast %cst_291 : f32 to vector<1x64xf32>
    %218 = arith.mulf %216, %217 : vector<1x64xf32>
    %219 = arith.mulf %214, %214 : vector<8x64xf32>
    %cst_292 = arith.constant dense<0.000000e+00> : vector<64xf32>
    %220 = vector.multi_reduction <add>, %219, %cst_292 [0] : vector<8x64xf32> to vector<64xf32>
    %221 = vector.shape_cast %220 : vector<64xf32> to vector<1x64xf32>
    %cst_293 = arith.constant 1.250000e-01 : f32
    %222 = vector.broadcast %cst_293 : f32 to vector<1x64xf32>
    %223 = arith.mulf %221, %222 : vector<1x64xf32>
    %224 = arith.mulf %218, %218 : vector<1x64xf32>
    %225 = arith.subf %223, %224 : vector<1x64xf32>
    %c6 = arith.constant 6 : index
    %c0_294 = arith.constant 0 : index
    %226 = vector.load %arg5[%c6, %c0_294] : memref<8x64xf32, #tpu.memory_space<vmem>>, vector<1x64xf32>
    %c7 = arith.constant 7 : index
    %c0_295 = arith.constant 0 : index
    %227 = vector.load %arg5[%c7, %c0_295] : memref<8x64xf32, #tpu.memory_space<vmem>>, vector<1x64xf32>
    %cst_296 = arith.constant 9.99999974E-6 : f32
    %228 = vector.broadcast %cst_296 : f32 to vector<1x64xf32>
    %229 = arith.addf %225, %228 : vector<1x64xf32>
    %230 = math.rsqrt %229 : vector<1x64xf32>
    %231 = arith.mulf %230, %226 : vector<1x64xf32>
    %232 = arith.mulf %218, %231 : vector<1x64xf32>
    %233 = arith.subf %227, %232 : vector<1x64xf32>
    %c0_297 = arith.constant 0 : index
    %c0_298 = arith.constant 0 : index
    %234 = vector.load %arg7[%c0_297, %c0_298] : memref<512x64xf32, #tpu.memory_space<vmem>>, vector<8x64xf32>
    %235 = vector.broadcast %231 : vector<1x64xf32> to vector<8x64xf32>
    %236 = arith.mulf %234, %235 : vector<8x64xf32>
    %237 = vector.broadcast %233 : vector<1x64xf32> to vector<8x64xf32>
    %238 = arith.addf %236, %237 : vector<8x64xf32>
    %239 = vector.shape_cast %238 : vector<8x64xf32> to vector<4x2x64xf32>
    %cst_299 = arith.constant dense<0xFF800000> : vector<4x64xf32>
    %240 = vector.multi_reduction <maximumf>, %239, %cst_299 [1] : vector<4x2x64xf32> to vector<4x64xf32>
    %241 = vector.shape_cast %240 : vector<4x64xf32> to vector<2x2x1x64xf32>
    %cst_300 = arith.constant dense<0xFF800000> : vector<2x1x64xf32>
    %242 = vector.multi_reduction <maximumf>, %241, %cst_300 [1] : vector<2x2x1x64xf32> to vector<2x1x64xf32>
    %cst_301 = arith.constant 0.000000e+00 : f32
    %243 = vector.broadcast %cst_301 : f32 to vector<2x1x64xf32>
    %244 = arith.maximumf %242, %243 : vector<2x1x64xf32>
    %245 = vector.shape_cast %244 : vector<2x1x64xf32> to vector<2x1x1x64xf32>
    %246 = vector.shape_cast %245 : vector<2x1x1x64xf32> to vector<2x1x64xf32>
    %cst_302 = arith.constant dense<0.000000e+00> : vector<2x64xf32>
    %247 = vector.multi_reduction <add>, %246, %cst_302 [1] : vector<2x1x64xf32> to vector<2x64xf32>
    %cst_303 = arith.constant 1.000000e+00 : f32
    %248 = vector.broadcast %cst_303 : f32 to vector<2x64xf32>
    %249 = arith.mulf %247, %248 : vector<2x64xf32>
    %c0_304 = arith.constant 0 : index
    %c0_305 = arith.constant 0 : index
    %250 = vector.load %arg6[%c0_304, %c0_305] : memref<2x64xf32, #tpu.memory_space<vmem>>, vector<2x64xf32>
    tpu.vector_store %arg6[%c0_304, %c0_305], %249 {strides = array<i32>} : memref<2x64xf32, #tpu.memory_space<vmem>>, vector<2x64xf32>,
    return
  }
}

</mosaic_0001>

<llo_original>
// kernel: conv4_forward.1
$region0: #{conv4_forward.1}
  #allocation0 [shape = 'u32[]', space=smem, size = 0x4, offset = 0x4, fixed_abs, tag = 'smem constant byte address 0x4 - core index']
  #allocation1 [shape = 'u32[72,128]{1,0:T(1,128)}', space=vmem, size = 0x9000, scoped, tag = 'internal scratch']
  #allocation2 [shape = 'f32[512,64]{1,0:T(8,128)}', space=vmem, size = 0x40000, scoped, tag = 'scratch operand']
  #allocation3 [shape = 'f32[128,576]{1,0:T(8,128)}', space=vmem, size = 0x50000, scoped, tag = 'scratch operand']
  #allocation4 [shape = 'f32[2,10,10,64]{3,2,1,0:T(8,128)}', space=vmem, size = 0x28000, scoped, tag = 'scratch operand']
  #allocation5 [shape = 'f32[2,6,6,64]{3,2,1,0:T(8,128)}', space=vmem, size = 0xc000, scoped, tag = 'scratch operand']
  #allocation6 [shape = 'f32[2,4,4,64]{3,2,1,0:T(4,128)}', space=vmem, size = 0x4000, scoped, tag = 'scratch operand']
  %s0 = inlined_call_operand.vmem [shape: f32[512,32], index: 0, kind: input, shape index: {}]
  %s1 = inlined_call_operand.vmem [shape: f32[32,64], index: 1, kind: input, shape index: {}]
  %s2 = inlined_call_operand.vmem [shape: f32[576,64], index: 2, kind: input, shape index: {}]
  %s3 = inlined_call_operand.vmem [shape: f32[576,64], index: 3, kind: input, shape index: {}]
  %s4 = inlined_call_operand.vmem [shape: f32[576,64], index: 4, kind: input, shape index: {}]
  %s5 = inlined_call_operand.vmem [shape: f32[8,64], index: 5, kind: input, shape index: {}]
  %s6 = inlined_call_operand.hbm [shape: f32[2,64], index: 6, kind: output, shape index: {}]
  %s7 = sld [smem:[#allocation0]]
  $region34: #{conv4_forward.1} parent=0
    _
  %s9 = ssub.s32 1, %s7
  %s10 = scalar_select 0, %s9, %s7
  $region1: #{conv4_forward.1} parent=0
    #allocation7 [shape = 'u8[1024]{0}', space=vmem, size = 0x400, scoped, tag = 'output window, operand 0, single buffered']
    #allocation8 [shape = 's32[1]{0}', space=sflag, size = 0x4, scoped, tag = 'scoped memory for conv4_forward.1']
    %11 = vsyncpa [#allocation8], 0
    // Predicated region
    $region2: #{conv4_forward.1} parent=1 // pred_check
      _
    $region3: #{conv4_forward.1} parent=1 // pred_check_branch
      %13 = sbr.rel (0) target = $region5
    $region4: #{conv4_forward.1} parent=1 // pred_region
      _
    $region5: #{conv4_forward.1} parent=1 // pred_fallthru
      _
    // Predicated region
    $region6: #{conv4_forward.1} parent=1 // pred_check
      _
    $region7: #{conv4_forward.1} parent=1 // pred_check_branch
      %15 = sbr.rel (0) target = $region9
    $region8: #{conv4_forward.1} parent=1 // pred_region
      _
    $region9: #{conv4_forward.1} parent=1 // pred_fallthru
      _
    // Predicated region
    $region10: #{conv4_forward.1} parent=1 // pred_check
      _
    $region11: #{conv4_forward.1} parent=1 // pred_check_branch
      %17 = sbr.rel (0) target = $region13
    $region12: #{conv4_forward.1} parent=1 // pred_region
      _
    $region13: #{conv4_forward.1} parent=1 // pred_fallthru
      _
    // Predicated region
    $region14: #{conv4_forward.1} parent=1 // pred_check
      _
    $region15: #{conv4_forward.1} parent=1 // pred_check_branch
      %19 = sbr.rel (0) target = $region17
    $region16: #{conv4_forward.1} parent=1 // pred_region
      _
    $region17: #{conv4_forward.1} parent=1 // pred_fallthru
      _
    // Predicated region
    $region18: #{conv4_forward.1} parent=1 // pred_check
      _
    $region19: #{conv4_forward.1} parent=1 // pred_check_branch
      %21 = sbr.rel (0) target = $region21
    $region20: #{conv4_forward.1} parent=1 // pred_region
      _
    $region21: #{conv4_forward.1} parent=1 // pred_fallthru
      _
    // Predicated region
    $region22: #{conv4_forward.1} parent=1 // pred_check
      _
    $region23: #{conv4_forward.1} parent=1 // pred_check_branch
      %23 = sbr.rel (0) target = $region25
    $region24: #{conv4_forward.1} parent=1 // pred_region
      _
    $region25: #{conv4_forward.1} parent=1 // pred_fallthru
      _
    %v24 = vld [vmem:[%s0] sm:$0xff]
    %v25 = vld [vmem:[%s0 + $0x8] sm:$0xff]
    %v26 = vld [vmem:[%s0 + $0x10] sm:$0xff]
    %v27 = vld [vmem:[%s0 + $0x18] sm:$0xff]
    %v28 = vld [vmem:[%s0 + $0x20] sm:$0xff]
    %v29 = vld [vmem:[%s0 + $0x28] sm:$0xff]
    %v30 = vld [vmem:[%s0 + $0x30] sm:$0xff]
    %v31 = vld [vmem:[%s0 + $0x38] sm:$0xff]
    %v32 = vld [vmem:[%s0 + $0x40] sm:$0xff]
    %v33 = vld [vmem:[%s0 + $0x48] sm:$0xff]
    %v34 = vld [vmem:[%s0 + $0x50] sm:$0xff]
    %v35 = vld [vmem:[%s0 + $0x58] sm:$0xff]
    %v36 = vld [vmem:[%s0 + $0x60] sm:$0xff]
    %v37 = vld [vmem:[%s0 + $0x68] sm:$0xff]
    %v38 = vld [vmem:[%s0 + $0x70] sm:$0xff]
    %v39 = vld [vmem:[%s0 + $0x78] sm:$0xff]
    %v40 = vld [vmem:[%s0 + $0x80] sm:$0xff]
    %v41 = vld [vmem:[%s0 + $0x88] sm:$0xff]
    %v42 = vld [vmem:[%s0 + $0x90] sm:$0xff]
    %v43 = vld [vmem:[%s0 + $0x98] sm:$0xff]
    %v44 = vld [vmem:[%s0 + $0xa0] sm:$0xff]
    %v45 = vld [vmem:[%s0 + $0xa8] sm:$0xff]
    %v46 = vld [vmem:[%s0 + $0xb0] sm:$0xff]
    %v47 = vld [vmem:[%s0 + $0xb8] sm:$0xff]
    %v48 = vld [vmem:[%s0 + $0xc0] sm:$0xff]
    %v49 = vld [vmem:[%s0 + $0xc8] sm:$0xff]
    %v50 = vld [vmem:[%s0 + $0xd0] sm:$0xff]
    %v51 = vld [vmem:[%s0 + $0xd8] sm:$0xff]
    %v52 = vld [vmem:[%s0 + $0xe0] sm:$0xff]
    %v53 = vld [vmem:[%s0 + $0xe8] sm:$0xff]
    %v54 = vld [vmem:[%s0 + $0xf0] sm:$0xff]
    %v55 = vld [vmem:[%s0 + $0xf8] sm:$0xff]
    %v56 = vld [vmem:[%s0 + $0x100] sm:$0xff]
    %v57 = vld [vmem:[%s0 + $0x108] sm:$0xff]
    %v58 = vld [vmem:[%s0 + $0x110] sm:$0xff]
    %v59 = vld [vmem:[%s0 + $0x118] sm:$0xff]
    %v60 = vld [vmem:[%s0 + $0x120] sm:$0xff]
    %v61 = vld [vmem:[%s0 + $0x128] sm:$0xff]
    %v62 = vld [vmem:[%s0 + $0x130] sm:$0xff]
    %v63 = vld [vmem:[%s0 + $0x138] sm:$0xff]
    %v64 = vld [vmem:[%s0 + $0x140] sm:$0xff]
    %v65 = vld [vmem:[%s0 + $0x148] sm:$0xff]
    %v66 = vld [vmem:[%s0 + $0x150] sm:$0xff]
    %v67 = vld [vmem:[%s0 + $0x158] sm:$0xff]
    %v68 = vld [vmem:[%s0 + $0x160] sm:$0xff]
    %v69 = vld [vmem:[%s0 + $0x168] sm:$0xff]
    %v70 = vld [vmem:[%s0 + $0x170] sm:$0xff]
    %v71 = vld [vmem:[%s0 + $0x178] sm:$0xff]
    %v72 = vld [vmem:[%s0 + $0x180] sm:$0xff]
    %v73 = vld [vmem:[%s0 + $0x188] sm:$0xff]
    %v74 = vld [vmem:[%s0 + $0x190] sm:$0xff]
    %v75 = vld [vmem:[%s0 + $0x198] sm:$0xff]
    %v76 = vld [vmem:[%s0 + $0x1a0] sm:$0xff]
    %v77 = vld [vmem:[%s0 + $0x1a8] sm:$0xff]
    %v78 = vld [vmem:[%s0 + $0x1b0] sm:$0xff]
    %v79 = vld [vmem:[%s0 + $0x1b8] sm:$0xff]
    %v80 = vld [vmem:[%s0 + $0x1c0] sm:$0xff]
    %v81 = vld [vmem:[%s0 + $0x1c8] sm:$0xff]
    %v82 = vld [vmem:[%s0 + $0x1d0] sm:$0xff]
    %v83 = vld [vmem:[%s0 + $0x1d8] sm:$0xff]
    %v84 = vld [vmem:[%s0 + $0x1e0] sm:$0xff]
    %v85 = vld [vmem:[%s0 + $0x1e8] sm:$0xff]
    %v86 = vld [vmem:[%s0 + $0x1f0] sm:$0xff]
    %v87 = vld [vmem:[%s0 + $0x1f8] sm:$0xff]
    %v88 = vld [vmem:[%s1] sm:$0xff]
    %v89 = vld [vmem:[%s1 + $0x8] sm:$0xff]
    %v90 = vld [vmem:[%s1 + $0x10] sm:$0xff]
    %v91 = vld [vmem:[%s1 + $0x18] sm:$0xff]
    %vm92 = vcmask 261120
    %v94 = vsel %vm92, %v24, 0
    %v97 = vsel %vm92, %v25, 0
    %v100 = vsel %vm92, %v26, 0
    %v103 = vsel %vm92, %v27, 0
    %v106 = vsel %vm92, %v28, 0
    %v109 = vsel %vm92, %v29, 0
    %v112 = vsel %vm92, %v30, 0
    %v115 = vsel %vm92, %v31, 0
    %v118 = vsel %vm92, %v32, 0
    %v121 = vsel %vm92, %v33, 0
    %v124 = vsel %vm92, %v34, 0
    %v127 = vsel %vm92, %v35, 0
    %v130 = vsel %vm92, %v36, 0
    %v133 = vsel %vm92, %v37, 0
    %v136 = vsel %vm92, %v38, 0
    %v139 = vsel %vm92, %v39, 0
    %v142 = vsel %vm92, %v40, 0
    %v145 = vsel %vm92, %v41, 0
    %v148 = vsel %vm92, %v42, 0
    %v151 = vsel %vm92, %v43, 0
    %v154 = vsel %vm92, %v44, 0
    %v157 = vsel %vm92, %v45, 0
    %v160 = vsel %vm92, %v46, 0
    %v163 = vsel %vm92, %v47, 0
    %v166 = vsel %vm92, %v48, 0
    %v169 = vsel %vm92, %v49, 0
    %v172 = vsel %vm92, %v50, 0
    %v175 = vsel %vm92, %v51, 0
    %v178 = vsel %vm92, %v52, 0
    %v181 = vsel %vm92, %v53, 0
    %v184 = vsel %vm92, %v54, 0
    %v187 = vsel %vm92, %v55, 0
    %v190 = vsel %vm92, %v56, 0
    %v193 = vsel %vm92, %v57, 0
    %v196 = vsel %vm92, %v58, 0
    %v199 = vsel %vm92, %v59, 0
    %v202 = vsel %vm92, %v60, 0
    %v205 = vsel %vm92, %v61, 0
    %v208 = vsel %vm92, %v62, 0
    %v211 = vsel %vm92, %v63, 0
    %v214 = vsel %vm92, %v64, 0
    %v217 = vsel %vm92, %v65, 0
    %v220 = vsel %vm92, %v66, 0
    %v223 = vsel %vm92, %v67, 0
    %v226 = vsel %vm92, %v68, 0
    %v229 = vsel %vm92, %v69, 0
    %v232 = vsel %vm92, %v70, 0
    %v235 = vsel %vm92, %v71, 0
    %v238 = vsel %vm92, %v72, 0
    %v241 = vsel %vm92, %v73, 0
    %v244 = vsel %vm92, %v74, 0
    %v247 = vsel %vm92, %v75, 0
    %v250 = vsel %vm92, %v76, 0
    %v253 = vsel %vm92, %v77, 0
    %v256 = vsel %vm92, %v78, 0
    %v259 = vsel %vm92, %v79, 0
    %v262 = vsel %vm92, %v80, 0
    %v265 = vsel %vm92, %v81, 0
    %v268 = vsel %vm92, %v82, 0
    %v271 = vsel %vm92, %v83, 0
    %v274 = vsel %vm92, %v84, 0
    %v277 = vsel %vm92, %v85, 0
    %v280 = vsel %vm92, %v86, 0
    %v283 = vsel %vm92, %v87, 0
    %285 = vmatpush.msra.mxu0 0.0
    %286 = vmatpush.msra.mxu0 0.0
    %287 = vmatpush.msra.mxu0 0.0
    %288 = vmatpush.msra.mxu0 0.0
    %289 = vmatpush.msra.mxu0 0.0
    %290 = vmatpush.msra.mxu0 0.0
    %291 = vmatpush.msra.mxu0 0.0
    %292 = vmatpush.msra.mxu0 0.0
    %293 = vmatpush.msra.mxu0 0.0
    %294 = vmatpush.msra.mxu0 0.0
    %295 = vmatpush.msra.mxu0 0.0
    %296 = vmatpush.msra.mxu0 0.0
    %297 = vmatpush.msra.mxu0 %v91
    %298 = vmatpush.msra.mxu0 %v90
    %299 = vmatpush.msra.mxu0 %v89
    %300 = vmatpush.msra.mxu0 %v88
    %301 = vmatmul.f32.gmra.mxu0 %v94
    %v302 = vpop.f32.mrf.mxu0
    %v303 = vadd.f32 0.0, %v302
    %304 = vmatmul.f32.gmra.mxu0 %v97
    %v305 = vpop.f32.mrf.mxu0
    %v306 = vadd.f32 0.0, %v305
    %307 = vmatmul.f32.gmra.mxu0 %v100
    %v308 = vpop.f32.mrf.mxu0
    %v309 = vadd.f32 0.0, %v308
    %310 = vmatmul.f32.gmra.mxu0 %v103
    %v311 = vpop.f32.mrf.mxu0
    %v312 = vadd.f32 0.0, %v311
    %313 = vmatmul.f32.gmra.mxu0 %v106
    %v314 = vpop.f32.mrf.mxu0
    %v315 = vadd.f32 0.0, %v314
    %316 = vmatmul.f32.gmra.mxu0 %v109
    %v317 = vpop.f32.mrf.mxu0
    %v318 = vadd.f32 0.0, %v317
    %319 = vmatmul.f32.gmra.mxu0 %v112
    %v320 = vpop.f32.mrf.mxu0
    %v321 = vadd.f32 0.0, %v320
    %322 = vmatmul.f32.gmra.mxu0 %v115
    %v323 = vpop.f32.mrf.mxu0
    %v324 = vadd.f32 0.0, %v323
    %325 = vmatmul.f32.gmra.mxu0 %v118
    %v326 = vpop.f32.mrf.mxu0
    %v327 = vadd.f32 0.0, %v326
    %328 = vmatmul.f32.gmra.mxu0 %v121
    %v329 = vpop.f32.mrf.mxu0
    %v330 = vadd.f32 0.0, %v329
    %331 = vmatmul.f32.gmra.mxu0 %v124
    %v332 = vpop.f32.mrf.mxu0
    %v333 = vadd.f32 0.0, %v332
    %334 = vmatmul.f32.gmra.mxu0 %v127
    %v335 = vpop.f32.mrf.mxu0
    %v336 = vadd.f32 0.0, %v335
    %337 = vmatmul.f32.gmra.mxu0 %v130
    %v338 = vpop.f32.mrf.mxu0
    %v339 = vadd.f32 0.0, %v338
    %340 = vmatmul.f32.gmra.mxu0 %v133
    %v341 = vpop.f32.mrf.mxu0
    %v342 = vadd.f32 0.0, %v341
    %343 = vmatmul.f32.gmra.mxu0 %v136
    %v344 = vpop.f32.mrf.mxu0
    %v345 = vadd.f32 0.0, %v344
    %346 = vmatmul.f32.gmra.mxu0 %v139
    %v347 = vpop.f32.mrf.mxu0
    %v348 = vadd.f32 0.0, %v347
    %349 = vmatmul.f32.gmra.mxu0 %v142
    %v350 = vpop.f32.mrf.mxu0
    %v351 = vadd.f32 0.0, %v350
    %352 = vmatmul.f32.gmra.mxu0 %v145
    %v353 = vpop.f32.mrf.mxu0
    %v354 = vadd.f32 0.0, %v353
    %355 = vmatmul.f32.gmra.mxu0 %v148
    %v356 = vpop.f32.mrf.mxu0
    %v357 = vadd.f32 0.0, %v356
    %358 = vmatmul.f32.gmra.mxu0 %v151
    %v359 = vpop.f32.mrf.mxu0
    %v360 = vadd.f32 0.0, %v359
    %361 = vmatmul.f32.gmra.mxu0 %v154
    %v362 = vpop.f32.mrf.mxu0
    %v363 = vadd.f32 0.0, %v362
    %364 = vmatmul.f32.gmra.mxu0 %v157
    %v365 = vpop.f32.mrf.mxu0
    %v366 = vadd.f32 0.0, %v365
    %367 = vmatmul.f32.gmra.mxu0 %v160
    %v368 = vpop.f32.mrf.mxu0
    %v369 = vadd.f32 0.0, %v368
    %370 = vmatmul.f32.gmra.mxu0 %v163
    %v371 = vpop.f32.mrf.mxu0
    %v372 = vadd.f32 0.0, %v371
    %373 = vmatmul.f32.gmra.mxu0 %v166
    %v374 = vpop.f32.mrf.mxu0
    %v375 = vadd.f32 0.0, %v374
    %376 = vmatmul.f32.gmra.mxu0 %v169
    %v377 = vpop.f32.mrf.mxu0
    %v378 = vadd.f32 0.0, %v377
    %379 = vmatmul.f32.gmra.mxu0 %v172
    %v380 = vpop.f32.mrf.mxu0
    %v381 = vadd.f32 0.0, %v380
    %382 = vmatmul.f32.gmra.mxu0 %v175
    %v383 = vpop.f32.mrf.mxu0
    %v384 = vadd.f32 0.0, %v383
    %385 = vmatmul.f32.gmra.mxu0 %v178
    %v386 = vpop.f32.mrf.mxu0
    %v387 = vadd.f32 0.0, %v386
    %388 = vmatmul.f32.gmra.mxu0 %v181
    %v389 = vpop.f32.mrf.mxu0
    %v390 = vadd.f32 0.0, %v389
    %391 = vmatmul.f32.gmra.mxu0 %v184
    %v392 = vpop.f32.mrf.mxu0
    %v393 = vadd.f32 0.0, %v392
    %394 = vmatmul.f32.gmra.mxu0 %v187
    %v395 = vpop.f32.mrf.mxu0
    %v396 = vadd.f32 0.0, %v395
    %397 = vmatmul.f32.gmra.mxu0 %v190
    %v398 = vpop.f32.mrf.mxu0
    %v399 = vadd.f32 0.0, %v398
    %400 = vmatmul.f32.gmra.mxu0 %v193
    %v401 = vpop.f32.mrf.mxu0
    %v402 = vadd.f32 0.0, %v401
    %403 = vmatmul.f32.gmra.mxu0 %v196
    %v404 = vpop.f32.mrf.mxu0
    %v405 = vadd.f32 0.0, %v404
    %406 = vmatmul.f32.gmra.mxu0 %v199
    %v407 = vpop.f32.mrf.mxu0
    %v408 = vadd.f32 0.0, %v407
    %409 = vmatmul.f32.gmra.mxu0 %v202
    %v410 = vpop.f32.mrf.mxu0
    %v411 = vadd.f32 0.0, %v410
    %412 = vmatmul.f32.gmra.mxu0 %v205
    %v413 = vpop.f32.mrf.mxu0
    %v414 = vadd.f32 0.0, %v413
    %415 = vmatmul.f32.gmra.mxu0 %v208
    %v416 = vpop.f32.mrf.mxu0
    %v417 = vadd.f32 0.0, %v416
    %418 = vmatmul.f32.gmra.mxu0 %v211
    %v419 = vpop.f32.mrf.mxu0
    %v420 = vadd.f32 0.0, %v419
    %421 = vmatmul.f32.gmra.mxu0 %v214
    %v422 = vpop.f32.mrf.mxu0
    %v423 = vadd.f32 0.0, %v422
    %424 = vmatmul.f32.gmra.mxu0 %v217
    %v425 = vpop.f32.mrf.mxu0
    %v426 = vadd.f32 0.0, %v425
    %427 = vmatmul.f32.gmra.mxu0 %v220
    %v428 = vpop.f32.mrf.mxu0
    %v429 = vadd.f32 0.0, %v428
    %430 = vmatmul.f32.gmra.mxu0 %v223
    %v431 = vpop.f32.mrf.mxu0
    %v432 = vadd.f32 0.0, %v431
    %433 = vmatmul.f32.gmra.mxu0 %v226
    %v434 = vpop.f32.mrf.mxu0
    %v435 = vadd.f32 0.0, %v434
    %436 = vmatmul.f32.gmra.mxu0 %v229
    %v437 = vpop.f32.mrf.mxu0
    %v438 = vadd.f32 0.0, %v437
    %439 = vmatmul.f32.gmra.mxu0 %v232
    %v440 = vpop.f32.mrf.mxu0
    %v441 = vadd.f32 0.0, %v440
    %442 = vmatmul.f32.gmra.mxu0 %v235
    %v443 = vpop.f32.mrf.mxu0
    %v444 = vadd.f32 0.0, %v443
    %445 = vmatmul.f32.gmra.mxu0 %v238
    %v446 = vpop.f32.mrf.mxu0
    %v447 = vadd.f32 0.0, %v446
    %448 = vmatmul.f32.gmra.mxu0 %v241
    %v449 = vpop.f32.mrf.mxu0
    %v450 = vadd.f32 0.0, %v449
    %451 = vmatmul.f32.gmra.mxu0 %v244
    %v452 = vpop.f32.mrf.mxu0
    %v453 = vadd.f32 0.0, %v452
    %454 = vmatmul.f32.gmra.mxu0 %v247
    %v455 = vpop.f32.mrf.mxu0
    %v456 = vadd.f32 0.0, %v455
    %457 = vmatmul.f32.gmra.mxu0 %v250
    %v458 = vpop.f32.mrf.mxu0
    %v459 = vadd.f32 0.0, %v458
    %460 = vmatmul.f32.gmra.mxu0 %v253
    %v461 = vpop.f32.mrf.mxu0
    %v462 = vadd.f32 0.0, %v461
    %463 = vmatmul.f32.gmra.mxu0 %v256
    %v464 = vpop.f32.mrf.mxu0
    %v465 = vadd.f32 0.0, %v464
    %466 = vmatmul.f32.gmra.mxu0 %v259
    %v467 = vpop.f32.mrf.mxu0
    %v468 = vadd.f32 0.0, %v467
    %469 = vmatmul.f32.gmra.mxu0 %v262
    %v470 = vpop.f32.mrf.mxu0
    %v471 = vadd.f32 0.0, %v470
    %472 = vmatmul.f32.gmra.mxu0 %v265
    %v473 = vpop.f32.mrf.mxu0
    %v474 = vadd.f32 0.0, %v473
    %475 = vmatmul.f32.gmra.mxu0 %v268
    %v476 = vpop.f32.mrf.mxu0
    %v477 = vadd.f32 0.0, %v476
    %478 = vmatmul.f32.gmra.mxu0 %v271
    %v479 = vpop.f32.mrf.mxu0
    %v480 = vadd.f32 0.0, %v479
    %481 = vmatmul.f32.gmra.mxu0 %v274
    %v482 = vpop.f32.mrf.mxu0
    %v483 = vadd.f32 0.0, %v482
    %484 = vmatmul.f32.gmra.mxu0 %v277
    %v485 = vpop.f32.mrf.mxu0
    %v486 = vadd.f32 0.0, %v485
    %487 = vmatmul.f32.gmra.mxu0 %v280
    %v488 = vpop.f32.mrf.mxu0
    %v489 = vadd.f32 0.0, %v488
    %490 = vmatmul.f32.gmra.mxu0 %v283
    %v491 = vpop.f32.mrf.mxu0
    %v492 = vadd.f32 0.0, %v491
    %493 = vdwg.mxu0
    %vm494 = vcmask 523264
    %495 = vst.msk [vmem:[#allocation2] sm:$0xff] %vm494, %v303
    %496 = vst.msk [vmem:[#allocation2 + $0x8] sm:$0xff] %vm494, %v306
    %497 = vst.msk [vmem:[#allocation2 + $0x10] sm:$0xff] %vm494, %v309
    %498 = vst.msk [vmem:[#allocation2 + $0x18] sm:$0xff] %vm494, %v312
    %499 = vst.msk [vmem:[#allocation2 + $0x20] sm:$0xff] %vm494, %v315
    %500 = vst.msk [vmem:[#allocation2 + $0x28] sm:$0xff] %vm494, %v318
    %501 = vst.msk [vmem:[#allocation2 + $0x30] sm:$0xff] %vm494, %v321
    %502 = vst.msk [vmem:[#allocation2 + $0x38] sm:$0xff] %vm494, %v324
    %503 = vst.msk [vmem:[#allocation2 + $0x40] sm:$0xff] %vm494, %v327
    %504 = vst.msk [vmem:[#allocation2 + $0x48] sm:$0xff] %vm494, %v330
    %505 = vst.msk [vmem:[#allocation2 + $0x50] sm:$0xff] %vm494, %v333
    %506 = vst.msk [vmem:[#allocation2 + $0x58] sm:$0xff] %vm494, %v336
    %507 = vst.msk [vmem:[#allocation2 + $0x60] sm:$0xff] %vm494, %v339
    %508 = vst.msk [vmem:[#allocation2 + $0x68] sm:$0xff] %vm494, %v342
    %509 = vst.msk [vmem:[#allocation2 + $0x70] sm:$0xff] %vm494, %v345
    %510 = vst.msk [vmem:[#allocation2 + $0x78] sm:$0xff] %vm494, %v348
    %511 = vst.msk [vmem:[#allocation2 + $0x80] sm:$0xff] %vm494, %v351
    %512 = vst.msk [vmem:[#allocation2 + $0x88] sm:$0xff] %vm494, %v354
    %513 = vst.msk [vmem:[#allocation2 + $0x90] sm:$0xff] %vm494, %v357
    %514 = vst.msk [vmem:[#allocation2 + $0x98] sm:$0xff] %vm494, %v360
    %515 = vst.msk [vmem:[#allocation2 + $0xa0] sm:$0xff] %vm494, %v363
    %516 = vst.msk [vmem:[#allocation2 + $0xa8] sm:$0xff] %vm494, %v366
    %517 = vst.msk [vmem:[#allocation2 + $0xb0] sm:$0xff] %vm494, %v369
    %518 = vst.msk [vmem:[#allocation2 + $0xb8] sm:$0xff] %vm494, %v372
    %519 = vst.msk [vmem:[#allocation2 + $0xc0] sm:$0xff] %vm494, %v375
    %520 = vst.msk [vmem:[#allocation2 + $0xc8] sm:$0xff] %vm494, %v378
    %521 = vst.msk [vmem:[#allocation2 + $0xd0] sm:$0xff] %vm494, %v381
    %522 = vst.msk [vmem:[#allocation2 + $0xd8] sm:$0xff] %vm494, %v384
    %523 = vst.msk [vmem:[#allocation2 + $0xe0] sm:$0xff] %vm494, %v387
    %524 = vst.msk [vmem:[#allocation2 + $0xe8] sm:$0xff] %vm494, %v390
    %525 = vst.msk [vmem:[#allocation2 + $0xf0] sm:$0xff] %vm494, %v393
    %526 = vst.msk [vmem:[#allocation2 + $0xf8] sm:$0xff] %vm494, %v396
    %527 = vst.msk [vmem:[#allocation2 + $0x100] sm:$0xff] %vm494, %v399
    %528 = vst.msk [vmem:[#allocation2 + $0x108] sm:$0xff] %vm494, %v402
    %529 = vst.msk [vmem:[#allocation2 + $0x110] sm:$0xff] %vm494, %v405
    %530 = vst.msk [vmem:[#allocation2 + $0x118] sm:$0xff] %vm494, %v408
    %531 = vst.msk [vmem:[#allocation2 + $0x120] sm:$0xff] %vm494, %v411
    %532 = vst.msk [vmem:[#allocation2 + $0x128] sm:$0xff] %vm494, %v414
    %533 = vst.msk [vmem:[#allocation2 + $0x130] sm:$0xff] %vm494, %v417
    %534 = vst.msk [vmem:[#allocation2 + $0x138] sm:$0xff] %vm494, %v420
    %535 = vst.msk [vmem:[#allocation2 + $0x140] sm:$0xff] %vm494, %v423
    %536 = vst.msk [vmem:[#allocation2 + $0x148] sm:$0xff] %vm494, %v426
    %537 = vst.msk [vmem:[#allocation2 + $0x150] sm:$0xff] %vm494, %v429
    %538 = vst.msk [vmem:[#allocation2 + $0x158] sm:$0xff] %vm494, %v432
    %539 = vst.msk [vmem:[#allocation2 + $0x160] sm:$0xff] %vm494, %v435
    %540 = vst.msk [vmem:[#allocation2 + $0x168] sm:$0xff] %vm494, %v438
    %541 = vst.msk [vmem:[#allocation2 + $0x170] sm:$0xff] %vm494, %v441
    %542 = vst.msk [vmem:[#allocation2 + $0x178] sm:$0xff] %vm494, %v444
    %543 = vst.msk [vmem:[#allocation2 + $0x180] sm:$0xff] %vm494, %v447
    %544 = vst.msk [vmem:[#allocation2 + $0x188] sm:$0xff] %vm494, %v450
    %545 = vst.msk [vmem:[#allocation2 + $0x190] sm:$0xff] %vm494, %v453
    %546 = vst.msk [vmem:[#allocation2 + $0x198] sm:$0xff] %vm494, %v456
    %547 = vst.msk [vmem:[#allocation2 + $0x1a0] sm:$0xff] %vm494, %v459
    %548 = vst.msk [vmem:[#allocation2 + $0x1a8] sm:$0xff] %vm494, %v462
    %549 = vst.msk [vmem:[#allocation2 + $0x1b0] sm:$0xff] %vm494, %v465
    %550 = vst.msk [vmem:[#allocation2 + $0x1b8] sm:$0xff] %vm494, %v468
    %551 = vst.msk [vmem:[#allocation2 + $0x1c0] sm:$0xff] %vm494, %v471
    %552 = vst.msk [vmem:[#allocation2 + $0x1c8] sm:$0xff] %vm494, %v474
    %553 = vst.msk [vmem:[#allocation2 + $0x1d0] sm:$0xff] %vm494, %v477
    %554 = vst.msk [vmem:[#allocation2 + $0x1d8] sm:$0xff] %vm494, %v480
    %555 = vst.msk [vmem:[#allocation2 + $0x1e0] sm:$0xff] %vm494, %v483
    %556 = vst.msk [vmem:[#allocation2 + $0x1e8] sm:$0xff] %vm494, %v486
    %557 = vst.msk [vmem:[#allocation2 + $0x1f0] sm:$0xff] %vm494, %v489
    %558 = vst.msk [vmem:[#allocation2 + $0x1f8] sm:$0xff] %vm494, %v492
    %v559 = vld [vmem:[#allocation2] sm:$0xff]
    %v560 = vld [vmem:[#allocation2 + $0x8] sm:$0xff]
    %v561 = vld [vmem:[#allocation2 + $0x10] sm:$0xff]
    %v562 = vld [vmem:[#allocation2 + $0x18] sm:$0xff]
    %v563 = vld [vmem:[#allocation2 + $0x20] sm:$0xff]
    %v564 = vld [vmem:[#allocation2 + $0x28] sm:$0xff]
    %v565 = vld [vmem:[#allocation2 + $0x30] sm:$0xff]
    %v566 = vld [vmem:[#allocation2 + $0x38] sm:$0xff]
    %v567 = vld [vmem:[#allocation2 + $0x40] sm:$0xff]
    %v568 = vld [vmem:[#allocation2 + $0x48] sm:$0xff]
    %v569 = vld [vmem:[#allocation2 + $0x50] sm:$0xff]
    %v570 = vld [vmem:[#allocation2 + $0x58] sm:$0xff]
    %v571 = vld [vmem:[#allocation2 + $0x60] sm:$0xff]
    %v572 = vld [vmem:[#allocation2 + $0x68] sm:$0xff]
    %v573 = vld [vmem:[#allocation2 + $0x70] sm:$0xff]
    %v574 = vld [vmem:[#allocation2 + $0x78] sm:$0xff]
    %v575 = vld [vmem:[#allocation2 + $0x80] sm:$0xff]
    %v576 = vld [vmem:[#allocation2 + $0x88] sm:$0xff]
    %v577 = vld [vmem:[#allocation2 + $0x90] sm:$0xff]
    %v578 = vld [vmem:[#allocation2 + $0x98] sm:$0xff]
    %v579 = vld [vmem:[#allocation2 + $0xa0] sm:$0xff]
    %v580 = vld [vmem:[#allocation2 + $0xa8] sm:$0xff]
    %v581 = vld [vmem:[#allocation2 + $0xb0] sm:$0xff]
    %v582 = vld [vmem:[#allocation2 + $0xb8] sm:$0xff]
    %v583 = vld [vmem:[#allocation2 + $0xc0] sm:$0xff]
    %v584 = vld [vmem:[#allocation2 + $0xc8] sm:$0xff]
    %v585 = vld [vmem:[#allocation2 + $0xd0] sm:$0xff]
    %v586 = vld [vmem:[#allocation2 + $0xd8] sm:$0xff]
    %v587 = vld [vmem:[#allocation2 + $0xe0] sm:$0xff]
    %v588 = vld [vmem:[#allocation2 + $0xe8] sm:$0xff]
    %v589 = vld [vmem:[#allocation2 + $0xf0] sm:$0xff]
    %v590 = vld [vmem:[#allocation2 + $0xf8] sm:$0xff]
    %v591 = vld [vmem:[#allocation2 + $0x100] sm:$0xff]
    %v592 = vld [vmem:[#allocation2 + $0x108] sm:$0xff]
    %v593 = vld [vmem:[#allocation2 + $0x110] sm:$0xff]
    %v594 = vld [vmem:[#allocation2 + $0x118] sm:$0xff]
    %v595 = vld [vmem:[#allocation2 + $0x120] sm:$0xff]
    %v596 = vld [vmem:[#allocation2 + $0x128] sm:$0xff]
    %v597 = vld [vmem:[#allocation2 + $0x130] sm:$0xff]
    %v598 = vld [vmem:[#allocation2 + $0x138] sm:$0xff]
    %v599 = vld [vmem:[#allocation2 + $0x140] sm:$0xff]
    %v600 = vld [vmem:[#allocation2 + $0x148] sm:$0xff]
    %v601 = vld [vmem:[#allocation2 + $0x150] sm:$0xff]
    %v602 = vld [vmem:[#allocation2 + $0x158] sm:$0xff]
    %v603 = vld [vmem:[#allocation2 + $0x160] sm:$0xff]
    %v604 = vld [vmem:[#allocation2 + $0x168] sm:$0xff]
    %v605 = vld [vmem:[#allocation2 + $0x170] sm:$0xff]
    %v606 = vld [vmem:[#allocation2 + $0x178] sm:$0xff]
    %v607 = vld [vmem:[#allocation2 + $0x180] sm:$0xff]
    %v608 = vld [vmem:[#allocation2 + $0x188] sm:$0xff]
    %v609 = vld [vmem:[#allocation2 + $0x190] sm:$0xff]
    %v610 = vld [vmem:[#allocation2 + $0x198] sm:$0xff]
    %v611 = vld [vmem:[#allocation2 + $0x1a0] sm:$0xff]
    %v612 = vld [vmem:[#allocation2 + $0x1a8] sm:$0xff]
    %v613 = vld [vmem:[#allocation2 + $0x1b0] sm:$0xff]
    %v614 = vld [vmem:[#allocation2 + $0x1b8] sm:$0xff]
    %v615 = vld [vmem:[#allocation2 + $0x1c0] sm:$0xff]
    %v616 = vld [vmem:[#allocation2 + $0x1c8] sm:$0xff]
    %v617 = vld [vmem:[#allocation2 + $0x1d0] sm:$0xff]
    %v618 = vld [vmem:[#allocation2 + $0x1d8] sm:$0xff]
    %v619 = vld [vmem:[#allocation2 + $0x1e0] sm:$0xff]
    %v620 = vld [vmem:[#allocation2 + $0x1e8] sm:$0xff]
    %v621 = vld [vmem:[#allocation2 + $0x1f0] sm:$0xff]
    %v622 = vld [vmem:[#allocation2 + $0x1f8] sm:$0xff]
    %v623 = vsel %vm494, %v559, 0.0
    %v624 = vsel %vm494, %v560, 0.0
    %v625 = vadd.f32 %v623, %v624
    %v626 = vsel %vm494, %v561, 0.0
    %v627 = vadd.f32 %v625, %v626
    %v628 = vsel %vm494, %v562, 0.0
    %v629 = vadd.f32 %v627, %v628
    %v630 = vsel %vm494, %v563, 0.0
    %v631 = vadd.f32 %v629, %v630
    %v632 = vsel %vm494, %v564, 0.0
    %v633 = vadd.f32 %v631, %v632
    %v634 = vsel %vm494, %v565, 0.0
    %v635 = vadd.f32 %v633, %v634
    %v636 = vsel %vm494, %v566, 0.0
    %v637 = vadd.f32 %v635, %v636
    %v638 = vsel %vm494, %v567, 0.0
    %v639 = vadd.f32 %v637, %v638
    %v640 = vsel %vm494, %v568, 0.0
    %v641 = vadd.f32 %v639, %v640
    %v642 = vsel %vm494, %v569, 0.0
    %v643 = vadd.f32 %v641, %v642
    %v644 = vsel %vm494, %v570, 0.0
    %v645 = vadd.f32 %v643, %v644
    %v646 = vsel %vm494, %v571, 0.0
    %v647 = vadd.f32 %v645, %v646
    %v648 = vsel %vm494, %v572, 0.0
    %v649 = vadd.f32 %v647, %v648
    %v650 = vsel %vm494, %v573, 0.0
    %v651 = vadd.f32 %v649, %v650
    %v652 = vsel %vm494, %v574, 0.0
    %v653 = vadd.f32 %v651, %v652
    %v654 = vsel %vm494, %v575, 0.0
    %v655 = vadd.f32 %v653, %v654
    %v656 = vsel %vm494, %v576, 0.0
    %v657 = vadd.f32 %v655, %v656
    %v658 = vsel %vm494, %v577, 0.0
    %v659 = vadd.f32 %v657, %v658
    %v660 = vsel %vm494, %v578, 0.0
    %v661 = vadd.f32 %v659, %v660
    %v662 = vsel %vm494, %v579, 0.0
    %v663 = vadd.f32 %v661, %v662
    %v664 = vsel %vm494, %v580, 0.0
    %v665 = vadd.f32 %v663, %v664
    %v666 = vsel %vm494, %v581, 0.0
    %v667 = vadd.f32 %v665, %v666
    %v668 = vsel %vm494, %v582, 0.0
    %v669 = vadd.f32 %v667, %v668
    %v670 = vsel %vm494, %v583, 0.0
    %v671 = vadd.f32 %v669, %v670
    %v672 = vsel %vm494, %v584, 0.0
    %v673 = vadd.f32 %v671, %v672
    %v674 = vsel %vm494, %v585, 0.0
    %v675 = vadd.f32 %v673, %v674
    %v676 = vsel %vm494, %v586, 0.0
    %v677 = vadd.f32 %v675, %v676
    %v678 = vsel %vm494, %v587, 0.0
    %v679 = vadd.f32 %v677, %v678
    %v680 = vsel %vm494, %v588, 0.0
    %v681 = vadd.f32 %v679, %v680
    %v682 = vsel %vm494, %v589, 0.0
    %v683 = vadd.f32 %v681, %v682
    %v684 = vsel %vm494, %v590, 0.0
    %v685 = vadd.f32 %v683, %v684
    %v686 = vsel %vm494, %v591, 0.0
    %v687 = vadd.f32 %v685, %v686
    %v688 = vsel %vm494, %v592, 0.0
    %v689 = vadd.f32 %v687, %v688
    %v690 = vsel %vm494, %v593, 0.0
    %v691 = vadd.f32 %v689, %v690
    %v692 = vsel %vm494, %v594, 0.0
    %v693 = vadd.f32 %v691, %v692
    %v694 = vsel %vm494, %v595, 0.0
    %v695 = vadd.f32 %v693, %v694
    %v696 = vsel %vm494, %v596, 0.0
    %v697 = vadd.f32 %v695, %v696
    %v698 = vsel %vm494, %v597, 0.0
    %v699 = vadd.f32 %v697, %v698
    %v700 = vsel %vm494, %v598, 0.0
    %v701 = vadd.f32 %v699, %v700
    %v702 = vsel %vm494, %v599, 0.0
    %v703 = vadd.f32 %v701, %v702
    %v704 = vsel %vm494, %v600, 0.0
    %v705 = vadd.f32 %v703, %v704
    %v706 = vsel %vm494, %v601, 0.0
    %v707 = vadd.f32 %v705, %v706
    %v708 = vsel %vm494, %v602, 0.0
    %v709 = vadd.f32 %v707, %v708
    %v710 = vsel %vm494, %v603, 0.0
    %v711 = vadd.f32 %v709, %v710
    %v712 = vsel %vm494, %v604, 0.0
    %v713 = vadd.f32 %v711, %v712
    %v714 = vsel %vm494, %v605, 0.0
    %v715 = vadd.f32 %v713, %v714
    %v716 = vsel %vm494, %v606, 0.0
    %v717 = vadd.f32 %v715, %v716
    %v718 = vsel %vm494, %v607, 0.0
    %v719 = vadd.f32 %v717, %v718
    %v720 = vsel %vm494, %v608, 0.0
    %v721 = vadd.f32 %v719, %v720
    %v722 = vsel %vm494, %v609, 0.0
    %v723 = vadd.f32 %v721, %v722
    %v724 = vsel %vm494, %v610, 0.0
    %v725 = vadd.f32 %v723, %v724
    %v726 = vsel %vm494, %v611, 0.0
    %v727 = vadd.f32 %v725, %v726
    %v728 = vsel %vm494, %v612, 0.0
    %v729 = vadd.f32 %v727, %v728
    %v730 = vsel %vm494, %v613, 0.0
    %v731 = vadd.f32 %v729, %v730
    %v732 = vsel %vm494, %v614, 0.0
    %v733 = vadd.f32 %v731, %v732
    %v734 = vsel %vm494, %v615, 0.0
    %v735 = vadd.f32 %v733, %v734
    %v736 = vsel %vm494, %v616, 0.0
    %v737 = vadd.f32 %v735, %v736
    %v738 = vsel %vm494, %v617, 0.0
    %v739 = vadd.f32 %v737, %v738
    %v740 = vsel %vm494, %v618, 0.0
    %v741 = vadd.f32 %v739, %v740
    %v742 = vsel %vm494, %v619, 0.0
    %v743 = vadd.f32 %v741, %v742
    %v744 = vsel %vm494, %v620, 0.0
    %v745 = vadd.f32 %v743, %v744
    %v746 = vsel %vm494, %v621, 0.0
    %v747 = vadd.f32 %v745, %v746
    %v748 = vsel %vm494, %v622, 0.0
    %v749 = vadd.f32 %v747, %v748
    %v750 = vrot.slane %v749, 4
    %v751 = vadd.f32 %v749, %v750
    %v752 = vrot.slane %v751, 2
    %v753 = vadd.f32 %v751, %v752
    %v754 = vrot.slane %v753, 1
    %v755 = vadd.f32 %v753, %v754
    %v756 = vmul.f32 %v755, 0.001953125
    %v757 = vmul.f32 %v559, %v559
    %v758 = vmul.f32 %v560, %v560
    %v759 = vmul.f32 %v561, %v561
    %v760 = vmul.f32 %v562, %v562
    %v761 = vmul.f32 %v563, %v563
    %v762 = vmul.f32 %v564, %v564
    %v763 = vmul.f32 %v565, %v565
    %v764 = vmul.f32 %v566, %v566
    %v765 = vmul.f32 %v567, %v567
    %v766 = vmul.f32 %v568, %v568
    %v767 = vmul.f32 %v569, %v569
    %v768 = vmul.f32 %v570, %v570
    %v769 = vmul.f32 %v571, %v571
    %v770 = vmul.f32 %v572, %v572
    %v771 = vmul.f32 %v573, %v573
    %v772 = vmul.f32 %v574, %v574
    %v773 = vmul.f32 %v575, %v575
    %v774 = vmul.f32 %v576, %v576
    %v775 = vmul.f32 %v577, %v577
    %v776 = vmul.f32 %v578, %v578
    %v777 = vmul.f32 %v579, %v579
    %v778 = vmul.f32 %v580, %v580
    %v779 = vmul.f32 %v581, %v581
    %v780 = vmul.f32 %v582, %v582
    %v781 = vmul.f32 %v583, %v583
    %v782 = vmul.f32 %v584, %v584
    %v783 = vmul.f32 %v585, %v585
    %v784 = vmul.f32 %v586, %v586
    %v785 = vmul.f32 %v587, %v587
    %v786 = vmul.f32 %v588, %v588
    %v787 = vmul.f32 %v589, %v589
    %v788 = vmul.f32 %v590, %v590
    %v789 = vmul.f32 %v591, %v591
    %v790 = vmul.f32 %v592, %v592
    %v791 = vmul.f32 %v593, %v593
    %v792 = vmul.f32 %v594, %v594
    %v793 = vmul.f32 %v595, %v595
    %v794 = vmul.f32 %v596, %v596
    %v795 = vmul.f32 %v597, %v597
    %v796 = vmul.f32 %v598, %v598
    %v797 = vmul.f32 %v599, %v599
    %v798 = vmul.f32 %v600, %v600
    %v799 = vmul.f32 %v601, %v601
    %v800 = vmul.f32 %v602, %v602
    %v801 = vmul.f32 %v603, %v603
    %v802 = vmul.f32 %v604, %v604
    %v803 = vmul.f32 %v605, %v605
    %v804 = vmul.f32 %v606, %v606
    %v805 = vmul.f32 %v607, %v607
    %v806 = vmul.f32 %v608, %v608
    %v807 = vmul.f32 %v609, %v609
    %v808 = vmul.f32 %v610, %v610
    %v809 = vmul.f32 %v611, %v611
    %v810 = vmul.f32 %v612, %v612
    %v811 = vmul.f32 %v613, %v613
    %v812 = vmul.f32 %v614, %v614
    %v813 = vmul.f32 %v615, %v615
    %v814 = vmul.f32 %v616, %v616
    %v815 = vmul.f32 %v617, %v617
    %v816 = vmul.f32 %v618, %v618
    %v817 = vmul.f32 %v619, %v619
    %v818 = vmul.f32 %v620, %v620
    %v819 = vmul.f32 %v621, %v621
    %v820 = vmul.f32 %v622, %v622
    %v821 = vsel %vm494, %v757, 0.0
    %v822 = vsel %vm494, %v758, 0.0
    %v823 = vadd.f32 %v821, %v822
    %v824 = vsel %vm494, %v759, 0.0
    %v825 = vadd.f32 %v823, %v824
    %v826 = vsel %vm494, %v760, 0.0
    %v827 = vadd.f32 %v825, %v826
    %v828 = vsel %vm494, %v761, 0.0
    %v829 = vadd.f32 %v827, %v828
    %v830 = vsel %vm494, %v762, 0.0
    %v831 = vadd.f32 %v829, %v830
    %v832 = vsel %vm494, %v763, 0.0
    %v833 = vadd.f32 %v831, %v832
    %v834 = vsel %vm494, %v764, 0.0
    %v835 = vadd.f32 %v833, %v834
    %v836 = vsel %vm494, %v765, 0.0
    %v837 = vadd.f32 %v835, %v836
    %v838 = vsel %vm494, %v766, 0.0
    %v839 = vadd.f32 %v837, %v838
    %v840 = vsel %vm494, %v767, 0.0
    %v841 = vadd.f32 %v839, %v840
    %v842 = vsel %vm494, %v768, 0.0
    %v843 = vadd.f32 %v841, %v842
    %v844 = vsel %vm494, %v769, 0.0
    %v845 = vadd.f32 %v843, %v844
    %v846 = vsel %vm494, %v770, 0.0
    %v847 = vadd.f32 %v845, %v846
    %v848 = vsel %vm494, %v771, 0.0
    %v849 = vadd.f32 %v847, %v848
    %v850 = vsel %vm494, %v772, 0.0
    %v851 = vadd.f32 %v849, %v850
    %v852 = vsel %vm494, %v773, 0.0
    %v853 = vadd.f32 %v851, %v852
    %v854 = vsel %vm494, %v774, 0.0
    %v855 = vadd.f32 %v853, %v854
    %v856 = vsel %vm494, %v775, 0.0
    %v857 = vadd.f32 %v855, %v856
    %v858 = vsel %vm494, %v776, 0.0
    %v859 = vadd.f32 %v857, %v858
    %v860 = vsel %vm494, %v777, 0.0
    %v861 = vadd.f32 %v859, %v860
    %v862 = vsel %vm494, %v778, 0.0
    %v863 = vadd.f32 %v861, %v862
    %v864 = vsel %vm494, %v779, 0.0
    %v865 = vadd.f32 %v863, %v864
    %v866 = vsel %vm494, %v780, 0.0
    %v867 = vadd.f32 %v865, %v866
    %v868 = vsel %vm494, %v781, 0.0
    %v869 = vadd.f32 %v867, %v868
    %v870 = vsel %vm494, %v782, 0.0
    %v871 = vadd.f32 %v869, %v870
    %v872 = vsel %vm494, %v783, 0.0
    %v873 = vadd.f32 %v871, %v872
    %v874 = vsel %vm494, %v784, 0.0
    %v875 = vadd.f32 %v873, %v874
    %v876 = vsel %vm494, %v785, 0.0
    %v877 = vadd.f32 %v875, %v876
    %v878 = vsel %vm494, %v786, 0.0
    %v879 = vadd.f32 %v877, %v878
    %v880 = vsel %vm494, %v787, 0.0
    %v881 = vadd.f32 %v879, %v880
    %v882 = vsel %vm494, %v788, 0.0
    %v883 = vadd.f32 %v881, %v882
    %v884 = vsel %vm494, %v789, 0.0
    %v885 = vadd.f32 %v883, %v884
    %v886 = vsel %vm494, %v790, 0.0
    %v887 = vadd.f32 %v885, %v886
    %v888 = vsel %vm494, %v791, 0.0
    %v889 = vadd.f32 %v887, %v888
    %v890 = vsel %vm494, %v792, 0.0
    %v891 = vadd.f32 %v889, %v890
    %v892 = vsel %vm494, %v793, 0.0
    %v893 = vadd.f32 %v891, %v892
    %v894 = vsel %vm494, %v794, 0.0
    %v895 = vadd.f32 %v893, %v894
    %v896 = vsel %vm494, %v795, 0.0
    %v897 = vadd.f32 %v895, %v896
    %v898 = vsel %vm494, %v796, 0.0
    %v899 = vadd.f32 %v897, %v898
    %v900 = vsel %vm494, %v797, 0.0
    %v901 = vadd.f32 %v899, %v900
    %v902 = vsel %vm494, %v798, 0.0
    %v903 = vadd.f32 %v901, %v902
    %v904 = vsel %vm494, %v799, 0.0
    %v905 = vadd.f32 %v903, %v904
    %v906 = vsel %vm494, %v800, 0.0
    %v907 = vadd.f32 %v905, %v906
    %v908 = vsel %vm494, %v801, 0.0
    %v909 = vadd.f32 %v907, %v908
    %v910 = vsel %vm494, %v802, 0.0
    %v911 = vadd.f32 %v909, %v910
    %v912 = vsel %vm494, %v803, 0.0
    %v913 = vadd.f32 %v911, %v912
    %v914 = vsel %vm494, %v804, 0.0
    %v915 = vadd.f32 %v913, %v914
    %v916 = vsel %vm494, %v805, 0.0
    %v917 = vadd.f32 %v915, %v916
    %v918 = vsel %vm494, %v806, 0.0
    %v919 = vadd.f32 %v917, %v918
    %v920 = vsel %vm494, %v807, 0.0
    %v921 = vadd.f32 %v919, %v920
    %v922 = vsel %vm494, %v808, 0.0
    %v923 = vadd.f32 %v921, %v922
    %v924 = vsel %vm494, %v809, 0.0
    %v925 = vadd.f32 %v923, %v924
    %v926 = vsel %vm494, %v810, 0.0
    %v927 = vadd.f32 %v925, %v926
    %v928 = vsel %vm494, %v811, 0.0
    %v929 = vadd.f32 %v927, %v928
    %v930 = vsel %vm494, %v812, 0.0
    %v931 = vadd.f32 %v929, %v930
    %v932 = vsel %vm494, %v813, 0.0
    %v933 = vadd.f32 %v931, %v932
    %v934 = vsel %vm494, %v814, 0.0
    %v935 = vadd.f32 %v933, %v934
    %v936 = vsel %vm494, %v815, 0.0
    %v937 = vadd.f32 %v935, %v936
    %v938 = vsel %vm494, %v816, 0.0
    %v939 = vadd.f32 %v937, %v938
    %v940 = vsel %vm494, %v817, 0.0
    %v941 = vadd.f32 %v939, %v940
    %v942 = vsel %vm494, %v818, 0.0
    %v943 = vadd.f32 %v941, %v942
    %v944 = vsel %vm494, %v819, 0.0
    %v945 = vadd.f32 %v943, %v944
    %v946 = vsel %vm494, %v820, 0.0
    %v947 = vadd.f32 %v945, %v946
    %v948 = vrot.slane %v947, 4
    %v949 = vadd.f32 %v947, %v948
    %v950 = vrot.slane %v949, 2
    %v951 = vadd.f32 %v949, %v950
    %v952 = vrot.slane %v951, 1
    %v953 = vadd.f32 %v951, %v952
    %v954 = vmul.f32 %v953, 0.001953125
    %v955 = vmul.f32 %v756, %v756
    %v956 = vsub.f32 %v954, %v955
    %v957 = vld [vmem:[%s5] sm:$0x1]
    %v958 = vld [vmem:[%s5 + $0x1] sm:$0x1]
    %v959 = vadd.f32 %v956, 1e-05
    %v960 = vrsqrt.pop %v959
    %v961 = vmul.f32 %v960, %v959
    %v962 = vmul.f32 %v961, %v960
    %v963 = vmul.f32 0.5, %v962
    %v964 = vsub.f32 1.5, %v963
    %v965 = vmul.f32 %v960, %v964
    %vm966 = vweird.f32 %v959
    %vm967 = vweird.f32 %v960
    %vm968 = vmor %vm966, %vm967
    %v969 = vsel %vm968, %v960, %v965
    %v970 = vmul.f32 %v969, %v957
    %v971 = vmul.f32 %v756, %v970
    %v972 = vsub.f32 %v958, %v971
    %v973 = vperm.slane %v970, 0
    %v974 = vmul.f32 %v559, %v973
    %v975 = vmul.f32 %v560, %v973
    %v976 = vmul.f32 %v561, %v973
    %v977 = vmul.f32 %v562, %v973
    %v978 = vmul.f32 %v563, %v973
    %v979 = vmul.f32 %v564, %v973
    %v980 = vmul.f32 %v565, %v973
    %v981 = vmul.f32 %v566, %v973
    %v982 = vmul.f32 %v567, %v973
    %v983 = vmul.f32 %v568, %v973
    %v984 = vmul.f32 %v569, %v973
    %v985 = vmul.f32 %v570, %v973
    %v986 = vmul.f32 %v571, %v973
    %v987 = vmul.f32 %v572, %v973
    %v988 = vmul.f32 %v573, %v973
    %v989 = vmul.f32 %v574, %v973
    %v990 = vmul.f32 %v575, %v973
    %v991 = vmul.f32 %v576, %v973
    %v992 = vmul.f32 %v577, %v973
    %v993 = vmul.f32 %v578, %v973
    %v994 = vmul.f32 %v579, %v973
    %v995 = vmul.f32 %v580, %v973
    %v996 = vmul.f32 %v581, %v973
    %v997 = vmul.f32 %v582, %v973
    %v998 = vmul.f32 %v583, %v973
    %v999 = vmul.f32 %v584, %v973
    %v1000 = vmul.f32 %v585, %v973
    %v1001 = vmul.f32 %v586, %v973
    %v1002 = vmul.f32 %v587, %v973
    %v1003 = vmul.f32 %v588, %v973
    %v1004 = vmul.f32 %v589, %v973
    %v1005 = vmul.f32 %v590, %v973
    %v1006 = vmul.f32 %v591, %v973
    %v1007 = vmul.f32 %v592, %v973
    %v1008 = vmul.f32 %v593, %v973
    %v1009 = vmul.f32 %v594, %v973
    %v1010 = vmul.f32 %v595, %v973
    %v1011 = vmul.f32 %v596, %v973
    %v1012 = vmul.f32 %v597, %v973
    %v1013 = vmul.f32 %v598, %v973
    %v1014 = vmul.f32 %v599, %v973
    %v1015 = vmul.f32 %v600, %v973
    %v1016 = vmul.f32 %v601, %v973
    %v1017 = vmul.f32 %v602, %v973
    %v1018 = vmul.f32 %v603, %v973
    %v1019 = vmul.f32 %v604, %v973
    %v1020 = vmul.f32 %v605, %v973
    %v1021 = vmul.f32 %v606, %v973
    %v1022 = vmul.f32 %v607, %v973
    %v1023 = vmul.f32 %v608, %v973
    %v1024 = vmul.f32 %v609, %v973
    %v1025 = vmul.f32 %v610, %v973
    %v1026 = vmul.f32 %v611, %v973
    %v1027 = vmul.f32 %v612, %v973
    %v1028 = vmul.f32 %v613, %v973
    %v1029 = vmul.f32 %v614, %v973
    %v1030 = vmul.f32 %v615, %v973
    %v1031 = vmul.f32 %v616, %v973
    %v1032 = vmul.f32 %v617, %v973
    %v1033 = vmul.f32 %v618, %v973
    %v1034 = vmul.f32 %v619, %v973
    %v1035 = vmul.f32 %v620, %v973
    %v1036 = vmul.f32 %v621, %v973
    %v1037 = vmul.f32 %v622, %v973
    %v1038 = vperm.slane %v972, 0
    %v1039 = vadd.f32 %v974, %v1038
    %v1040 = vadd.f32 %v975, %v1038
    %v1041 = vadd.f32 %v976, %v1038
    %v1042 = vadd.f32 %v977, %v1038
    %v1043 = vadd.f32 %v978, %v1038
    %v1044 = vadd.f32 %v979, %v1038
    %v1045 = vadd.f32 %v980, %v1038
    %v1046 = vadd.f32 %v981, %v1038
    %v1047 = vadd.f32 %v982, %v1038
    %v1048 = vadd.f32 %v983, %v1038
    %v1049 = vadd.f32 %v984, %v1038
    %v1050 = vadd.f32 %v985, %v1038
    %v1051 = vadd.f32 %v986, %v1038
    %v1052 = vadd.f32 %v987, %v1038
    %v1053 = vadd.f32 %v988, %v1038
    %v1054 = vadd.f32 %v989, %v1038
    %v1055 = vadd.f32 %v990, %v1038
    %v1056 = vadd.f32 %v991, %v1038
    %v1057 = vadd.f32 %v992, %v1038
    %v1058 = vadd.f32 %v993, %v1038
    %v1059 = vadd.f32 %v994, %v1038
    %v1060 = vadd.f32 %v995, %v1038
    %v1061 = vadd.f32 %v996, %v1038
    %v1062 = vadd.f32 %v997, %v1038
    %v1063 = vadd.f32 %v998, %v1038
    %v1064 = vadd.f32 %v999, %v1038
    %v1065 = vadd.f32 %v1000, %v1038
    %v1066 = vadd.f32 %v1001, %v1038
    %v1067 = vadd.f32 %v1002, %v1038
    %v1068 = vadd.f32 %v1003, %v1038
    %v1069 = vadd.f32 %v1004, %v1038
    %v1070 = vadd.f32 %v1005, %v1038
    %v1071 = vadd.f32 %v1006, %v1038
    %v1072 = vadd.f32 %v1007, %v1038
    %v1073 = vadd.f32 %v1008, %v1038
    %v1074 = vadd.f32 %v1009, %v1038
    %v1075 = vadd.f32 %v1010, %v1038
    %v1076 = vadd.f32 %v1011, %v1038
    %v1077 = vadd.f32 %v1012, %v1038
    %v1078 = vadd.f32 %v1013, %v1038
    %v1079 = vadd.f32 %v1014, %v1038
    %v1080 = vadd.f32 %v1015, %v1038
    %v1081 = vadd.f32 %v1016, %v1038
    %v1082 = vadd.f32 %v1017, %v1038
    %v1083 = vadd.f32 %v1018, %v1038
    %v1084 = vadd.f32 %v1019, %v1038
    %v1085 = vadd.f32 %v1020, %v1038
    %v1086 = vadd.f32 %v1021, %v1038
    %v1087 = vadd.f32 %v1022, %v1038
    %v1088 = vadd.f32 %v1023, %v1038
    %v1089 = vadd.f32 %v1024, %v1038
    %v1090 = vadd.f32 %v1025, %v1038
    %v1091 = vadd.f32 %v1026, %v1038
    %v1092 = vadd.f32 %v1027, %v1038
    %v1093 = vadd.f32 %v1028, %v1038
    %v1094 = vadd.f32 %v1029, %v1038
    %v1095 = vadd.f32 %v1030, %v1038
    %v1096 = vadd.f32 %v1031, %v1038
    %v1097 = vadd.f32 %v1032, %v1038
    %v1098 = vadd.f32 %v1033, %v1038
    %v1099 = vadd.f32 %v1034, %v1038
    %v1100 = vadd.f32 %v1035, %v1038
    %v1101 = vadd.f32 %v1036, %v1038
    %v1102 = vadd.f32 %v1037, %v1038
    %v1167 = vrot.slane %v1039, 2
    %v1168 = vrot.slane %v1039, 4
    %v1169 = vrot.slane %v1039, 6
    %v1170 = vrot.slane %v1040, 2
    %v1171 = vrot.slane %v1040, 4
    %v1172 = vrot.slane %v1040, 6
    %v1173 = vrot.slane %v1041, 2
    %v1174 = vrot.slane %v1041, 4
    %v1175 = vrot.slane %v1041, 6
    %v1176 = vrot.slane %v1042, 2
    %v1177 = vrot.slane %v1042, 4
    %v1178 = vrot.slane %v1042, 6
    %v1179 = vrot.slane %v1043, 2
    %v1180 = vrot.slane %v1043, 4
    %v1181 = vrot.slane %v1043, 6
    %v1182 = vrot.slane %v1044, 2
    %v1183 = vrot.slane %v1044, 4
    %v1184 = vrot.slane %v1044, 6
    %v1185 = vrot.slane %v1045, 2
    %v1186 = vrot.slane %v1045, 4
    %v1187 = vrot.slane %v1045, 6
    %v1188 = vrot.slane %v1046, 2
    %v1189 = vrot.slane %v1046, 4
    %v1190 = vrot.slane %v1046, 6
    %v1191 = vrot.slane %v1047, 2
    %v1192 = vrot.slane %v1047, 4
    %v1193 = vrot.slane %v1047, 6
    %v1194 = vrot.slane %v1048, 2
    %v1195 = vrot.slane %v1048, 4
    %v1196 = vrot.slane %v1048, 6
    %v1197 = vrot.slane %v1049, 2
    %v1198 = vrot.slane %v1049, 4
    %v1199 = vrot.slane %v1049, 6
    %v1200 = vrot.slane %v1050, 2
    %v1201 = vrot.slane %v1050, 4
    %v1202 = vrot.slane %v1050, 6
    %v1203 = vrot.slane %v1051, 2
    %v1204 = vrot.slane %v1051, 4
    %v1205 = vrot.slane %v1051, 6
    %v1206 = vrot.slane %v1052, 2
    %v1207 = vrot.slane %v1052, 4
    %v1208 = vrot.slane %v1052, 6
    %v1209 = vrot.slane %v1053, 2
    %v1210 = vrot.slane %v1053, 4
    %v1211 = vrot.slane %v1053, 6
    %v1212 = vrot.slane %v1054, 2
    %v1213 = vrot.slane %v1054, 4
    %v1214 = vrot.slane %v1054, 6
    %v1215 = vrot.slane %v1055, 2
    %v1216 = vrot.slane %v1055, 4
    %v1217 = vrot.slane %v1055, 6
    %v1218 = vrot.slane %v1056, 2
    %v1219 = vrot.slane %v1056, 4
    %v1220 = vrot.slane %v1056, 6
    %v1221 = vrot.slane %v1057, 2
    %v1222 = vrot.slane %v1057, 4
    %v1223 = vrot.slane %v1057, 6
    %v1224 = vrot.slane %v1058, 2
    %v1225 = vrot.slane %v1058, 4
    %v1226 = vrot.slane %v1058, 6
    %v1227 = vrot.slane %v1059, 2
    %v1228 = vrot.slane %v1059, 4
    %v1229 = vrot.slane %v1059, 6
    %v1230 = vrot.slane %v1060, 2
    %v1231 = vrot.slane %v1060, 4
    %v1232 = vrot.slane %v1060, 6
    %v1233 = vrot.slane %v1061, 2
    %v1234 = vrot.slane %v1061, 4
    %v1235 = vrot.slane %v1061, 6
    %v1236 = vrot.slane %v1062, 2
    %v1237 = vrot.slane %v1062, 4
    %v1238 = vrot.slane %v1062, 6
    %v1239 = vrot.slane %v1063, 2
    %v1240 = vrot.slane %v1063, 4
    %v1241 = vrot.slane %v1063, 6
    %v1242 = vrot.slane %v1064, 2
    %v1243 = vrot.slane %v1064, 4
    %v1244 = vrot.slane %v1064, 6
    %v1245 = vrot.slane %v1065, 2
    %v1246 = vrot.slane %v1065, 4
    %v1247 = vrot.slane %v1065, 6
    %v1248 = vrot.slane %v1066, 2
    %v1249 = vrot.slane %v1066, 4
    %v1250 = vrot.slane %v1066, 6
    %v1251 = vrot.slane %v1067, 2
    %v1252 = vrot.slane %v1067, 4
    %v1253 = vrot.slane %v1067, 6
    %v1254 = vrot.slane %v1068, 2
    %v1255 = vrot.slane %v1068, 4
    %v1256 = vrot.slane %v1068, 6
    %v1257 = vrot.slane %v1069, 2
    %v1258 = vrot.slane %v1069, 4
    %v1259 = vrot.slane %v1069, 6
    %v1260 = vrot.slane %v1070, 2
    %v1261 = vrot.slane %v1070, 4
    %v1262 = vrot.slane %v1070, 6
    %v1263 = vrot.slane %v1071, 2
    %v1264 = vrot.slane %v1071, 4
    %v1265 = vrot.slane %v1071, 6
    %v1266 = vrot.slane %v1072, 2
    %v1267 = vrot.slane %v1072, 4
    %v1268 = vrot.slane %v1072, 6
    %v1269 = vrot.slane %v1073, 2
    %v1270 = vrot.slane %v1073, 4
    %v1271 = vrot.slane %v1073, 6
    %v1272 = vrot.slane %v1074, 2
    %v1273 = vrot.slane %v1074, 4
    %v1274 = vrot.slane %v1074, 6
    %v1275 = vrot.slane %v1075, 2
    %v1276 = vrot.slane %v1075, 4
    %v1277 = vrot.slane %v1075, 6
    %v1278 = vrot.slane %v1076, 2
    %v1279 = vrot.slane %v1076, 4
    %v1280 = vrot.slane %v1076, 6
    %v1281 = vrot.slane %v1077, 2
    %v1282 = vrot.slane %v1077, 4
    %v1283 = vrot.slane %v1077, 6
    %v1284 = vrot.slane %v1078, 2
    %v1285 = vrot.slane %v1078, 4
    %v1286 = vrot.slane %v1078, 6
    %v1287 = vrot.slane %v1079, 2
    %v1288 = vrot.slane %v1079, 4
    %v1289 = vrot.slane %v1079, 6
    %v1290 = vrot.slane %v1080, 2
    %v1291 = vrot.slane %v1080, 4
    %v1292 = vrot.slane %v1080, 6
    %v1293 = vrot.slane %v1081, 2
    %v1294 = vrot.slane %v1081, 4
    %v1295 = vrot.slane %v1081, 6
    %v1296 = vrot.slane %v1082, 2
    %v1297 = vrot.slane %v1082, 4
    %v1298 = vrot.slane %v1082, 6
    %v1299 = vrot.slane %v1083, 2
    %v1300 = vrot.slane %v1083, 4
    %v1301 = vrot.slane %v1083, 6
    %v1302 = vrot.slane %v1084, 2
    %v1303 = vrot.slane %v1084, 4
    %v1304 = vrot.slane %v1084, 6
    %v1305 = vrot.slane %v1085, 2
    %v1306 = vrot.slane %v1085, 4
    %v1307 = vrot.slane %v1085, 6
    %v1308 = vrot.slane %v1086, 2
    %v1309 = vrot.slane %v1086, 4
    %v1310 = vrot.slane %v1086, 6
    %v1311 = vrot.slane %v1087, 2
    %v1312 = vrot.slane %v1087, 4
    %v1313 = vrot.slane %v1087, 6
    %v1314 = vrot.slane %v1088, 2
    %v1315 = vrot.slane %v1088, 4
    %v1316 = vrot.slane %v1088, 6
    %v1317 = vrot.slane %v1089, 2
    %v1318 = vrot.slane %v1089, 4
    %v1319 = vrot.slane %v1089, 6
    %v1320 = vrot.slane %v1090, 2
    %v1321 = vrot.slane %v1090, 4
    %v1322 = vrot.slane %v1090, 6
    %v1323 = vrot.slane %v1091, 2
    %v1324 = vrot.slane %v1091, 4
    %v1325 = vrot.slane %v1091, 6
    %v1326 = vrot.slane %v1092, 2
    %v1327 = vrot.slane %v1092, 4
    %v1328 = vrot.slane %v1092, 6
    %v1329 = vrot.slane %v1093, 2
    %v1330 = vrot.slane %v1093, 4
    %v1331 = vrot.slane %v1093, 6
    %v1332 = vrot.slane %v1094, 2
    %v1333 = vrot.slane %v1094, 4
    %v1334 = vrot.slane %v1094, 6
    %v1335 = vrot.slane %v1095, 2
    %v1336 = vrot.slane %v1095, 4
    %v1337 = vrot.slane %v1095, 6
    %v1338 = vrot.slane %v1096, 2
    %v1339 = vrot.slane %v1096, 4
    %v1340 = vrot.slane %v1096, 6
    %v1341 = vrot.slane %v1097, 2
    %v1342 = vrot.slane %v1097, 4
    %v1343 = vrot.slane %v1097, 6
    %v1344 = vrot.slane %v1098, 2
    %v1345 = vrot.slane %v1098, 4
    %v1346 = vrot.slane %v1098, 6
    %v1347 = vrot.slane %v1099, 2
    %v1348 = vrot.slane %v1099, 4
    %v1349 = vrot.slane %v1099, 6
    %v1350 = vrot.slane %v1100, 2
    %v1351 = vrot.slane %v1100, 4
    %v1352 = vrot.slane %v1100, 6
    %v1353 = vrot.slane %v1101, 2
    %v1354 = vrot.slane %v1101, 4
    %v1355 = vrot.slane %v1101, 6
    %v1356 = vrot.slane %v1102, 2
    %v1357 = vrot.slane %v1102, 4
    %v1358 = vrot.slane %v1102, 6
    %vm1551 = vcmask 517120
    %v1552 = vsel %vm1551, %v1039, -inf
    %v1553 = vrot.slane %v1552, 4
    %v1554 = vmax.f32 %v1552, %v1553
    %v1555 = vrot.slane %v1554, 2
    %v1556 = vmax.f32 %v1554, %v1555
    %v1557 = vrot.slane %v1556, 1
    %v1558 = vmax.f32 %v1556, %v1557
    %v1559 = vsel %vm1551, %v1167, -inf
    %v1560 = vrot.slane %v1559, 4
    %v1561 = vmax.f32 %v1559, %v1560
    %v1562 = vrot.slane %v1561, 2
    %v1563 = vmax.f32 %v1561, %v1562
    %v1564 = vrot.slane %v1563, 1
    %v1565 = vmax.f32 %v1563, %v1564
    %v1566 = vsel %vm1551, %v1168, -inf
    %v1567 = vrot.slane %v1566, 4
    %v1568 = vmax.f32 %v1566, %v1567
    %v1569 = vrot.slane %v1568, 2
    %v1570 = vmax.f32 %v1568, %v1569
    %v1571 = vrot.slane %v1570, 1
    %v1572 = vmax.f32 %v1570, %v1571
    %v1573 = vsel %vm1551, %v1169, -inf
    %v1574 = vrot.slane %v1573, 4
    %v1575 = vmax.f32 %v1573, %v1574
    %v1576 = vrot.slane %v1575, 2
    %v1577 = vmax.f32 %v1575, %v1576
    %v1578 = vrot.slane %v1577, 1
    %v1579 = vmax.f32 %v1577, %v1578
    %v1580 = vsel %vm1551, %v1040, -inf
    %v1581 = vrot.slane %v1580, 4
    %v1582 = vmax.f32 %v1580, %v1581
    %v1583 = vrot.slane %v1582, 2
    %v1584 = vmax.f32 %v1582, %v1583
    %v1585 = vrot.slane %v1584, 1
    %v1586 = vmax.f32 %v1584, %v1585
    %v1587 = vsel %vm1551, %v1170, -inf
    %v1588 = vrot.slane %v1587, 4
    %v1589 = vmax.f32 %v1587, %v1588
    %v1590 = vrot.slane %v1589, 2
    %v1591 = vmax.f32 %v1589, %v1590
    %v1592 = vrot.slane %v1591, 1
    %v1593 = vmax.f32 %v1591, %v1592
    %v1594 = vsel %vm1551, %v1171, -inf
    %v1595 = vrot.slane %v1594, 4
    %v1596 = vmax.f32 %v1594, %v1595
    %v1597 = vrot.slane %v1596, 2
    %v1598 = vmax.f32 %v1596, %v1597
    %v1599 = vrot.slane %v1598, 1
    %v1600 = vmax.f32 %v1598, %v1599
    %v1601 = vsel %vm1551, %v1172, -inf
    %v1602 = vrot.slane %v1601, 4
    %v1603 = vmax.f32 %v1601, %v1602
    %v1604 = vrot.slane %v1603, 2
    %v1605 = vmax.f32 %v1603, %v1604
    %v1606 = vrot.slane %v1605, 1
    %v1607 = vmax.f32 %v1605, %v1606
    %v1608 = vsel %vm1551, %v1041, -inf
    %v1609 = vrot.slane %v1608, 4
    %v1610 = vmax.f32 %v1608, %v1609
    %v1611 = vrot.slane %v1610, 2
    %v1612 = vmax.f32 %v1610, %v1611
    %v1613 = vrot.slane %v1612, 1
    %v1614 = vmax.f32 %v1612, %v1613
    %v1615 = vsel %vm1551, %v1173, -inf
    %v1616 = vrot.slane %v1615, 4
    %v1617 = vmax.f32 %v1615, %v1616
    %v1618 = vrot.slane %v1617, 2
    %v1619 = vmax.f32 %v1617, %v1618
    %v1620 = vrot.slane %v1619, 1
    %v1621 = vmax.f32 %v1619, %v1620
    %v1622 = vsel %vm1551, %v1174, -inf
    %v1623 = vrot.slane %v1622, 4
    %v1624 = vmax.f32 %v1622, %v1623
    %v1625 = vrot.slane %v1624, 2
    %v1626 = vmax.f32 %v1624, %v1625
    %v1627 = vrot.slane %v1626, 1
    %v1628 = vmax.f32 %v1626, %v1627
    %v1629 = vsel %vm1551, %v1175, -inf
    %v1630 = vrot.slane %v1629, 4
    %v1631 = vmax.f32 %v1629, %v1630
    %v1632 = vrot.slane %v1631, 2
    %v1633 = vmax.f32 %v1631, %v1632
    %v1634 = vrot.slane %v1633, 1
    %v1635 = vmax.f32 %v1633, %v1634
    %v1636 = vsel %vm1551, %v1042, -inf
    %v1637 = vrot.slane %v1636, 4
    %v1638 = vmax.f32 %v1636, %v1637
    %v1639 = vrot.slane %v1638, 2
    %v1640 = vmax.f32 %v1638, %v1639
    %v1641 = vrot.slane %v1640, 1
    %v1642 = vmax.f32 %v1640, %v1641
    %v1643 = vsel %vm1551, %v1176, -inf
    %v1644 = vrot.slane %v1643, 4
    %v1645 = vmax.f32 %v1643, %v1644
    %v1646 = vrot.slane %v1645, 2
    %v1647 = vmax.f32 %v1645, %v1646
    %v1648 = vrot.slane %v1647, 1
    %v1649 = vmax.f32 %v1647, %v1648
    %v1650 = vsel %vm1551, %v1177, -inf
    %v1651 = vrot.slane %v1650, 4
    %v1652 = vmax.f32 %v1650, %v1651
    %v1653 = vrot.slane %v1652, 2
    %v1654 = vmax.f32 %v1652, %v1653
    %v1655 = vrot.slane %v1654, 1
    %v1656 = vmax.f32 %v1654, %v1655
    %v1657 = vsel %vm1551, %v1178, -inf
    %v1658 = vrot.slane %v1657, 4
    %v1659 = vmax.f32 %v1657, %v1658
    %v1660 = vrot.slane %v1659, 2
    %v1661 = vmax.f32 %v1659, %v1660
    %v1662 = vrot.slane %v1661, 1
    %v1663 = vmax.f32 %v1661, %v1662
    %v1664 = vsel %vm1551, %v1043, -inf
    %v1665 = vrot.slane %v1664, 4
    %v1666 = vmax.f32 %v1664, %v1665
    %v1667 = vrot.slane %v1666, 2
    %v1668 = vmax.f32 %v1666, %v1667
    %v1669 = vrot.slane %v1668, 1
    %v1670 = vmax.f32 %v1668, %v1669
    %v1671 = vsel %vm1551, %v1179, -inf
    %v1672 = vrot.slane %v1671, 4
    %v1673 = vmax.f32 %v1671, %v1672
    %v1674 = vrot.slane %v1673, 2
    %v1675 = vmax.f32 %v1673, %v1674
    %v1676 = vrot.slane %v1675, 1
    %v1677 = vmax.f32 %v1675, %v1676
    %v1678 = vsel %vm1551, %v1180, -inf
    %v1679 = vrot.slane %v1678, 4
    %v1680 = vmax.f32 %v1678, %v1679
    %v1681 = vrot.slane %v1680, 2
    %v1682 = vmax.f32 %v1680, %v1681
    %v1683 = vrot.slane %v1682, 1
    %v1684 = vmax.f32 %v1682, %v1683
    %v1685 = vsel %vm1551, %v1181, -inf
    %v1686 = vrot.slane %v1685, 4
    %v1687 = vmax.f32 %v1685, %v1686
    %v1688 = vrot.slane %v1687, 2
    %v1689 = vmax.f32 %v1687, %v1688
    %v1690 = vrot.slane %v1689, 1
    %v1691 = vmax.f32 %v1689, %v1690
    %v1692 = vsel %vm1551, %v1044, -inf
    %v1693 = vrot.slane %v1692, 4
    %v1694 = vmax.f32 %v1692, %v1693
    %v1695 = vrot.slane %v1694, 2
    %v1696 = vmax.f32 %v1694, %v1695
    %v1697 = vrot.slane %v1696, 1
    %v1698 = vmax.f32 %v1696, %v1697
    %v1699 = vsel %vm1551, %v1182, -inf
    %v1700 = vrot.slane %v1699, 4
    %v1701 = vmax.f32 %v1699, %v1700
    %v1702 = vrot.slane %v1701, 2
    %v1703 = vmax.f32 %v1701, %v1702
    %v1704 = vrot.slane %v1703, 1
    %v1705 = vmax.f32 %v1703, %v1704
    %v1706 = vsel %vm1551, %v1183, -inf
    %v1707 = vrot.slane %v1706, 4
    %v1708 = vmax.f32 %v1706, %v1707
    %v1709 = vrot.slane %v1708, 2
    %v1710 = vmax.f32 %v1708, %v1709
    %v1711 = vrot.slane %v1710, 1
    %v1712 = vmax.f32 %v1710, %v1711
    %v1713 = vsel %vm1551, %v1184, -inf
    %v1714 = vrot.slane %v1713, 4
    %v1715 = vmax.f32 %v1713, %v1714
    %v1716 = vrot.slane %v1715, 2
    %v1717 = vmax.f32 %v1715, %v1716
    %v1718 = vrot.slane %v1717, 1
    %v1719 = vmax.f32 %v1717, %v1718
    %v1720 = vsel %vm1551, %v1045, -inf
    %v1721 = vrot.slane %v1720, 4
    %v1722 = vmax.f32 %v1720, %v1721
    %v1723 = vrot.slane %v1722, 2
    %v1724 = vmax.f32 %v1722, %v1723
    %v1725 = vrot.slane %v1724, 1
    %v1726 = vmax.f32 %v1724, %v1725
    %v1727 = vsel %vm1551, %v1185, -inf
    %v1728 = vrot.slane %v1727, 4
    %v1729 = vmax.f32 %v1727, %v1728
    %v1730 = vrot.slane %v1729, 2
    %v1731 = vmax.f32 %v1729, %v1730
    %v1732 = vrot.slane %v1731, 1
    %v1733 = vmax.f32 %v1731, %v1732
    %v1734 = vsel %vm1551, %v1186, -inf
    %v1735 = vrot.slane %v1734, 4
    %v1736 = vmax.f32 %v1734, %v1735
    %v1737 = vrot.slane %v1736, 2
    %v1738 = vmax.f32 %v1736, %v1737
    %v1739 = vrot.slane %v1738, 1
    %v1740 = vmax.f32 %v1738, %v1739
    %v1741 = vsel %vm1551, %v1187, -inf
    %v1742 = vrot.slane %v1741, 4
    %v1743 = vmax.f32 %v1741, %v1742
    %v1744 = vrot.slane %v1743, 2
    %v1745 = vmax.f32 %v1743, %v1744
    %v1746 = vrot.slane %v1745, 1
    %v1747 = vmax.f32 %v1745, %v1746
    %v1748 = vsel %vm1551, %v1046, -inf
    %v1749 = vrot.slane %v1748, 4
    %v1750 = vmax.f32 %v1748, %v1749
    %v1751 = vrot.slane %v1750, 2
    %v1752 = vmax.f32 %v1750, %v1751
    %v1753 = vrot.slane %v1752, 1
    %v1754 = vmax.f32 %v1752, %v1753
    %v1755 = vsel %vm1551, %v1188, -inf
    %v1756 = vrot.slane %v1755, 4
    %v1757 = vmax.f32 %v1755, %v1756
    %v1758 = vrot.slane %v1757, 2
    %v1759 = vmax.f32 %v1757, %v1758
    %v1760 = vrot.slane %v1759, 1
    %v1761 = vmax.f32 %v1759, %v1760
    %v1762 = vsel %vm1551, %v1189, -inf
    %v1763 = vrot.slane %v1762, 4
    %v1764 = vmax.f32 %v1762, %v1763
    %v1765 = vrot.slane %v1764, 2
    %v1766 = vmax.f32 %v1764, %v1765
    %v1767 = vrot.slane %v1766, 1
    %v1768 = vmax.f32 %v1766, %v1767
    %v1769 = vsel %vm1551, %v1190, -inf
    %v1770 = vrot.slane %v1769, 4
    %v1771 = vmax.f32 %v1769, %v1770
    %v1772 = vrot.slane %v1771, 2
    %v1773 = vmax.f32 %v1771, %v1772
    %v1774 = vrot.slane %v1773, 1
    %v1775 = vmax.f32 %v1773, %v1774
    %v1776 = vsel %vm1551, %v1047, -inf
    %v1777 = vrot.slane %v1776, 4
    %v1778 = vmax.f32 %v1776, %v1777
    %v1779 = vrot.slane %v1778, 2
    %v1780 = vmax.f32 %v1778, %v1779
    %v1781 = vrot.slane %v1780, 1
    %v1782 = vmax.f32 %v1780, %v1781
    %v1783 = vsel %vm1551, %v1191, -inf
    %v1784 = vrot.slane %v1783, 4
    %v1785 = vmax.f32 %v1783, %v1784
    %v1786 = vrot.slane %v1785, 2
    %v1787 = vmax.f32 %v1785, %v1786
    %v1788 = vrot.slane %v1787, 1
    %v1789 = vmax.f32 %v1787, %v1788
    %v1790 = vsel %vm1551, %v1192, -inf
    %v1791 = vrot.slane %v1790, 4
    %v1792 = vmax.f32 %v1790, %v1791
    %v1793 = vrot.slane %v1792, 2
    %v1794 = vmax.f32 %v1792, %v1793
    %v1795 = vrot.slane %v1794, 1
    %v1796 = vmax.f32 %v1794, %v1795
    %v1797 = vsel %vm1551, %v1193, -inf
    %v1798 = vrot.slane %v1797, 4
    %v1799 = vmax.f32 %v1797, %v1798
    %v1800 = vrot.slane %v1799, 2
    %v1801 = vmax.f32 %v1799, %v1800
    %v1802 = vrot.slane %v1801, 1
    %v1803 = vmax.f32 %v1801, %v1802
    %v1804 = vsel %vm1551, %v1048, -inf
    %v1805 = vrot.slane %v1804, 4
    %v1806 = vmax.f32 %v1804, %v1805
    %v1807 = vrot.slane %v1806, 2
    %v1808 = vmax.f32 %v1806, %v1807
    %v1809 = vrot.slane %v1808, 1
    %v1810 = vmax.f32 %v1808, %v1809
    %v1811 = vsel %vm1551, %v1194, -inf
    %v1812 = vrot.slane %v1811, 4
    %v1813 = vmax.f32 %v1811, %v1812
    %v1814 = vrot.slane %v1813, 2
    %v1815 = vmax.f32 %v1813, %v1814
    %v1816 = vrot.slane %v1815, 1
    %v1817 = vmax.f32 %v1815, %v1816
    %v1818 = vsel %vm1551, %v1195, -inf
    %v1819 = vrot.slane %v1818, 4
    %v1820 = vmax.f32 %v1818, %v1819
    %v1821 = vrot.slane %v1820, 2
    %v1822 = vmax.f32 %v1820, %v1821
    %v1823 = vrot.slane %v1822, 1
    %v1824 = vmax.f32 %v1822, %v1823
    %v1825 = vsel %vm1551, %v1196, -inf
    %v1826 = vrot.slane %v1825, 4
    %v1827 = vmax.f32 %v1825, %v1826
    %v1828 = vrot.slane %v1827, 2
    %v1829 = vmax.f32 %v1827, %v1828
    %v1830 = vrot.slane %v1829, 1
    %v1831 = vmax.f32 %v1829, %v1830
    %v1832 = vsel %vm1551, %v1049, -inf
    %v1833 = vrot.slane %v1832, 4
    %v1834 = vmax.f32 %v1832, %v1833
    %v1835 = vrot.slane %v1834, 2
    %v1836 = vmax.f32 %v1834, %v1835
    %v1837 = vrot.slane %v1836, 1
    %v1838 = vmax.f32 %v1836, %v1837
    %v1839 = vsel %vm1551, %v1197, -inf
    %v1840 = vrot.slane %v1839, 4
    %v1841 = vmax.f32 %v1839, %v1840
    %v1842 = vrot.slane %v1841, 2
    %v1843 = vmax.f32 %v1841, %v1842
    %v1844 = vrot.slane %v1843, 1
    %v1845 = vmax.f32 %v1843, %v1844
    %v1846 = vsel %vm1551, %v1198, -inf
    %v1847 = vrot.slane %v1846, 4
    %v1848 = vmax.f32 %v1846, %v1847
    %v1849 = vrot.slane %v1848, 2
    %v1850 = vmax.f32 %v1848, %v1849
    %v1851 = vrot.slane %v1850, 1
    %v1852 = vmax.f32 %v1850, %v1851
    %v1853 = vsel %vm1551, %v1199, -inf
    %v1854 = vrot.slane %v1853, 4
    %v1855 = vmax.f32 %v1853, %v1854
    %v1856 = vrot.slane %v1855, 2
    %v1857 = vmax.f32 %v1855, %v1856
    %v1858 = vrot.slane %v1857, 1
    %v1859 = vmax.f32 %v1857, %v1858
    %v1860 = vsel %vm1551, %v1050, -inf
    %v1861 = vrot.slane %v1860, 4
    %v1862 = vmax.f32 %v1860, %v1861
    %v1863 = vrot.slane %v1862, 2
    %v1864 = vmax.f32 %v1862, %v1863
    %v1865 = vrot.slane %v1864, 1
    %v1866 = vmax.f32 %v1864, %v1865
    %v1867 = vsel %vm1551, %v1200, -inf
    %v1868 = vrot.slane %v1867, 4
    %v1869 = vmax.f32 %v1867, %v1868
    %v1870 = vrot.slane %v1869, 2
    %v1871 = vmax.f32 %v1869, %v1870
    %v1872 = vrot.slane %v1871, 1
    %v1873 = vmax.f32 %v1871, %v1872
    %v1874 = vsel %vm1551, %v1201, -inf
    %v1875 = vrot.slane %v1874, 4
    %v1876 = vmax.f32 %v1874, %v1875
    %v1877 = vrot.slane %v1876, 2
    %v1878 = vmax.f32 %v1876, %v1877
    %v1879 = vrot.slane %v1878, 1
    %v1880 = vmax.f32 %v1878, %v1879
    %v1881 = vsel %vm1551, %v1202, -inf
    %v1882 = vrot.slane %v1881, 4
    %v1883 = vmax.f32 %v1881, %v1882
    %v1884 = vrot.slane %v1883, 2
    %v1885 = vmax.f32 %v1883, %v1884
    %v1886 = vrot.slane %v1885, 1
    %v1887 = vmax.f32 %v1885, %v1886
    %v1888 = vsel %vm1551, %v1051, -inf
    %v1889 = vrot.slane %v1888, 4
    %v1890 = vmax.f32 %v1888, %v1889
    %v1891 = vrot.slane %v1890, 2
    %v1892 = vmax.f32 %v1890, %v1891
    %v1893 = vrot.slane %v1892, 1
    %v1894 = vmax.f32 %v1892, %v1893
    %v1895 = vsel %vm1551, %v1203, -inf
    %v1896 = vrot.slane %v1895, 4
    %v1897 = vmax.f32 %v1895, %v1896
    %v1898 = vrot.slane %v1897, 2
    %v1899 = vmax.f32 %v1897, %v1898
    %v1900 = vrot.slane %v1899, 1
    %v1901 = vmax.f32 %v1899, %v1900
    %v1902 = vsel %vm1551, %v1204, -inf
    %v1903 = vrot.slane %v1902, 4
    %v1904 = vmax.f32 %v1902, %v1903
    %v1905 = vrot.slane %v1904, 2
    %v1906 = vmax.f32 %v1904, %v1905
    %v1907 = vrot.slane %v1906, 1
    %v1908 = vmax.f32 %v1906, %v1907
    %v1909 = vsel %vm1551, %v1205, -inf
    %v1910 = vrot.slane %v1909, 4
    %v1911 = vmax.f32 %v1909, %v1910
    %v1912 = vrot.slane %v1911, 2
    %v1913 = vmax.f32 %v1911, %v1912
    %v1914 = vrot.slane %v1913, 1
    %v1915 = vmax.f32 %v1913, %v1914
    %v1916 = vsel %vm1551, %v1052, -inf
    %v1917 = vrot.slane %v1916, 4
    %v1918 = vmax.f32 %v1916, %v1917
    %v1919 = vrot.slane %v1918, 2
    %v1920 = vmax.f32 %v1918, %v1919
    %v1921 = vrot.slane %v1920, 1
    %v1922 = vmax.f32 %v1920, %v1921
    %v1923 = vsel %vm1551, %v1206, -inf
    %v1924 = vrot.slane %v1923, 4
    %v1925 = vmax.f32 %v1923, %v1924
    %v1926 = vrot.slane %v1925, 2
    %v1927 = vmax.f32 %v1925, %v1926
    %v1928 = vrot.slane %v1927, 1
    %v1929 = vmax.f32 %v1927, %v1928
    %v1930 = vsel %vm1551, %v1207, -inf
    %v1931 = vrot.slane %v1930, 4
    %v1932 = vmax.f32 %v1930, %v1931
    %v1933 = vrot.slane %v1932, 2
    %v1934 = vmax.f32 %v1932, %v1933
    %v1935 = vrot.slane %v1934, 1
    %v1936 = vmax.f32 %v1934, %v1935
    %v1937 = vsel %vm1551, %v1208, -inf
    %v1938 = vrot.slane %v1937, 4
    %v1939 = vmax.f32 %v1937, %v1938
    %v1940 = vrot.slane %v1939, 2
    %v1941 = vmax.f32 %v1939, %v1940
    %v1942 = vrot.slane %v1941, 1
    %v1943 = vmax.f32 %v1941, %v1942
    %v1944 = vsel %vm1551, %v1053, -inf
    %v1945 = vrot.slane %v1944, 4
    %v1946 = vmax.f32 %v1944, %v1945
    %v1947 = vrot.slane %v1946, 2
    %v1948 = vmax.f32 %v1946, %v1947
    %v1949 = vrot.slane %v1948, 1
    %v1950 = vmax.f32 %v1948, %v1949
    %v1951 = vsel %vm1551, %v1209, -inf
    %v1952 = vrot.slane %v1951, 4
    %v1953 = vmax.f32 %v1951, %v1952
    %v1954 = vrot.slane %v1953, 2
    %v1955 = vmax.f32 %v1953, %v1954
    %v1956 = vrot.slane %v1955, 1
    %v1957 = vmax.f32 %v1955, %v1956
    %v1958 = vsel %vm1551, %v1210, -inf
    %v1959 = vrot.slane %v1958, 4
    %v1960 = vmax.f32 %v1958, %v1959
    %v1961 = vrot.slane %v1960, 2
    %v1962 = vmax.f32 %v1960, %v1961
    %v1963 = vrot.slane %v1962, 1
    %v1964 = vmax.f32 %v1962, %v1963
    %v1965 = vsel %vm1551, %v1211, -inf
    %v1966 = vrot.slane %v1965, 4
    %v1967 = vmax.f32 %v1965, %v1966
    %v1968 = vrot.slane %v1967, 2
    %v1969 = vmax.f32 %v1967, %v1968
    %v1970 = vrot.slane %v1969, 1
    %v1971 = vmax.f32 %v1969, %v1970
    %v1972 = vsel %vm1551, %v1054, -inf
    %v1973 = vrot.slane %v1972, 4
    %v1974 = vmax.f32 %v1972, %v1973
    %v1975 = vrot.slane %v1974, 2
    %v1976 = vmax.f32 %v1974, %v1975
    %v1977 = vrot.slane %v1976, 1
    %v1978 = vmax.f32 %v1976, %v1977
    %v1979 = vsel %vm1551, %v1212, -inf
    %v1980 = vrot.slane %v1979, 4
    %v1981 = vmax.f32 %v1979, %v1980
    %v1982 = vrot.slane %v1981, 2
    %v1983 = vmax.f32 %v1981, %v1982
    %v1984 = vrot.slane %v1983, 1
    %v1985 = vmax.f32 %v1983, %v1984
    %v1986 = vsel %vm1551, %v1213, -inf
    %v1987 = vrot.slane %v1986, 4
    %v1988 = vmax.f32 %v1986, %v1987
    %v1989 = vrot.slane %v1988, 2
    %v1990 = vmax.f32 %v1988, %v1989
    %v1991 = vrot.slane %v1990, 1
    %v1992 = vmax.f32 %v1990, %v1991
    %v1993 = vsel %vm1551, %v1214, -inf
    %v1994 = vrot.slane %v1993, 4
    %v1995 = vmax.f32 %v1993, %v1994
    %v1996 = vrot.slane %v1995, 2
    %v1997 = vmax.f32 %v1995, %v1996
    %v1998 = vrot.slane %v1997, 1
    %v1999 = vmax.f32 %v1997, %v1998
    %v2000 = vsel %vm1551, %v1055, -inf
    %v2001 = vrot.slane %v2000, 4
    %v2002 = vmax.f32 %v2000, %v2001
    %v2003 = vrot.slane %v2002, 2
    %v2004 = vmax.f32 %v2002, %v2003
    %v2005 = vrot.slane %v2004, 1
    %v2006 = vmax.f32 %v2004, %v2005
    %v2007 = vsel %vm1551, %v1215, -inf
    %v2008 = vrot.slane %v2007, 4
    %v2009 = vmax.f32 %v2007, %v2008
    %v2010 = vrot.slane %v2009, 2
    %v2011 = vmax.f32 %v2009, %v2010
    %v2012 = vrot.slane %v2011, 1
    %v2013 = vmax.f32 %v2011, %v2012
    %v2014 = vsel %vm1551, %v1216, -inf
    %v2015 = vrot.slane %v2014, 4
    %v2016 = vmax.f32 %v2014, %v2015
    %v2017 = vrot.slane %v2016, 2
    %v2018 = vmax.f32 %v2016, %v2017
    %v2019 = vrot.slane %v2018, 1
    %v2020 = vmax.f32 %v2018, %v2019
    %v2021 = vsel %vm1551, %v1217, -inf
    %v2022 = vrot.slane %v2021, 4
    %v2023 = vmax.f32 %v2021, %v2022
    %v2024 = vrot.slane %v2023, 2
    %v2025 = vmax.f32 %v2023, %v2024
    %v2026 = vrot.slane %v2025, 1
    %v2027 = vmax.f32 %v2025, %v2026
    %v2028 = vsel %vm1551, %v1056, -inf
    %v2029 = vrot.slane %v2028, 4
    %v2030 = vmax.f32 %v2028, %v2029
    %v2031 = vrot.slane %v2030, 2
    %v2032 = vmax.f32 %v2030, %v2031
    %v2033 = vrot.slane %v2032, 1
    %v2034 = vmax.f32 %v2032, %v2033
    %v2035 = vsel %vm1551, %v1218, -inf
    %v2036 = vrot.slane %v2035, 4
    %v2037 = vmax.f32 %v2035, %v2036
    %v2038 = vrot.slane %v2037, 2
    %v2039 = vmax.f32 %v2037, %v2038
    %v2040 = vrot.slane %v2039, 1
    %v2041 = vmax.f32 %v2039, %v2040
    %v2042 = vsel %vm1551, %v1219, -inf
    %v2043 = vrot.slane %v2042, 4
    %v2044 = vmax.f32 %v2042, %v2043
    %v2045 = vrot.slane %v2044, 2
    %v2046 = vmax.f32 %v2044, %v2045
    %v2047 = vrot.slane %v2046, 1
    %v2048 = vmax.f32 %v2046, %v2047
    %v2049 = vsel %vm1551, %v1220, -inf
    %v2050 = vrot.slane %v2049, 4
    %v2051 = vmax.f32 %v2049, %v2050
    %v2052 = vrot.slane %v2051, 2
    %v2053 = vmax.f32 %v2051, %v2052
    %v2054 = vrot.slane %v2053, 1
    %v2055 = vmax.f32 %v2053, %v2054
    %v2056 = vsel %vm1551, %v1057, -inf
    %v2057 = vrot.slane %v2056, 4
    %v2058 = vmax.f32 %v2056, %v2057
    %v2059 = vrot.slane %v2058, 2
    %v2060 = vmax.f32 %v2058, %v2059
    %v2061 = vrot.slane %v2060, 1
    %v2062 = vmax.f32 %v2060, %v2061
    %v2063 = vsel %vm1551, %v1221, -inf
    %v2064 = vrot.slane %v2063, 4
    %v2065 = vmax.f32 %v2063, %v2064
    %v2066 = vrot.slane %v2065, 2
    %v2067 = vmax.f32 %v2065, %v2066
    %v2068 = vrot.slane %v2067, 1
    %v2069 = vmax.f32 %v2067, %v2068
    %v2070 = vsel %vm1551, %v1222, -inf
    %v2071 = vrot.slane %v2070, 4
    %v2072 = vmax.f32 %v2070, %v2071
    %v2073 = vrot.slane %v2072, 2
    %v2074 = vmax.f32 %v2072, %v2073
    %v2075 = vrot.slane %v2074, 1
    %v2076 = vmax.f32 %v2074, %v2075
    %v2077 = vsel %vm1551, %v1223, -inf
    %v2078 = vrot.slane %v2077, 4
    %v2079 = vmax.f32 %v2077, %v2078
    %v2080 = vrot.slane %v2079, 2
    %v2081 = vmax.f32 %v2079, %v2080
    %v2082 = vrot.slane %v2081, 1
    %v2083 = vmax.f32 %v2081, %v2082
    %v2084 = vsel %vm1551, %v1058, -inf
    %v2085 = vrot.slane %v2084, 4
    %v2086 = vmax.f32 %v2084, %v2085
    %v2087 = vrot.slane %v2086, 2
    %v2088 = vmax.f32 %v2086, %v2087
    %v2089 = vrot.slane %v2088, 1
    %v2090 = vmax.f32 %v2088, %v2089
    %v2091 = vsel %vm1551, %v1224, -inf
    %v2092 = vrot.slane %v2091, 4
    %v2093 = vmax.f32 %v2091, %v2092
    %v2094 = vrot.slane %v2093, 2
    %v2095 = vmax.f32 %v2093, %v2094
    %v2096 = vrot.slane %v2095, 1
    %v2097 = vmax.f32 %v2095, %v2096
    %v2098 = vsel %vm1551, %v1225, -inf
    %v2099 = vrot.slane %v2098, 4
    %v2100 = vmax.f32 %v2098, %v2099
    %v2101 = vrot.slane %v2100, 2
    %v2102 = vmax.f32 %v2100, %v2101
    %v2103 = vrot.slane %v2102, 1
    %v2104 = vmax.f32 %v2102, %v2103
    %v2105 = vsel %vm1551, %v1226, -inf
    %v2106 = vrot.slane %v2105, 4
    %v2107 = vmax.f32 %v2105, %v2106
    %v2108 = vrot.slane %v2107, 2
    %v2109 = vmax.f32 %v2107, %v2108
    %v2110 = vrot.slane %v2109, 1
    %v2111 = vmax.f32 %v2109, %v2110
    %v2112 = vsel %vm1551, %v1059, -inf
    %v2113 = vrot.slane %v2112, 4
    %v2114 = vmax.f32 %v2112, %v2113
    %v2115 = vrot.slane %v2114, 2
    %v2116 = vmax.f32 %v2114, %v2115
    %v2117 = vrot.slane %v2116, 1
    %v2118 = vmax.f32 %v2116, %v2117
    %v2119 = vsel %vm1551, %v1227, -inf
    %v2120 = vrot.slane %v2119, 4
    %v2121 = vmax.f32 %v2119, %v2120
    %v2122 = vrot.slane %v2121, 2
    %v2123 = vmax.f32 %v2121, %v2122
    %v2124 = vrot.slane %v2123, 1
    %v2125 = vmax.f32 %v2123, %v2124
    %v2126 = vsel %vm1551, %v1228, -inf
    %v2127 = vrot.slane %v2126, 4
    %v2128 = vmax.f32 %v2126, %v2127
    %v2129 = vrot.slane %v2128, 2
    %v2130 = vmax.f32 %v2128, %v2129
    %v2131 = vrot.slane %v2130, 1
    %v2132 = vmax.f32 %v2130, %v2131
    %v2133 = vsel %vm1551, %v1229, -inf
    %v2134 = vrot.slane %v2133, 4
    %v2135 = vmax.f32 %v2133, %v2134
    %v2136 = vrot.slane %v2135, 2
    %v2137 = vmax.f32 %v2135, %v2136
    %v2138 = vrot.slane %v2137, 1
    %v2139 = vmax.f32 %v2137, %v2138
    %v2140 = vsel %vm1551, %v1060, -inf
    %v2141 = vrot.slane %v2140, 4
    %v2142 = vmax.f32 %v2140, %v2141
    %v2143 = vrot.slane %v2142, 2
    %v2144 = vmax.f32 %v2142, %v2143
    %v2145 = vrot.slane %v2144, 1
    %v2146 = vmax.f32 %v2144, %v2145
    %v2147 = vsel %vm1551, %v1230, -inf
    %v2148 = vrot.slane %v2147, 4
    %v2149 = vmax.f32 %v2147, %v2148
    %v2150 = vrot.slane %v2149, 2
    %v2151 = vmax.f32 %v2149, %v2150
    %v2152 = vrot.slane %v2151, 1
    %v2153 = vmax.f32 %v2151, %v2152
    %v2154 = vsel %vm1551, %v1231, -inf
    %v2155 = vrot.slane %v2154, 4
    %v2156 = vmax.f32 %v2154, %v2155
    %v2157 = vrot.slane %v2156, 2
    %v2158 = vmax.f32 %v2156, %v2157
    %v2159 = vrot.slane %v2158, 1
    %v2160 = vmax.f32 %v2158, %v2159
    %v2161 = vsel %vm1551, %v1232, -inf
    %v2162 = vrot.slane %v2161, 4
    %v2163 = vmax.f32 %v2161, %v2162
    %v2164 = vrot.slane %v2163, 2
    %v2165 = vmax.f32 %v2163, %v2164
    %v2166 = vrot.slane %v2165, 1
    %v2167 = vmax.f32 %v2165, %v2166
    %v2168 = vsel %vm1551, %v1061, -inf
    %v2169 = vrot.slane %v2168, 4
    %v2170 = vmax.f32 %v2168, %v2169
    %v2171 = vrot.slane %v2170, 2
    %v2172 = vmax.f32 %v2170, %v2171
    %v2173 = vrot.slane %v2172, 1
    %v2174 = vmax.f32 %v2172, %v2173
    %v2175 = vsel %vm1551, %v1233, -inf
    %v2176 = vrot.slane %v2175, 4
    %v2177 = vmax.f32 %v2175, %v2176
    %v2178 = vrot.slane %v2177, 2
    %v2179 = vmax.f32 %v2177, %v2178
    %v2180 = vrot.slane %v2179, 1
    %v2181 = vmax.f32 %v2179, %v2180
    %v2182 = vsel %vm1551, %v1234, -inf
    %v2183 = vrot.slane %v2182, 4
    %v2184 = vmax.f32 %v2182, %v2183
    %v2185 = vrot.slane %v2184, 2
    %v2186 = vmax.f32 %v2184, %v2185
    %v2187 = vrot.slane %v2186, 1
    %v2188 = vmax.f32 %v2186, %v2187
    %v2189 = vsel %vm1551, %v1235, -inf
    %v2190 = vrot.slane %v2189, 4
    %v2191 = vmax.f32 %v2189, %v2190
    %v2192 = vrot.slane %v2191, 2
    %v2193 = vmax.f32 %v2191, %v2192
    %v2194 = vrot.slane %v2193, 1
    %v2195 = vmax.f32 %v2193, %v2194
    %v2196 = vsel %vm1551, %v1062, -inf
    %v2197 = vrot.slane %v2196, 4
    %v2198 = vmax.f32 %v2196, %v2197
    %v2199 = vrot.slane %v2198, 2
    %v2200 = vmax.f32 %v2198, %v2199
    %v2201 = vrot.slane %v2200, 1
    %v2202 = vmax.f32 %v2200, %v2201
    %v2203 = vsel %vm1551, %v1236, -inf
    %v2204 = vrot.slane %v2203, 4
    %v2205 = vmax.f32 %v2203, %v2204
    %v2206 = vrot.slane %v2205, 2
    %v2207 = vmax.f32 %v2205, %v2206
    %v2208 = vrot.slane %v2207, 1
    %v2209 = vmax.f32 %v2207, %v2208
    %v2210 = vsel %vm1551, %v1237, -inf
    %v2211 = vrot.slane %v2210, 4
    %v2212 = vmax.f32 %v2210, %v2211
    %v2213 = vrot.slane %v2212, 2
    %v2214 = vmax.f32 %v2212, %v2213
    %v2215 = vrot.slane %v2214, 1
    %v2216 = vmax.f32 %v2214, %v2215
    %v2217 = vsel %vm1551, %v1238, -inf
    %v2218 = vrot.slane %v2217, 4
    %v2219 = vmax.f32 %v2217, %v2218
    %v2220 = vrot.slane %v2219, 2
    %v2221 = vmax.f32 %v2219, %v2220
    %v2222 = vrot.slane %v2221, 1
    %v2223 = vmax.f32 %v2221, %v2222
    %v2224 = vsel %vm1551, %v1063, -inf
    %v2225 = vrot.slane %v2224, 4
    %v2226 = vmax.f32 %v2224, %v2225
    %v2227 = vrot.slane %v2226, 2
    %v2228 = vmax.f32 %v2226, %v2227
    %v2229 = vrot.slane %v2228, 1
    %v2230 = vmax.f32 %v2228, %v2229
    %v2231 = vsel %vm1551, %v1239, -inf
    %v2232 = vrot.slane %v2231, 4
    %v2233 = vmax.f32 %v2231, %v2232
    %v2234 = vrot.slane %v2233, 2
    %v2235 = vmax.f32 %v2233, %v2234
    %v2236 = vrot.slane %v2235, 1
    %v2237 = vmax.f32 %v2235, %v2236
    %v2238 = vsel %vm1551, %v1240, -inf
    %v2239 = vrot.slane %v2238, 4
    %v2240 = vmax.f32 %v2238, %v2239
    %v2241 = vrot.slane %v2240, 2
    %v2242 = vmax.f32 %v2240, %v2241
    %v2243 = vrot.slane %v2242, 1
    %v2244 = vmax.f32 %v2242, %v2243
    %v2245 = vsel %vm1551, %v1241, -inf
    %v2246 = vrot.slane %v2245, 4
    %v2247 = vmax.f32 %v2245, %v2246
    %v2248 = vrot.slane %v2247, 2
    %v2249 = vmax.f32 %v2247, %v2248
    %v2250 = vrot.slane %v2249, 1
    %v2251 = vmax.f32 %v2249, %v2250
    %v2252 = vsel %vm1551, %v1064, -inf
    %v2253 = vrot.slane %v2252, 4
    %v2254 = vmax.f32 %v2252, %v2253
    %v2255 = vrot.slane %v2254, 2
    %v2256 = vmax.f32 %v2254, %v2255
    %v2257 = vrot.slane %v2256, 1
    %v2258 = vmax.f32 %v2256, %v2257
    %v2259 = vsel %vm1551, %v1242, -inf
    %v2260 = vrot.slane %v2259, 4
    %v2261 = vmax.f32 %v2259, %v2260
    %v2262 = vrot.slane %v2261, 2
    %v2263 = vmax.f32 %v2261, %v2262
    %v2264 = vrot.slane %v2263, 1
    %v2265 = vmax.f32 %v2263, %v2264
    %v2266 = vsel %vm1551, %v1243, -inf
    %v2267 = vrot.slane %v2266, 4
    %v2268 = vmax.f32 %v2266, %v2267
    %v2269 = vrot.slane %v2268, 2
    %v2270 = vmax.f32 %v2268, %v2269
    %v2271 = vrot.slane %v2270, 1
    %v2272 = vmax.f32 %v2270, %v2271
    %v2273 = vsel %vm1551, %v1244, -inf
    %v2274 = vrot.slane %v2273, 4
    %v2275 = vmax.f32 %v2273, %v2274
    %v2276 = vrot.slane %v2275, 2
    %v2277 = vmax.f32 %v2275, %v2276
    %v2278 = vrot.slane %v2277, 1
    %v2279 = vmax.f32 %v2277, %v2278
    %v2280 = vsel %vm1551, %v1065, -inf
    %v2281 = vrot.slane %v2280, 4
    %v2282 = vmax.f32 %v2280, %v2281
    %v2283 = vrot.slane %v2282, 2
    %v2284 = vmax.f32 %v2282, %v2283
    %v2285 = vrot.slane %v2284, 1
    %v2286 = vmax.f32 %v2284, %v2285
    %v2287 = vsel %vm1551, %v1245, -inf
    %v2288 = vrot.slane %v2287, 4
    %v2289 = vmax.f32 %v2287, %v2288
    %v2290 = vrot.slane %v2289, 2
    %v2291 = vmax.f32 %v2289, %v2290
    %v2292 = vrot.slane %v2291, 1
    %v2293 = vmax.f32 %v2291, %v2292
    %v2294 = vsel %vm1551, %v1246, -inf
    %v2295 = vrot.slane %v2294, 4
    %v2296 = vmax.f32 %v2294, %v2295
    %v2297 = vrot.slane %v2296, 2
    %v2298 = vmax.f32 %v2296, %v2297
    %v2299 = vrot.slane %v2298, 1
    %v2300 = vmax.f32 %v2298, %v2299
    %v2301 = vsel %vm1551, %v1247, -inf
    %v2302 = vrot.slane %v2301, 4
    %v2303 = vmax.f32 %v2301, %v2302
    %v2304 = vrot.slane %v2303, 2
    %v2305 = vmax.f32 %v2303, %v2304
    %v2306 = vrot.slane %v2305, 1
    %v2307 = vmax.f32 %v2305, %v2306
    %v2308 = vsel %vm1551, %v1066, -inf
    %v2309 = vrot.slane %v2308, 4
    %v2310 = vmax.f32 %v2308, %v2309
    %v2311 = vrot.slane %v2310, 2
    %v2312 = vmax.f32 %v2310, %v2311
    %v2313 = vrot.slane %v2312, 1
    %v2314 = vmax.f32 %v2312, %v2313
    %v2315 = vsel %vm1551, %v1248, -inf
    %v2316 = vrot.slane %v2315, 4
    %v2317 = vmax.f32 %v2315, %v2316
    %v2318 = vrot.slane %v2317, 2
    %v2319 = vmax.f32 %v2317, %v2318
    %v2320 = vrot.slane %v2319, 1
    %v2321 = vmax.f32 %v2319, %v2320
    %v2322 = vsel %vm1551, %v1249, -inf
    %v2323 = vrot.slane %v2322, 4
    %v2324 = vmax.f32 %v2322, %v2323
    %v2325 = vrot.slane %v2324, 2
    %v2326 = vmax.f32 %v2324, %v2325
    %v2327 = vrot.slane %v2326, 1
    %v2328 = vmax.f32 %v2326, %v2327
    %v2329 = vsel %vm1551, %v1250, -inf
    %v2330 = vrot.slane %v2329, 4
    %v2331 = vmax.f32 %v2329, %v2330
    %v2332 = vrot.slane %v2331, 2
    %v2333 = vmax.f32 %v2331, %v2332
    %v2334 = vrot.slane %v2333, 1
    %v2335 = vmax.f32 %v2333, %v2334
    %v2336 = vsel %vm1551, %v1067, -inf
    %v2337 = vrot.slane %v2336, 4
    %v2338 = vmax.f32 %v2336, %v2337
    %v2339 = vrot.slane %v2338, 2
    %v2340 = vmax.f32 %v2338, %v2339
    %v2341 = vrot.slane %v2340, 1
    %v2342 = vmax.f32 %v2340, %v2341
    %v2343 = vsel %vm1551, %v1251, -inf
    %v2344 = vrot.slane %v2343, 4
    %v2345 = vmax.f32 %v2343, %v2344
    %v2346 = vrot.slane %v2345, 2
    %v2347 = vmax.f32 %v2345, %v2346
    %v2348 = vrot.slane %v2347, 1
    %v2349 = vmax.f32 %v2347, %v2348
    %v2350 = vsel %vm1551, %v1252, -inf
    %v2351 = vrot.slane %v2350, 4
    %v2352 = vmax.f32 %v2350, %v2351
    %v2353 = vrot.slane %v2352, 2
    %v2354 = vmax.f32 %v2352, %v2353
    %v2355 = vrot.slane %v2354, 1
    %v2356 = vmax.f32 %v2354, %v2355
    %v2357 = vsel %vm1551, %v1253, -inf
    %v2358 = vrot.slane %v2357, 4
    %v2359 = vmax.f32 %v2357, %v2358
    %v2360 = vrot.slane %v2359, 2
    %v2361 = vmax.f32 %v2359, %v2360
    %v2362 = vrot.slane %v2361, 1
    %v2363 = vmax.f32 %v2361, %v2362
    %v2364 = vsel %vm1551, %v1068, -inf
    %v2365 = vrot.slane %v2364, 4
    %v2366 = vmax.f32 %v2364, %v2365
    %v2367 = vrot.slane %v2366, 2
    %v2368 = vmax.f32 %v2366, %v2367
    %v2369 = vrot.slane %v2368, 1
    %v2370 = vmax.f32 %v2368, %v2369
    %v2371 = vsel %vm1551, %v1254, -inf
    %v2372 = vrot.slane %v2371, 4
    %v2373 = vmax.f32 %v2371, %v2372
    %v2374 = vrot.slane %v2373, 2
    %v2375 = vmax.f32 %v2373, %v2374
    %v2376 = vrot.slane %v2375, 1
    %v2377 = vmax.f32 %v2375, %v2376
    %v2378 = vsel %vm1551, %v1255, -inf
    %v2379 = vrot.slane %v2378, 4
    %v2380 = vmax.f32 %v2378, %v2379
    %v2381 = vrot.slane %v2380, 2
    %v2382 = vmax.f32 %v2380, %v2381
    %v2383 = vrot.slane %v2382, 1
    %v2384 = vmax.f32 %v2382, %v2383
    %v2385 = vsel %vm1551, %v1256, -inf
    %v2386 = vrot.slane %v2385, 4
    %v2387 = vmax.f32 %v2385, %v2386
    %v2388 = vrot.slane %v2387, 2
    %v2389 = vmax.f32 %v2387, %v2388
    %v2390 = vrot.slane %v2389, 1
    %v2391 = vmax.f32 %v2389, %v2390
    %v2392 = vsel %vm1551, %v1069, -inf
    %v2393 = vrot.slane %v2392, 4
    %v2394 = vmax.f32 %v2392, %v2393
    %v2395 = vrot.slane %v2394, 2
    %v2396 = vmax.f32 %v2394, %v2395
    %v2397 = vrot.slane %v2396, 1
    %v2398 = vmax.f32 %v2396, %v2397
    %v2399 = vsel %vm1551, %v1257, -inf
    %v2400 = vrot.slane %v2399, 4
    %v2401 = vmax.f32 %v2399, %v2400
    %v2402 = vrot.slane %v2401, 2
    %v2403 = vmax.f32 %v2401, %v2402
    %v2404 = vrot.slane %v2403, 1
    %v2405 = vmax.f32 %v2403, %v2404
    %v2406 = vsel %vm1551, %v1258, -inf
    %v2407 = vrot.slane %v2406, 4
    %v2408 = vmax.f32 %v2406, %v2407
    %v2409 = vrot.slane %v2408, 2
    %v2410 = vmax.f32 %v2408, %v2409
    %v2411 = vrot.slane %v2410, 1
    %v2412 = vmax.f32 %v2410, %v2411
    %v2413 = vsel %vm1551, %v1259, -inf
    %v2414 = vrot.slane %v2413, 4
    %v2415 = vmax.f32 %v2413, %v2414
    %v2416 = vrot.slane %v2415, 2
    %v2417 = vmax.f32 %v2415, %v2416
    %v2418 = vrot.slane %v2417, 1
    %v2419 = vmax.f32 %v2417, %v2418
    %v2420 = vsel %vm1551, %v1070, -inf
    %v2421 = vrot.slane %v2420, 4
    %v2422 = vmax.f32 %v2420, %v2421
    %v2423 = vrot.slane %v2422, 2
    %v2424 = vmax.f32 %v2422, %v2423
    %v2425 = vrot.slane %v2424, 1
    %v2426 = vmax.f32 %v2424, %v2425
    %v2427 = vsel %vm1551, %v1260, -inf
    %v2428 = vrot.slane %v2427, 4
    %v2429 = vmax.f32 %v2427, %v2428
    %v2430 = vrot.slane %v2429, 2
    %v2431 = vmax.f32 %v2429, %v2430
    %v2432 = vrot.slane %v2431, 1
    %v2433 = vmax.f32 %v2431, %v2432
    %v2434 = vsel %vm1551, %v1261, -inf
    %v2435 = vrot.slane %v2434, 4
    %v2436 = vmax.f32 %v2434, %v2435
    %v2437 = vrot.slane %v2436, 2
    %v2438 = vmax.f32 %v2436, %v2437
    %v2439 = vrot.slane %v2438, 1
    %v2440 = vmax.f32 %v2438, %v2439
    %v2441 = vsel %vm1551, %v1262, -inf
    %v2442 = vrot.slane %v2441, 4
    %v2443 = vmax.f32 %v2441, %v2442
    %v2444 = vrot.slane %v2443, 2
    %v2445 = vmax.f32 %v2443, %v2444
    %v2446 = vrot.slane %v2445, 1
    %v2447 = vmax.f32 %v2445, %v2446
    %v2448 = vsel %vm1551, %v1071, -inf
    %v2449 = vrot.slane %v2448, 4
    %v2450 = vmax.f32 %v2448, %v2449
    %v2451 = vrot.slane %v2450, 2
    %v2452 = vmax.f32 %v2450, %v2451
    %v2453 = vrot.slane %v2452, 1
    %v2454 = vmax.f32 %v2452, %v2453
    %v2455 = vsel %vm1551, %v1263, -inf
    %v2456 = vrot.slane %v2455, 4
    %v2457 = vmax.f32 %v2455, %v2456
    %v2458 = vrot.slane %v2457, 2
    %v2459 = vmax.f32 %v2457, %v2458
    %v2460 = vrot.slane %v2459, 1
    %v2461 = vmax.f32 %v2459, %v2460
    %v2462 = vsel %vm1551, %v1264, -inf
    %v2463 = vrot.slane %v2462, 4
    %v2464 = vmax.f32 %v2462, %v2463
    %v2465 = vrot.slane %v2464, 2
    %v2466 = vmax.f32 %v2464, %v2465
    %v2467 = vrot.slane %v2466, 1
    %v2468 = vmax.f32 %v2466, %v2467
    %v2469 = vsel %vm1551, %v1265, -inf
    %v2470 = vrot.slane %v2469, 4
    %v2471 = vmax.f32 %v2469, %v2470
    %v2472 = vrot.slane %v2471, 2
    %v2473 = vmax.f32 %v2471, %v2472
    %v2474 = vrot.slane %v2473, 1
    %v2475 = vmax.f32 %v2473, %v2474
    %v2476 = vsel %vm1551, %v1072, -inf
    %v2477 = vrot.slane %v2476, 4
    %v2478 = vmax.f32 %v2476, %v2477
    %v2479 = vrot.slane %v2478, 2
    %v2480 = vmax.f32 %v2478, %v2479
    %v2481 = vrot.slane %v2480, 1
    %v2482 = vmax.f32 %v2480, %v2481
    %v2483 = vsel %vm1551, %v1266, -inf
    %v2484 = vrot.slane %v2483, 4
    %v2485 = vmax.f32 %v2483, %v2484
    %v2486 = vrot.slane %v2485, 2
    %v2487 = vmax.f32 %v2485, %v2486
    %v2488 = vrot.slane %v2487, 1
    %v2489 = vmax.f32 %v2487, %v2488
    %v2490 = vsel %vm1551, %v1267, -inf
    %v2491 = vrot.slane %v2490, 4
    %v2492 = vmax.f32 %v2490, %v2491
    %v2493 = vrot.slane %v2492, 2
    %v2494 = vmax.f32 %v2492, %v2493
    %v2495 = vrot.slane %v2494, 1
    %v2496 = vmax.f32 %v2494, %v2495
    %v2497 = vsel %vm1551, %v1268, -inf
    %v2498 = vrot.slane %v2497, 4
    %v2499 = vmax.f32 %v2497, %v2498
    %v2500 = vrot.slane %v2499, 2
    %v2501 = vmax.f32 %v2499, %v2500
    %v2502 = vrot.slane %v2501, 1
    %v2503 = vmax.f32 %v2501, %v2502
    %v2504 = vsel %vm1551, %v1073, -inf
    %v2505 = vrot.slane %v2504, 4
    %v2506 = vmax.f32 %v2504, %v2505
    %v2507 = vrot.slane %v2506, 2
    %v2508 = vmax.f32 %v2506, %v2507
    %v2509 = vrot.slane %v2508, 1
    %v2510 = vmax.f32 %v2508, %v2509
    %v2511 = vsel %vm1551, %v1269, -inf
    %v2512 = vrot.slane %v2511, 4
    %v2513 = vmax.f32 %v2511, %v2512
    %v2514 = vrot.slane %v2513, 2
    %v2515 = vmax.f32 %v2513, %v2514
    %v2516 = vrot.slane %v2515, 1
    %v2517 = vmax.f32 %v2515, %v2516
    %v2518 = vsel %vm1551, %v1270, -inf
    %v2519 = vrot.slane %v2518, 4
    %v2520 = vmax.f32 %v2518, %v2519
    %v2521 = vrot.slane %v2520, 2
    %v2522 = vmax.f32 %v2520, %v2521
    %v2523 = vrot.slane %v2522, 1
    %v2524 = vmax.f32 %v2522, %v2523
    %v2525 = vsel %vm1551, %v1271, -inf
    %v2526 = vrot.slane %v2525, 4
    %v2527 = vmax.f32 %v2525, %v2526
    %v2528 = vrot.slane %v2527, 2
    %v2529 = vmax.f32 %v2527, %v2528
    %v2530 = vrot.slane %v2529, 1
    %v2531 = vmax.f32 %v2529, %v2530
    %v2532 = vsel %vm1551, %v1074, -inf
    %v2533 = vrot.slane %v2532, 4
    %v2534 = vmax.f32 %v2532, %v2533
    %v2535 = vrot.slane %v2534, 2
    %v2536 = vmax.f32 %v2534, %v2535
    %v2537 = vrot.slane %v2536, 1
    %v2538 = vmax.f32 %v2536, %v2537
    %v2539 = vsel %vm1551, %v1272, -inf
    %v2540 = vrot.slane %v2539, 4
    %v2541 = vmax.f32 %v2539, %v2540
    %v2542 = vrot.slane %v2541, 2
    %v2543 = vmax.f32 %v2541, %v2542
    %v2544 = vrot.slane %v2543, 1
    %v2545 = vmax.f32 %v2543, %v2544
    %v2546 = vsel %vm1551, %v1273, -inf
    %v2547 = vrot.slane %v2546, 4
    %v2548 = vmax.f32 %v2546, %v2547
    %v2549 = vrot.slane %v2548, 2
    %v2550 = vmax.f32 %v2548, %v2549
    %v2551 = vrot.slane %v2550, 1
    %v2552 = vmax.f32 %v2550, %v2551
    %v2553 = vsel %vm1551, %v1274, -inf
    %v2554 = vrot.slane %v2553, 4
    %v2555 = vmax.f32 %v2553, %v2554
    %v2556 = vrot.slane %v2555, 2
    %v2557 = vmax.f32 %v2555, %v2556
    %v2558 = vrot.slane %v2557, 1
    %v2559 = vmax.f32 %v2557, %v2558
    %v2560 = vsel %vm1551, %v1075, -inf
    %v2561 = vrot.slane %v2560, 4
    %v2562 = vmax.f32 %v2560, %v2561
    %v2563 = vrot.slane %v2562, 2
    %v2564 = vmax.f32 %v2562, %v2563
    %v2565 = vrot.slane %v2564, 1
    %v2566 = vmax.f32 %v2564, %v2565
    %v2567 = vsel %vm1551, %v1275, -inf
    %v2568 = vrot.slane %v2567, 4
    %v2569 = vmax.f32 %v2567, %v2568
    %v2570 = vrot.slane %v2569, 2
    %v2571 = vmax.f32 %v2569, %v2570
    %v2572 = vrot.slane %v2571, 1
    %v2573 = vmax.f32 %v2571, %v2572
    %v2574 = vsel %vm1551, %v1276, -inf
    %v2575 = vrot.slane %v2574, 4
    %v2576 = vmax.f32 %v2574, %v2575
    %v2577 = vrot.slane %v2576, 2
    %v2578 = vmax.f32 %v2576, %v2577
    %v2579 = vrot.slane %v2578, 1
    %v2580 = vmax.f32 %v2578, %v2579
    %v2581 = vsel %vm1551, %v1277, -inf
    %v2582 = vrot.slane %v2581, 4
    %v2583 = vmax.f32 %v2581, %v2582
    %v2584 = vrot.slane %v2583, 2
    %v2585 = vmax.f32 %v2583, %v2584
    %v2586 = vrot.slane %v2585, 1
    %v2587 = vmax.f32 %v2585, %v2586
    %v2588 = vsel %vm1551, %v1076, -inf
    %v2589 = vrot.slane %v2588, 4
    %v2590 = vmax.f32 %v2588, %v2589
    %v2591 = vrot.slane %v2590, 2
    %v2592 = vmax.f32 %v2590, %v2591
    %v2593 = vrot.slane %v2592, 1
    %v2594 = vmax.f32 %v2592, %v2593
    %v2595 = vsel %vm1551, %v1278, -inf
    %v2596 = vrot.slane %v2595, 4
    %v2597 = vmax.f32 %v2595, %v2596
    %v2598 = vrot.slane %v2597, 2
    %v2599 = vmax.f32 %v2597, %v2598
    %v2600 = vrot.slane %v2599, 1
    %v2601 = vmax.f32 %v2599, %v2600
    %v2602 = vsel %vm1551, %v1279, -inf
    %v2603 = vrot.slane %v2602, 4
    %v2604 = vmax.f32 %v2602, %v2603
    %v2605 = vrot.slane %v2604, 2
    %v2606 = vmax.f32 %v2604, %v2605
    %v2607 = vrot.slane %v2606, 1
    %v2608 = vmax.f32 %v2606, %v2607
    %v2609 = vsel %vm1551, %v1280, -inf
    %v2610 = vrot.slane %v2609, 4
    %v2611 = vmax.f32 %v2609, %v2610
    %v2612 = vrot.slane %v2611, 2
    %v2613 = vmax.f32 %v2611, %v2612
    %v2614 = vrot.slane %v2613, 1
    %v2615 = vmax.f32 %v2613, %v2614
    %v2616 = vsel %vm1551, %v1077, -inf
    %v2617 = vrot.slane %v2616, 4
    %v2618 = vmax.f32 %v2616, %v2617
    %v2619 = vrot.slane %v2618, 2
    %v2620 = vmax.f32 %v2618, %v2619
    %v2621 = vrot.slane %v2620, 1
    %v2622 = vmax.f32 %v2620, %v2621
    %v2623 = vsel %vm1551, %v1281, -inf
    %v2624 = vrot.slane %v2623, 4
    %v2625 = vmax.f32 %v2623, %v2624
    %v2626 = vrot.slane %v2625, 2
    %v2627 = vmax.f32 %v2625, %v2626
    %v2628 = vrot.slane %v2627, 1
    %v2629 = vmax.f32 %v2627, %v2628
    %v2630 = vsel %vm1551, %v1282, -inf
    %v2631 = vrot.slane %v2630, 4
    %v2632 = vmax.f32 %v2630, %v2631
    %v2633 = vrot.slane %v2632, 2
    %v2634 = vmax.f32 %v2632, %v2633
    %v2635 = vrot.slane %v2634, 1
    %v2636 = vmax.f32 %v2634, %v2635
    %v2637 = vsel %vm1551, %v1283, -inf
    %v2638 = vrot.slane %v2637, 4
    %v2639 = vmax.f32 %v2637, %v2638
    %v2640 = vrot.slane %v2639, 2
    %v2641 = vmax.f32 %v2639, %v2640
    %v2642 = vrot.slane %v2641, 1
    %v2643 = vmax.f32 %v2641, %v2642
    %v2644 = vsel %vm1551, %v1078, -inf
    %v2645 = vrot.slane %v2644, 4
    %v2646 = vmax.f32 %v2644, %v2645
    %v2647 = vrot.slane %v2646, 2
    %v2648 = vmax.f32 %v2646, %v2647
    %v2649 = vrot.slane %v2648, 1
    %v2650 = vmax.f32 %v2648, %v2649
    %v2651 = vsel %vm1551, %v1284, -inf
    %v2652 = vrot.slane %v2651, 4
    %v2653 = vmax.f32 %v2651, %v2652
    %v2654 = vrot.slane %v2653, 2
    %v2655 = vmax.f32 %v2653, %v2654
    %v2656 = vrot.slane %v2655, 1
    %v2657 = vmax.f32 %v2655, %v2656
    %v2658 = vsel %vm1551, %v1285, -inf
    %v2659 = vrot.slane %v2658, 4
    %v2660 = vmax.f32 %v2658, %v2659
    %v2661 = vrot.slane %v2660, 2
    %v2662 = vmax.f32 %v2660, %v2661
    %v2663 = vrot.slane %v2662, 1
    %v2664 = vmax.f32 %v2662, %v2663
    %v2665 = vsel %vm1551, %v1286, -inf
    %v2666 = vrot.slane %v2665, 4
    %v2667 = vmax.f32 %v2665, %v2666
    %v2668 = vrot.slane %v2667, 2
    %v2669 = vmax.f32 %v2667, %v2668
    %v2670 = vrot.slane %v2669, 1
    %v2671 = vmax.f32 %v2669, %v2670
    %v2672 = vsel %vm1551, %v1079, -inf
    %v2673 = vrot.slane %v2672, 4
    %v2674 = vmax.f32 %v2672, %v2673
    %v2675 = vrot.slane %v2674, 2
    %v2676 = vmax.f32 %v2674, %v2675
    %v2677 = vrot.slane %v2676, 1
    %v2678 = vmax.f32 %v2676, %v2677
    %v2679 = vsel %vm1551, %v1287, -inf
    %v2680 = vrot.slane %v2679, 4
    %v2681 = vmax.f32 %v2679, %v2680
    %v2682 = vrot.slane %v2681, 2
    %v2683 = vmax.f32 %v2681, %v2682
    %v2684 = vrot.slane %v2683, 1
    %v2685 = vmax.f32 %v2683, %v2684
    %v2686 = vsel %vm1551, %v1288, -inf
    %v2687 = vrot.slane %v2686, 4
    %v2688 = vmax.f32 %v2686, %v2687
    %v2689 = vrot.slane %v2688, 2
    %v2690 = vmax.f32 %v2688, %v2689
    %v2691 = vrot.slane %v2690, 1
    %v2692 = vmax.f32 %v2690, %v2691
    %v2693 = vsel %vm1551, %v1289, -inf
    %v2694 = vrot.slane %v2693, 4
    %v2695 = vmax.f32 %v2693, %v2694
    %v2696 = vrot.slane %v2695, 2
    %v2697 = vmax.f32 %v2695, %v2696
    %v2698 = vrot.slane %v2697, 1
    %v2699 = vmax.f32 %v2697, %v2698
    %v2700 = vsel %vm1551, %v1080, -inf
    %v2701 = vrot.slane %v2700, 4
    %v2702 = vmax.f32 %v2700, %v2701
    %v2703 = vrot.slane %v2702, 2
    %v2704 = vmax.f32 %v2702, %v2703
    %v2705 = vrot.slane %v2704, 1
    %v2706 = vmax.f32 %v2704, %v2705
    %v2707 = vsel %vm1551, %v1290, -inf
    %v2708 = vrot.slane %v2707, 4
    %v2709 = vmax.f32 %v2707, %v2708
    %v2710 = vrot.slane %v2709, 2
    %v2711 = vmax.f32 %v2709, %v2710
    %v2712 = vrot.slane %v2711, 1
    %v2713 = vmax.f32 %v2711, %v2712
    %v2714 = vsel %vm1551, %v1291, -inf
    %v2715 = vrot.slane %v2714, 4
    %v2716 = vmax.f32 %v2714, %v2715
    %v2717 = vrot.slane %v2716, 2
    %v2718 = vmax.f32 %v2716, %v2717
    %v2719 = vrot.slane %v2718, 1
    %v2720 = vmax.f32 %v2718, %v2719
    %v2721 = vsel %vm1551, %v1292, -inf
    %v2722 = vrot.slane %v2721, 4
    %v2723 = vmax.f32 %v2721, %v2722
    %v2724 = vrot.slane %v2723, 2
    %v2725 = vmax.f32 %v2723, %v2724
    %v2726 = vrot.slane %v2725, 1
    %v2727 = vmax.f32 %v2725, %v2726
    %v2728 = vsel %vm1551, %v1081, -inf
    %v2729 = vrot.slane %v2728, 4
    %v2730 = vmax.f32 %v2728, %v2729
    %v2731 = vrot.slane %v2730, 2
    %v2732 = vmax.f32 %v2730, %v2731
    %v2733 = vrot.slane %v2732, 1
    %v2734 = vmax.f32 %v2732, %v2733
    %v2735 = vsel %vm1551, %v1293, -inf
    %v2736 = vrot.slane %v2735, 4
    %v2737 = vmax.f32 %v2735, %v2736
    %v2738 = vrot.slane %v2737, 2
    %v2739 = vmax.f32 %v2737, %v2738
    %v2740 = vrot.slane %v2739, 1
    %v2741 = vmax.f32 %v2739, %v2740
    %v2742 = vsel %vm1551, %v1294, -inf
    %v2743 = vrot.slane %v2742, 4
    %v2744 = vmax.f32 %v2742, %v2743
    %v2745 = vrot.slane %v2744, 2
    %v2746 = vmax.f32 %v2744, %v2745
    %v2747 = vrot.slane %v2746, 1
    %v2748 = vmax.f32 %v2746, %v2747
    %v2749 = vsel %vm1551, %v1295, -inf
    %v2750 = vrot.slane %v2749, 4
    %v2751 = vmax.f32 %v2749, %v2750
    %v2752 = vrot.slane %v2751, 2
    %v2753 = vmax.f32 %v2751, %v2752
    %v2754 = vrot.slane %v2753, 1
    %v2755 = vmax.f32 %v2753, %v2754
    %v2756 = vsel %vm1551, %v1082, -inf
    %v2757 = vrot.slane %v2756, 4
    %v2758 = vmax.f32 %v2756, %v2757
    %v2759 = vrot.slane %v2758, 2
    %v2760 = vmax.f32 %v2758, %v2759
    %v2761 = vrot.slane %v2760, 1
    %v2762 = vmax.f32 %v2760, %v2761
    %v2763 = vsel %vm1551, %v1296, -inf
    %v2764 = vrot.slane %v2763, 4
    %v2765 = vmax.f32 %v2763, %v2764
    %v2766 = vrot.slane %v2765, 2
    %v2767 = vmax.f32 %v2765, %v2766
    %v2768 = vrot.slane %v2767, 1
    %v2769 = vmax.f32 %v2767, %v2768
    %v2770 = vsel %vm1551, %v1297, -inf
    %v2771 = vrot.slane %v2770, 4
    %v2772 = vmax.f32 %v2770, %v2771
    %v2773 = vrot.slane %v2772, 2
    %v2774 = vmax.f32 %v2772, %v2773
    %v2775 = vrot.slane %v2774, 1
    %v2776 = vmax.f32 %v2774, %v2775
    %v2777 = vsel %vm1551, %v1298, -inf
    %v2778 = vrot.slane %v2777, 4
    %v2779 = vmax.f32 %v2777, %v2778
    %v2780 = vrot.slane %v2779, 2
    %v2781 = vmax.f32 %v2779, %v2780
    %v2782 = vrot.slane %v2781, 1
    %v2783 = vmax.f32 %v2781, %v2782
    %v2784 = vsel %vm1551, %v1083, -inf
    %v2785 = vrot.slane %v2784, 4
    %v2786 = vmax.f32 %v2784, %v2785
    %v2787 = vrot.slane %v2786, 2
    %v2788 = vmax.f32 %v2786, %v2787
    %v2789 = vrot.slane %v2788, 1
    %v2790 = vmax.f32 %v2788, %v2789
    %v2791 = vsel %vm1551, %v1299, -inf
    %v2792 = vrot.slane %v2791, 4
    %v2793 = vmax.f32 %v2791, %v2792
    %v2794 = vrot.slane %v2793, 2
    %v2795 = vmax.f32 %v2793, %v2794
    %v2796 = vrot.slane %v2795, 1
    %v2797 = vmax.f32 %v2795, %v2796
    %v2798 = vsel %vm1551, %v1300, -inf
    %v2799 = vrot.slane %v2798, 4
    %v2800 = vmax.f32 %v2798, %v2799
    %v2801 = vrot.slane %v2800, 2
    %v2802 = vmax.f32 %v2800, %v2801
    %v2803 = vrot.slane %v2802, 1
    %v2804 = vmax.f32 %v2802, %v2803
    %v2805 = vsel %vm1551, %v1301, -inf
    %v2806 = vrot.slane %v2805, 4
    %v2807 = vmax.f32 %v2805, %v2806
    %v2808 = vrot.slane %v2807, 2
    %v2809 = vmax.f32 %v2807, %v2808
    %v2810 = vrot.slane %v2809, 1
    %v2811 = vmax.f32 %v2809, %v2810
    %v2812 = vsel %vm1551, %v1084, -inf
    %v2813 = vrot.slane %v2812, 4
    %v2814 = vmax.f32 %v2812, %v2813
    %v2815 = vrot.slane %v2814, 2
    %v2816 = vmax.f32 %v2814, %v2815
    %v2817 = vrot.slane %v2816, 1
    %v2818 = vmax.f32 %v2816, %v2817
    %v2819 = vsel %vm1551, %v1302, -inf
    %v2820 = vrot.slane %v2819, 4
    %v2821 = vmax.f32 %v2819, %v2820
    %v2822 = vrot.slane %v2821, 2
    %v2823 = vmax.f32 %v2821, %v2822
    %v2824 = vrot.slane %v2823, 1
    %v2825 = vmax.f32 %v2823, %v2824
    %v2826 = vsel %vm1551, %v1303, -inf
    %v2827 = vrot.slane %v2826, 4
    %v2828 = vmax.f32 %v2826, %v2827
    %v2829 = vrot.slane %v2828, 2
    %v2830 = vmax.f32 %v2828, %v2829
    %v2831 = vrot.slane %v2830, 1
    %v2832 = vmax.f32 %v2830, %v2831
    %v2833 = vsel %vm1551, %v1304, -inf
    %v2834 = vrot.slane %v2833, 4
    %v2835 = vmax.f32 %v2833, %v2834
    %v2836 = vrot.slane %v2835, 2
    %v2837 = vmax.f32 %v2835, %v2836
    %v2838 = vrot.slane %v2837, 1
    %v2839 = vmax.f32 %v2837, %v2838
    %v2840 = vsel %vm1551, %v1085, -inf
    %v2841 = vrot.slane %v2840, 4
    %v2842 = vmax.f32 %v2840, %v2841
    %v2843 = vrot.slane %v2842, 2
    %v2844 = vmax.f32 %v2842, %v2843
    %v2845 = vrot.slane %v2844, 1
    %v2846 = vmax.f32 %v2844, %v2845
    %v2847 = vsel %vm1551, %v1305, -inf
    %v2848 = vrot.slane %v2847, 4
    %v2849 = vmax.f32 %v2847, %v2848
    %v2850 = vrot.slane %v2849, 2
    %v2851 = vmax.f32 %v2849, %v2850
    %v2852 = vrot.slane %v2851, 1
    %v2853 = vmax.f32 %v2851, %v2852
    %v2854 = vsel %vm1551, %v1306, -inf
    %v2855 = vrot.slane %v2854, 4
    %v2856 = vmax.f32 %v2854, %v2855
    %v2857 = vrot.slane %v2856, 2
    %v2858 = vmax.f32 %v2856, %v2857
    %v2859 = vrot.slane %v2858, 1
    %v2860 = vmax.f32 %v2858, %v2859
    %v2861 = vsel %vm1551, %v1307, -inf
    %v2862 = vrot.slane %v2861, 4
    %v2863 = vmax.f32 %v2861, %v2862
    %v2864 = vrot.slane %v2863, 2
    %v2865 = vmax.f32 %v2863, %v2864
    %v2866 = vrot.slane %v2865, 1
    %v2867 = vmax.f32 %v2865, %v2866
    %v2868 = vsel %vm1551, %v1086, -inf
    %v2869 = vrot.slane %v2868, 4
    %v2870 = vmax.f32 %v2868, %v2869
    %v2871 = vrot.slane %v2870, 2
    %v2872 = vmax.f32 %v2870, %v2871
    %v2873 = vrot.slane %v2872, 1
    %v2874 = vmax.f32 %v2872, %v2873
    %v2875 = vsel %vm1551, %v1308, -inf
    %v2876 = vrot.slane %v2875, 4
    %v2877 = vmax.f32 %v2875, %v2876
    %v2878 = vrot.slane %v2877, 2
    %v2879 = vmax.f32 %v2877, %v2878
    %v2880 = vrot.slane %v2879, 1
    %v2881 = vmax.f32 %v2879, %v2880
    %v2882 = vsel %vm1551, %v1309, -inf
    %v2883 = vrot.slane %v2882, 4
    %v2884 = vmax.f32 %v2882, %v2883
    %v2885 = vrot.slane %v2884, 2
    %v2886 = vmax.f32 %v2884, %v2885
    %v2887 = vrot.slane %v2886, 1
    %v2888 = vmax.f32 %v2886, %v2887
    %v2889 = vsel %vm1551, %v1310, -inf
    %v2890 = vrot.slane %v2889, 4
    %v2891 = vmax.f32 %v2889, %v2890
    %v2892 = vrot.slane %v2891, 2
    %v2893 = vmax.f32 %v2891, %v2892
    %v2894 = vrot.slane %v2893, 1
    %v2895 = vmax.f32 %v2893, %v2894
    %v2896 = vsel %vm1551, %v1087, -inf
    %v2897 = vrot.slane %v2896, 4
    %v2898 = vmax.f32 %v2896, %v2897
    %v2899 = vrot.slane %v2898, 2
    %v2900 = vmax.f32 %v2898, %v2899
    %v2901 = vrot.slane %v2900, 1
    %v2902 = vmax.f32 %v2900, %v2901
    %v2903 = vsel %vm1551, %v1311, -inf
    %v2904 = vrot.slane %v2903, 4
    %v2905 = vmax.f32 %v2903, %v2904
    %v2906 = vrot.slane %v2905, 2
    %v2907 = vmax.f32 %v2905, %v2906
    %v2908 = vrot.slane %v2907, 1
    %v2909 = vmax.f32 %v2907, %v2908
    %v2910 = vsel %vm1551, %v1312, -inf
    %v2911 = vrot.slane %v2910, 4
    %v2912 = vmax.f32 %v2910, %v2911
    %v2913 = vrot.slane %v2912, 2
    %v2914 = vmax.f32 %v2912, %v2913
    %v2915 = vrot.slane %v2914, 1
    %v2916 = vmax.f32 %v2914, %v2915
    %v2917 = vsel %vm1551, %v1313, -inf
    %v2918 = vrot.slane %v2917, 4
    %v2919 = vmax.f32 %v2917, %v2918
    %v2920 = vrot.slane %v2919, 2
    %v2921 = vmax.f32 %v2919, %v2920
    %v2922 = vrot.slane %v2921, 1
    %v2923 = vmax.f32 %v2921, %v2922
    %v2924 = vsel %vm1551, %v1088, -inf
    %v2925 = vrot.slane %v2924, 4
    %v2926 = vmax.f32 %v2924, %v2925
    %v2927 = vrot.slane %v2926, 2
    %v2928 = vmax.f32 %v2926, %v2927
    %v2929 = vrot.slane %v2928, 1
    %v2930 = vmax.f32 %v2928, %v2929
    %v2931 = vsel %vm1551, %v1314, -inf
    %v2932 = vrot.slane %v2931, 4
    %v2933 = vmax.f32 %v2931, %v2932
    %v2934 = vrot.slane %v2933, 2
    %v2935 = vmax.f32 %v2933, %v2934
    %v2936 = vrot.slane %v2935, 1
    %v2937 = vmax.f32 %v2935, %v2936
    %v2938 = vsel %vm1551, %v1315, -inf
    %v2939 = vrot.slane %v2938, 4
    %v2940 = vmax.f32 %v2938, %v2939
    %v2941 = vrot.slane %v2940, 2
    %v2942 = vmax.f32 %v2940, %v2941
    %v2943 = vrot.slane %v2942, 1
    %v2944 = vmax.f32 %v2942, %v2943
    %v2945 = vsel %vm1551, %v1316, -inf
    %v2946 = vrot.slane %v2945, 4
    %v2947 = vmax.f32 %v2945, %v2946
    %v2948 = vrot.slane %v2947, 2
    %v2949 = vmax.f32 %v2947, %v2948
    %v2950 = vrot.slane %v2949, 1
    %v2951 = vmax.f32 %v2949, %v2950
    %v2952 = vsel %vm1551, %v1089, -inf
    %v2953 = vrot.slane %v2952, 4
    %v2954 = vmax.f32 %v2952, %v2953
    %v2955 = vrot.slane %v2954, 2
    %v2956 = vmax.f32 %v2954, %v2955
    %v2957 = vrot.slane %v2956, 1
    %v2958 = vmax.f32 %v2956, %v2957
    %v2959 = vsel %vm1551, %v1317, -inf
    %v2960 = vrot.slane %v2959, 4
    %v2961 = vmax.f32 %v2959, %v2960
    %v2962 = vrot.slane %v2961, 2
    %v2963 = vmax.f32 %v2961, %v2962
    %v2964 = vrot.slane %v2963, 1
    %v2965 = vmax.f32 %v2963, %v2964
    %v2966 = vsel %vm1551, %v1318, -inf
    %v2967 = vrot.slane %v2966, 4
    %v2968 = vmax.f32 %v2966, %v2967
    %v2969 = vrot.slane %v2968, 2
    %v2970 = vmax.f32 %v2968, %v2969
    %v2971 = vrot.slane %v2970, 1
    %v2972 = vmax.f32 %v2970, %v2971
    %v2973 = vsel %vm1551, %v1319, -inf
    %v2974 = vrot.slane %v2973, 4
    %v2975 = vmax.f32 %v2973, %v2974
    %v2976 = vrot.slane %v2975, 2
    %v2977 = vmax.f32 %v2975, %v2976
    %v2978 = vrot.slane %v2977, 1
    %v2979 = vmax.f32 %v2977, %v2978
    %v2980 = vsel %vm1551, %v1090, -inf
    %v2981 = vrot.slane %v2980, 4
    %v2982 = vmax.f32 %v2980, %v2981
    %v2983 = vrot.slane %v2982, 2
    %v2984 = vmax.f32 %v2982, %v2983
    %v2985 = vrot.slane %v2984, 1
    %v2986 = vmax.f32 %v2984, %v2985
    %v2987 = vsel %vm1551, %v1320, -inf
    %v2988 = vrot.slane %v2987, 4
    %v2989 = vmax.f32 %v2987, %v2988
    %v2990 = vrot.slane %v2989, 2
    %v2991 = vmax.f32 %v2989, %v2990
    %v2992 = vrot.slane %v2991, 1
    %v2993 = vmax.f32 %v2991, %v2992
    %v2994 = vsel %vm1551, %v1321, -inf
    %v2995 = vrot.slane %v2994, 4
    %v2996 = vmax.f32 %v2994, %v2995
    %v2997 = vrot.slane %v2996, 2
    %v2998 = vmax.f32 %v2996, %v2997
    %v2999 = vrot.slane %v2998, 1
    %v3000 = vmax.f32 %v2998, %v2999
    %v3001 = vsel %vm1551, %v1322, -inf
    %v3002 = vrot.slane %v3001, 4
    %v3003 = vmax.f32 %v3001, %v3002
    %v3004 = vrot.slane %v3003, 2
    %v3005 = vmax.f32 %v3003, %v3004
    %v3006 = vrot.slane %v3005, 1
    %v3007 = vmax.f32 %v3005, %v3006
    %v3008 = vsel %vm1551, %v1091, -inf
    %v3009 = vrot.slane %v3008, 4
    %v3010 = vmax.f32 %v3008, %v3009
    %v3011 = vrot.slane %v3010, 2
    %v3012 = vmax.f32 %v3010, %v3011
    %v3013 = vrot.slane %v3012, 1
    %v3014 = vmax.f32 %v3012, %v3013
    %v3015 = vsel %vm1551, %v1323, -inf
    %v3016 = vrot.slane %v3015, 4
    %v3017 = vmax.f32 %v3015, %v3016
    %v3018 = vrot.slane %v3017, 2
    %v3019 = vmax.f32 %v3017, %v3018
    %v3020 = vrot.slane %v3019, 1
    %v3021 = vmax.f32 %v3019, %v3020
    %v3022 = vsel %vm1551, %v1324, -inf
    %v3023 = vrot.slane %v3022, 4
    %v3024 = vmax.f32 %v3022, %v3023
    %v3025 = vrot.slane %v3024, 2
    %v3026 = vmax.f32 %v3024, %v3025
    %v3027 = vrot.slane %v3026, 1
    %v3028 = vmax.f32 %v3026, %v3027
    %v3029 = vsel %vm1551, %v1325, -inf
    %v3030 = vrot.slane %v3029, 4
    %v3031 = vmax.f32 %v3029, %v3030
    %v3032 = vrot.slane %v3031, 2
    %v3033 = vmax.f32 %v3031, %v3032
    %v3034 = vrot.slane %v3033, 1
    %v3035 = vmax.f32 %v3033, %v3034
    %v3036 = vsel %vm1551, %v1092, -inf
    %v3037 = vrot.slane %v3036, 4
    %v3038 = vmax.f32 %v3036, %v3037
    %v3039 = vrot.slane %v3038, 2
    %v3040 = vmax.f32 %v3038, %v3039
    %v3041 = vrot.slane %v3040, 1
    %v3042 = vmax.f32 %v3040, %v3041
    %v3043 = vsel %vm1551, %v1326, -inf
    %v3044 = vrot.slane %v3043, 4
    %v3045 = vmax.f32 %v3043, %v3044
    %v3046 = vrot.slane %v3045, 2
    %v3047 = vmax.f32 %v3045, %v3046
    %v3048 = vrot.slane %v3047, 1
    %v3049 = vmax.f32 %v3047, %v3048
    %v3050 = vsel %vm1551, %v1327, -inf
    %v3051 = vrot.slane %v3050, 4
    %v3052 = vmax.f32 %v3050, %v3051
    %v3053 = vrot.slane %v3052, 2
    %v3054 = vmax.f32 %v3052, %v3053
    %v3055 = vrot.slane %v3054, 1
    %v3056 = vmax.f32 %v3054, %v3055
    %v3057 = vsel %vm1551, %v1328, -inf
    %v3058 = vrot.slane %v3057, 4
    %v3059 = vmax.f32 %v3057, %v3058
    %v3060 = vrot.slane %v3059, 2
    %v3061 = vmax.f32 %v3059, %v3060
    %v3062 = vrot.slane %v3061, 1
    %v3063 = vmax.f32 %v3061, %v3062
    %v3064 = vsel %vm1551, %v1093, -inf
    %v3065 = vrot.slane %v3064, 4
    %v3066 = vmax.f32 %v3064, %v3065
    %v3067 = vrot.slane %v3066, 2
    %v3068 = vmax.f32 %v3066, %v3067
    %v3069 = vrot.slane %v3068, 1
    %v3070 = vmax.f32 %v3068, %v3069
    %v3071 = vsel %vm1551, %v1329, -inf
    %v3072 = vrot.slane %v3071, 4
    %v3073 = vmax.f32 %v3071, %v3072
    %v3074 = vrot.slane %v3073, 2
    %v3075 = vmax.f32 %v3073, %v3074
    %v3076 = vrot.slane %v3075, 1
    %v3077 = vmax.f32 %v3075, %v3076
    %v3078 = vsel %vm1551, %v1330, -inf
    %v3079 = vrot.slane %v3078, 4
    %v3080 = vmax.f32 %v3078, %v3079
    %v3081 = vrot.slane %v3080, 2
    %v3082 = vmax.f32 %v3080, %v3081
    %v3083 = vrot.slane %v3082, 1
    %v3084 = vmax.f32 %v3082, %v3083
    %v3085 = vsel %vm1551, %v1331, -inf
    %v3086 = vrot.slane %v3085, 4
    %v3087 = vmax.f32 %v3085, %v3086
    %v3088 = vrot.slane %v3087, 2
    %v3089 = vmax.f32 %v3087, %v3088
    %v3090 = vrot.slane %v3089, 1
    %v3091 = vmax.f32 %v3089, %v3090
    %v3092 = vsel %vm1551, %v1094, -inf
    %v3093 = vrot.slane %v3092, 4
    %v3094 = vmax.f32 %v3092, %v3093
    %v3095 = vrot.slane %v3094, 2
    %v3096 = vmax.f32 %v3094, %v3095
    %v3097 = vrot.slane %v3096, 1
    %v3098 = vmax.f32 %v3096, %v3097
    %v3099 = vsel %vm1551, %v1332, -inf
    %v3100 = vrot.slane %v3099, 4
    %v3101 = vmax.f32 %v3099, %v3100
    %v3102 = vrot.slane %v3101, 2
    %v3103 = vmax.f32 %v3101, %v3102
    %v3104 = vrot.slane %v3103, 1
    %v3105 = vmax.f32 %v3103, %v3104
    %v3106 = vsel %vm1551, %v1333, -inf
    %v3107 = vrot.slane %v3106, 4
    %v3108 = vmax.f32 %v3106, %v3107
    %v3109 = vrot.slane %v3108, 2
    %v3110 = vmax.f32 %v3108, %v3109
    %v3111 = vrot.slane %v3110, 1
    %v3112 = vmax.f32 %v3110, %v3111
    %v3113 = vsel %vm1551, %v1334, -inf
    %v3114 = vrot.slane %v3113, 4
    %v3115 = vmax.f32 %v3113, %v3114
    %v3116 = vrot.slane %v3115, 2
    %v3117 = vmax.f32 %v3115, %v3116
    %v3118 = vrot.slane %v3117, 1
    %v3119 = vmax.f32 %v3117, %v3118
    %v3120 = vsel %vm1551, %v1095, -inf
    %v3121 = vrot.slane %v3120, 4
    %v3122 = vmax.f32 %v3120, %v3121
    %v3123 = vrot.slane %v3122, 2
    %v3124 = vmax.f32 %v3122, %v3123
    %v3125 = vrot.slane %v3124, 1
    %v3126 = vmax.f32 %v3124, %v3125
    %v3127 = vsel %vm1551, %v1335, -inf
    %v3128 = vrot.slane %v3127, 4
    %v3129 = vmax.f32 %v3127, %v3128
    %v3130 = vrot.slane %v3129, 2
    %v3131 = vmax.f32 %v3129, %v3130
    %v3132 = vrot.slane %v3131, 1
    %v3133 = vmax.f32 %v3131, %v3132
    %v3134 = vsel %vm1551, %v1336, -inf
    %v3135 = vrot.slane %v3134, 4
    %v3136 = vmax.f32 %v3134, %v3135
    %v3137 = vrot.slane %v3136, 2
    %v3138 = vmax.f32 %v3136, %v3137
    %v3139 = vrot.slane %v3138, 1
    %v3140 = vmax.f32 %v3138, %v3139
    %v3141 = vsel %vm1551, %v1337, -inf
    %v3142 = vrot.slane %v3141, 4
    %v3143 = vmax.f32 %v3141, %v3142
    %v3144 = vrot.slane %v3143, 2
    %v3145 = vmax.f32 %v3143, %v3144
    %v3146 = vrot.slane %v3145, 1
    %v3147 = vmax.f32 %v3145, %v3146
    %v3148 = vsel %vm1551, %v1096, -inf
    %v3149 = vrot.slane %v3148, 4
    %v3150 = vmax.f32 %v3148, %v3149
    %v3151 = vrot.slane %v3150, 2
    %v3152 = vmax.f32 %v3150, %v3151
    %v3153 = vrot.slane %v3152, 1
    %v3154 = vmax.f32 %v3152, %v3153
    %v3155 = vsel %vm1551, %v1338, -inf
    %v3156 = vrot.slane %v3155, 4
    %v3157 = vmax.f32 %v3155, %v3156
    %v3158 = vrot.slane %v3157, 2
    %v3159 = vmax.f32 %v3157, %v3158
    %v3160 = vrot.slane %v3159, 1
    %v3161 = vmax.f32 %v3159, %v3160
    %v3162 = vsel %vm1551, %v1339, -inf
    %v3163 = vrot.slane %v3162, 4
    %v3164 = vmax.f32 %v3162, %v3163
    %v3165 = vrot.slane %v3164, 2
    %v3166 = vmax.f32 %v3164, %v3165
    %v3167 = vrot.slane %v3166, 1
    %v3168 = vmax.f32 %v3166, %v3167
    %v3169 = vsel %vm1551, %v1340, -inf
    %v3170 = vrot.slane %v3169, 4
    %v3171 = vmax.f32 %v3169, %v3170
    %v3172 = vrot.slane %v3171, 2
    %v3173 = vmax.f32 %v3171, %v3172
    %v3174 = vrot.slane %v3173, 1
    %v3175 = vmax.f32 %v3173, %v3174
    %v3176 = vsel %vm1551, %v1097, -inf
    %v3177 = vrot.slane %v3176, 4
    %v3178 = vmax.f32 %v3176, %v3177
    %v3179 = vrot.slane %v3178, 2
    %v3180 = vmax.f32 %v3178, %v3179
    %v3181 = vrot.slane %v3180, 1
    %v3182 = vmax.f32 %v3180, %v3181
    %v3183 = vsel %vm1551, %v1341, -inf
    %v3184 = vrot.slane %v3183, 4
    %v3185 = vmax.f32 %v3183, %v3184
    %v3186 = vrot.slane %v3185, 2
    %v3187 = vmax.f32 %v3185, %v3186
    %v3188 = vrot.slane %v3187, 1
    %v3189 = vmax.f32 %v3187, %v3188
    %v3190 = vsel %vm1551, %v1342, -inf
    %v3191 = vrot.slane %v3190, 4
    %v3192 = vmax.f32 %v3190, %v3191
    %v3193 = vrot.slane %v3192, 2
    %v3194 = vmax.f32 %v3192, %v3193
    %v3195 = vrot.slane %v3194, 1
    %v3196 = vmax.f32 %v3194, %v3195
    %v3197 = vsel %vm1551, %v1343, -inf
    %v3198 = vrot.slane %v3197, 4
    %v3199 = vmax.f32 %v3197, %v3198
    %v3200 = vrot.slane %v3199, 2
    %v3201 = vmax.f32 %v3199, %v3200
    %v3202 = vrot.slane %v3201, 1
    %v3203 = vmax.f32 %v3201, %v3202
    %v3204 = vsel %vm1551, %v1098, -inf
    %v3205 = vrot.slane %v3204, 4
    %v3206 = vmax.f32 %v3204, %v3205
    %v3207 = vrot.slane %v3206, 2
    %v3208 = vmax.f32 %v3206, %v3207
    %v3209 = vrot.slane %v3208, 1
    %v3210 = vmax.f32 %v3208, %v3209
    %v3211 = vsel %vm1551, %v1344, -inf
    %v3212 = vrot.slane %v3211, 4
    %v3213 = vmax.f32 %v3211, %v3212
    %v3214 = vrot.slane %v3213, 2
    %v3215 = vmax.f32 %v3213, %v3214
    %v3216 = vrot.slane %v3215, 1
    %v3217 = vmax.f32 %v3215, %v3216
    %v3218 = vsel %vm1551, %v1345, -inf
    %v3219 = vrot.slane %v3218, 4
    %v3220 = vmax.f32 %v3218, %v3219
    %v3221 = vrot.slane %v3220, 2
    %v3222 = vmax.f32 %v3220, %v3221
    %v3223 = vrot.slane %v3222, 1
    %v3224 = vmax.f32 %v3222, %v3223
    %v3225 = vsel %vm1551, %v1346, -inf
    %v3226 = vrot.slane %v3225, 4
    %v3227 = vmax.f32 %v3225, %v3226
    %v3228 = vrot.slane %v3227, 2
    %v3229 = vmax.f32 %v3227, %v3228
    %v3230 = vrot.slane %v3229, 1
    %v3231 = vmax.f32 %v3229, %v3230
    %v3232 = vsel %vm1551, %v1099, -inf
    %v3233 = vrot.slane %v3232, 4
    %v3234 = vmax.f32 %v3232, %v3233
    %v3235 = vrot.slane %v3234, 2
    %v3236 = vmax.f32 %v3234, %v3235
    %v3237 = vrot.slane %v3236, 1
    %v3238 = vmax.f32 %v3236, %v3237
    %v3239 = vsel %vm1551, %v1347, -inf
    %v3240 = vrot.slane %v3239, 4
    %v3241 = vmax.f32 %v3239, %v3240
    %v3242 = vrot.slane %v3241, 2
    %v3243 = vmax.f32 %v3241, %v3242
    %v3244 = vrot.slane %v3243, 1
    %v3245 = vmax.f32 %v3243, %v3244
    %v3246 = vsel %vm1551, %v1348, -inf
    %v3247 = vrot.slane %v3246, 4
    %v3248 = vmax.f32 %v3246, %v3247
    %v3249 = vrot.slane %v3248, 2
    %v3250 = vmax.f32 %v3248, %v3249
    %v3251 = vrot.slane %v3250, 1
    %v3252 = vmax.f32 %v3250, %v3251
    %v3253 = vsel %vm1551, %v1349, -inf
    %v3254 = vrot.slane %v3253, 4
    %v3255 = vmax.f32 %v3253, %v3254
    %v3256 = vrot.slane %v3255, 2
    %v3257 = vmax.f32 %v3255, %v3256
    %v3258 = vrot.slane %v3257, 1
    %v3259 = vmax.f32 %v3257, %v3258
    %v3260 = vsel %vm1551, %v1100, -inf
    %v3261 = vrot.slane %v3260, 4
    %v3262 = vmax.f32 %v3260, %v3261
    %v3263 = vrot.slane %v3262, 2
    %v3264 = vmax.f32 %v3262, %v3263
    %v3265 = vrot.slane %v3264, 1
    %v3266 = vmax.f32 %v3264, %v3265
    %v3267 = vsel %vm1551, %v1350, -inf
    %v3268 = vrot.slane %v3267, 4
    %v3269 = vmax.f32 %v3267, %v3268
    %v3270 = vrot.slane %v3269, 2
    %v3271 = vmax.f32 %v3269, %v3270
    %v3272 = vrot.slane %v3271, 1
    %v3273 = vmax.f32 %v3271, %v3272
    %v3274 = vsel %vm1551, %v1351, -inf
    %v3275 = vrot.slane %v3274, 4
    %v3276 = vmax.f32 %v3274, %v3275
    %v3277 = vrot.slane %v3276, 2
    %v3278 = vmax.f32 %v3276, %v3277
    %v3279 = vrot.slane %v3278, 1
    %v3280 = vmax.f32 %v3278, %v3279
    %v3281 = vsel %vm1551, %v1352, -inf
    %v3282 = vrot.slane %v3281, 4
    %v3283 = vmax.f32 %v3281, %v3282
    %v3284 = vrot.slane %v3283, 2
    %v3285 = vmax.f32 %v3283, %v3284
    %v3286 = vrot.slane %v3285, 1
    %v3287 = vmax.f32 %v3285, %v3286
    %v3288 = vsel %vm1551, %v1101, -inf
    %v3289 = vrot.slane %v3288, 4
    %v3290 = vmax.f32 %v3288, %v3289
    %v3291 = vrot.slane %v3290, 2
    %v3292 = vmax.f32 %v3290, %v3291
    %v3293 = vrot.slane %v3292, 1
    %v3294 = vmax.f32 %v3292, %v3293
    %v3295 = vsel %vm1551, %v1353, -inf
    %v3296 = vrot.slane %v3295, 4
    %v3297 = vmax.f32 %v3295, %v3296
    %v3298 = vrot.slane %v3297, 2
    %v3299 = vmax.f32 %v3297, %v3298
    %v3300 = vrot.slane %v3299, 1
    %v3301 = vmax.f32 %v3299, %v3300
    %v3302 = vsel %vm1551, %v1354, -inf
    %v3303 = vrot.slane %v3302, 4
    %v3304 = vmax.f32 %v3302, %v3303
    %v3305 = vrot.slane %v3304, 2
    %v3306 = vmax.f32 %v3304, %v3305
    %v3307 = vrot.slane %v3306, 1
    %v3308 = vmax.f32 %v3306, %v3307
    %v3309 = vsel %vm1551, %v1355, -inf
    %v3310 = vrot.slane %v3309, 4
    %v3311 = vmax.f32 %v3309, %v3310
    %v3312 = vrot.slane %v3311, 2
    %v3313 = vmax.f32 %v3311, %v3312
    %v3314 = vrot.slane %v3313, 1
    %v3315 = vmax.f32 %v3313, %v3314
    %v3316 = vsel %vm1551, %v1102, -inf
    %v3317 = vrot.slane %v3316, 4
    %v3318 = vmax.f32 %v3316, %v3317
    %v3319 = vrot.slane %v3318, 2
    %v3320 = vmax.f32 %v3318, %v3319
    %v3321 = vrot.slane %v3320, 1
    %v3322 = vmax.f32 %v3320, %v3321
    %v3323 = vsel %vm1551, %v1356, -inf
    %v3324 = vrot.slane %v3323, 4
    %v3325 = vmax.f32 %v3323, %v3324
    %v3326 = vrot.slane %v3325, 2
    %v3327 = vmax.f32 %v3325, %v3326
    %v3328 = vrot.slane %v3327, 1
    %v3329 = vmax.f32 %v3327, %v3328
    %v3330 = vsel %vm1551, %v1357, -inf
    %v3331 = vrot.slane %v3330, 4
    %v3332 = vmax.f32 %v3330, %v3331
    %v3333 = vrot.slane %v3332, 2
    %v3334 = vmax.f32 %v3332, %v3333
    %v3335 = vrot.slane %v3334, 1
    %v3336 = vmax.f32 %v3334, %v3335
    %v3337 = vsel %vm1551, %v1358, -inf
    %v3338 = vrot.slane %v3337, 4
    %v3339 = vmax.f32 %v3337, %v3338
    %v3340 = vrot.slane %v3339, 2
    %v3341 = vmax.f32 %v3339, %v3340
    %v3342 = vrot.slane %v3341, 1
    %v3343 = vmax.f32 %v3341, %v3342
    %v3344 = vsel %vm494, %v1558, -inf
    %v3345 = vsel %vm494, %v1614, -inf
    %v3346 = vmax.f32 %v3344, %v3345
    %v3347 = vsel %vm494, %v1565, -inf
    %v3348 = vsel %vm494, %v1621, -inf
    %v3349 = vmax.f32 %v3347, %v3348
    %v3350 = vsel %vm494, %v1572, -inf
    %v3351 = vsel %vm494, %v1628, -inf
    %v3352 = vmax.f32 %v3350, %v3351
    %v3353 = vsel %vm494, %v1579, -inf
    %v3354 = vsel %vm494, %v1635, -inf
    %v3355 = vmax.f32 %v3353, %v3354
    %v3356 = vsel %vm494, %v1586, -inf
    %v3357 = vsel %vm494, %v1642, -inf
    %v3358 = vmax.f32 %v3356, %v3357
    %v3359 = vsel %vm494, %v1593, -inf
    %v3360 = vsel %vm494, %v1649, -inf
    %v3361 = vmax.f32 %v3359, %v3360
    %v3362 = vsel %vm494, %v1600, -inf
    %v3363 = vsel %vm494, %v1656, -inf
    %v3364 = vmax.f32 %v3362, %v3363
    %v3365 = vsel %vm494, %v1607, -inf
    %v3366 = vsel %vm494, %v1663, -inf
    %v3367 = vmax.f32 %v3365, %v3366
    %v3368 = vsel %vm494, %v1670, -inf
    %v3369 = vsel %vm494, %v1726, -inf
    %v3370 = vmax.f32 %v3368, %v3369
    %v3371 = vsel %vm494, %v1677, -inf
    %v3372 = vsel %vm494, %v1733, -inf
    %v3373 = vmax.f32 %v3371, %v3372
    %v3374 = vsel %vm494, %v1684, -inf
    %v3375 = vsel %vm494, %v1740, -inf
    %v3376 = vmax.f32 %v3374, %v3375
    %v3377 = vsel %vm494, %v1691, -inf
    %v3378 = vsel %vm494, %v1747, -inf
    %v3379 = vmax.f32 %v3377, %v3378
    %v3380 = vsel %vm494, %v1698, -inf
    %v3381 = vsel %vm494, %v1754, -inf
    %v3382 = vmax.f32 %v3380, %v3381
    %v3383 = vsel %vm494, %v1705, -inf
    %v3384 = vsel %vm494, %v1761, -inf
    %v3385 = vmax.f32 %v3383, %v3384
    %v3386 = vsel %vm494, %v1712, -inf
    %v3387 = vsel %vm494, %v1768, -inf
    %v3388 = vmax.f32 %v3386, %v3387
    %v3389 = vsel %vm494, %v1719, -inf
    %v3390 = vsel %vm494, %v1775, -inf
    %v3391 = vmax.f32 %v3389, %v3390
    %v3392 = vsel %vm494, %v1782, -inf
    %v3393 = vsel %vm494, %v1838, -inf
    %v3394 = vmax.f32 %v3392, %v3393
    %v3395 = vsel %vm494, %v1789, -inf
    %v3396 = vsel %vm494, %v1845, -inf
    %v3397 = vmax.f32 %v3395, %v3396
    %v3398 = vsel %vm494, %v1796, -inf
    %v3399 = vsel %vm494, %v1852, -inf
    %v3400 = vmax.f32 %v3398, %v3399
    %v3401 = vsel %vm494, %v1803, -inf
    %v3402 = vsel %vm494, %v1859, -inf
    %v3403 = vmax.f32 %v3401, %v3402
    %v3404 = vsel %vm494, %v1810, -inf
    %v3405 = vsel %vm494, %v1866, -inf
    %v3406 = vmax.f32 %v3404, %v3405
    %v3407 = vsel %vm494, %v1817, -inf
    %v3408 = vsel %vm494, %v1873, -inf
    %v3409 = vmax.f32 %v3407, %v3408
    %v3410 = vsel %vm494, %v1824, -inf
    %v3411 = vsel %vm494, %v1880, -inf
    %v3412 = vmax.f32 %v3410, %v3411
    %v3413 = vsel %vm494, %v1831, -inf
    %v3414 = vsel %vm494, %v1887, -inf
    %v3415 = vmax.f32 %v3413, %v3414
    %v3416 = vsel %vm494, %v1894, -inf
    %v3417 = vsel %vm494, %v1950, -inf
    %v3418 = vmax.f32 %v3416, %v3417
    %v3419 = vsel %vm494, %v1901, -inf
    %v3420 = vsel %vm494, %v1957, -inf
    %v3421 = vmax.f32 %v3419, %v3420
    %v3422 = vsel %vm494, %v1908, -inf
    %v3423 = vsel %vm494, %v1964, -inf
    %v3424 = vmax.f32 %v3422, %v3423
    %v3425 = vsel %vm494, %v1915, -inf
    %v3426 = vsel %vm494, %v1971, -inf
    %v3427 = vmax.f32 %v3425, %v3426
    %v3428 = vsel %vm494, %v1922, -inf
    %v3429 = vsel %vm494, %v1978, -inf
    %v3430 = vmax.f32 %v3428, %v3429
    %v3431 = vsel %vm494, %v1929, -inf
    %v3432 = vsel %vm494, %v1985, -inf
    %v3433 = vmax.f32 %v3431, %v3432
    %v3434 = vsel %vm494, %v1936, -inf
    %v3435 = vsel %vm494, %v1992, -inf
    %v3436 = vmax.f32 %v3434, %v3435
    %v3437 = vsel %vm494, %v1943, -inf
    %v3438 = vsel %vm494, %v1999, -inf
    %v3439 = vmax.f32 %v3437, %v3438
    %v3440 = vsel %vm494, %v2006, -inf
    %v3441 = vsel %vm494, %v2062, -inf
    %v3442 = vmax.f32 %v3440, %v3441
    %v3443 = vsel %vm494, %v2013, -inf
    %v3444 = vsel %vm494, %v2069, -inf
    %v3445 = vmax.f32 %v3443, %v3444
    %v3446 = vsel %vm494, %v2020, -inf
    %v3447 = vsel %vm494, %v2076, -inf
    %v3448 = vmax.f32 %v3446, %v3447
    %v3449 = vsel %vm494, %v2027, -inf
    %v3450 = vsel %vm494, %v2083, -inf
    %v3451 = vmax.f32 %v3449, %v3450
    %v3452 = vsel %vm494, %v2034, -inf
    %v3453 = vsel %vm494, %v2090, -inf
    %v3454 = vmax.f32 %v3452, %v3453
    %v3455 = vsel %vm494, %v2041, -inf
    %v3456 = vsel %vm494, %v2097, -inf
    %v3457 = vmax.f32 %v3455, %v3456
    %v3458 = vsel %vm494, %v2048, -inf
    %v3459 = vsel %vm494, %v2104, -inf
    %v3460 = vmax.f32 %v3458, %v3459
    %v3461 = vsel %vm494, %v2055, -inf
    %v3462 = vsel %vm494, %v2111, -inf
    %v3463 = vmax.f32 %v3461, %v3462
    %v3464 = vsel %vm494, %v2118, -inf
    %v3465 = vsel %vm494, %v2174, -inf
    %v3466 = vmax.f32 %v3464, %v3465
    %v3467 = vsel %vm494, %v2125, -inf
    %v3468 = vsel %vm494, %v2181, -inf
    %v3469 = vmax.f32 %v3467, %v3468
    %v3470 = vsel %vm494, %v2132, -inf
    %v3471 = vsel %vm494, %v2188, -inf
    %v3472 = vmax.f32 %v3470, %v3471
    %v3473 = vsel %vm494, %v2139, -inf
    %v3474 = vsel %vm494, %v2195, -inf
    %v3475 = vmax.f32 %v3473, %v3474
    %v3476 = vsel %vm494, %v2146, -inf
    %v3477 = vsel %vm494, %v2202, -inf
    %v3478 = vmax.f32 %v3476, %v3477
    %v3479 = vsel %vm494, %v2153, -inf
    %v3480 = vsel %vm494, %v2209, -inf
    %v3481 = vmax.f32 %v3479, %v3480
    %v3482 = vsel %vm494, %v2160, -inf
    %v3483 = vsel %vm494, %v2216, -inf
    %v3484 = vmax.f32 %v3482, %v3483
    %v3485 = vsel %vm494, %v2167, -inf
    %v3486 = vsel %vm494, %v2223, -inf
    %v3487 = vmax.f32 %v3485, %v3486
    %v3488 = vsel %vm494, %v2230, -inf
    %v3489 = vsel %vm494, %v2286, -inf
    %v3490 = vmax.f32 %v3488, %v3489
    %v3491 = vsel %vm494, %v2237, -inf
    %v3492 = vsel %vm494, %v2293, -inf
    %v3493 = vmax.f32 %v3491, %v3492
    %v3494 = vsel %vm494, %v2244, -inf
    %v3495 = vsel %vm494, %v2300, -inf
    %v3496 = vmax.f32 %v3494, %v3495
    %v3497 = vsel %vm494, %v2251, -inf
    %v3498 = vsel %vm494, %v2307, -inf
    %v3499 = vmax.f32 %v3497, %v3498
    %v3500 = vsel %vm494, %v2258, -inf
    %v3501 = vsel %vm494, %v2314, -inf
    %v3502 = vmax.f32 %v3500, %v3501
    %v3503 = vsel %vm494, %v2265, -inf
    %v3504 = vsel %vm494, %v2321, -inf
    %v3505 = vmax.f32 %v3503, %v3504
    %v3506 = vsel %vm494, %v2272, -inf
    %v3507 = vsel %vm494, %v2328, -inf
    %v3508 = vmax.f32 %v3506, %v3507
    %v3509 = vsel %vm494, %v2279, -inf
    %v3510 = vsel %vm494, %v2335, -inf
    %v3511 = vmax.f32 %v3509, %v3510
    %v3512 = vsel %vm494, %v2342, -inf
    %v3513 = vsel %vm494, %v2398, -inf
    %v3514 = vmax.f32 %v3512, %v3513
    %v3515 = vsel %vm494, %v2349, -inf
    %v3516 = vsel %vm494, %v2405, -inf
    %v3517 = vmax.f32 %v3515, %v3516
    %v3518 = vsel %vm494, %v2356, -inf
    %v3519 = vsel %vm494, %v2412, -inf
    %v3520 = vmax.f32 %v3518, %v3519
    %v3521 = vsel %vm494, %v2363, -inf
    %v3522 = vsel %vm494, %v2419, -inf
    %v3523 = vmax.f32 %v3521, %v3522
    %v3524 = vsel %vm494, %v2370, -inf
    %v3525 = vsel %vm494, %v2426, -inf
    %v3526 = vmax.f32 %v3524, %v3525
    %v3527 = vsel %vm494, %v2377, -inf
    %v3528 = vsel %vm494, %v2433, -inf
    %v3529 = vmax.f32 %v3527, %v3528
    %v3530 = vsel %vm494, %v2384, -inf
    %v3531 = vsel %vm494, %v2440, -inf
    %v3532 = vmax.f32 %v3530, %v3531
    %v3533 = vsel %vm494, %v2391, -inf
    %v3534 = vsel %vm494, %v2447, -inf
    %v3535 = vmax.f32 %v3533, %v3534
    %v3536 = vsel %vm494, %v2454, -inf
    %v3537 = vsel %vm494, %v2510, -inf
    %v3538 = vmax.f32 %v3536, %v3537
    %v3539 = vsel %vm494, %v2461, -inf
    %v3540 = vsel %vm494, %v2517, -inf
    %v3541 = vmax.f32 %v3539, %v3540
    %v3542 = vsel %vm494, %v2468, -inf
    %v3543 = vsel %vm494, %v2524, -inf
    %v3544 = vmax.f32 %v3542, %v3543
    %v3545 = vsel %vm494, %v2475, -inf
    %v3546 = vsel %vm494, %v2531, -inf
    %v3547 = vmax.f32 %v3545, %v3546
    %v3548 = vsel %vm494, %v2482, -inf
    %v3549 = vsel %vm494, %v2538, -inf
    %v3550 = vmax.f32 %v3548, %v3549
    %v3551 = vsel %vm494, %v2489, -inf
    %v3552 = vsel %vm494, %v2545, -inf
    %v3553 = vmax.f32 %v3551, %v3552
    %v3554 = vsel %vm494, %v2496, -inf
    %v3555 = vsel %vm494, %v2552, -inf
    %v3556 = vmax.f32 %v3554, %v3555
    %v3557 = vsel %vm494, %v2503, -inf
    %v3558 = vsel %vm494, %v2559, -inf
    %v3559 = vmax.f32 %v3557, %v3558
    %v3560 = vsel %vm494, %v2566, -inf
    %v3561 = vsel %vm494, %v2622, -inf
    %v3562 = vmax.f32 %v3560, %v3561
    %v3563 = vsel %vm494, %v2573, -inf
    %v3564 = vsel %vm494, %v2629, -inf
    %v3565 = vmax.f32 %v3563, %v3564
    %v3566 = vsel %vm494, %v2580, -inf
    %v3567 = vsel %vm494, %v2636, -inf
    %v3568 = vmax.f32 %v3566, %v3567
    %v3569 = vsel %vm494, %v2587, -inf
    %v3570 = vsel %vm494, %v2643, -inf
    %v3571 = vmax.f32 %v3569, %v3570
    %v3572 = vsel %vm494, %v2594, -inf
    %v3573 = vsel %vm494, %v2650, -inf
    %v3574 = vmax.f32 %v3572, %v3573
    %v3575 = vsel %vm494, %v2601, -inf
    %v3576 = vsel %vm494, %v2657, -inf
    %v3577 = vmax.f32 %v3575, %v3576
    %v3578 = vsel %vm494, %v2608, -inf
    %v3579 = vsel %vm494, %v2664, -inf
    %v3580 = vmax.f32 %v3578, %v3579
    %v3581 = vsel %vm494, %v2615, -inf
    %v3582 = vsel %vm494, %v2671, -inf
    %v3583 = vmax.f32 %v3581, %v3582
    %v3584 = vsel %vm494, %v2678, -inf
    %v3585 = vsel %vm494, %v2734, -inf
    %v3586 = vmax.f32 %v3584, %v3585
    %v3587 = vsel %vm494, %v2685, -inf
    %v3588 = vsel %vm494, %v2741, -inf
    %v3589 = vmax.f32 %v3587, %v3588
    %v3590 = vsel %vm494, %v2692, -inf
    %v3591 = vsel %vm494, %v2748, -inf
    %v3592 = vmax.f32 %v3590, %v3591
    %v3593 = vsel %vm494, %v2699, -inf
    %v3594 = vsel %vm494, %v2755, -inf
    %v3595 = vmax.f32 %v3593, %v3594
    %v3596 = vsel %vm494, %v2706, -inf
    %v3597 = vsel %vm494, %v2762, -inf
    %v3598 = vmax.f32 %v3596, %v3597
    %v3599 = vsel %vm494, %v2713, -inf
    %v3600 = vsel %vm494, %v2769, -inf
    %v3601 = vmax.f32 %v3599, %v3600
    %v3602 = vsel %vm494, %v2720, -inf
    %v3603 = vsel %vm494, %v2776, -inf
    %v3604 = vmax.f32 %v3602, %v3603
    %v3605 = vsel %vm494, %v2727, -inf
    %v3606 = vsel %vm494, %v2783, -inf
    %v3607 = vmax.f32 %v3605, %v3606
    %v3608 = vsel %vm494, %v2790, -inf
    %v3609 = vsel %vm494, %v2846, -inf
    %v3610 = vmax.f32 %v3608, %v3609
    %v3611 = vsel %vm494, %v2797, -inf
    %v3612 = vsel %vm494, %v2853, -inf
    %v3613 = vmax.f32 %v3611, %v3612
    %v3614 = vsel %vm494, %v2804, -inf
    %v3615 = vsel %vm494, %v2860, -inf
    %v3616 = vmax.f32 %v3614, %v3615
    %v3617 = vsel %vm494, %v2811, -inf
    %v3618 = vsel %vm494, %v2867, -inf
    %v3619 = vmax.f32 %v3617, %v3618
    %v3620 = vsel %vm494, %v2818, -inf
    %v3621 = vsel %vm494, %v2874, -inf
    %v3622 = vmax.f32 %v3620, %v3621
    %v3623 = vsel %vm494, %v2825, -inf
    %v3624 = vsel %vm494, %v2881, -inf
    %v3625 = vmax.f32 %v3623, %v3624
    %v3626 = vsel %vm494, %v2832, -inf
    %v3627 = vsel %vm494, %v2888, -inf
    %v3628 = vmax.f32 %v3626, %v3627
    %v3629 = vsel %vm494, %v2839, -inf
    %v3630 = vsel %vm494, %v2895, -inf
    %v3631 = vmax.f32 %v3629, %v3630
    %v3632 = vsel %vm494, %v2902, -inf
    %v3633 = vsel %vm494, %v2958, -inf
    %v3634 = vmax.f32 %v3632, %v3633
    %v3635 = vsel %vm494, %v2909, -inf
    %v3636 = vsel %vm494, %v2965, -inf
    %v3637 = vmax.f32 %v3635, %v3636
    %v3638 = vsel %vm494, %v2916, -inf
    %v3639 = vsel %vm494, %v2972, -inf
    %v3640 = vmax.f32 %v3638, %v3639
    %v3641 = vsel %vm494, %v2923, -inf
    %v3642 = vsel %vm494, %v2979, -inf
    %v3643 = vmax.f32 %v3641, %v3642
    %v3644 = vsel %vm494, %v2930, -inf
    %v3645 = vsel %vm494, %v2986, -inf
    %v3646 = vmax.f32 %v3644, %v3645
    %v3647 = vsel %vm494, %v2937, -inf
    %v3648 = vsel %vm494, %v2993, -inf
    %v3649 = vmax.f32 %v3647, %v3648
    %v3650 = vsel %vm494, %v2944, -inf
    %v3651 = vsel %vm494, %v3000, -inf
    %v3652 = vmax.f32 %v3650, %v3651
    %v3653 = vsel %vm494, %v2951, -inf
    %v3654 = vsel %vm494, %v3007, -inf
    %v3655 = vmax.f32 %v3653, %v3654
    %v3656 = vsel %vm494, %v3014, -inf
    %v3657 = vsel %vm494, %v3070, -inf
    %v3658 = vmax.f32 %v3656, %v3657
    %v3659 = vsel %vm494, %v3021, -inf
    %v3660 = vsel %vm494, %v3077, -inf
    %v3661 = vmax.f32 %v3659, %v3660
    %v3662 = vsel %vm494, %v3028, -inf
    %v3663 = vsel %vm494, %v3084, -inf
    %v3664 = vmax.f32 %v3662, %v3663
    %v3665 = vsel %vm494, %v3035, -inf
    %v3666 = vsel %vm494, %v3091, -inf
    %v3667 = vmax.f32 %v3665, %v3666
    %v3668 = vsel %vm494, %v3042, -inf
    %v3669 = vsel %vm494, %v3098, -inf
    %v3670 = vmax.f32 %v3668, %v3669
    %v3671 = vsel %vm494, %v3049, -inf
    %v3672 = vsel %vm494, %v3105, -inf
    %v3673 = vmax.f32 %v3671, %v3672
    %v3674 = vsel %vm494, %v3056, -inf
    %v3675 = vsel %vm494, %v3112, -inf
    %v3676 = vmax.f32 %v3674, %v3675
    %v3677 = vsel %vm494, %v3063, -inf
    %v3678 = vsel %vm494, %v3119, -inf
    %v3679 = vmax.f32 %v3677, %v3678
    %v3680 = vsel %vm494, %v3126, -inf
    %v3681 = vsel %vm494, %v3182, -inf
    %v3682 = vmax.f32 %v3680, %v3681
    %v3683 = vsel %vm494, %v3133, -inf
    %v3684 = vsel %vm494, %v3189, -inf
    %v3685 = vmax.f32 %v3683, %v3684
    %v3686 = vsel %vm494, %v3140, -inf
    %v3687 = vsel %vm494, %v3196, -inf
    %v3688 = vmax.f32 %v3686, %v3687
    %v3689 = vsel %vm494, %v3147, -inf
    %v3690 = vsel %vm494, %v3203, -inf
    %v3691 = vmax.f32 %v3689, %v3690
    %v3692 = vsel %vm494, %v3154, -inf
    %v3693 = vsel %vm494, %v3210, -inf
    %v3694 = vmax.f32 %v3692, %v3693
    %v3695 = vsel %vm494, %v3161, -inf
    %v3696 = vsel %vm494, %v3217, -inf
    %v3697 = vmax.f32 %v3695, %v3696
    %v3698 = vsel %vm494, %v3168, -inf
    %v3699 = vsel %vm494, %v3224, -inf
    %v3700 = vmax.f32 %v3698, %v3699
    %v3701 = vsel %vm494, %v3175, -inf
    %v3702 = vsel %vm494, %v3231, -inf
    %v3703 = vmax.f32 %v3701, %v3702
    %v3704 = vsel %vm494, %v3238, -inf
    %v3705 = vsel %vm494, %v3294, -inf
    %v3706 = vmax.f32 %v3704, %v3705
    %v3707 = vsel %vm494, %v3245, -inf
    %v3708 = vsel %vm494, %v3301, -inf
    %v3709 = vmax.f32 %v3707, %v3708
    %v3710 = vsel %vm494, %v3252, -inf
    %v3711 = vsel %vm494, %v3308, -inf
    %v3712 = vmax.f32 %v3710, %v3711
    %v3713 = vsel %vm494, %v3259, -inf
    %v3714 = vsel %vm494, %v3315, -inf
    %v3715 = vmax.f32 %v3713, %v3714
    %v3716 = vsel %vm494, %v3266, -inf
    %v3717 = vsel %vm494, %v3322, -inf
    %v3718 = vmax.f32 %v3716, %v3717
    %v3719 = vsel %vm494, %v3273, -inf
    %v3720 = vsel %vm494, %v3329, -inf
    %v3721 = vmax.f32 %v3719, %v3720
    %v3722 = vsel %vm494, %v3280, -inf
    %v3723 = vsel %vm494, %v3336, -inf
    %v3724 = vmax.f32 %v3722, %v3723
    %v3725 = vsel %vm494, %v3287, -inf
    %v3726 = vsel %vm494, %v3343, -inf
    %v3727 = vmax.f32 %v3725, %v3726
    %v3728 = vmax.f32 %v3346, 0.0
    %v3729 = vmax.f32 %v3349, 0.0
    %v3730 = vmax.f32 %v3352, 0.0
    %v3731 = vmax.f32 %v3355, 0.0
    %v3732 = vmax.f32 %v3358, 0.0
    %v3733 = vmax.f32 %v3361, 0.0
    %v3734 = vmax.f32 %v3364, 0.0
    %v3735 = vmax.f32 %v3367, 0.0
    %v3736 = vmax.f32 %v3370, 0.0
    %v3737 = vmax.f32 %v3373, 0.0
    %v3738 = vmax.f32 %v3376, 0.0
    %v3739 = vmax.f32 %v3379, 0.0
    %v3740 = vmax.f32 %v3382, 0.0
    %v3741 = vmax.f32 %v3385, 0.0
    %v3742 = vmax.f32 %v3388, 0.0
    %v3743 = vmax.f32 %v3391, 0.0
    %v3744 = vmax.f32 %v3394, 0.0
    %v3745 = vmax.f32 %v3397, 0.0
    %v3746 = vmax.f32 %v3400, 0.0
    %v3747 = vmax.f32 %v3403, 0.0
    %v3748 = vmax.f32 %v3406, 0.0
    %v3749 = vmax.f32 %v3409, 0.0
    %v3750 = vmax.f32 %v3412, 0.0
    %v3751 = vmax.f32 %v3415, 0.0
    %v3752 = vmax.f32 %v3418, 0.0
    %v3753 = vmax.f32 %v3421, 0.0
    %v3754 = vmax.f32 %v3424, 0.0
    %v3755 = vmax.f32 %v3427, 0.0
    %v3756 = vmax.f32 %v3430, 0.0
    %v3757 = vmax.f32 %v3433, 0.0
    %v3758 = vmax.f32 %v3436, 0.0
    %v3759 = vmax.f32 %v3439, 0.0
    %v3760 = vmax.f32 %v3442, 0.0
    %v3761 = vmax.f32 %v3445, 0.0
    %v3762 = vmax.f32 %v3448, 0.0
    %v3763 = vmax.f32 %v3451, 0.0
    %v3764 = vmax.f32 %v3454, 0.0
    %v3765 = vmax.f32 %v3457, 0.0
    %v3766 = vmax.f32 %v3460, 0.0
    %v3767 = vmax.f32 %v3463, 0.0
    %v3768 = vmax.f32 %v3466, 0.0
    %v3769 = vmax.f32 %v3469, 0.0
    %v3770 = vmax.f32 %v3472, 0.0
    %v3771 = vmax.f32 %v3475, 0.0
    %v3772 = vmax.f32 %v3478, 0.0
    %v3773 = vmax.f32 %v3481, 0.0
    %v3774 = vmax.f32 %v3484, 0.0
    %v3775 = vmax.f32 %v3487, 0.0
    %v3776 = vmax.f32 %v3490, 0.0
    %v3777 = vmax.f32 %v3493, 0.0
    %v3778 = vmax.f32 %v3496, 0.0
    %v3779 = vmax.f32 %v3499, 0.0
    %v3780 = vmax.f32 %v3502, 0.0
    %v3781 = vmax.f32 %v3505, 0.0
    %v3782 = vmax.f32 %v3508, 0.0
    %v3783 = vmax.f32 %v3511, 0.0
    %v3784 = vmax.f32 %v3514, 0.0
    %v3785 = vmax.f32 %v3517, 0.0
    %v3786 = vmax.f32 %v3520, 0.0
    %v3787 = vmax.f32 %v3523, 0.0
    %v3788 = vmax.f32 %v3526, 0.0
    %v3789 = vmax.f32 %v3529, 0.0
    %v3790 = vmax.f32 %v3532, 0.0
    %v3791 = vmax.f32 %v3535, 0.0
    %v3792 = vmax.f32 %v3538, 0.0
    %v3793 = vmax.f32 %v3541, 0.0
    %v3794 = vmax.f32 %v3544, 0.0
    %v3795 = vmax.f32 %v3547, 0.0
    %v3796 = vmax.f32 %v3550, 0.0
    %v3797 = vmax.f32 %v3553, 0.0
    %v3798 = vmax.f32 %v3556, 0.0
    %v3799 = vmax.f32 %v3559, 0.0
    %v3800 = vmax.f32 %v3562, 0.0
    %v3801 = vmax.f32 %v3565, 0.0
    %v3802 = vmax.f32 %v3568, 0.0
    %v3803 = vmax.f32 %v3571, 0.0
    %v3804 = vmax.f32 %v3574, 0.0
    %v3805 = vmax.f32 %v3577, 0.0
    %v3806 = vmax.f32 %v3580, 0.0
    %v3807 = vmax.f32 %v3583, 0.0
    %v3808 = vmax.f32 %v3586, 0.0
    %v3809 = vmax.f32 %v3589, 0.0
    %v3810 = vmax.f32 %v3592, 0.0
    %v3811 = vmax.f32 %v3595, 0.0
    %v3812 = vmax.f32 %v3598, 0.0
    %v3813 = vmax.f32 %v3601, 0.0
    %v3814 = vmax.f32 %v3604, 0.0
    %v3815 = vmax.f32 %v3607, 0.0
    %v3816 = vmax.f32 %v3610, 0.0
    %v3817 = vmax.f32 %v3613, 0.0
    %v3818 = vmax.f32 %v3616, 0.0
    %v3819 = vmax.f32 %v3619, 0.0
    %v3820 = vmax.f32 %v3622, 0.0
    %v3821 = vmax.f32 %v3625, 0.0
    %v3822 = vmax.f32 %v3628, 0.0
    %v3823 = vmax.f32 %v3631, 0.0
    %v3824 = vmax.f32 %v3634, 0.0
    %v3825 = vmax.f32 %v3637, 0.0
    %v3826 = vmax.f32 %v3640, 0.0
    %v3827 = vmax.f32 %v3643, 0.0
    %v3828 = vmax.f32 %v3646, 0.0
    %v3829 = vmax.f32 %v3649, 0.0
    %v3830 = vmax.f32 %v3652, 0.0
    %v3831 = vmax.f32 %v3655, 0.0
    %v3832 = vmax.f32 %v3658, 0.0
    %v3833 = vmax.f32 %v3661, 0.0
    %v3834 = vmax.f32 %v3664, 0.0
    %v3835 = vmax.f32 %v3667, 0.0
    %v3836 = vmax.f32 %v3670, 0.0
    %v3837 = vmax.f32 %v3673, 0.0
    %v3838 = vmax.f32 %v3676, 0.0
    %v3839 = vmax.f32 %v3679, 0.0
    %v3840 = vmax.f32 %v3682, 0.0
    %v3841 = vmax.f32 %v3685, 0.0
    %v3842 = vmax.f32 %v3688, 0.0
    %v3843 = vmax.f32 %v3691, 0.0
    %v3844 = vmax.f32 %v3694, 0.0
    %v3845 = vmax.f32 %v3697, 0.0
    %v3846 = vmax.f32 %v3700, 0.0
    %v3847 = vmax.f32 %v3703, 0.0
    %v3848 = vmax.f32 %v3706, 0.0
    %v3849 = vmax.f32 %v3709, 0.0
    %v3850 = vmax.f32 %v3712, 0.0
    %v3851 = vmax.f32 %v3715, 0.0
    %v3852 = vmax.f32 %v3718, 0.0
    %v3853 = vmax.f32 %v3721, 0.0
    %v3854 = vmax.f32 %v3724, 0.0
    %v3855 = vmax.f32 %v3727, 0.0
    %3856 = vst.msk [vmem:[#allocation4] sm:$0xff] %vm494, 0.0
    %3857 = vst.msk [vmem:[#allocation4 + $0x8] sm:$0x3] %vm1551, 0.0
    %3858 = vst.msk [vmem:[#allocation4 + $0xa0] sm:$0xff] %vm494, 0.0
    %3859 = vst.msk [vmem:[#allocation4 + $0xa8] sm:$0x3] %vm1551, 0.0
    %s3860 = scalar_lea.vmem [#allocation4], 144
    %3861 = vst.msk [vmem:[%s3860] sm:$0xff] %vm494, 0.0
    %3862 = vst.msk [vmem:[%s3860 + $0x8] sm:$0x3] %vm1551, 0.0
    %3863 = vst.msk [vmem:[%s3860 + $0xa0] sm:$0xff] %vm494, 0.0
    %3864 = vst.msk [vmem:[%s3860 + $0xa8] sm:$0x3] %vm1551, 0.0
    %s3865 = scalar_lea.vmem [#allocation4], 16
    %vm3866 = vcmask 516096
    %3867 = vst.msk [vmem:[%s3865] sm:$0x1] %vm3866, 0.0
    %3868 = vst.msk [vmem:[%s3865 + $0x10] sm:$0x1] %vm3866, 0.0
    %3869 = vst.msk [vmem:[%s3865 + $0x20] sm:$0x1] %vm3866, 0.0
    %3870 = vst.msk [vmem:[%s3865 + $0x30] sm:$0x1] %vm3866, 0.0
    %3871 = vst.msk [vmem:[%s3865 + $0x40] sm:$0x1] %vm3866, 0.0
    %3872 = vst.msk [vmem:[%s3865 + $0x50] sm:$0x1] %vm3866, 0.0
    %3873 = vst.msk [vmem:[%s3865 + $0x60] sm:$0x1] %vm3866, 0.0
    %3874 = vst.msk [vmem:[%s3865 + $0x70] sm:$0x1] %vm3866, 0.0
    %3875 = vst.msk [vmem:[%s3865 + $0xa0] sm:$0x1] %vm3866, 0.0
    %3876 = vst.msk [vmem:[%s3865 + $0xb0] sm:$0x1] %vm3866, 0.0
    %3877 = vst.msk [vmem:[%s3865 + $0xc0] sm:$0x1] %vm3866, 0.0
    %3878 = vst.msk [vmem:[%s3865 + $0xd0] sm:$0x1] %vm3866, 0.0
    %3879 = vst.msk [vmem:[%s3865 + $0xe0] sm:$0x1] %vm3866, 0.0
    %3880 = vst.msk [vmem:[%s3865 + $0xf0] sm:$0x1] %vm3866, 0.0
    %3881 = vst.msk [vmem:[%s3865 + $0x100] sm:$0x1] %vm3866, 0.0
    %3882 = vst.msk [vmem:[%s3865 + $0x110] sm:$0x1] %vm3866, 0.0
    %3883 = vst.msk [vmem:[%s3865 + $0x9] sm:$0x1] %vm3866, 0.0
    %3884 = vst.msk [vmem:[%s3865 + $0x19] sm:$0x1] %vm3866, 0.0
    %3885 = vst.msk [vmem:[%s3865 + $0x29] sm:$0x1] %vm3866, 0.0
    %3886 = vst.msk [vmem:[%s3865 + $0x39] sm:$0x1] %vm3866, 0.0
    %3887 = vst.msk [vmem:[%s3865 + $0x49] sm:$0x1] %vm3866, 0.0
    %3888 = vst.msk [vmem:[%s3865 + $0x59] sm:$0x1] %vm3866, 0.0
    %3889 = vst.msk [vmem:[%s3865 + $0x69] sm:$0x1] %vm3866, 0.0
    %3890 = vst.msk [vmem:[%s3865 + $0x79] sm:$0x1] %vm3866, 0.0
    %3891 = vst.msk [vmem:[%s3865 + $0xa9] sm:$0x1] %vm3866, 0.0
    %3892 = vst.msk [vmem:[%s3865 + $0xb9] sm:$0x1] %vm3866, 0.0
    %3893 = vst.msk [vmem:[%s3865 + $0xc9] sm:$0x1] %vm3866, 0.0
    %3894 = vst.msk [vmem:[%s3865 + $0xd9] sm:$0x1] %vm3866, 0.0
    %3895 = vst.msk [vmem:[%s3865 + $0xe9] sm:$0x1] %vm3866, 0.0
    %3896 = vst.msk [vmem:[%s3865 + $0xf9] sm:$0x1] %vm3866, 0.0
    %3897 = vst.msk [vmem:[%s3865 + $0x109] sm:$0x1] %vm3866, 0.0
    %3898 = vst.msk [vmem:[%s3865 + $0x119] sm:$0x1] %vm3866, 0.0
    %vm4027 = vcmask 1041409
    %v4028 = vsel %vm4027, %v3729, %v3728
    %vm4029 = vcmask 1042434
    %v4030 = vsel %vm4029, %v3730, %v4028
    %vm4031 = vcmask 1043459
    %v4032 = vsel %vm4031, %v3731, %v4030
    %vm4033 = vcmask 1044484
    %v4034 = vsel %vm4033, %v3732, %v4032
    %vm4035 = vcmask 1045509
    %v4036 = vsel %vm4035, %v3733, %v4034
    %vm4037 = vcmask 1046534
    %v4038 = vsel %vm4037, %v3734, %v4036
    %vm4039 = vcmask 1047559
    %v4040 = vsel %vm4039, %v3735, %v4038
    %v4041 = vsel %vm4027, %v3737, %v3736
    %v4042 = vsel %vm4029, %v3738, %v4041
    %v4043 = vsel %vm4031, %v3739, %v4042
    %v4044 = vsel %vm4033, %v3740, %v4043
    %v4045 = vsel %vm4035, %v3741, %v4044
    %v4046 = vsel %vm4037, %v3742, %v4045
    %v4047 = vsel %vm4039, %v3743, %v4046
    %v4048 = vsel %vm4027, %v3745, %v3744
    %v4049 = vsel %vm4029, %v3746, %v4048
    %v4050 = vsel %vm4031, %v3747, %v4049
    %v4051 = vsel %vm4033, %v3748, %v4050
    %v4052 = vsel %vm4035, %v3749, %v4051
    %v4053 = vsel %vm4037, %v3750, %v4052
    %v4054 = vsel %vm4039, %v3751, %v4053
    %v4055 = vsel %vm4027, %v3753, %v3752
    %v4056 = vsel %vm4029, %v3754, %v4055
    %v4057 = vsel %vm4031, %v3755, %v4056
    %v4058 = vsel %vm4033, %v3756, %v4057
    %v4059 = vsel %vm4035, %v3757, %v4058
    %v4060 = vsel %vm4037, %v3758, %v4059
    %v4061 = vsel %vm4039, %v3759, %v4060
    %v4062 = vsel %vm4027, %v3761, %v3760
    %v4063 = vsel %vm4029, %v3762, %v4062
    %v4064 = vsel %vm4031, %v3763, %v4063
    %v4065 = vsel %vm4033, %v3764, %v4064
    %v4066 = vsel %vm4035, %v3765, %v4065
    %v4067 = vsel %vm4037, %v3766, %v4066
    %v4068 = vsel %vm4039, %v3767, %v4067
    %v4069 = vsel %vm4027, %v3769, %v3768
    %v4070 = vsel %vm4029, %v3770, %v4069
    %v4071 = vsel %vm4031, %v3771, %v4070
    %v4072 = vsel %vm4033, %v3772, %v4071
    %v4073 = vsel %vm4035, %v3773, %v4072
    %v4074 = vsel %vm4037, %v3774, %v4073
    %v4075 = vsel %vm4039, %v3775, %v4074
    %v4076 = vsel %vm4027, %v3777, %v3776
    %v4077 = vsel %vm4029, %v3778, %v4076
    %v4078 = vsel %vm4031, %v3779, %v4077
    %v4079 = vsel %vm4033, %v3780, %v4078
    %v4080 = vsel %vm4035, %v3781, %v4079
    %v4081 = vsel %vm4037, %v3782, %v4080
    %v4082 = vsel %vm4039, %v3783, %v4081
    %v4083 = vsel %vm4027, %v3785, %v3784
    %v4084 = vsel %vm4029, %v3786, %v4083
    %v4085 = vsel %vm4031, %v3787, %v4084
    %v4086 = vsel %vm4033, %v3788, %v4085
    %v4087 = vsel %vm4035, %v3789, %v4086
    %v4088 = vsel %vm4037, %v3790, %v4087
    %v4089 = vsel %vm4039, %v3791, %v4088
    %v4090 = vsel %vm4027, %v3793, %v3792
    %v4091 = vsel %vm4029, %v3794, %v4090
    %v4092 = vsel %vm4031, %v3795, %v4091
    %v4093 = vsel %vm4033, %v3796, %v4092
    %v4094 = vsel %vm4035, %v3797, %v4093
    %v4095 = vsel %vm4037, %v3798, %v4094
    %v4096 = vsel %vm4039, %v3799, %v4095
    %v4097 = vsel %vm4027, %v3801, %v3800
    %v4098 = vsel %vm4029, %v3802, %v4097
    %v4099 = vsel %vm4031, %v3803, %v4098
    %v4100 = vsel %vm4033, %v3804, %v4099
    %v4101 = vsel %vm4035, %v3805, %v4100
    %v4102 = vsel %vm4037, %v3806, %v4101
    %v4103 = vsel %vm4039, %v3807, %v4102
    %v4104 = vsel %vm4027, %v3809, %v3808
    %v4105 = vsel %vm4029, %v3810, %v4104
    %v4106 = vsel %vm4031, %v3811, %v4105
    %v4107 = vsel %vm4033, %v3812, %v4106
    %v4108 = vsel %vm4035, %v3813, %v4107
    %v4109 = vsel %vm4037, %v3814, %v4108
    %v4110 = vsel %vm4039, %v3815, %v4109
    %v4111 = vsel %vm4027, %v3817, %v3816
    %v4112 = vsel %vm4029, %v3818, %v4111
    %v4113 = vsel %vm4031, %v3819, %v4112
    %v4114 = vsel %vm4033, %v3820, %v4113
    %v4115 = vsel %vm4035, %v3821, %v4114
    %v4116 = vsel %vm4037, %v3822, %v4115
    %v4117 = vsel %vm4039, %v3823, %v4116
    %v4118 = vsel %vm4027, %v3825, %v3824
    %v4119 = vsel %vm4029, %v3826, %v4118
    %v4120 = vsel %vm4031, %v3827, %v4119
    %v4121 = vsel %vm4033, %v3828, %v4120
    %v4122 = vsel %vm4035, %v3829, %v4121
    %v4123 = vsel %vm4037, %v3830, %v4122
    %v4124 = vsel %vm4039, %v3831, %v4123
    %v4125 = vsel %vm4027, %v3833, %v3832
    %v4126 = vsel %vm4029, %v3834, %v4125
    %v4127 = vsel %vm4031, %v3835, %v4126
    %v4128 = vsel %vm4033, %v3836, %v4127
    %v4129 = vsel %vm4035, %v3837, %v4128
    %v4130 = vsel %vm4037, %v3838, %v4129
    %v4131 = vsel %vm4039, %v3839, %v4130
    %v4132 = vsel %vm4027, %v3841, %v3840
    %v4133 = vsel %vm4029, %v3842, %v4132
    %v4134 = vsel %vm4031, %v3843, %v4133
    %v4135 = vsel %vm4033, %v3844, %v4134
    %v4136 = vsel %vm4035, %v3845, %v4135
    %v4137 = vsel %vm4037, %v3846, %v4136
    %v4138 = vsel %vm4039, %v3847, %v4137
    %v4139 = vsel %vm4027, %v3849, %v3848
    %v4140 = vsel %vm4029, %v3850, %v4139
    %v4141 = vsel %vm4031, %v3851, %v4140
    %v4142 = vsel %vm4033, %v3852, %v4141
    %v4143 = vsel %vm4035, %v3853, %v4142
    %v4144 = vsel %vm4037, %v3854, %v4143
    %v4145 = vsel %vm4039, %v3855, %v4144
    %4162 = vst.msk [vmem:[%s3865 + $0x1] sm:$0xff] %vm494, %v4040
    %4163 = vst.msk [vmem:[%s3865 + $0x11] sm:$0xff] %vm494, %v4047
    %4164 = vst.msk [vmem:[%s3865 + $0x21] sm:$0xff] %vm494, %v4054
    %4165 = vst.msk [vmem:[%s3865 + $0x31] sm:$0xff] %vm494, %v4061
    %4166 = vst.msk [vmem:[%s3865 + $0x41] sm:$0xff] %vm494, %v4068
    %4167 = vst.msk [vmem:[%s3865 + $0x51] sm:$0xff] %vm494, %v4075
    %4168 = vst.msk [vmem:[%s3865 + $0x61] sm:$0xff] %vm494, %v4082
    %4169 = vst.msk [vmem:[%s3865 + $0x71] sm:$0xff] %vm494, %v4089
    %4170 = vst.msk [vmem:[%s3865 + $0xa1] sm:$0xff] %vm494, %v4096
    %4171 = vst.msk [vmem:[%s3865 + $0xb1] sm:$0xff] %vm494, %v4103
    %4172 = vst.msk [vmem:[%s3865 + $0xc1] sm:$0xff] %vm494, %v4110
    %4173 = vst.msk [vmem:[%s3865 + $0xd1] sm:$0xff] %vm494, %v4117
    %4174 = vst.msk [vmem:[%s3865 + $0xe1] sm:$0xff] %vm494, %v4124
    %4175 = vst.msk [vmem:[%s3865 + $0xf1] sm:$0xff] %vm494, %v4131
    %4176 = vst.msk [vmem:[%s3865 + $0x101] sm:$0xff] %vm494, %v4138
    %4177 = vst.msk [vmem:[%s3865 + $0x111] sm:$0xff] %vm494, %v4145
    %v4178 = vld [vmem:[#allocation4] sm:$0xff]
    %v4179 = vld [vmem:[#allocation4 + $0x10] sm:$0xff]
    %v4180 = vld [vmem:[#allocation4 + $0x20] sm:$0xff]
    %v4181 = vld [vmem:[#allocation4 + $0x30] sm:$0xff]
    %v4182 = vld [vmem:[#allocation4 + $0x40] sm:$0xff]
    %v4183 = vld [vmem:[#allocation4 + $0x50] sm:$0xff]
    %v4184 = vld [vmem:[#allocation4 + $0x60] sm:$0xff]
    %v4185 = vld [vmem:[#allocation4 + $0x70] sm:$0xff]
    %v4186 = vld [vmem:[#allocation4 + $0xa0] sm:$0xff]
    %v4187 = vld [vmem:[#allocation4 + $0xb0] sm:$0xff]
    %v4188 = vld [vmem:[#allocation4 + $0xc0] sm:$0xff]
    %v4189 = vld [vmem:[#allocation4 + $0xd0] sm:$0xff]
    %v4190 = vld [vmem:[#allocation4 + $0xe0] sm:$0xff]
    %v4191 = vld [vmem:[#allocation4 + $0xf0] sm:$0xff]
    %v4192 = vld [vmem:[#allocation4 + $0x100] sm:$0xff]
    %v4193 = vld [vmem:[#allocation4 + $0x110] sm:$0xff]
    %4194 = vst.msk [vmem:[#allocation3] sm:$0xff] %vm494, %v4178
    %4195 = vst.msk [vmem:[#allocation3 + $0x28] sm:$0xff] %vm494, %v4179
    %4196 = vst.msk [vmem:[#allocation3 + $0x50] sm:$0xff] %vm494, %v4180
    %4197 = vst.msk [vmem:[#allocation3 + $0x78] sm:$0xff] %vm494, %v4181
    %4198 = vst.msk [vmem:[#allocation3 + $0xa0] sm:$0xff] %vm494, %v4182
    %4199 = vst.msk [vmem:[#allocation3 + $0xc8] sm:$0xff] %vm494, %v4183
    %4200 = vst.msk [vmem:[#allocation3 + $0xf0] sm:$0xff] %vm494, %v4184
    %4201 = vst.msk [vmem:[#allocation3 + $0x118] sm:$0xff] %vm494, %v4185
    %4202 = vst.msk [vmem:[#allocation3 + $0x140] sm:$0xff] %vm494, %v4186
    %4203 = vst.msk [vmem:[#allocation3 + $0x168] sm:$0xff] %vm494, %v4187
    %4204 = vst.msk [vmem:[#allocation3 + $0x190] sm:$0xff] %vm494, %v4188
    %4205 = vst.msk [vmem:[#allocation3 + $0x1b8] sm:$0xff] %vm494, %v4189
    %4206 = vst.msk [vmem:[#allocation3 + $0x1e0] sm:$0xff] %vm494, %v4190
    %4207 = vst.msk [vmem:[#allocation3 + $0x208] sm:$0xff] %vm494, %v4191
    %4208 = vst.msk [vmem:[#allocation3 + $0x230] sm:$0xff] %vm494, %v4192
    %4209 = vst.msk [vmem:[#allocation3 + $0x258] sm:$0xff] %vm494, %v4193
    %v4210 = vld [vmem:[#allocation4 + $0x1] sm:$0xff]
    %v4211 = vld [vmem:[#allocation4 + $0x11] sm:$0xff]
    %v4212 = vld [vmem:[#allocation4 + $0x21] sm:$0xff]
    %v4213 = vld [vmem:[#allocation4 + $0x31] sm:$0xff]
    %v4214 = vld [vmem:[#allocation4 + $0x41] sm:$0xff]
    %v4215 = vld [vmem:[#allocation4 + $0x51] sm:$0xff]
    %v4216 = vld [vmem:[#allocation4 + $0x61] sm:$0xff]
    %v4217 = vld [vmem:[#allocation4 + $0x71] sm:$0xff]
    %v4218 = vld [vmem:[#allocation4 + $0xa1] sm:$0xff]
    %v4219 = vld [vmem:[#allocation4 + $0xb1] sm:$0xff]
    %v4220 = vld [vmem:[#allocation4 + $0xc1] sm:$0xff]
    %v4221 = vld [vmem:[#allocation4 + $0xd1] sm:$0xff]
    %v4222 = vld [vmem:[#allocation4 + $0xe1] sm:$0xff]
    %v4223 = vld [vmem:[#allocation4 + $0xf1] sm:$0xff]
    %v4224 = vld [vmem:[#allocation4 + $0x101] sm:$0xff]
    %v4225 = vld [vmem:[#allocation4 + $0x111] sm:$0xff]
    %4242 = vrot.lane.b32.xlu0 %v4210, 64
    %v4243 = vpop.permute.xlu0 %4242
    %4244 = vrot.lane.b32.xlu0 %v4211, 64
    %v4245 = vpop.permute.xlu0 %4244
    %4246 = vrot.lane.b32.xlu0 %v4212, 64
    %v4247 = vpop.permute.xlu0 %4246
    %4248 = vrot.lane.b32.xlu0 %v4213, 64
    %v4249 = vpop.permute.xlu0 %4248
    %4250 = vrot.lane.b32.xlu0 %v4214, 64
    %v4251 = vpop.permute.xlu0 %4250
    %4252 = vrot.lane.b32.xlu0 %v4215, 64
    %v4253 = vpop.permute.xlu0 %4252
    %4254 = vrot.lane.b32.xlu0 %v4216, 64
    %v4255 = vpop.permute.xlu0 %4254
    %4256 = vrot.lane.b32.xlu0 %v4217, 64
    %v4257 = vpop.permute.xlu0 %4256
    %4258 = vrot.lane.b32.xlu0 %v4218, 64
    %v4259 = vpop.permute.xlu0 %4258
    %4260 = vrot.lane.b32.xlu0 %v4219, 64
    %v4261 = vpop.permute.xlu0 %4260
    %4262 = vrot.lane.b32.xlu0 %v4220, 64
    %v4263 = vpop.permute.xlu0 %4262
    %4264 = vrot.lane.b32.xlu0 %v4221, 64
    %v4265 = vpop.permute.xlu0 %4264
    %4266 = vrot.lane.b32.xlu0 %v4222, 64
    %v4267 = vpop.permute.xlu0 %4266
    %4268 = vrot.lane.b32.xlu0 %v4223, 64
    %v4269 = vpop.permute.xlu0 %4268
    %4270 = vrot.lane.b32.xlu0 %v4224, 64
    %v4271 = vpop.permute.xlu0 %4270
    %4272 = vrot.lane.b32.xlu0 %v4225, 64
    %v4273 = vpop.permute.xlu0 %4272
    %vm4290 = vcmask 1048064
    %4291 = vst.msk [vmem:[#allocation3] sm:$0xff] %vm4290, %v4243
    %4292 = vst.msk [vmem:[#allocation3 + $0x28] sm:$0xff] %vm4290, %v4245
    %4293 = vst.msk [vmem:[#allocation3 + $0x50] sm:$0xff] %vm4290, %v4247
    %4294 = vst.msk [vmem:[#allocation3 + $0x78] sm:$0xff] %vm4290, %v4249
    %4295 = vst.msk [vmem:[#allocation3 + $0xa0] sm:$0xff] %vm4290, %v4251
    %4296 = vst.msk [vmem:[#allocation3 + $0xc8] sm:$0xff] %vm4290, %v4253
    %4297 = vst.msk [vmem:[#allocation3 + $0xf0] sm:$0xff] %vm4290, %v4255
    %4298 = vst.msk [vmem:[#allocation3 + $0x118] sm:$0xff] %vm4290, %v4257
    %4299 = vst.msk [vmem:[#allocation3 + $0x140] sm:$0xff] %vm4290, %v4259
    %4300 = vst.msk [vmem:[#allocation3 + $0x168] sm:$0xff] %vm4290, %v4261
    %4301 = vst.msk [vmem:[#allocation3 + $0x190] sm:$0xff] %vm4290, %v4263
    %4302 = vst.msk [vmem:[#allocation3 + $0x1b8] sm:$0xff] %vm4290, %v4265
    %4303 = vst.msk [vmem:[#allocation3 + $0x1e0] sm:$0xff] %vm4290, %v4267
    %4304 = vst.msk [vmem:[#allocation3 + $0x208] sm:$0xff] %vm4290, %v4269
    %4305 = vst.msk [vmem:[#allocation3 + $0x230] sm:$0xff] %vm4290, %v4271
    %4306 = vst.msk [vmem:[#allocation3 + $0x258] sm:$0xff] %vm4290, %v4273
    %v4307 = vld [vmem:[#allocation4 + $0x2] sm:$0xff]
    %v4308 = vld [vmem:[#allocation4 + $0x12] sm:$0xff]
    %v4309 = vld [vmem:[#allocation4 + $0x22] sm:$0xff]
    %v4310 = vld [vmem:[#allocation4 + $0x32] sm:$0xff]
    %v4311 = vld [vmem:[#allocation4 + $0x42] sm:$0xff]
    %v4312 = vld [vmem:[#allocation4 + $0x52] sm:$0xff]
    %v4313 = vld [vmem:[#allocation4 + $0x62] sm:$0xff]
    %v4314 = vld [vmem:[#allocation4 + $0x72] sm:$0xff]
    %v4315 = vld [vmem:[#allocation4 + $0xa2] sm:$0xff]
    %v4316 = vld [vmem:[#allocation4 + $0xb2] sm:$0xff]
    %v4317 = vld [vmem:[#allocation4 + $0xc2] sm:$0xff]
    %v4318 = vld [vmem:[#allocation4 + $0xd2] sm:$0xff]
    %v4319 = vld [vmem:[#allocation4 + $0xe2] sm:$0xff]
    %v4320 = vld [vmem:[#allocation4 + $0xf2] sm:$0xff]
    %v4321 = vld [vmem:[#allocation4 + $0x102] sm:$0xff]
    %v4322 = vld [vmem:[#allocation4 + $0x112] sm:$0xff]
    %4323 = vst.msk [vmem:[#allocation3 + $0x8] sm:$0xff] %vm494, %v4307
    %4324 = vst.msk [vmem:[#allocation3 + $0x30] sm:$0xff] %vm494, %v4308
    %4325 = vst.msk [vmem:[#allocation3 + $0x58] sm:$0xff] %vm494, %v4309
    %4326 = vst.msk [vmem:[#allocation3 + $0x80] sm:$0xff] %vm494, %v4310
    %4327 = vst.msk [vmem:[#allocation3 + $0xa8] sm:$0xff] %vm494, %v4311
    %4328 = vst.msk [vmem:[#allocation3 + $0xd0] sm:$0xff] %vm494, %v4312
    %4329 = vst.msk [vmem:[#allocation3 + $0xf8] sm:$0xff] %vm494, %v4313
    %4330 = vst.msk [vmem:[#allocation3 + $0x120] sm:$0xff] %vm494, %v4314
    %4331 = vst.msk [vmem:[#allocation3 + $0x148] sm:$0xff] %vm494, %v4315
    %4332 = vst.msk [vmem:[#allocation3 + $0x170] sm:$0xff] %vm494, %v4316
    %4333 = vst.msk [vmem:[#allocation3 + $0x198] sm:$0xff] %vm494, %v4317
    %4334 = vst.msk [vmem:[#allocation3 + $0x1c0] sm:$0xff] %vm494, %v4318
    %4335 = vst.msk [vmem:[#allocation3 + $0x1e8] sm:$0xff] %vm494, %v4319
    %4336 = vst.msk [vmem:[#allocation3 + $0x210] sm:$0xff] %vm494, %v4320
    %4337 = vst.msk [vmem:[#allocation3 + $0x238] sm:$0xff] %vm494, %v4321
    %4338 = vst.msk [vmem:[#allocation3 + $0x260] sm:$0xff] %vm494, %v4322
    %v4339 = vld [vmem:[%s3865] sm:$0xff]
    %v4340 = vld [vmem:[%s3865 + $0x10] sm:$0xff]
    %v4341 = vld [vmem:[%s3865 + $0x20] sm:$0xff]
    %v4342 = vld [vmem:[%s3865 + $0x30] sm:$0xff]
    %v4343 = vld [vmem:[%s3865 + $0x40] sm:$0xff]
    %v4344 = vld [vmem:[%s3865 + $0x50] sm:$0xff]
    %v4345 = vld [vmem:[%s3865 + $0x60] sm:$0xff]
    %v4346 = vld [vmem:[%s3865 + $0x70] sm:$0xff]
    %v4347 = vld [vmem:[%s3865 + $0xa0] sm:$0xff]
    %v4348 = vld [vmem:[%s3865 + $0xb0] sm:$0xff]
    %v4349 = vld [vmem:[%s3865 + $0xc0] sm:$0xff]
    %v4350 = vld [vmem:[%s3865 + $0xd0] sm:$0xff]
    %v4351 = vld [vmem:[%s3865 + $0xe0] sm:$0xff]
    %v4352 = vld [vmem:[%s3865 + $0xf0] sm:$0xff]
    %v4353 = vld [vmem:[%s3865 + $0x100] sm:$0xff]
    %v4354 = vld [vmem:[%s3865 + $0x110] sm:$0xff]
    %4371 = vrot.lane.b32.xlu0 %v4339, 64
    %v4372 = vpop.permute.xlu0 %4371
    %4373 = vrot.lane.b32.xlu0 %v4340, 64
    %v4374 = vpop.permute.xlu0 %4373
    %4375 = vrot.lane.b32.xlu0 %v4341, 64
    %v4376 = vpop.permute.xlu0 %4375
    %4377 = vrot.lane.b32.xlu0 %v4342, 64
    %v4378 = vpop.permute.xlu0 %4377
    %4379 = vrot.lane.b32.xlu0 %v4343, 64
    %v4380 = vpop.permute.xlu0 %4379
    %4381 = vrot.lane.b32.xlu0 %v4344, 64
    %v4382 = vpop.permute.xlu0 %4381
    %4383 = vrot.lane.b32.xlu0 %v4345, 64
    %v4384 = vpop.permute.xlu0 %4383
    %4385 = vrot.lane.b32.xlu0 %v4346, 64
    %v4386 = vpop.permute.xlu0 %4385
    %4387 = vrot.lane.b32.xlu0 %v4347, 64
    %v4388 = vpop.permute.xlu0 %4387
    %4389 = vrot.lane.b32.xlu0 %v4348, 64
    %v4390 = vpop.permute.xlu0 %4389
    %4391 = vrot.lane.b32.xlu0 %v4349, 64
    %v4392 = vpop.permute.xlu0 %4391
    %4393 = vrot.lane.b32.xlu0 %v4350, 64
    %v4394 = vpop.permute.xlu0 %4393
    %4395 = vrot.lane.b32.xlu0 %v4351, 64
    %v4396 = vpop.permute.xlu0 %4395
    %4397 = vrot.lane.b32.xlu0 %v4352, 64
    %v4398 = vpop.permute.xlu0 %4397
    %4399 = vrot.lane.b32.xlu0 %v4353, 64
    %v4400 = vpop.permute.xlu0 %4399
    %4401 = vrot.lane.b32.xlu0 %v4354, 64
    %v4402 = vpop.permute.xlu0 %4401
    %4419 = vst.msk [vmem:[#allocation3 + $0x8] sm:$0xff] %vm4290, %v4372
    %4420 = vst.msk [vmem:[#allocation3 + $0x30] sm:$0xff] %vm4290, %v4374
    %4421 = vst.msk [vmem:[#allocation3 + $0x58] sm:$0xff] %vm4290, %v4376
    %4422 = vst.msk [vmem:[#allocation3 + $0x80] sm:$0xff] %vm4290, %v4378
    %4423 = vst.msk [vmem:[#allocation3 + $0xa8] sm:$0xff] %vm4290, %v4380
    %4424 = vst.msk [vmem:[#allocation3 + $0xd0] sm:$0xff] %vm4290, %v4382
    %4425 = vst.msk [vmem:[#allocation3 + $0xf8] sm:$0xff] %vm4290, %v4384
    %4426 = vst.msk [vmem:[#allocation3 + $0x120] sm:$0xff] %vm4290, %v4386
    %4427 = vst.msk [vmem:[#allocation3 + $0x148] sm:$0xff] %vm4290, %v4388
    %4428 = vst.msk [vmem:[#allocation3 + $0x170] sm:$0xff] %vm4290, %v4390
    %4429 = vst.msk [vmem:[#allocation3 + $0x198] sm:$0xff] %vm4290, %v4392
    %4430 = vst.msk [vmem:[#allocation3 + $0x1c0] sm:$0xff] %vm4290, %v4394
    %4431 = vst.msk [vmem:[#allocation3 + $0x1e8] sm:$0xff] %vm4290, %v4396
    %4432 = vst.msk [vmem:[#allocation3 + $0x210] sm:$0xff] %vm4290, %v4398
    %4433 = vst.msk [vmem:[#allocation3 + $0x238] sm:$0xff] %vm4290, %v4400
    %4434 = vst.msk [vmem:[#allocation3 + $0x260] sm:$0xff] %vm4290, %v4402
    %v4435 = vld [vmem:[%s3865 + $0x1] sm:$0xff]
    %v4436 = vld [vmem:[%s3865 + $0x11] sm:$0xff]
    %v4437 = vld [vmem:[%s3865 + $0x21] sm:$0xff]
    %v4438 = vld [vmem:[%s3865 + $0x31] sm:$0xff]
    %v4439 = vld [vmem:[%s3865 + $0x41] sm:$0xff]
    %v4440 = vld [vmem:[%s3865 + $0x51] sm:$0xff]
    %v4441 = vld [vmem:[%s3865 + $0x61] sm:$0xff]
    %v4442 = vld [vmem:[%s3865 + $0x71] sm:$0xff]
    %v4443 = vld [vmem:[%s3865 + $0xa1] sm:$0xff]
    %v4444 = vld [vmem:[%s3865 + $0xb1] sm:$0xff]
    %v4445 = vld [vmem:[%s3865 + $0xc1] sm:$0xff]
    %v4446 = vld [vmem:[%s3865 + $0xd1] sm:$0xff]
    %v4447 = vld [vmem:[%s3865 + $0xe1] sm:$0xff]
    %v4448 = vld [vmem:[%s3865 + $0xf1] sm:$0xff]
    %v4449 = vld [vmem:[%s3865 + $0x101] sm:$0xff]
    %v4450 = vld [vmem:[%s3865 + $0x111] sm:$0xff]
    %4451 = vst.msk [vmem:[#allocation3 + $0x10] sm:$0xff] %vm494, %v4435
    %4452 = vst.msk [vmem:[#allocation3 + $0x38] sm:$0xff] %vm494, %v4436
    %4453 = vst.msk [vmem:[#allocation3 + $0x60] sm:$0xff] %vm494, %v4437
    %4454 = vst.msk [vmem:[#allocation3 + $0x88] sm:$0xff] %vm494, %v4438
    %4455 = vst.msk [vmem:[#allocation3 + $0xb0] sm:$0xff] %vm494, %v4439
    %4456 = vst.msk [vmem:[#allocation3 + $0xd8] sm:$0xff] %vm494, %v4440
    %4457 = vst.msk [vmem:[#allocation3 + $0x100] sm:$0xff] %vm494, %v4441
    %4458 = vst.msk [vmem:[#allocation3 + $0x128] sm:$0xff] %vm494, %v4442
    %4459 = vst.msk [vmem:[#allocation3 + $0x150] sm:$0xff] %vm494, %v4443
    %4460 = vst.msk [vmem:[#allocation3 + $0x178] sm:$0xff] %vm494, %v4444
    %4461 = vst.msk [vmem:[#allocation3 + $0x1a0] sm:$0xff] %vm494, %v4445
    %4462 = vst.msk [vmem:[#allocation3 + $0x1c8] sm:$0xff] %vm494, %v4446
    %4463 = vst.msk [vmem:[#allocation3 + $0x1f0] sm:$0xff] %vm494, %v4447
    %4464 = vst.msk [vmem:[#allocation3 + $0x218] sm:$0xff] %vm494, %v4448
    %4465 = vst.msk [vmem:[#allocation3 + $0x240] sm:$0xff] %vm494, %v4449
    %4466 = vst.msk [vmem:[#allocation3 + $0x268] sm:$0xff] %vm494, %v4450
    %v4467 = vld [vmem:[%s3865 + $0x2] sm:$0xff]
    %v4468 = vld [vmem:[%s3865 + $0x12] sm:$0xff]
    %v4469 = vld [vmem:[%s3865 + $0x22] sm:$0xff]
    %v4470 = vld [vmem:[%s3865 + $0x32] sm:$0xff]
    %v4471 = vld [vmem:[%s3865 + $0x42] sm:$0xff]
    %v4472 = vld [vmem:[%s3865 + $0x52] sm:$0xff]
    %v4473 = vld [vmem:[%s3865 + $0x62] sm:$0xff]
    %v4474 = vld [vmem:[%s3865 + $0x72] sm:$0xff]
    %v4475 = vld [vmem:[%s3865 + $0xa2] sm:$0xff]
    %v4476 = vld [vmem:[%s3865 + $0xb2] sm:$0xff]
    %v4477 = vld [vmem:[%s3865 + $0xc2] sm:$0xff]
    %v4478 = vld [vmem:[%s3865 + $0xd2] sm:$0xff]
    %v4479 = vld [vmem:[%s3865 + $0xe2] sm:$0xff]
    %v4480 = vld [vmem:[%s3865 + $0xf2] sm:$0xff]
    %v4481 = vld [vmem:[%s3865 + $0x102] sm:$0xff]
    %v4482 = vld [vmem:[%s3865 + $0x112] sm:$0xff]
    %4499 = vrot.lane.b32.xlu0 %v4467, 64
    %v4500 = vpop.permute.xlu0 %4499
    %4501 = vrot.lane.b32.xlu0 %v4468, 64
    %v4502 = vpop.permute.xlu0 %4501
    %4503 = vrot.lane.b32.xlu0 %v4469, 64
    %v4504 = vpop.permute.xlu0 %4503
    %4505 = vrot.lane.b32.xlu0 %v4470, 64
    %v4506 = vpop.permute.xlu0 %4505
    %4507 = vrot.lane.b32.xlu0 %v4471, 64
    %v4508 = vpop.permute.xlu0 %4507
    %4509 = vrot.lane.b32.xlu0 %v4472, 64
    %v4510 = vpop.permute.xlu0 %4509
    %4511 = vrot.lane.b32.xlu0 %v4473, 64
    %v4512 = vpop.permute.xlu0 %4511
    %4513 = vrot.lane.b32.xlu0 %v4474, 64
    %v4514 = vpop.permute.xlu0 %4513
    %4515 = vrot.lane.b32.xlu0 %v4475, 64
    %v4516 = vpop.permute.xlu0 %4515
    %4517 = vrot.lane.b32.xlu0 %v4476, 64
    %v4518 = vpop.permute.xlu0 %4517
    %4519 = vrot.lane.b32.xlu0 %v4477, 64
    %v4520 = vpop.permute.xlu0 %4519
    %4521 = vrot.lane.b32.xlu0 %v4478, 64
    %v4522 = vpop.permute.xlu0 %4521
    %4523 = vrot.lane.b32.xlu0 %v4479, 64
    %v4524 = vpop.permute.xlu0 %4523
    %4525 = vrot.lane.b32.xlu0 %v4480, 64
    %v4526 = vpop.permute.xlu0 %4525
    %4527 = vrot.lane.b32.xlu0 %v4481, 64
    %v4528 = vpop.permute.xlu0 %4527
    %4529 = vrot.lane.b32.xlu0 %v4482, 64
    %v4530 = vpop.permute.xlu0 %4529
    %4547 = vst.msk [vmem:[#allocation3 + $0x10] sm:$0xff] %vm4290, %v4500
    %4548 = vst.msk [vmem:[#allocation3 + $0x38] sm:$0xff] %vm4290, %v4502
    %4549 = vst.msk [vmem:[#allocation3 + $0x60] sm:$0xff] %vm4290, %v4504
    %4550 = vst.msk [vmem:[#allocation3 + $0x88] sm:$0xff] %vm4290, %v4506
    %4551 = vst.msk [vmem:[#allocation3 + $0xb0] sm:$0xff] %vm4290, %v4508
    %4552 = vst.msk [vmem:[#allocation3 + $0xd8] sm:$0xff] %vm4290, %v4510
    %4553 = vst.msk [vmem:[#allocation3 + $0x100] sm:$0xff] %vm4290, %v4512
    %4554 = vst.msk [vmem:[#allocation3 + $0x128] sm:$0xff] %vm4290, %v4514
    %4555 = vst.msk [vmem:[#allocation3 + $0x150] sm:$0xff] %vm4290, %v4516
    %4556 = vst.msk [vmem:[#allocation3 + $0x178] sm:$0xff] %vm4290, %v4518
    %4557 = vst.msk [vmem:[#allocation3 + $0x1a0] sm:$0xff] %vm4290, %v4520
    %4558 = vst.msk [vmem:[#allocation3 + $0x1c8] sm:$0xff] %vm4290, %v4522
    %4559 = vst.msk [vmem:[#allocation3 + $0x1f0] sm:$0xff] %vm4290, %v4524
    %4560 = vst.msk [vmem:[#allocation3 + $0x218] sm:$0xff] %vm4290, %v4526
    %4561 = vst.msk [vmem:[#allocation3 + $0x240] sm:$0xff] %vm4290, %v4528
    %4562 = vst.msk [vmem:[#allocation3 + $0x268] sm:$0xff] %vm4290, %v4530
    %s4563 = scalar_lea.vmem [#allocation4], 32
    %v4564 = vld [vmem:[%s4563] sm:$0xff]
    %v4565 = vld [vmem:[%s4563 + $0x10] sm:$0xff]
    %v4566 = vld [vmem:[%s4563 + $0x20] sm:$0xff]
    %v4567 = vld [vmem:[%s4563 + $0x30] sm:$0xff]
    %v4568 = vld [vmem:[%s4563 + $0x40] sm:$0xff]
    %v4569 = vld [vmem:[%s4563 + $0x50] sm:$0xff]
    %v4570 = vld [vmem:[%s4563 + $0x60] sm:$0xff]
    %v4571 = vld [vmem:[%s4563 + $0x70] sm:$0xff]
    %v4572 = vld [vmem:[%s4563 + $0xa0] sm:$0xff]
    %v4573 = vld [vmem:[%s4563 + $0xb0] sm:$0xff]
    %v4574 = vld [vmem:[%s4563 + $0xc0] sm:$0xff]
    %v4575 = vld [vmem:[%s4563 + $0xd0] sm:$0xff]
    %v4576 = vld [vmem:[%s4563 + $0xe0] sm:$0xff]
    %v4577 = vld [vmem:[%s4563 + $0xf0] sm:$0xff]
    %v4578 = vld [vmem:[%s4563 + $0x100] sm:$0xff]
    %v4579 = vld [vmem:[%s4563 + $0x110] sm:$0xff]
    %4580 = vst.msk [vmem:[#allocation3 + $0x18] sm:$0xff] %vm494, %v4564
    %4581 = vst.msk [vmem:[#allocation3 + $0x40] sm:$0xff] %vm494, %v4565
    %4582 = vst.msk [vmem:[#allocation3 + $0x68] sm:$0xff] %vm494, %v4566
    %4583 = vst.msk [vmem:[#allocation3 + $0x90] sm:$0xff] %vm494, %v4567
    %4584 = vst.msk [vmem:[#allocation3 + $0xb8] sm:$0xff] %vm494, %v4568
    %4585 = vst.msk [vmem:[#allocation3 + $0xe0] sm:$0xff] %vm494, %v4569
    %4586 = vst.msk [vmem:[#allocation3 + $0x108] sm:$0xff] %vm494, %v4570
    %4587 = vst.msk [vmem:[#allocation3 + $0x130] sm:$0xff] %vm494, %v4571
    %4588 = vst.msk [vmem:[#allocation3 + $0x158] sm:$0xff] %vm494, %v4572
    %4589 = vst.msk [vmem:[#allocation3 + $0x180] sm:$0xff] %vm494, %v4573
    %4590 = vst.msk [vmem:[#allocation3 + $0x1a8] sm:$0xff] %vm494, %v4574
    %4591 = vst.msk [vmem:[#allocation3 + $0x1d0] sm:$0xff] %vm494, %v4575
    %4592 = vst.msk [vmem:[#allocation3 + $0x1f8] sm:$0xff] %vm494, %v4576
    %4593 = vst.msk [vmem:[#allocation3 + $0x220] sm:$0xff] %vm494, %v4577
    %4594 = vst.msk [vmem:[#allocation3 + $0x248] sm:$0xff] %vm494, %v4578
    %4595 = vst.msk [vmem:[#allocation3 + $0x270] sm:$0xff] %vm494, %v4579
    %v4596 = vld [vmem:[%s4563 + $0x1] sm:$0xff]
    %v4597 = vld [vmem:[%s4563 + $0x11] sm:$0xff]
    %v4598 = vld [vmem:[%s4563 + $0x21] sm:$0xff]
    %v4599 = vld [vmem:[%s4563 + $0x31] sm:$0xff]
    %v4600 = vld [vmem:[%s4563 + $0x41] sm:$0xff]
    %v4601 = vld [vmem:[%s4563 + $0x51] sm:$0xff]
    %v4602 = vld [vmem:[%s4563 + $0x61] sm:$0xff]
    %v4603 = vld [vmem:[%s4563 + $0x71] sm:$0xff]
    %v4604 = vld [vmem:[%s4563 + $0xa1] sm:$0xff]
    %v4605 = vld [vmem:[%s4563 + $0xb1] sm:$0xff]
    %v4606 = vld [vmem:[%s4563 + $0xc1] sm:$0xff]
    %v4607 = vld [vmem:[%s4563 + $0xd1] sm:$0xff]
    %v4608 = vld [vmem:[%s4563 + $0xe1] sm:$0xff]
    %v4609 = vld [vmem:[%s4563 + $0xf1] sm:$0xff]
    %v4610 = vld [vmem:[%s4563 + $0x101] sm:$0xff]
    %v4611 = vld [vmem:[%s4563 + $0x111] sm:$0xff]
    %4628 = vrot.lane.b32.xlu0 %v4596, 64
    %v4629 = vpop.permute.xlu0 %4628
    %4630 = vrot.lane.b32.xlu0 %v4597, 64
    %v4631 = vpop.permute.xlu0 %4630
    %4632 = vrot.lane.b32.xlu0 %v4598, 64
    %v4633 = vpop.permute.xlu0 %4632
    %4634 = vrot.lane.b32.xlu0 %v4599, 64
    %v4635 = vpop.permute.xlu0 %4634
    %4636 = vrot.lane.b32.xlu0 %v4600, 64
    %v4637 = vpop.permute.xlu0 %4636
    %4638 = vrot.lane.b32.xlu0 %v4601, 64
    %v4639 = vpop.permute.xlu0 %4638
    %4640 = vrot.lane.b32.xlu0 %v4602, 64
    %v4641 = vpop.permute.xlu0 %4640
    %4642 = vrot.lane.b32.xlu0 %v4603, 64
    %v4643 = vpop.permute.xlu0 %4642
    %4644 = vrot.lane.b32.xlu0 %v4604, 64
    %v4645 = vpop.permute.xlu0 %4644
    %4646 = vrot.lane.b32.xlu0 %v4605, 64
    %v4647 = vpop.permute.xlu0 %4646
    %4648 = vrot.lane.b32.xlu0 %v4606, 64
    %v4649 = vpop.permute.xlu0 %4648
    %4650 = vrot.lane.b32.xlu0 %v4607, 64
    %v4651 = vpop.permute.xlu0 %4650
    %4652 = vrot.lane.b32.xlu0 %v4608, 64
    %v4653 = vpop.permute.xlu0 %4652
    %4654 = vrot.lane.b32.xlu0 %v4609, 64
    %v4655 = vpop.permute.xlu0 %4654
    %4656 = vrot.lane.b32.xlu0 %v4610, 64
    %v4657 = vpop.permute.xlu0 %4656
    %4658 = vrot.lane.b32.xlu0 %v4611, 64
    %v4659 = vpop.permute.xlu0 %4658
    %4676 = vst.msk [vmem:[#allocation3 + $0x18] sm:$0xff] %vm4290, %v4629
    %4677 = vst.msk [vmem:[#allocation3 + $0x40] sm:$0xff] %vm4290, %v4631
    %4678 = vst.msk [vmem:[#allocation3 + $0x68] sm:$0xff] %vm4290, %v4633
    %4679 = vst.msk [vmem:[#allocation3 + $0x90] sm:$0xff] %vm4290, %v4635
    %4680 = vst.msk [vmem:[#allocation3 + $0xb8] sm:$0xff] %vm4290, %v4637
    %4681 = vst.msk [vmem:[#allocation3 + $0xe0] sm:$0xff] %vm4290, %v4639
    %4682 = vst.msk [vmem:[#allocation3 + $0x108] sm:$0xff] %vm4290, %v4641
    %4683 = vst.msk [vmem:[#allocation3 + $0x130] sm:$0xff] %vm4290, %v4643
    %4684 = vst.msk [vmem:[#allocation3 + $0x158] sm:$0xff] %vm4290, %v4645
    %4685 = vst.msk [vmem:[#allocation3 + $0x180] sm:$0xff] %vm4290, %v4647
    %4686 = vst.msk [vmem:[#allocation3 + $0x1a8] sm:$0xff] %vm4290, %v4649
    %4687 = vst.msk [vmem:[#allocation3 + $0x1d0] sm:$0xff] %vm4290, %v4651
    %4688 = vst.msk [vmem:[#allocation3 + $0x1f8] sm:$0xff] %vm4290, %v4653
    %4689 = vst.msk [vmem:[#allocation3 + $0x220] sm:$0xff] %vm4290, %v4655
    %4690 = vst.msk [vmem:[#allocation3 + $0x248] sm:$0xff] %vm4290, %v4657
    %4691 = vst.msk [vmem:[#allocation3 + $0x270] sm:$0xff] %vm4290, %v4659
    %v4692 = vld [vmem:[%s4563 + $0x2] sm:$0xff]
    %v4693 = vld [vmem:[%s4563 + $0x12] sm:$0xff]
    %v4694 = vld [vmem:[%s4563 + $0x22] sm:$0xff]
    %v4695 = vld [vmem:[%s4563 + $0x32] sm:$0xff]
    %v4696 = vld [vmem:[%s4563 + $0x42] sm:$0xff]
    %v4697 = vld [vmem:[%s4563 + $0x52] sm:$0xff]
    %v4698 = vld [vmem:[%s4563 + $0x62] sm:$0xff]
    %v4699 = vld [vmem:[%s4563 + $0x72] sm:$0xff]
    %v4700 = vld [vmem:[%s4563 + $0xa2] sm:$0xff]
    %v4701 = vld [vmem:[%s4563 + $0xb2] sm:$0xff]
    %v4702 = vld [vmem:[%s4563 + $0xc2] sm:$0xff]
    %v4703 = vld [vmem:[%s4563 + $0xd2] sm:$0xff]
    %v4704 = vld [vmem:[%s4563 + $0xe2] sm:$0xff]
    %v4705 = vld [vmem:[%s4563 + $0xf2] sm:$0xff]
    %v4706 = vld [vmem:[%s4563 + $0x102] sm:$0xff]
    %v4707 = vld [vmem:[%s4563 + $0x112] sm:$0xff]
    %4708 = vst.msk [vmem:[#allocation3 + $0x20] sm:$0xff] %vm494, %v4692
    %4709 = vst.msk [vmem:[#allocation3 + $0x48] sm:$0xff] %vm494, %v4693
    %4710 = vst.msk [vmem:[#allocation3 + $0x70] sm:$0xff] %vm494, %v4694
    %4711 = vst.msk [vmem:[#allocation3 + $0x98] sm:$0xff] %vm494, %v4695
    %4712 = vst.msk [vmem:[#allocation3 + $0xc0] sm:$0xff] %vm494, %v4696
    %4713 = vst.msk [vmem:[#allocation3 + $0xe8] sm:$0xff] %vm494, %v4697
    %4714 = vst.msk [vmem:[#allocation3 + $0x110] sm:$0xff] %vm494, %v4698
    %4715 = vst.msk [vmem:[#allocation3 + $0x138] sm:$0xff] %vm494, %v4699
    %4716 = vst.msk [vmem:[#allocation3 + $0x160] sm:$0xff] %vm494, %v4700
    %4717 = vst.msk [vmem:[#allocation3 + $0x188] sm:$0xff] %vm494, %v4701
    %4718 = vst.msk [vmem:[#allocation3 + $0x1b0] sm:$0xff] %vm494, %v4702
    %4719 = vst.msk [vmem:[#allocation3 + $0x1d8] sm:$0xff] %vm494, %v4703
    %4720 = vst.msk [vmem:[#allocation3 + $0x200] sm:$0xff] %vm494, %v4704
    %4721 = vst.msk [vmem:[#allocation3 + $0x228] sm:$0xff] %vm494, %v4705
    %4722 = vst.msk [vmem:[#allocation3 + $0x250] sm:$0xff] %vm494, %v4706
    %4723 = vst.msk [vmem:[#allocation3 + $0x278] sm:$0xff] %vm494, %v4707
    %v4724 = vld [vmem:[#allocation3] sm:$0xff]
    %v4725 = vld [vmem:[#allocation3 + $0x8] sm:$0xff]
    %v4726 = vld [vmem:[#allocation3 + $0x10] sm:$0xff]
    %v4727 = vld [vmem:[#allocation3 + $0x18] sm:$0xff]
    %v4728 = vld [vmem:[#allocation3 + $0x20] sm:$0xff]
    %v4729 = vld [vmem:[#allocation3 + $0x28] sm:$0xff]
    %v4730 = vld [vmem:[#allocation3 + $0x30] sm:$0xff]
    %v4731 = vld [vmem:[#allocation3 + $0x38] sm:$0xff]
    %v4732 = vld [vmem:[#allocation3 + $0x40] sm:$0xff]
    %v4733 = vld [vmem:[#allocation3 + $0x48] sm:$0xff]
    %v4734 = vld [vmem:[#allocation3 + $0x50] sm:$0xff]
    %v4735 = vld [vmem:[#allocation3 + $0x58] sm:$0xff]
    %v4736 = vld [vmem:[#allocation3 + $0x60] sm:$0xff]
    %v4737 = vld [vmem:[#allocation3 + $0x68] sm:$0xff]
    %v4738 = vld [vmem:[#allocation3 + $0x70] sm:$0xff]
    %v4739 = vld [vmem:[#allocation3 + $0x78] sm:$0xff]
    %v4740 = vld [vmem:[#allocation3 + $0x80] sm:$0xff]
    %v4741 = vld [vmem:[#allocation3 + $0x88] sm:$0xff]
    %v4742 = vld [vmem:[#allocation3 + $0x90] sm:$0xff]
    %v4743 = vld [vmem:[#allocation3 + $0x98] sm:$0xff]
    %v4744 = vld [vmem:[#allocation3 + $0xa0] sm:$0xff]
    %v4745 = vld [vmem:[#allocation3 + $0xa8] sm:$0xff]
    %v4746 = vld [vmem:[#allocation3 + $0xb0] sm:$0xff]
    %v4747 = vld [vmem:[#allocation3 + $0xb8] sm:$0xff]
    %v4748 = vld [vmem:[#allocation3 + $0xc0] sm:$0xff]
    %v4749 = vld [vmem:[#allocation3 + $0xc8] sm:$0xff]
    %v4750 = vld [vmem:[#allocation3 + $0xd0] sm:$0xff]
    %v4751 = vld [vmem:[#allocation3 + $0xd8] sm:$0xff]
    %v4752 = vld [vmem:[#allocation3 + $0xe0] sm:$0xff]
    %v4753 = vld [vmem:[#allocation3 + $0xe8] sm:$0xff]
    %v4754 = vld [vmem:[#allocation3 + $0xf0] sm:$0xff]
    %v4755 = vld [vmem:[#allocation3 + $0xf8] sm:$0xff]
    %v4756 = vld [vmem:[#allocation3 + $0x100] sm:$0xff]
    %v4757 = vld [vmem:[#allocation3 + $0x108] sm:$0xff]
    %v4758 = vld [vmem:[#allocation3 + $0x110] sm:$0xff]
    %v4759 = vld [vmem:[#allocation3 + $0x118] sm:$0xff]
    %v4760 = vld [vmem:[#allocation3 + $0x120] sm:$0xff]
    %v4761 = vld [vmem:[#allocation3 + $0x128] sm:$0xff]
    %v4762 = vld [vmem:[#allocation3 + $0x130] sm:$0xff]
    %v4763 = vld [vmem:[#allocation3 + $0x138] sm:$0xff]
    %v4764 = vld [vmem:[#allocation3 + $0x140] sm:$0xff]
    %v4765 = vld [vmem:[#allocation3 + $0x148] sm:$0xff]
    %v4766 = vld [vmem:[#allocation3 + $0x150] sm:$0xff]
    %v4767 = vld [vmem:[#allocation3 + $0x158] sm:$0xff]
    %v4768 = vld [vmem:[#allocation3 + $0x160] sm:$0xff]
    %v4769 = vld [vmem:[#allocation3 + $0x168] sm:$0xff]
    %v4770 = vld [vmem:[#allocation3 + $0x170] sm:$0xff]
    %v4771 = vld [vmem:[#allocation3 + $0x178] sm:$0xff]
    %v4772 = vld [vmem:[#allocation3 + $0x180] sm:$0xff]
    %v4773 = vld [vmem:[#allocation3 + $0x188] sm:$0xff]
    %v4774 = vld [vmem:[#allocation3 + $0x190] sm:$0xff]
    %v4775 = vld [vmem:[#allocation3 + $0x198] sm:$0xff]
    %v4776 = vld [vmem:[#allocation3 + $0x1a0] sm:$0xff]
    %v4777 = vld [vmem:[#allocation3 + $0x1a8] sm:$0xff]
    %v4778 = vld [vmem:[#allocation3 + $0x1b0] sm:$0xff]
    %v4779 = vld [vmem:[#allocation3 + $0x1b8] sm:$0xff]
    %v4780 = vld [vmem:[#allocation3 + $0x1c0] sm:$0xff]
    %v4781 = vld [vmem:[#allocation3 + $0x1c8] sm:$0xff]
    %v4782 = vld [vmem:[#allocation3 + $0x1d0] sm:$0xff]
    %v4783 = vld [vmem:[#allocation3 + $0x1d8] sm:$0xff]
    %v4784 = vld [vmem:[#allocation3 + $0x1e0] sm:$0xff]
    %v4785 = vld [vmem:[#allocation3 + $0x1e8] sm:$0xff]
    %v4786 = vld [vmem:[#allocation3 + $0x1f0] sm:$0xff]
    %v4787 = vld [vmem:[#allocation3 + $0x1f8] sm:$0xff]
    %v4788 = vld [vmem:[#allocation3 + $0x200] sm:$0xff]
    %v4789 = vld [vmem:[#allocation3 + $0x208] sm:$0xff]
    %v4790 = vld [vmem:[#allocation3 + $0x210] sm:$0xff]
    %v4791 = vld [vmem:[#allocation3 + $0x218] sm:$0xff]
    %v4792 = vld [vmem:[#allocation3 + $0x220] sm:$0xff]
    %v4793 = vld [vmem:[#allocation3 + $0x228] sm:$0xff]
    %v4794 = vld [vmem:[#allocation3 + $0x230] sm:$0xff]
    %v4795 = vld [vmem:[#allocation3 + $0x238] sm:$0xff]
    %v4796 = vld [vmem:[#allocation3 + $0x240] sm:$0xff]
    %v4797 = vld [vmem:[#allocation3 + $0x248] sm:$0xff]
    %v4798 = vld [vmem:[#allocation3 + $0x250] sm:$0xff]
    %v4799 = vld [vmem:[#allocation3 + $0x258] sm:$0xff]
    %v4800 = vld [vmem:[#allocation3 + $0x260] sm:$0xff]
    %v4801 = vld [vmem:[#allocation3 + $0x268] sm:$0xff]
    %v4802 = vld [vmem:[#allocation3 + $0x270] sm:$0xff]
    %v4803 = vld [vmem:[#allocation3 + $0x278] sm:$0xff]
    %v4804 = vld [vmem:[%s2] sm:$0xff]
    %v4805 = vld [vmem:[%s2 + $0x8] sm:$0xff]
    %v4806 = vld [vmem:[%s2 + $0x10] sm:$0xff]
    %v4807 = vld [vmem:[%s2 + $0x18] sm:$0xff]
    %v4808 = vld [vmem:[%s2 + $0x20] sm:$0xff]
    %v4809 = vld [vmem:[%s2 + $0x28] sm:$0xff]
    %v4810 = vld [vmem:[%s2 + $0x30] sm:$0xff]
    %v4811 = vld [vmem:[%s2 + $0x38] sm:$0xff]
    %v4812 = vld [vmem:[%s2 + $0x40] sm:$0xff]
    %v4813 = vld [vmem:[%s2 + $0x48] sm:$0xff]
    %v4814 = vld [vmem:[%s2 + $0x50] sm:$0xff]
    %v4815 = vld [vmem:[%s2 + $0x58] sm:$0xff]
    %v4816 = vld [vmem:[%s2 + $0x60] sm:$0xff]
    %v4817 = vld [vmem:[%s2 + $0x68] sm:$0xff]
    %v4818 = vld [vmem:[%s2 + $0x70] sm:$0xff]
    %v4819 = vld [vmem:[%s2 + $0x78] sm:$0xff]
    %v4820 = vld [vmem:[%s2 + $0x80] sm:$0xff]
    %v4821 = vld [vmem:[%s2 + $0x88] sm:$0xff]
    %v4822 = vld [vmem:[%s2 + $0x90] sm:$0xff]
    %v4823 = vld [vmem:[%s2 + $0x98] sm:$0xff]
    %v4824 = vld [vmem:[%s2 + $0xa0] sm:$0xff]
    %v4825 = vld [vmem:[%s2 + $0xa8] sm:$0xff]
    %v4826 = vld [vmem:[%s2 + $0xb0] sm:$0xff]
    %v4827 = vld [vmem:[%s2 + $0xb8] sm:$0xff]
    %v4828 = vld [vmem:[%s2 + $0xc0] sm:$0xff]
    %v4829 = vld [vmem:[%s2 + $0xc8] sm:$0xff]
    %v4830 = vld [vmem:[%s2 + $0xd0] sm:$0xff]
    %v4831 = vld [vmem:[%s2 + $0xd8] sm:$0xff]
    %v4832 = vld [vmem:[%s2 + $0xe0] sm:$0xff]
    %v4833 = vld [vmem:[%s2 + $0xe8] sm:$0xff]
    %v4834 = vld [vmem:[%s2 + $0xf0] sm:$0xff]
    %v4835 = vld [vmem:[%s2 + $0xf8] sm:$0xff]
    %v4836 = vld [vmem:[%s2 + $0x100] sm:$0xff]
    %v4837 = vld [vmem:[%s2 + $0x108] sm:$0xff]
    %v4838 = vld [vmem:[%s2 + $0x110] sm:$0xff]
    %v4839 = vld [vmem:[%s2 + $0x118] sm:$0xff]
    %v4840 = vld [vmem:[%s2 + $0x120] sm:$0xff]
    %v4841 = vld [vmem:[%s2 + $0x128] sm:$0xff]
    %v4842 = vld [vmem:[%s2 + $0x130] sm:$0xff]
    %v4843 = vld [vmem:[%s2 + $0x138] sm:$0xff]
    %v4844 = vld [vmem:[%s2 + $0x140] sm:$0xff]
    %v4845 = vld [vmem:[%s2 + $0x148] sm:$0xff]
    %v4846 = vld [vmem:[%s2 + $0x150] sm:$0xff]
    %v4847 = vld [vmem:[%s2 + $0x158] sm:$0xff]
    %v4848 = vld [vmem:[%s2 + $0x160] sm:$0xff]
    %v4849 = vld [vmem:[%s2 + $0x168] sm:$0xff]
    %v4850 = vld [vmem:[%s2 + $0x170] sm:$0xff]
    %v4851 = vld [vmem:[%s2 + $0x178] sm:$0xff]
    %v4852 = vld [vmem:[%s2 + $0x180] sm:$0xff]
    %v4853 = vld [vmem:[%s2 + $0x188] sm:$0xff]
    %v4854 = vld [vmem:[%s2 + $0x190] sm:$0xff]
    %v4855 = vld [vmem:[%s2 + $0x198] sm:$0xff]
    %v4856 = vld [vmem:[%s2 + $0x1a0] sm:$0xff]
    %v4857 = vld [vmem:[%s2 + $0x1a8] sm:$0xff]
    %v4858 = vld [vmem:[%s2 + $0x1b0] sm:$0xff]
    %v4859 = vld [vmem:[%s2 + $0x1b8] sm:$0xff]
    %v4860 = vld [vmem:[%s2 + $0x1c0] sm:$0xff]
    %v4861 = vld [vmem:[%s2 + $0x1c8] sm:$0xff]
    %v4862 = vld [vmem:[%s2 + $0x1d0] sm:$0xff]
    %v4863 = vld [vmem:[%s2 + $0x1d8] sm:$0xff]
    %v4864 = vld [vmem:[%s2 + $0x1e0] sm:$0xff]
    %v4865 = vld [vmem:[%s2 + $0x1e8] sm:$0xff]
    %v4866 = vld [vmem:[%s2 + $0x1f0] sm:$0xff]
    %v4867 = vld [vmem:[%s2 + $0x1f8] sm:$0xff]
    %v4868 = vld [vmem:[%s2 + $0x200] sm:$0xff]
    %v4869 = vld [vmem:[%s2 + $0x208] sm:$0xff]
    %v4870 = vld [vmem:[%s2 + $0x210] sm:$0xff]
    %v4871 = vld [vmem:[%s2 + $0x218] sm:$0xff]
    %v4872 = vld [vmem:[%s2 + $0x220] sm:$0xff]
    %v4873 = vld [vmem:[%s2 + $0x228] sm:$0xff]
    %v4874 = vld [vmem:[%s2 + $0x230] sm:$0xff]
    %v4875 = vld [vmem:[%s2 + $0x238] sm:$0xff]
    %v4877 = vsel %vm494, %v4728, 0
    %v4880 = vsel %vm494, %v4733, 0
    %v4883 = vsel %vm494, %v4738, 0
    %v4886 = vsel %vm494, %v4743, 0
    %v4889 = vsel %vm494, %v4748, 0
    %v4892 = vsel %vm494, %v4753, 0
    %v4895 = vsel %vm494, %v4758, 0
    %v4898 = vsel %vm494, %v4763, 0
    %v4901 = vsel %vm494, %v4768, 0
    %v4904 = vsel %vm494, %v4773, 0
    %v4907 = vsel %vm494, %v4778, 0
    %v4910 = vsel %vm494, %v4783, 0
    %v4913 = vsel %vm494, %v4788, 0
    %v4916 = vsel %vm494, %v4793, 0
    %v4919 = vsel %vm494, %v4798, 0
    %v4922 = vsel %vm494, %v4803, 0
    %4924 = vmatpush.msra.mxu0 %v4819
    %4925 = vmatpush.msra.mxu0 %v4818
    %4926 = vmatpush.msra.mxu0 %v4817
    %4927 = vmatpush.msra.mxu0 %v4816
    %4928 = vmatpush.msra.mxu0 %v4815
    %4929 = vmatpush.msra.mxu0 %v4814
    %4930 = vmatpush.msra.mxu0 %v4813
    %4931 = vmatpush.msra.mxu0 %v4812
    %4932 = vmatpush.msra.mxu0 %v4811
    %4933 = vmatpush.msra.mxu0 %v4810
    %4934 = vmatpush.msra.mxu0 %v4809
    %4935 = vmatpush.msra.mxu0 %v4808
    %4936 = vmatpush.msra.mxu0 %v4807
    %4937 = vmatpush.msra.mxu0 %v4806
    %4938 = vmatpush.msra.mxu0 %v4805
    %4939 = vmatpush.msra.mxu0 %v4804
    %4940 = vmatmul.f32.gmra.mxu0 %v4724
    %v4941 = vpop.f32.mrf.mxu0
    %v4942 = vadd.f32 0.0, %v4941
    %4943 = vmatmul.f32.gmra.mxu0 %v4729
    %v4944 = vpop.f32.mrf.mxu0
    %v4945 = vadd.f32 0.0, %v4944
    %4946 = vmatmul.f32.gmra.mxu0 %v4734
    %v4947 = vpop.f32.mrf.mxu0
    %v4948 = vadd.f32 0.0, %v4947
    %4949 = vmatmul.f32.gmra.mxu0 %v4739
    %v4950 = vpop.f32.mrf.mxu0
    %v4951 = vadd.f32 0.0, %v4950
    %4952 = vmatmul.f32.gmra.mxu0 %v4744
    %v4953 = vpop.f32.mrf.mxu0
    %v4954 = vadd.f32 0.0, %v4953
    %4955 = vmatmul.f32.gmra.mxu0 %v4749
    %v4956 = vpop.f32.mrf.mxu0
    %v4957 = vadd.f32 0.0, %v4956
    %4958 = vmatmul.f32.gmra.mxu0 %v4754
    %v4959 = vpop.f32.mrf.mxu0
    %v4960 = vadd.f32 0.0, %v4959
    %4961 = vmatmul.f32.gmra.mxu0 %v4759
    %v4962 = vpop.f32.mrf.mxu0
    %v4963 = vadd.f32 0.0, %v4962
    %4964 = vmatmul.f32.gmra.mxu0 %v4764
    %v4965 = vpop.f32.mrf.mxu0
    %v4966 = vadd.f32 0.0, %v4965
    %4967 = vmatmul.f32.gmra.mxu0 %v4769
    %v4968 = vpop.f32.mrf.mxu0
    %v4969 = vadd.f32 0.0, %v4968
    %4970 = vmatmul.f32.gmra.mxu0 %v4774
    %v4971 = vpop.f32.mrf.mxu0
    %v4972 = vadd.f32 0.0, %v4971
    %4973 = vmatmul.f32.gmra.mxu0 %v4779
    %v4974 = vpop.f32.mrf.mxu0
    %v4975 = vadd.f32 0.0, %v4974
    %4976 = vmatmul.f32.gmra.mxu0 %v4784
    %v4977 = vpop.f32.mrf.mxu0
    %v4978 = vadd.f32 0.0, %v4977
    %4979 = vmatmul.f32.gmra.mxu0 %v4789
    %v4980 = vpop.f32.mrf.mxu0
    %v4981 = vadd.f32 0.0, %v4980
    %4982 = vmatmul.f32.gmra.mxu0 %v4794
    %v4983 = vpop.f32.mrf.mxu0
    %v4984 = vadd.f32 0.0, %v4983
    %4985 = vmatmul.f32.gmra.mxu0 %v4799
    %v4986 = vpop.f32.mrf.mxu0
    %v4987 = vadd.f32 0.0, %v4986
    %4988 = vdwg.mxu0
    %4989 = vmatpush.msra.mxu0 %v4835
    %4990 = vmatpush.msra.mxu0 %v4834
    %4991 = vmatpush.msra.mxu0 %v4833
    %4992 = vmatpush.msra.mxu0 %v4832
    %4993 = vmatpush.msra.mxu0 %v4831
    %4994 = vmatpush.msra.mxu0 %v4830
    %4995 = vmatpush.msra.mxu0 %v4829
    %4996 = vmatpush.msra.mxu0 %v4828
    %4997 = vmatpush.msra.mxu0 %v4827
    %4998 = vmatpush.msra.mxu0 %v4826
    %4999 = vmatpush.msra.mxu0 %v4825
    %5000 = vmatpush.msra.mxu0 %v4824
    %5001 = vmatpush.msra.mxu0 %v4823
    %5002 = vmatpush.msra.mxu0 %v4822
    %5003 = vmatpush.msra.mxu0 %v4821
    %5004 = vmatpush.msra.mxu0 %v4820
    %5005 = vmatmul.f32.gmra.mxu0 %v4725
    %v5006 = vpop.f32.mrf.mxu0
    %v5007 = vadd.f32 %v4942, %v5006
    %5008 = vmatmul.f32.gmra.mxu0 %v4730
    %v5009 = vpop.f32.mrf.mxu0
    %v5010 = vadd.f32 %v4945, %v5009
    %5011 = vmatmul.f32.gmra.mxu0 %v4735
    %v5012 = vpop.f32.mrf.mxu0
    %v5013 = vadd.f32 %v4948, %v5012
    %5014 = vmatmul.f32.gmra.mxu0 %v4740
    %v5015 = vpop.f32.mrf.mxu0
    %v5016 = vadd.f32 %v4951, %v5015
    %5017 = vmatmul.f32.gmra.mxu0 %v4745
    %v5018 = vpop.f32.mrf.mxu0
    %v5019 = vadd.f32 %v4954, %v5018
    %5020 = vmatmul.f32.gmra.mxu0 %v4750
    %v5021 = vpop.f32.mrf.mxu0
    %v5022 = vadd.f32 %v4957, %v5021
    %5023 = vmatmul.f32.gmra.mxu0 %v4755
    %v5024 = vpop.f32.mrf.mxu0
    %v5025 = vadd.f32 %v4960, %v5024
    %5026 = vmatmul.f32.gmra.mxu0 %v4760
    %v5027 = vpop.f32.mrf.mxu0
    %v5028 = vadd.f32 %v4963, %v5027
    %5029 = vmatmul.f32.gmra.mxu0 %v4765
    %v5030 = vpop.f32.mrf.mxu0
    %v5031 = vadd.f32 %v4966, %v5030
    %5032 = vmatmul.f32.gmra.mxu0 %v4770
    %v5033 = vpop.f32.mrf.mxu0
    %v5034 = vadd.f32 %v4969, %v5033
    %5035 = vmatmul.f32.gmra.mxu0 %v4775
    %v5036 = vpop.f32.mrf.mxu0
    %v5037 = vadd.f32 %v4972, %v5036
    %5038 = vmatmul.f32.gmra.mxu0 %v4780
    %v5039 = vpop.f32.mrf.mxu0
    %v5040 = vadd.f32 %v4975, %v5039
    %5041 = vmatmul.f32.gmra.mxu0 %v4785
    %v5042 = vpop.f32.mrf.mxu0
    %v5043 = vadd.f32 %v4978, %v5042
    %5044 = vmatmul.f32.gmra.mxu0 %v4790
    %v5045 = vpop.f32.mrf.mxu0
    %v5046 = vadd.f32 %v4981, %v5045
    %5047 = vmatmul.f32.gmra.mxu0 %v4795
    %v5048 = vpop.f32.mrf.mxu0
    %v5049 = vadd.f32 %v4984, %v5048
    %5050 = vmatmul.f32.gmra.mxu0 %v4800
    %v5051 = vpop.f32.mrf.mxu0
    %v5052 = vadd.f32 %v4987, %v5051
    %5053 = vdwg.mxu0
    %5054 = vmatpush.msra.mxu0 %v4851
    %5055 = vmatpush.msra.mxu0 %v4850
    %5056 = vmatpush.msra.mxu0 %v4849
    %5057 = vmatpush.msra.mxu0 %v4848
    %5058 = vmatpush.msra.mxu0 %v4847
    %5059 = vmatpush.msra.mxu0 %v4846
    %5060 = vmatpush.msra.mxu0 %v4845
    %5061 = vmatpush.msra.mxu0 %v4844
    %5062 = vmatpush.msra.mxu0 %v4843
    %5063 = vmatpush.msra.mxu0 %v4842
    %5064 = vmatpush.msra.mxu0 %v4841
    %5065 = vmatpush.msra.mxu0 %v4840
    %5066 = vmatpush.msra.mxu0 %v4839
    %5067 = vmatpush.msra.mxu0 %v4838
    %5068 = vmatpush.msra.mxu0 %v4837
    %5069 = vmatpush.msra.mxu0 %v4836
    %5070 = vmatmul.f32.gmra.mxu0 %v4726
    %v5071 = vpop.f32.mrf.mxu0
    %v5072 = vadd.f32 %v5007, %v5071
    %5073 = vmatmul.f32.gmra.mxu0 %v4731
    %v5074 = vpop.f32.mrf.mxu0
    %v5075 = vadd.f32 %v5010, %v5074
    %5076 = vmatmul.f32.gmra.mxu0 %v4736
    %v5077 = vpop.f32.mrf.mxu0
    %v5078 = vadd.f32 %v5013, %v5077
    %5079 = vmatmul.f32.gmra.mxu0 %v4741
    %v5080 = vpop.f32.mrf.mxu0
    %v5081 = vadd.f32 %v5016, %v5080
    %5082 = vmatmul.f32.gmra.mxu0 %v4746
    %v5083 = vpop.f32.mrf.mxu0
    %v5084 = vadd.f32 %v5019, %v5083
    %5085 = vmatmul.f32.gmra.mxu0 %v4751
    %v5086 = vpop.f32.mrf.mxu0
    %v5087 = vadd.f32 %v5022, %v5086
    %5088 = vmatmul.f32.gmra.mxu0 %v4756
    %v5089 = vpop.f32.mrf.mxu0
    %v5090 = vadd.f32 %v5025, %v5089
    %5091 = vmatmul.f32.gmra.mxu0 %v4761
    %v5092 = vpop.f32.mrf.mxu0
    %v5093 = vadd.f32 %v5028, %v5092
    %5094 = vmatmul.f32.gmra.mxu0 %v4766
    %v5095 = vpop.f32.mrf.mxu0
    %v5096 = vadd.f32 %v5031, %v5095
    %5097 = vmatmul.f32.gmra.mxu0 %v4771
    %v5098 = vpop.f32.mrf.mxu0
    %v5099 = vadd.f32 %v5034, %v5098
    %5100 = vmatmul.f32.gmra.mxu0 %v4776
    %v5101 = vpop.f32.mrf.mxu0
    %v5102 = vadd.f32 %v5037, %v5101
    %5103 = vmatmul.f32.gmra.mxu0 %v4781
    %v5104 = vpop.f32.mrf.mxu0
    %v5105 = vadd.f32 %v5040, %v5104
    %5106 = vmatmul.f32.gmra.mxu0 %v4786
    %v5107 = vpop.f32.mrf.mxu0
    %v5108 = vadd.f32 %v5043, %v5107
    %5109 = vmatmul.f32.gmra.mxu0 %v4791
    %v5110 = vpop.f32.mrf.mxu0
    %v5111 = vadd.f32 %v5046, %v5110
    %5112 = vmatmul.f32.gmra.mxu0 %v4796
    %v5113 = vpop.f32.mrf.mxu0
    %v5114 = vadd.f32 %v5049, %v5113
    %5115 = vmatmul.f32.gmra.mxu0 %v4801
    %v5116 = vpop.f32.mrf.mxu0
    %v5117 = vadd.f32 %v5052, %v5116
    %5118 = vdwg.mxu0
    %5119 = vmatpush.msra.mxu0 %v4867
    %5120 = vmatpush.msra.mxu0 %v4866
    %5121 = vmatpush.msra.mxu0 %v4865
    %5122 = vmatpush.msra.mxu0 %v4864
    %5123 = vmatpush.msra.mxu0 %v4863
    %5124 = vmatpush.msra.mxu0 %v4862
    %5125 = vmatpush.msra.mxu0 %v4861
    %5126 = vmatpush.msra.mxu0 %v4860
    %5127 = vmatpush.msra.mxu0 %v4859
    %5128 = vmatpush.msra.mxu0 %v4858
    %5129 = vmatpush.msra.mxu0 %v4857
    %5130 = vmatpush.msra.mxu0 %v4856
    %5131 = vmatpush.msra.mxu0 %v4855
    %5132 = vmatpush.msra.mxu0 %v4854
    %5133 = vmatpush.msra.mxu0 %v4853
    %5134 = vmatpush.msra.mxu0 %v4852
    %5135 = vmatmul.f32.gmra.mxu0 %v4727
    %v5136 = vpop.f32.mrf.mxu0
    %v5137 = vadd.f32 %v5072, %v5136
    %5138 = vmatmul.f32.gmra.mxu0 %v4732
    %v5139 = vpop.f32.mrf.mxu0
    %v5140 = vadd.f32 %v5075, %v5139
    %5141 = vmatmul.f32.gmra.mxu0 %v4737
    %v5142 = vpop.f32.mrf.mxu0
    %v5143 = vadd.f32 %v5078, %v5142
    %5144 = vmatmul.f32.gmra.mxu0 %v4742
    %v5145 = vpop.f32.mrf.mxu0
    %v5146 = vadd.f32 %v5081, %v5145
    %5147 = vmatmul.f32.gmra.mxu0 %v4747
    %v5148 = vpop.f32.mrf.mxu0
    %v5149 = vadd.f32 %v5084, %v5148
    %5150 = vmatmul.f32.gmra.mxu0 %v4752
    %v5151 = vpop.f32.mrf.mxu0
    %v5152 = vadd.f32 %v5087, %v5151
    %5153 = vmatmul.f32.gmra.mxu0 %v4757
    %v5154 = vpop.f32.mrf.mxu0
    %v5155 = vadd.f32 %v5090, %v5154
    %5156 = vmatmul.f32.gmra.mxu0 %v4762
    %v5157 = vpop.f32.mrf.mxu0
    %v5158 = vadd.f32 %v5093, %v5157
    %5159 = vmatmul.f32.gmra.mxu0 %v4767
    %v5160 = vpop.f32.mrf.mxu0
    %v5161 = vadd.f32 %v5096, %v5160
    %5162 = vmatmul.f32.gmra.mxu0 %v4772
    %v5163 = vpop.f32.mrf.mxu0
    %v5164 = vadd.f32 %v5099, %v5163
    %5165 = vmatmul.f32.gmra.mxu0 %v4777
    %v5166 = vpop.f32.mrf.mxu0
    %v5167 = vadd.f32 %v5102, %v5166
    %5168 = vmatmul.f32.gmra.mxu0 %v4782
    %v5169 = vpop.f32.mrf.mxu0
    %v5170 = vadd.f32 %v5105, %v5169
    %5171 = vmatmul.f32.gmra.mxu0 %v4787
    %v5172 = vpop.f32.mrf.mxu0
    %v5173 = vadd.f32 %v5108, %v5172
    %5174 = vmatmul.f32.gmra.mxu0 %v4792
    %v5175 = vpop.f32.mrf.mxu0
    %v5176 = vadd.f32 %v5111, %v5175
    %5177 = vmatmul.f32.gmra.mxu0 %v4797
    %v5178 = vpop.f32.mrf.mxu0
    %v5179 = vadd.f32 %v5114, %v5178
    %5180 = vmatmul.f32.gmra.mxu0 %v4802
    %v5181 = vpop.f32.mrf.mxu0
    %v5182 = vadd.f32 %v5117, %v5181
    %5183 = vdwg.mxu0
    %5184 = vmatpush.msra.mxu0 0.0
    %5185 = vmatpush.msra.mxu0 0.0
    %5186 = vmatpush.msra.mxu0 0.0
    %5187 = vmatpush.msra.mxu0 0.0
    %5188 = vmatpush.msra.mxu0 0.0
    %5189 = vmatpush.msra.mxu0 0.0
    %5190 = vmatpush.msra.mxu0 0.0
    %5191 = vmatpush.msra.mxu0 0.0
    %5192 = vmatpush.msra.mxu0 %v4875
    %5193 = vmatpush.msra.mxu0 %v4874
    %5194 = vmatpush.msra.mxu0 %v4873
    %5195 = vmatpush.msra.mxu0 %v4872
    %5196 = vmatpush.msra.mxu0 %v4871
    %5197 = vmatpush.msra.mxu0 %v4870
    %5198 = vmatpush.msra.mxu0 %v4869
    %5199 = vmatpush.msra.mxu0 %v4868
    %5200 = vmatmul.f32.gmra.mxu0 %v4877
    %v5201 = vpop.f32.mrf.mxu0
    %v5202 = vadd.f32 %v5137, %v5201
    %5203 = vmatmul.f32.gmra.mxu0 %v4880
    %v5204 = vpop.f32.mrf.mxu0
    %v5205 = vadd.f32 %v5140, %v5204
    %5206 = vmatmul.f32.gmra.mxu0 %v4883
    %v5207 = vpop.f32.mrf.mxu0
    %v5208 = vadd.f32 %v5143, %v5207
    %5209 = vmatmul.f32.gmra.mxu0 %v4886
    %v5210 = vpop.f32.mrf.mxu0
    %v5211 = vadd.f32 %v5146, %v5210
    %5212 = vmatmul.f32.gmra.mxu0 %v4889
    %v5213 = vpop.f32.mrf.mxu0
    %v5214 = vadd.f32 %v5149, %v5213
    %5215 = vmatmul.f32.gmra.mxu0 %v4892
    %v5216 = vpop.f32.mrf.mxu0
    %v5217 = vadd.f32 %v5152, %v5216
    %5218 = vmatmul.f32.gmra.mxu0 %v4895
    %v5219 = vpop.f32.mrf.mxu0
    %v5220 = vadd.f32 %v5155, %v5219
    %5221 = vmatmul.f32.gmra.mxu0 %v4898
    %v5222 = vpop.f32.mrf.mxu0
    %v5223 = vadd.f32 %v5158, %v5222
    %5224 = vmatmul.f32.gmra.mxu0 %v4901
    %v5225 = vpop.f32.mrf.mxu0
    %v5226 = vadd.f32 %v5161, %v5225
    %5227 = vmatmul.f32.gmra.mxu0 %v4904
    %v5228 = vpop.f32.mrf.mxu0
    %v5229 = vadd.f32 %v5164, %v5228
    %5230 = vmatmul.f32.gmra.mxu0 %v4907
    %v5231 = vpop.f32.mrf.mxu0
    %v5232 = vadd.f32 %v5167, %v5231
    %5233 = vmatmul.f32.gmra.mxu0 %v4910
    %v5234 = vpop.f32.mrf.mxu0
    %v5235 = vadd.f32 %v5170, %v5234
    %5236 = vmatmul.f32.gmra.mxu0 %v4913
    %v5237 = vpop.f32.mrf.mxu0
    %v5238 = vadd.f32 %v5173, %v5237
    %5239 = vmatmul.f32.gmra.mxu0 %v4916
    %v5240 = vpop.f32.mrf.mxu0
    %v5241 = vadd.f32 %v5176, %v5240
    %5242 = vmatmul.f32.gmra.mxu0 %v4919
    %v5243 = vpop.f32.mrf.mxu0
    %v5244 = vadd.f32 %v5179, %v5243
    %5245 = vmatmul.f32.gmra.mxu0 %v4922
    %v5246 = vpop.f32.mrf.mxu0
    %v5247 = vadd.f32 %v5182, %v5246
    %5248 = vdwg.mxu0
    %5249 = vst.msk [vmem:[#allocation2] sm:$0xff] %vm494, %v5202
    %5250 = vst.msk [vmem:[#allocation2 + $0x8] sm:$0xff] %vm494, %v5205
    %5251 = vst.msk [vmem:[#allocation2 + $0x10] sm:$0xff] %vm494, %v5208
    %5252 = vst.msk [vmem:[#allocation2 + $0x18] sm:$0xff] %vm494, %v5211
    %5253 = vst.msk [vmem:[#allocation2 + $0x20] sm:$0xff] %vm494, %v5214
    %5254 = vst.msk [vmem:[#allocation2 + $0x28] sm:$0xff] %vm494, %v5217
    %5255 = vst.msk [vmem:[#allocation2 + $0x30] sm:$0xff] %vm494, %v5220
    %5256 = vst.msk [vmem:[#allocation2 + $0x38] sm:$0xff] %vm494, %v5223
    %5257 = vst.msk [vmem:[#allocation2 + $0x40] sm:$0xff] %vm494, %v5226
    %5258 = vst.msk [vmem:[#allocation2 + $0x48] sm:$0xff] %vm494, %v5229
    %5259 = vst.msk [vmem:[#allocation2 + $0x50] sm:$0xff] %vm494, %v5232
    %5260 = vst.msk [vmem:[#allocation2 + $0x58] sm:$0xff] %vm494, %v5235
    %5261 = vst.msk [vmem:[#allocation2 + $0x60] sm:$0xff] %vm494, %v5238
    %5262 = vst.msk [vmem:[#allocation2 + $0x68] sm:$0xff] %vm494, %v5241
    %5263 = vst.msk [vmem:[#allocation2 + $0x70] sm:$0xff] %vm494, %v5244
    %5264 = vst.msk [vmem:[#allocation2 + $0x78] sm:$0xff] %vm494, %v5247
    %v5265 = vld [vmem:[#allocation2] sm:$0xff]
    %v5266 = vld [vmem:[#allocation2 + $0x8] sm:$0xff]
    %v5267 = vld [vmem:[#allocation2 + $0x10] sm:$0xff]
    %v5268 = vld [vmem:[#allocation2 + $0x18] sm:$0xff]
    %v5269 = vld [vmem:[#allocation2 + $0x20] sm:$0xff]
    %v5270 = vld [vmem:[#allocation2 + $0x28] sm:$0xff]
    %v5271 = vld [vmem:[#allocation2 + $0x30] sm:$0xff]
    %v5272 = vld [vmem:[#allocation2 + $0x38] sm:$0xff]
    %v5273 = vld [vmem:[#allocation2 + $0x40] sm:$0xff]
    %v5274 = vld [vmem:[#allocation2 + $0x48] sm:$0xff]
    %v5275 = vld [vmem:[#allocation2 + $0x50] sm:$0xff]
    %v5276 = vld [vmem:[#allocation2 + $0x58] sm:$0xff]
    %v5277 = vld [vmem:[#allocation2 + $0x60] sm:$0xff]
    %v5278 = vld [vmem:[#allocation2 + $0x68] sm:$0xff]
    %v5279 = vld [vmem:[#allocation2 + $0x70] sm:$0xff]
    %v5280 = vld [vmem:[#allocation2 + $0x78] sm:$0xff]
    %v5281 = vsel %vm494, %v5265, 0.0
    %v5282 = vsel %vm494, %v5266, 0.0
    %v5283 = vadd.f32 %v5281, %v5282
    %v5284 = vsel %vm494, %v5267, 0.0
    %v5285 = vadd.f32 %v5283, %v5284
    %v5286 = vsel %vm494, %v5268, 0.0
    %v5287 = vadd.f32 %v5285, %v5286
    %v5288 = vsel %vm494, %v5269, 0.0
    %v5289 = vadd.f32 %v5287, %v5288
    %v5290 = vsel %vm494, %v5270, 0.0
    %v5291 = vadd.f32 %v5289, %v5290
    %v5292 = vsel %vm494, %v5271, 0.0
    %v5293 = vadd.f32 %v5291, %v5292
    %v5294 = vsel %vm494, %v5272, 0.0
    %v5295 = vadd.f32 %v5293, %v5294
    %v5296 = vsel %vm494, %v5273, 0.0
    %v5297 = vadd.f32 %v5295, %v5296
    %v5298 = vsel %vm494, %v5274, 0.0
    %v5299 = vadd.f32 %v5297, %v5298
    %v5300 = vsel %vm494, %v5275, 0.0
    %v5301 = vadd.f32 %v5299, %v5300
    %v5302 = vsel %vm494, %v5276, 0.0
    %v5303 = vadd.f32 %v5301, %v5302
    %v5304 = vsel %vm494, %v5277, 0.0
    %v5305 = vadd.f32 %v5303, %v5304
    %v5306 = vsel %vm494, %v5278, 0.0
    %v5307 = vadd.f32 %v5305, %v5306
    %v5308 = vsel %vm494, %v5279, 0.0
    %v5309 = vadd.f32 %v5307, %v5308
    %v5310 = vsel %vm494, %v5280, 0.0
    %v5311 = vadd.f32 %v5309, %v5310
    %v5312 = vrot.slane %v5311, 4
    %v5313 = vadd.f32 %v5311, %v5312
    %v5314 = vrot.slane %v5313, 2
    %v5315 = vadd.f32 %v5313, %v5314
    %v5316 = vrot.slane %v5315, 1
    %v5317 = vadd.f32 %v5315, %v5316
    %v5318 = vmul.f32 %v5317, 0.0078125
    %v5319 = vmul.f32 %v5265, %v5265
    %v5320 = vmul.f32 %v5266, %v5266
    %v5321 = vmul.f32 %v5267, %v5267
    %v5322 = vmul.f32 %v5268, %v5268
    %v5323 = vmul.f32 %v5269, %v5269
    %v5324 = vmul.f32 %v5270, %v5270
    %v5325 = vmul.f32 %v5271, %v5271
    %v5326 = vmul.f32 %v5272, %v5272
    %v5327 = vmul.f32 %v5273, %v5273
    %v5328 = vmul.f32 %v5274, %v5274
    %v5329 = vmul.f32 %v5275, %v5275
    %v5330 = vmul.f32 %v5276, %v5276
    %v5331 = vmul.f32 %v5277, %v5277
    %v5332 = vmul.f32 %v5278, %v5278
    %v5333 = vmul.f32 %v5279, %v5279
    %v5334 = vmul.f32 %v5280, %v5280
    %v5335 = vsel %vm494, %v5319, 0.0
    %v5336 = vsel %vm494, %v5320, 0.0
    %v5337 = vadd.f32 %v5335, %v5336
    %v5338 = vsel %vm494, %v5321, 0.0
    %v5339 = vadd.f32 %v5337, %v5338
    %v5340 = vsel %vm494, %v5322, 0.0
    %v5341 = vadd.f32 %v5339, %v5340
    %v5342 = vsel %vm494, %v5323, 0.0
    %v5343 = vadd.f32 %v5341, %v5342
    %v5344 = vsel %vm494, %v5324, 0.0
    %v5345 = vadd.f32 %v5343, %v5344
    %v5346 = vsel %vm494, %v5325, 0.0
    %v5347 = vadd.f32 %v5345, %v5346
    %v5348 = vsel %vm494, %v5326, 0.0
    %v5349 = vadd.f32 %v5347, %v5348
    %v5350 = vsel %vm494, %v5327, 0.0
    %v5351 = vadd.f32 %v5349, %v5350
    %v5352 = vsel %vm494, %v5328, 0.0
    %v5353 = vadd.f32 %v5351, %v5352
    %v5354 = vsel %vm494, %v5329, 0.0
    %v5355 = vadd.f32 %v5353, %v5354
    %v5356 = vsel %vm494, %v5330, 0.0
    %v5357 = vadd.f32 %v5355, %v5356
    %v5358 = vsel %vm494, %v5331, 0.0
    %v5359 = vadd.f32 %v5357, %v5358
    %v5360 = vsel %vm494, %v5332, 0.0
    %v5361 = vadd.f32 %v5359, %v5360
    %v5362 = vsel %vm494, %v5333, 0.0
    %v5363 = vadd.f32 %v5361, %v5362
    %v5364 = vsel %vm494, %v5334, 0.0
    %v5365 = vadd.f32 %v5363, %v5364
    %v5366 = vrot.slane %v5365, 4
    %v5367 = vadd.f32 %v5365, %v5366
    %v5368 = vrot.slane %v5367, 2
    %v5369 = vadd.f32 %v5367, %v5368
    %v5370 = vrot.slane %v5369, 1
    %v5371 = vadd.f32 %v5369, %v5370
    %v5372 = vmul.f32 %v5371, 0.0078125
    %v5373 = vmul.f32 %v5318, %v5318
    %v5374 = vsub.f32 %v5372, %v5373
    %v5375 = vld [vmem:[%s5 + $0x2] sm:$0x1]
    %v5376 = vld [vmem:[%s5 + $0x3] sm:$0x1]
    %v5377 = vadd.f32 %v5374, 1e-05
    %v5378 = vrsqrt.pop %v5377
    %v5379 = vmul.f32 %v5378, %v5377
    %v5380 = vmul.f32 %v5379, %v5378
    %v5381 = vmul.f32 0.5, %v5380
    %v5382 = vsub.f32 1.5, %v5381
    %v5383 = vmul.f32 %v5378, %v5382
    %vm5384 = vweird.f32 %v5377
    %vm5385 = vweird.f32 %v5378
    %vm5386 = vmor %vm5384, %vm5385
    %v5387 = vsel %vm5386, %v5378, %v5383
    %v5388 = vmul.f32 %v5387, %v5375
    %v5389 = vmul.f32 %v5318, %v5388
    %v5390 = vsub.f32 %v5376, %v5389
    %v5391 = vperm.slane %v5388, 0
    %v5392 = vmul.f32 %v5265, %v5391
    %v5393 = vmul.f32 %v5266, %v5391
    %v5394 = vmul.f32 %v5267, %v5391
    %v5395 = vmul.f32 %v5268, %v5391
    %v5396 = vmul.f32 %v5269, %v5391
    %v5397 = vmul.f32 %v5270, %v5391
    %v5398 = vmul.f32 %v5271, %v5391
    %v5399 = vmul.f32 %v5272, %v5391
    %v5400 = vmul.f32 %v5273, %v5391
    %v5401 = vmul.f32 %v5274, %v5391
    %v5402 = vmul.f32 %v5275, %v5391
    %v5403 = vmul.f32 %v5276, %v5391
    %v5404 = vmul.f32 %v5277, %v5391
    %v5405 = vmul.f32 %v5278, %v5391
    %v5406 = vmul.f32 %v5279, %v5391
    %v5407 = vmul.f32 %v5280, %v5391
    %v5408 = vperm.slane %v5390, 0
    %v5409 = vadd.f32 %v5392, %v5408
    %v5410 = vadd.f32 %v5393, %v5408
    %v5411 = vadd.f32 %v5394, %v5408
    %v5412 = vadd.f32 %v5395, %v5408
    %v5413 = vadd.f32 %v5396, %v5408
    %v5414 = vadd.f32 %v5397, %v5408
    %v5415 = vadd.f32 %v5398, %v5408
    %v5416 = vadd.f32 %v5399, %v5408
    %v5417 = vadd.f32 %v5400, %v5408
    %v5418 = vadd.f32 %v5401, %v5408
    %v5419 = vadd.f32 %v5402, %v5408
    %v5420 = vadd.f32 %v5403, %v5408
    %v5421 = vadd.f32 %v5404, %v5408
    %v5422 = vadd.f32 %v5405, %v5408
    %v5423 = vadd.f32 %v5406, %v5408
    %v5424 = vadd.f32 %v5407, %v5408
    %v5441 = vrot.slane %v5409, 2
    %v5442 = vrot.slane %v5409, 4
    %v5443 = vrot.slane %v5409, 6
    %v5444 = vrot.slane %v5410, 2
    %v5445 = vrot.slane %v5410, 4
    %v5446 = vrot.slane %v5410, 6
    %v5447 = vrot.slane %v5411, 2
    %v5448 = vrot.slane %v5411, 4
    %v5449 = vrot.slane %v5411, 6
    %v5450 = vrot.slane %v5412, 2
    %v5451 = vrot.slane %v5412, 4
    %v5452 = vrot.slane %v5412, 6
    %v5453 = vrot.slane %v5413, 2
    %v5454 = vrot.slane %v5413, 4
    %v5455 = vrot.slane %v5413, 6
    %v5456 = vrot.slane %v5414, 2
    %v5457 = vrot.slane %v5414, 4
    %v5458 = vrot.slane %v5414, 6
    %v5459 = vrot.slane %v5415, 2
    %v5460 = vrot.slane %v5415, 4
    %v5461 = vrot.slane %v5415, 6
    %v5462 = vrot.slane %v5416, 2
    %v5463 = vrot.slane %v5416, 4
    %v5464 = vrot.slane %v5416, 6
    %v5465 = vrot.slane %v5417, 2
    %v5466 = vrot.slane %v5417, 4
    %v5467 = vrot.slane %v5417, 6
    %v5468 = vrot.slane %v5418, 2
    %v5469 = vrot.slane %v5418, 4
    %v5470 = vrot.slane %v5418, 6
    %v5471 = vrot.slane %v5419, 2
    %v5472 = vrot.slane %v5419, 4
    %v5473 = vrot.slane %v5419, 6
    %v5474 = vrot.slane %v5420, 2
    %v5475 = vrot.slane %v5420, 4
    %v5476 = vrot.slane %v5420, 6
    %v5477 = vrot.slane %v5421, 2
    %v5478 = vrot.slane %v5421, 4
    %v5479 = vrot.slane %v5421, 6
    %v5480 = vrot.slane %v5422, 2
    %v5481 = vrot.slane %v5422, 4
    %v5482 = vrot.slane %v5422, 6
    %v5483 = vrot.slane %v5423, 2
    %v5484 = vrot.slane %v5423, 4
    %v5485 = vrot.slane %v5423, 6
    %v5486 = vrot.slane %v5424, 2
    %v5487 = vrot.slane %v5424, 4
    %v5488 = vrot.slane %v5424, 6
    %v5537 = vsel %vm1551, %v5409, -inf
    %v5538 = vrot.slane %v5537, 4
    %v5539 = vmax.f32 %v5537, %v5538
    %v5540 = vrot.slane %v5539, 2
    %v5541 = vmax.f32 %v5539, %v5540
    %v5542 = vrot.slane %v5541, 1
    %v5543 = vmax.f32 %v5541, %v5542
    %v5544 = vsel %vm1551, %v5441, -inf
    %v5545 = vrot.slane %v5544, 4
    %v5546 = vmax.f32 %v5544, %v5545
    %v5547 = vrot.slane %v5546, 2
    %v5548 = vmax.f32 %v5546, %v5547
    %v5549 = vrot.slane %v5548, 1
    %v5550 = vmax.f32 %v5548, %v5549
    %v5551 = vsel %vm1551, %v5442, -inf
    %v5552 = vrot.slane %v5551, 4
    %v5553 = vmax.f32 %v5551, %v5552
    %v5554 = vrot.slane %v5553, 2
    %v5555 = vmax.f32 %v5553, %v5554
    %v5556 = vrot.slane %v5555, 1
    %v5557 = vmax.f32 %v5555, %v5556
    %v5558 = vsel %vm1551, %v5443, -inf
    %v5559 = vrot.slane %v5558, 4
    %v5560 = vmax.f32 %v5558, %v5559
    %v5561 = vrot.slane %v5560, 2
    %v5562 = vmax.f32 %v5560, %v5561
    %v5563 = vrot.slane %v5562, 1
    %v5564 = vmax.f32 %v5562, %v5563
    %v5565 = vsel %vm1551, %v5410, -inf
    %v5566 = vrot.slane %v5565, 4
    %v5567 = vmax.f32 %v5565, %v5566
    %v5568 = vrot.slane %v5567, 2
    %v5569 = vmax.f32 %v5567, %v5568
    %v5570 = vrot.slane %v5569, 1
    %v5571 = vmax.f32 %v5569, %v5570
    %v5572 = vsel %vm1551, %v5444, -inf
    %v5573 = vrot.slane %v5572, 4
    %v5574 = vmax.f32 %v5572, %v5573
    %v5575 = vrot.slane %v5574, 2
    %v5576 = vmax.f32 %v5574, %v5575
    %v5577 = vrot.slane %v5576, 1
    %v5578 = vmax.f32 %v5576, %v5577
    %v5579 = vsel %vm1551, %v5445, -inf
    %v5580 = vrot.slane %v5579, 4
    %v5581 = vmax.f32 %v5579, %v5580
    %v5582 = vrot.slane %v5581, 2
    %v5583 = vmax.f32 %v5581, %v5582
    %v5584 = vrot.slane %v5583, 1
    %v5585 = vmax.f32 %v5583, %v5584
    %v5586 = vsel %vm1551, %v5446, -inf
    %v5587 = vrot.slane %v5586, 4
    %v5588 = vmax.f32 %v5586, %v5587
    %v5589 = vrot.slane %v5588, 2
    %v5590 = vmax.f32 %v5588, %v5589
    %v5591 = vrot.slane %v5590, 1
    %v5592 = vmax.f32 %v5590, %v5591
    %v5593 = vsel %vm1551, %v5411, -inf
    %v5594 = vrot.slane %v5593, 4
    %v5595 = vmax.f32 %v5593, %v5594
    %v5596 = vrot.slane %v5595, 2
    %v5597 = vmax.f32 %v5595, %v5596
    %v5598 = vrot.slane %v5597, 1
    %v5599 = vmax.f32 %v5597, %v5598
    %v5600 = vsel %vm1551, %v5447, -inf
    %v5601 = vrot.slane %v5600, 4
    %v5602 = vmax.f32 %v5600, %v5601
    %v5603 = vrot.slane %v5602, 2
    %v5604 = vmax.f32 %v5602, %v5603
    %v5605 = vrot.slane %v5604, 1
    %v5606 = vmax.f32 %v5604, %v5605
    %v5607 = vsel %vm1551, %v5448, -inf
    %v5608 = vrot.slane %v5607, 4
    %v5609 = vmax.f32 %v5607, %v5608
    %v5610 = vrot.slane %v5609, 2
    %v5611 = vmax.f32 %v5609, %v5610
    %v5612 = vrot.slane %v5611, 1
    %v5613 = vmax.f32 %v5611, %v5612
    %v5614 = vsel %vm1551, %v5449, -inf
    %v5615 = vrot.slane %v5614, 4
    %v5616 = vmax.f32 %v5614, %v5615
    %v5617 = vrot.slane %v5616, 2
    %v5618 = vmax.f32 %v5616, %v5617
    %v5619 = vrot.slane %v5618, 1
    %v5620 = vmax.f32 %v5618, %v5619
    %v5621 = vsel %vm1551, %v5412, -inf
    %v5622 = vrot.slane %v5621, 4
    %v5623 = vmax.f32 %v5621, %v5622
    %v5624 = vrot.slane %v5623, 2
    %v5625 = vmax.f32 %v5623, %v5624
    %v5626 = vrot.slane %v5625, 1
    %v5627 = vmax.f32 %v5625, %v5626
    %v5628 = vsel %vm1551, %v5450, -inf
    %v5629 = vrot.slane %v5628, 4
    %v5630 = vmax.f32 %v5628, %v5629
    %v5631 = vrot.slane %v5630, 2
    %v5632 = vmax.f32 %v5630, %v5631
    %v5633 = vrot.slane %v5632, 1
    %v5634 = vmax.f32 %v5632, %v5633
    %v5635 = vsel %vm1551, %v5451, -inf
    %v5636 = vrot.slane %v5635, 4
    %v5637 = vmax.f32 %v5635, %v5636
    %v5638 = vrot.slane %v5637, 2
    %v5639 = vmax.f32 %v5637, %v5638
    %v5640 = vrot.slane %v5639, 1
    %v5641 = vmax.f32 %v5639, %v5640
    %v5642 = vsel %vm1551, %v5452, -inf
    %v5643 = vrot.slane %v5642, 4
    %v5644 = vmax.f32 %v5642, %v5643
    %v5645 = vrot.slane %v5644, 2
    %v5646 = vmax.f32 %v5644, %v5645
    %v5647 = vrot.slane %v5646, 1
    %v5648 = vmax.f32 %v5646, %v5647
    %v5649 = vsel %vm1551, %v5413, -inf
    %v5650 = vrot.slane %v5649, 4
    %v5651 = vmax.f32 %v5649, %v5650
    %v5652 = vrot.slane %v5651, 2
    %v5653 = vmax.f32 %v5651, %v5652
    %v5654 = vrot.slane %v5653, 1
    %v5655 = vmax.f32 %v5653, %v5654
    %v5656 = vsel %vm1551, %v5453, -inf
    %v5657 = vrot.slane %v5656, 4
    %v5658 = vmax.f32 %v5656, %v5657
    %v5659 = vrot.slane %v5658, 2
    %v5660 = vmax.f32 %v5658, %v5659
    %v5661 = vrot.slane %v5660, 1
    %v5662 = vmax.f32 %v5660, %v5661
    %v5663 = vsel %vm1551, %v5454, -inf
    %v5664 = vrot.slane %v5663, 4
    %v5665 = vmax.f32 %v5663, %v5664
    %v5666 = vrot.slane %v5665, 2
    %v5667 = vmax.f32 %v5665, %v5666
    %v5668 = vrot.slane %v5667, 1
    %v5669 = vmax.f32 %v5667, %v5668
    %v5670 = vsel %vm1551, %v5455, -inf
    %v5671 = vrot.slane %v5670, 4
    %v5672 = vmax.f32 %v5670, %v5671
    %v5673 = vrot.slane %v5672, 2
    %v5674 = vmax.f32 %v5672, %v5673
    %v5675 = vrot.slane %v5674, 1
    %v5676 = vmax.f32 %v5674, %v5675
    %v5677 = vsel %vm1551, %v5414, -inf
    %v5678 = vrot.slane %v5677, 4
    %v5679 = vmax.f32 %v5677, %v5678
    %v5680 = vrot.slane %v5679, 2
    %v5681 = vmax.f32 %v5679, %v5680
    %v5682 = vrot.slane %v5681, 1
    %v5683 = vmax.f32 %v5681, %v5682
    %v5684 = vsel %vm1551, %v5456, -inf
    %v5685 = vrot.slane %v5684, 4
    %v5686 = vmax.f32 %v5684, %v5685
    %v5687 = vrot.slane %v5686, 2
    %v5688 = vmax.f32 %v5686, %v5687
    %v5689 = vrot.slane %v5688, 1
    %v5690 = vmax.f32 %v5688, %v5689
    %v5691 = vsel %vm1551, %v5457, -inf
    %v5692 = vrot.slane %v5691, 4
    %v5693 = vmax.f32 %v5691, %v5692
    %v5694 = vrot.slane %v5693, 2
    %v5695 = vmax.f32 %v5693, %v5694
    %v5696 = vrot.slane %v5695, 1
    %v5697 = vmax.f32 %v5695, %v5696
    %v5698 = vsel %vm1551, %v5458, -inf
    %v5699 = vrot.slane %v5698, 4
    %v5700 = vmax.f32 %v5698, %v5699
    %v5701 = vrot.slane %v5700, 2
    %v5702 = vmax.f32 %v5700, %v5701
    %v5703 = vrot.slane %v5702, 1
    %v5704 = vmax.f32 %v5702, %v5703
    %v5705 = vsel %vm1551, %v5415, -inf
    %v5706 = vrot.slane %v5705, 4
    %v5707 = vmax.f32 %v5705, %v5706
    %v5708 = vrot.slane %v5707, 2
    %v5709 = vmax.f32 %v5707, %v5708
    %v5710 = vrot.slane %v5709, 1
    %v5711 = vmax.f32 %v5709, %v5710
    %v5712 = vsel %vm1551, %v5459, -inf
    %v5713 = vrot.slane %v5712, 4
    %v5714 = vmax.f32 %v5712, %v5713
    %v5715 = vrot.slane %v5714, 2
    %v5716 = vmax.f32 %v5714, %v5715
    %v5717 = vrot.slane %v5716, 1
    %v5718 = vmax.f32 %v5716, %v5717
    %v5719 = vsel %vm1551, %v5460, -inf
    %v5720 = vrot.slane %v5719, 4
    %v5721 = vmax.f32 %v5719, %v5720
    %v5722 = vrot.slane %v5721, 2
    %v5723 = vmax.f32 %v5721, %v5722
    %v5724 = vrot.slane %v5723, 1
    %v5725 = vmax.f32 %v5723, %v5724
    %v5726 = vsel %vm1551, %v5461, -inf
    %v5727 = vrot.slane %v5726, 4
    %v5728 = vmax.f32 %v5726, %v5727
    %v5729 = vrot.slane %v5728, 2
    %v5730 = vmax.f32 %v5728, %v5729
    %v5731 = vrot.slane %v5730, 1
    %v5732 = vmax.f32 %v5730, %v5731
    %v5733 = vsel %vm1551, %v5416, -inf
    %v5734 = vrot.slane %v5733, 4
    %v5735 = vmax.f32 %v5733, %v5734
    %v5736 = vrot.slane %v5735, 2
    %v5737 = vmax.f32 %v5735, %v5736
    %v5738 = vrot.slane %v5737, 1
    %v5739 = vmax.f32 %v5737, %v5738
    %v5740 = vsel %vm1551, %v5462, -inf
    %v5741 = vrot.slane %v5740, 4
    %v5742 = vmax.f32 %v5740, %v5741
    %v5743 = vrot.slane %v5742, 2
    %v5744 = vmax.f32 %v5742, %v5743
    %v5745 = vrot.slane %v5744, 1
    %v5746 = vmax.f32 %v5744, %v5745
    %v5747 = vsel %vm1551, %v5463, -inf
    %v5748 = vrot.slane %v5747, 4
    %v5749 = vmax.f32 %v5747, %v5748
    %v5750 = vrot.slane %v5749, 2
    %v5751 = vmax.f32 %v5749, %v5750
    %v5752 = vrot.slane %v5751, 1
    %v5753 = vmax.f32 %v5751, %v5752
    %v5754 = vsel %vm1551, %v5464, -inf
    %v5755 = vrot.slane %v5754, 4
    %v5756 = vmax.f32 %v5754, %v5755
    %v5757 = vrot.slane %v5756, 2
    %v5758 = vmax.f32 %v5756, %v5757
    %v5759 = vrot.slane %v5758, 1
    %v5760 = vmax.f32 %v5758, %v5759
    %v5761 = vsel %vm1551, %v5417, -inf
    %v5762 = vrot.slane %v5761, 4
    %v5763 = vmax.f32 %v5761, %v5762
    %v5764 = vrot.slane %v5763, 2
    %v5765 = vmax.f32 %v5763, %v5764
    %v5766 = vrot.slane %v5765, 1
    %v5767 = vmax.f32 %v5765, %v5766
    %v5768 = vsel %vm1551, %v5465, -inf
    %v5769 = vrot.slane %v5768, 4
    %v5770 = vmax.f32 %v5768, %v5769
    %v5771 = vrot.slane %v5770, 2
    %v5772 = vmax.f32 %v5770, %v5771
    %v5773 = vrot.slane %v5772, 1
    %v5774 = vmax.f32 %v5772, %v5773
    %v5775 = vsel %vm1551, %v5466, -inf
    %v5776 = vrot.slane %v5775, 4
    %v5777 = vmax.f32 %v5775, %v5776
    %v5778 = vrot.slane %v5777, 2
    %v5779 = vmax.f32 %v5777, %v5778
    %v5780 = vrot.slane %v5779, 1
    %v5781 = vmax.f32 %v5779, %v5780
    %v5782 = vsel %vm1551, %v5467, -inf
    %v5783 = vrot.slane %v5782, 4
    %v5784 = vmax.f32 %v5782, %v5783
    %v5785 = vrot.slane %v5784, 2
    %v5786 = vmax.f32 %v5784, %v5785
    %v5787 = vrot.slane %v5786, 1
    %v5788 = vmax.f32 %v5786, %v5787
    %v5789 = vsel %vm1551, %v5418, -inf
    %v5790 = vrot.slane %v5789, 4
    %v5791 = vmax.f32 %v5789, %v5790
    %v5792 = vrot.slane %v5791, 2
    %v5793 = vmax.f32 %v5791, %v5792
    %v5794 = vrot.slane %v5793, 1
    %v5795 = vmax.f32 %v5793, %v5794
    %v5796 = vsel %vm1551, %v5468, -inf
    %v5797 = vrot.slane %v5796, 4
    %v5798 = vmax.f32 %v5796, %v5797
    %v5799 = vrot.slane %v5798, 2
    %v5800 = vmax.f32 %v5798, %v5799
    %v5801 = vrot.slane %v5800, 1
    %v5802 = vmax.f32 %v5800, %v5801
    %v5803 = vsel %vm1551, %v5469, -inf
    %v5804 = vrot.slane %v5803, 4
    %v5805 = vmax.f32 %v5803, %v5804
    %v5806 = vrot.slane %v5805, 2
    %v5807 = vmax.f32 %v5805, %v5806
    %v5808 = vrot.slane %v5807, 1
    %v5809 = vmax.f32 %v5807, %v5808
    %v5810 = vsel %vm1551, %v5470, -inf
    %v5811 = vrot.slane %v5810, 4
    %v5812 = vmax.f32 %v5810, %v5811
    %v5813 = vrot.slane %v5812, 2
    %v5814 = vmax.f32 %v5812, %v5813
    %v5815 = vrot.slane %v5814, 1
    %v5816 = vmax.f32 %v5814, %v5815
    %v5817 = vsel %vm1551, %v5419, -inf
    %v5818 = vrot.slane %v5817, 4
    %v5819 = vmax.f32 %v5817, %v5818
    %v5820 = vrot.slane %v5819, 2
    %v5821 = vmax.f32 %v5819, %v5820
    %v5822 = vrot.slane %v5821, 1
    %v5823 = vmax.f32 %v5821, %v5822
    %v5824 = vsel %vm1551, %v5471, -inf
    %v5825 = vrot.slane %v5824, 4
    %v5826 = vmax.f32 %v5824, %v5825
    %v5827 = vrot.slane %v5826, 2
    %v5828 = vmax.f32 %v5826, %v5827
    %v5829 = vrot.slane %v5828, 1
    %v5830 = vmax.f32 %v5828, %v5829
    %v5831 = vsel %vm1551, %v5472, -inf
    %v5832 = vrot.slane %v5831, 4
    %v5833 = vmax.f32 %v5831, %v5832
    %v5834 = vrot.slane %v5833, 2
    %v5835 = vmax.f32 %v5833, %v5834
    %v5836 = vrot.slane %v5835, 1
    %v5837 = vmax.f32 %v5835, %v5836
    %v5838 = vsel %vm1551, %v5473, -inf
    %v5839 = vrot.slane %v5838, 4
    %v5840 = vmax.f32 %v5838, %v5839
    %v5841 = vrot.slane %v5840, 2
    %v5842 = vmax.f32 %v5840, %v5841
    %v5843 = vrot.slane %v5842, 1
    %v5844 = vmax.f32 %v5842, %v5843
    %v5845 = vsel %vm1551, %v5420, -inf
    %v5846 = vrot.slane %v5845, 4
    %v5847 = vmax.f32 %v5845, %v5846
    %v5848 = vrot.slane %v5847, 2
    %v5849 = vmax.f32 %v5847, %v5848
    %v5850 = vrot.slane %v5849, 1
    %v5851 = vmax.f32 %v5849, %v5850
    %v5852 = vsel %vm1551, %v5474, -inf
    %v5853 = vrot.slane %v5852, 4
    %v5854 = vmax.f32 %v5852, %v5853
    %v5855 = vrot.slane %v5854, 2
    %v5856 = vmax.f32 %v5854, %v5855
    %v5857 = vrot.slane %v5856, 1
    %v5858 = vmax.f32 %v5856, %v5857
    %v5859 = vsel %vm1551, %v5475, -inf
    %v5860 = vrot.slane %v5859, 4
    %v5861 = vmax.f32 %v5859, %v5860
    %v5862 = vrot.slane %v5861, 2
    %v5863 = vmax.f32 %v5861, %v5862
    %v5864 = vrot.slane %v5863, 1
    %v5865 = vmax.f32 %v5863, %v5864
    %v5866 = vsel %vm1551, %v5476, -inf
    %v5867 = vrot.slane %v5866, 4
    %v5868 = vmax.f32 %v5866, %v5867
    %v5869 = vrot.slane %v5868, 2
    %v5870 = vmax.f32 %v5868, %v5869
    %v5871 = vrot.slane %v5870, 1
    %v5872 = vmax.f32 %v5870, %v5871
    %v5873 = vsel %vm1551, %v5421, -inf
    %v5874 = vrot.slane %v5873, 4
    %v5875 = vmax.f32 %v5873, %v5874
    %v5876 = vrot.slane %v5875, 2
    %v5877 = vmax.f32 %v5875, %v5876
    %v5878 = vrot.slane %v5877, 1
    %v5879 = vmax.f32 %v5877, %v5878
    %v5880 = vsel %vm1551, %v5477, -inf
    %v5881 = vrot.slane %v5880, 4
    %v5882 = vmax.f32 %v5880, %v5881
    %v5883 = vrot.slane %v5882, 2
    %v5884 = vmax.f32 %v5882, %v5883
    %v5885 = vrot.slane %v5884, 1
    %v5886 = vmax.f32 %v5884, %v5885
    %v5887 = vsel %vm1551, %v5478, -inf
    %v5888 = vrot.slane %v5887, 4
    %v5889 = vmax.f32 %v5887, %v5888
    %v5890 = vrot.slane %v5889, 2
    %v5891 = vmax.f32 %v5889, %v5890
    %v5892 = vrot.slane %v5891, 1
    %v5893 = vmax.f32 %v5891, %v5892
    %v5894 = vsel %vm1551, %v5479, -inf
    %v5895 = vrot.slane %v5894, 4
    %v5896 = vmax.f32 %v5894, %v5895
    %v5897 = vrot.slane %v5896, 2
    %v5898 = vmax.f32 %v5896, %v5897
    %v5899 = vrot.slane %v5898, 1
    %v5900 = vmax.f32 %v5898, %v5899
    %v5901 = vsel %vm1551, %v5422, -inf
    %v5902 = vrot.slane %v5901, 4
    %v5903 = vmax.f32 %v5901, %v5902
    %v5904 = vrot.slane %v5903, 2
    %v5905 = vmax.f32 %v5903, %v5904
    %v5906 = vrot.slane %v5905, 1
    %v5907 = vmax.f32 %v5905, %v5906
    %v5908 = vsel %vm1551, %v5480, -inf
    %v5909 = vrot.slane %v5908, 4
    %v5910 = vmax.f32 %v5908, %v5909
    %v5911 = vrot.slane %v5910, 2
    %v5912 = vmax.f32 %v5910, %v5911
    %v5913 = vrot.slane %v5912, 1
    %v5914 = vmax.f32 %v5912, %v5913
    %v5915 = vsel %vm1551, %v5481, -inf
    %v5916 = vrot.slane %v5915, 4
    %v5917 = vmax.f32 %v5915, %v5916
    %v5918 = vrot.slane %v5917, 2
    %v5919 = vmax.f32 %v5917, %v5918
    %v5920 = vrot.slane %v5919, 1
    %v5921 = vmax.f32 %v5919, %v5920
    %v5922 = vsel %vm1551, %v5482, -inf
    %v5923 = vrot.slane %v5922, 4
    %v5924 = vmax.f32 %v5922, %v5923
    %v5925 = vrot.slane %v5924, 2
    %v5926 = vmax.f32 %v5924, %v5925
    %v5927 = vrot.slane %v5926, 1
    %v5928 = vmax.f32 %v5926, %v5927
    %v5929 = vsel %vm1551, %v5423, -inf
    %v5930 = vrot.slane %v5929, 4
    %v5931 = vmax.f32 %v5929, %v5930
    %v5932 = vrot.slane %v5931, 2
    %v5933 = vmax.f32 %v5931, %v5932
    %v5934 = vrot.slane %v5933, 1
    %v5935 = vmax.f32 %v5933, %v5934
    %v5936 = vsel %vm1551, %v5483, -inf
    %v5937 = vrot.slane %v5936, 4
    %v5938 = vmax.f32 %v5936, %v5937
    %v5939 = vrot.slane %v5938, 2
    %v5940 = vmax.f32 %v5938, %v5939
    %v5941 = vrot.slane %v5940, 1
    %v5942 = vmax.f32 %v5940, %v5941
    %v5943 = vsel %vm1551, %v5484, -inf
    %v5944 = vrot.slane %v5943, 4
    %v5945 = vmax.f32 %v5943, %v5944
    %v5946 = vrot.slane %v5945, 2
    %v5947 = vmax.f32 %v5945, %v5946
    %v5948 = vrot.slane %v5947, 1
    %v5949 = vmax.f32 %v5947, %v5948
    %v5950 = vsel %vm1551, %v5485, -inf
    %v5951 = vrot.slane %v5950, 4
    %v5952 = vmax.f32 %v5950, %v5951
    %v5953 = vrot.slane %v5952, 2
    %v5954 = vmax.f32 %v5952, %v5953
    %v5955 = vrot.slane %v5954, 1
    %v5956 = vmax.f32 %v5954, %v5955
    %v5957 = vsel %vm1551, %v5424, -inf
    %v5958 = vrot.slane %v5957, 4
    %v5959 = vmax.f32 %v5957, %v5958
    %v5960 = vrot.slane %v5959, 2
    %v5961 = vmax.f32 %v5959, %v5960
    %v5962 = vrot.slane %v5961, 1
    %v5963 = vmax.f32 %v5961, %v5962
    %v5964 = vsel %vm1551, %v5486, -inf
    %v5965 = vrot.slane %v5964, 4
    %v5966 = vmax.f32 %v5964, %v5965
    %v5967 = vrot.slane %v5966, 2
    %v5968 = vmax.f32 %v5966, %v5967
    %v5969 = vrot.slane %v5968, 1
    %v5970 = vmax.f32 %v5968, %v5969
    %v5971 = vsel %vm1551, %v5487, -inf
    %v5972 = vrot.slane %v5971, 4
    %v5973 = vmax.f32 %v5971, %v5972
    %v5974 = vrot.slane %v5973, 2
    %v5975 = vmax.f32 %v5973, %v5974
    %v5976 = vrot.slane %v5975, 1
    %v5977 = vmax.f32 %v5975, %v5976
    %v5978 = vsel %vm1551, %v5488, -inf
    %v5979 = vrot.slane %v5978, 4
    %v5980 = vmax.f32 %v5978, %v5979
    %v5981 = vrot.slane %v5980, 2
    %v5982 = vmax.f32 %v5980, %v5981
    %v5983 = vrot.slane %v5982, 1
    %v5984 = vmax.f32 %v5982, %v5983
    %v5985 = vsel %vm494, %v5543, -inf
    %v5986 = vsel %vm494, %v5571, -inf
    %v5987 = vmax.f32 %v5985, %v5986
    %v5988 = vsel %vm494, %v5550, -inf
    %v5989 = vsel %vm494, %v5578, -inf
    %v5990 = vmax.f32 %v5988, %v5989
    %v5991 = vsel %vm494, %v5557, -inf
    %v5992 = vsel %vm494, %v5585, -inf
    %v5993 = vmax.f32 %v5991, %v5992
    %v5994 = vsel %vm494, %v5564, -inf
    %v5995 = vsel %vm494, %v5592, -inf
    %v5996 = vmax.f32 %v5994, %v5995
    %v5997 = vsel %vm494, %v5599, -inf
    %v5998 = vsel %vm494, %v5627, -inf
    %v5999 = vmax.f32 %v5997, %v5998
    %v6000 = vsel %vm494, %v5606, -inf
    %v6001 = vsel %vm494, %v5634, -inf
    %v6002 = vmax.f32 %v6000, %v6001
    %v6003 = vsel %vm494, %v5613, -inf
    %v6004 = vsel %vm494, %v5641, -inf
    %v6005 = vmax.f32 %v6003, %v6004
    %v6006 = vsel %vm494, %v5620, -inf
    %v6007 = vsel %vm494, %v5648, -inf
    %v6008 = vmax.f32 %v6006, %v6007
    %v6009 = vsel %vm494, %v5655, -inf
    %v6010 = vsel %vm494, %v5683, -inf
    %v6011 = vmax.f32 %v6009, %v6010
    %v6012 = vsel %vm494, %v5662, -inf
    %v6013 = vsel %vm494, %v5690, -inf
    %v6014 = vmax.f32 %v6012, %v6013
    %v6015 = vsel %vm494, %v5669, -inf
    %v6016 = vsel %vm494, %v5697, -inf
    %v6017 = vmax.f32 %v6015, %v6016
    %v6018 = vsel %vm494, %v5676, -inf
    %v6019 = vsel %vm494, %v5704, -inf
    %v6020 = vmax.f32 %v6018, %v6019
    %v6021 = vsel %vm494, %v5711, -inf
    %v6022 = vsel %vm494, %v5739, -inf
    %v6023 = vmax.f32 %v6021, %v6022
    %v6024 = vsel %vm494, %v5718, -inf
    %v6025 = vsel %vm494, %v5746, -inf
    %v6026 = vmax.f32 %v6024, %v6025
    %v6027 = vsel %vm494, %v5725, -inf
    %v6028 = vsel %vm494, %v5753, -inf
    %v6029 = vmax.f32 %v6027, %v6028
    %v6030 = vsel %vm494, %v5732, -inf
    %v6031 = vsel %vm494, %v5760, -inf
    %v6032 = vmax.f32 %v6030, %v6031
    %v6033 = vsel %vm494, %v5767, -inf
    %v6034 = vsel %vm494, %v5795, -inf
    %v6035 = vmax.f32 %v6033, %v6034
    %v6036 = vsel %vm494, %v5774, -inf
    %v6037 = vsel %vm494, %v5802, -inf
    %v6038 = vmax.f32 %v6036, %v6037
    %v6039 = vsel %vm494, %v5781, -inf
    %v6040 = vsel %vm494, %v5809, -inf
    %v6041 = vmax.f32 %v6039, %v6040
    %v6042 = vsel %vm494, %v5788, -inf
    %v6043 = vsel %vm494, %v5816, -inf
    %v6044 = vmax.f32 %v6042, %v6043
    %v6045 = vsel %vm494, %v5823, -inf
    %v6046 = vsel %vm494, %v5851, -inf
    %v6047 = vmax.f32 %v6045, %v6046
    %v6048 = vsel %vm494, %v5830, -inf
    %v6049 = vsel %vm494, %v5858, -inf
    %v6050 = vmax.f32 %v6048, %v6049
    %v6051 = vsel %vm494, %v5837, -inf
    %v6052 = vsel %vm494, %v5865, -inf
    %v6053 = vmax.f32 %v6051, %v6052
    %v6054 = vsel %vm494, %v5844, -inf
    %v6055 = vsel %vm494, %v5872, -inf
    %v6056 = vmax.f32 %v6054, %v6055
    %v6057 = vsel %vm494, %v5879, -inf
    %v6058 = vsel %vm494, %v5907, -inf
    %v6059 = vmax.f32 %v6057, %v6058
    %v6060 = vsel %vm494, %v5886, -inf
    %v6061 = vsel %vm494, %v5914, -inf
    %v6062 = vmax.f32 %v6060, %v6061
    %v6063 = vsel %vm494, %v5893, -inf
    %v6064 = vsel %vm494, %v5921, -inf
    %v6065 = vmax.f32 %v6063, %v6064
    %v6066 = vsel %vm494, %v5900, -inf
    %v6067 = vsel %vm494, %v5928, -inf
    %v6068 = vmax.f32 %v6066, %v6067
    %v6069 = vsel %vm494, %v5935, -inf
    %v6070 = vsel %vm494, %v5963, -inf
    %v6071 = vmax.f32 %v6069, %v6070
    %v6072 = vsel %vm494, %v5942, -inf
    %v6073 = vsel %vm494, %v5970, -inf
    %v6074 = vmax.f32 %v6072, %v6073
    %v6075 = vsel %vm494, %v5949, -inf
    %v6076 = vsel %vm494, %v5977, -inf
    %v6077 = vmax.f32 %v6075, %v6076
    %v6078 = vsel %vm494, %v5956, -inf
    %v6079 = vsel %vm494, %v5984, -inf
    %v6080 = vmax.f32 %v6078, %v6079
    %v6081 = vmax.f32 %v5987, 0.0
    %v6082 = vmax.f32 %v5990, 0.0
    %v6083 = vmax.f32 %v5993, 0.0
    %v6084 = vmax.f32 %v5996, 0.0
    %v6085 = vmax.f32 %v5999, 0.0
    %v6086 = vmax.f32 %v6002, 0.0
    %v6087 = vmax.f32 %v6005, 0.0
    %v6088 = vmax.f32 %v6008, 0.0
    %v6089 = vmax.f32 %v6011, 0.0
    %v6090 = vmax.f32 %v6014, 0.0
    %v6091 = vmax.f32 %v6017, 0.0
    %v6092 = vmax.f32 %v6020, 0.0
    %v6093 = vmax.f32 %v6023, 0.0
    %v6094 = vmax.f32 %v6026, 0.0
    %v6095 = vmax.f32 %v6029, 0.0
    %v6096 = vmax.f32 %v6032, 0.0
    %v6097 = vmax.f32 %v6035, 0.0
    %v6098 = vmax.f32 %v6038, 0.0
    %v6099 = vmax.f32 %v6041, 0.0
    %v6100 = vmax.f32 %v6044, 0.0
    %v6101 = vmax.f32 %v6047, 0.0
    %v6102 = vmax.f32 %v6050, 0.0
    %v6103 = vmax.f32 %v6053, 0.0
    %v6104 = vmax.f32 %v6056, 0.0
    %v6105 = vmax.f32 %v6059, 0.0
    %v6106 = vmax.f32 %v6062, 0.0
    %v6107 = vmax.f32 %v6065, 0.0
    %v6108 = vmax.f32 %v6068, 0.0
    %v6109 = vmax.f32 %v6071, 0.0
    %v6110 = vmax.f32 %v6074, 0.0
    %v6111 = vmax.f32 %v6077, 0.0
    %v6112 = vmax.f32 %v6080, 0.0
    %vm6113 = vcmask 521216
    %6114 = vst.msk [vmem:[#allocation5] sm:$0x3f] %vm6113, 0.0
    %6115 = vst.msk [vmem:[#allocation5 + $0x30] sm:$0x3f] %vm6113, 0.0
    %s6116 = scalar_lea.vmem [#allocation5], 40
    %6117 = vst.msk [vmem:[%s6116] sm:$0x3f] %vm6113, 0.0
    %6118 = vst.msk [vmem:[%s6116 + $0x30] sm:$0x3f] %vm6113, 0.0
    %s6119 = scalar_lea.vmem [#allocation5], 8
    %6120 = vst.msk [vmem:[%s6119] sm:$0x1] %vm3866, 0.0
    %6121 = vst.msk [vmem:[%s6119 + $0x8] sm:$0x1] %vm3866, 0.0
    %6122 = vst.msk [vmem:[%s6119 + $0x10] sm:$0x1] %vm3866, 0.0
    %6123 = vst.msk [vmem:[%s6119 + $0x18] sm:$0x1] %vm3866, 0.0
    %6124 = vst.msk [vmem:[%s6119 + $0x30] sm:$0x1] %vm3866, 0.0
    %6125 = vst.msk [vmem:[%s6119 + $0x38] sm:$0x1] %vm3866, 0.0
    %6126 = vst.msk [vmem:[%s6119 + $0x40] sm:$0x1] %vm3866, 0.0
    %6127 = vst.msk [vmem:[%s6119 + $0x48] sm:$0x1] %vm3866, 0.0
    %6128 = vst.msk [vmem:[%s6119 + $0x5] sm:$0x1] %vm3866, 0.0
    %6129 = vst.msk [vmem:[%s6119 + $0xd] sm:$0x1] %vm3866, 0.0
    %6130 = vst.msk [vmem:[%s6119 + $0x15] sm:$0x1] %vm3866, 0.0
    %6131 = vst.msk [vmem:[%s6119 + $0x1d] sm:$0x1] %vm3866, 0.0
    %6132 = vst.msk [vmem:[%s6119 + $0x35] sm:$0x1] %vm3866, 0.0
    %6133 = vst.msk [vmem:[%s6119 + $0x3d] sm:$0x1] %vm3866, 0.0
    %6134 = vst.msk [vmem:[%s6119 + $0x45] sm:$0x1] %vm3866, 0.0
    %6135 = vst.msk [vmem:[%s6119 + $0x4d] sm:$0x1] %vm3866, 0.0
    %v6168 = vsel %vm4027, %v6082, %v6081
    %v6169 = vsel %vm4029, %v6083, %v6168
    %v6170 = vsel %vm4031, %v6084, %v6169
    %v6171 = vsel %vm4027, %v6086, %v6085
    %v6172 = vsel %vm4029, %v6087, %v6171
    %v6173 = vsel %vm4031, %v6088, %v6172
    %v6174 = vsel %vm4027, %v6090, %v6089
    %v6175 = vsel %vm4029, %v6091, %v6174
    %v6176 = vsel %vm4031, %v6092, %v6175
    %v6177 = vsel %vm4027, %v6094, %v6093
    %v6178 = vsel %vm4029, %v6095, %v6177
    %v6179 = vsel %vm4031, %v6096, %v6178
    %v6180 = vsel %vm4027, %v6098, %v6097
    %v6181 = vsel %vm4029, %v6099, %v6180
    %v6182 = vsel %vm4031, %v6100, %v6181
    %v6183 = vsel %vm4027, %v6102, %v6101
    %v6184 = vsel %vm4029, %v6103, %v6183
    %v6185 = vsel %vm4031, %v6104, %v6184
    %v6186 = vsel %vm4027, %v6106, %v6105
    %v6187 = vsel %vm4029, %v6107, %v6186
    %v6188 = vsel %vm4031, %v6108, %v6187
    %v6189 = vsel %vm4027, %v6110, %v6109
    %v6190 = vsel %vm4029, %v6111, %v6189
    %v6191 = vsel %vm4031, %v6112, %v6190
    %vm6200 = vcmask 519168
    %6201 = vst.msk [vmem:[%s6119 + $0x1] sm:$0xf] %vm6200, %v6170
    %6202 = vst.msk [vmem:[%s6119 + $0x9] sm:$0xf] %vm6200, %v6173
    %6203 = vst.msk [vmem:[%s6119 + $0x11] sm:$0xf] %vm6200, %v6176
    %6204 = vst.msk [vmem:[%s6119 + $0x19] sm:$0xf] %vm6200, %v6179
    %6205 = vst.msk [vmem:[%s6119 + $0x31] sm:$0xf] %vm6200, %v6182
    %6206 = vst.msk [vmem:[%s6119 + $0x39] sm:$0xf] %vm6200, %v6185
    %6207 = vst.msk [vmem:[%s6119 + $0x41] sm:$0xf] %vm6200, %v6188
    %6208 = vst.msk [vmem:[%s6119 + $0x49] sm:$0xf] %vm6200, %v6191
    %v6209 = vld [vmem:[#allocation5] sm:$0xf]
    %v6210 = vld [vmem:[#allocation5 + $0x8] sm:$0xf]
    %v6211 = vld [vmem:[#allocation5 + $0x10] sm:$0xf]
    %v6212 = vld [vmem:[#allocation5 + $0x18] sm:$0xf]
    %v6213 = vld [vmem:[#allocation5 + $0x30] sm:$0xf]
    %v6214 = vld [vmem:[#allocation5 + $0x38] sm:$0xf]
    %v6215 = vld [vmem:[#allocation5 + $0x40] sm:$0xf]
    %v6216 = vld [vmem:[#allocation5 + $0x48] sm:$0xf]
    %6225 = vst [vmem:[#allocation1] ss:$2 sm:$0xff] %v6209
    %s6226 = scalar_lea.vmem [#allocation1], 1
    %6227 = vst [vmem:[%s6226] ss:$2 sm:$0xff] %v6210
    %s6228 = scalar_lea.vmem [#allocation1], 16
    %6229 = vst [vmem:[%s6228] ss:$2 sm:$0xff] %v6211
    %s6230 = scalar_lea.vmem [#allocation1], 17
    %6231 = vst [vmem:[%s6230] ss:$2 sm:$0xff] %v6212
    %s6232 = scalar_lea.vmem [#allocation1], 32
    %6233 = vst [vmem:[%s6232] ss:$2 sm:$0xff] %v6213
    %s6234 = scalar_lea.vmem [#allocation1], 33
    %6235 = vst [vmem:[%s6234] ss:$2 sm:$0xff] %v6214
    %s6236 = scalar_lea.vmem [#allocation1], 48
    %6237 = vst [vmem:[%s6236] ss:$2 sm:$0xff] %v6215
    %s6238 = scalar_lea.vmem [#allocation1], 49
    %6239 = vst [vmem:[%s6238] ss:$2 sm:$0xff] %v6216
    %v6240 = vld.sshfl [vmem:[#allocation1] sm:$0xff pattern:$0x75316420]
    %v6241 = vld.sshfl [vmem:[#allocation1 + $0x10] sm:$0xff pattern:$0x75316420]
    %v6242 = vld.sshfl [vmem:[#allocation1 + $0x20] sm:$0xff pattern:$0x75316420]
    %v6243 = vld.sshfl [vmem:[#allocation1 + $0x30] sm:$0xff pattern:$0x75316420]
    %6248 = vst.msk [vmem:[#allocation3] sm:$0xff] %vm494, %v6240
    %6249 = vst.msk [vmem:[#allocation3 + $0x28] sm:$0xff] %vm494, %v6241
    %6250 = vst.msk [vmem:[#allocation3 + $0x50] sm:$0xff] %vm494, %v6242
    %6251 = vst.msk [vmem:[#allocation3 + $0x78] sm:$0xff] %vm494, %v6243
    %v6252 = vld [vmem:[#allocation5 + $0x1] sm:$0xf]
    %v6253 = vld [vmem:[#allocation5 + $0x9] sm:$0xf]
    %v6254 = vld [vmem:[#allocation5 + $0x11] sm:$0xf]
    %v6255 = vld [vmem:[#allocation5 + $0x19] sm:$0xf]
    %v6256 = vld [vmem:[#allocation5 + $0x31] sm:$0xf]
    %v6257 = vld [vmem:[#allocation5 + $0x39] sm:$0xf]
    %v6258 = vld [vmem:[#allocation5 + $0x41] sm:$0xf]
    %v6259 = vld [vmem:[#allocation5 + $0x49] sm:$0xf]
    %6268 = vst [vmem:[#allocation1] ss:$2 sm:$0xff] %v6252
    %s6269 = scalar_lea.vmem [#allocation1], 1
    %6270 = vst [vmem:[%s6269] ss:$2 sm:$0xff] %v6253
    %s6271 = scalar_lea.vmem [#allocation1], 16
    %6272 = vst [vmem:[%s6271] ss:$2 sm:$0xff] %v6254
    %s6273 = scalar_lea.vmem [#allocation1], 17
    %6274 = vst [vmem:[%s6273] ss:$2 sm:$0xff] %v6255
    %s6275 = scalar_lea.vmem [#allocation1], 32
    %6276 = vst [vmem:[%s6275] ss:$2 sm:$0xff] %v6256
    %s6277 = scalar_lea.vmem [#allocation1], 33
    %6278 = vst [vmem:[%s6277] ss:$2 sm:$0xff] %v6257
    %s6279 = scalar_lea.vmem [#allocation1], 48
    %6280 = vst [vmem:[%s6279] ss:$2 sm:$0xff] %v6258
    %s6281 = scalar_lea.vmem [#allocation1], 49
    %6282 = vst [vmem:[%s6281] ss:$2 sm:$0xff] %v6259
    %v6283 = vld.sshfl [vmem:[#allocation1] sm:$0xff pattern:$0x75316420]
    %v6284 = vld.sshfl [vmem:[#allocation1 + $0x10] sm:$0xff pattern:$0x75316420]
    %v6285 = vld.sshfl [vmem:[#allocation1 + $0x20] sm:$0xff pattern:$0x75316420]
    %v6286 = vld.sshfl [vmem:[#allocation1 + $0x30] sm:$0xff pattern:$0x75316420]
    %6287 = vrot.lane.b32.xlu0 %v6283, 64
    %v6288 = vpop.permute.xlu0 %6287
    %6289 = vrot.lane.b32.xlu0 %v6284, 64
    %v6290 = vpop.permute.xlu0 %6289
    %6291 = vrot.lane.b32.xlu0 %v6285, 64
    %v6292 = vpop.permute.xlu0 %6291
    %6293 = vrot.lane.b32.xlu0 %v6286, 64
    %v6294 = vpop.permute.xlu0 %6293
    %6299 = vst.msk [vmem:[#allocation3] sm:$0xff] %vm4290, %v6288
    %6300 = vst.msk [vmem:[#allocation3 + $0x28] sm:$0xff] %vm4290, %v6290
    %6301 = vst.msk [vmem:[#allocation3 + $0x50] sm:$0xff] %vm4290, %v6292
    %6302 = vst.msk [vmem:[#allocation3 + $0x78] sm:$0xff] %vm4290, %v6294
    %v6303 = vld [vmem:[#allocation5 + $0x2] sm:$0xf]
    %v6304 = vld [vmem:[#allocation5 + $0xa] sm:$0xf]
    %v6305 = vld [vmem:[#allocation5 + $0x12] sm:$0xf]
    %v6306 = vld [vmem:[#allocation5 + $0x1a] sm:$0xf]
    %v6307 = vld [vmem:[#allocation5 + $0x32] sm:$0xf]
    %v6308 = vld [vmem:[#allocation5 + $0x3a] sm:$0xf]
    %v6309 = vld [vmem:[#allocation5 + $0x42] sm:$0xf]
    %v6310 = vld [vmem:[#allocation5 + $0x4a] sm:$0xf]
    %6319 = vst [vmem:[#allocation1] ss:$2 sm:$0xff] %v6303
    %s6320 = scalar_lea.vmem [#allocation1], 1
    %6321 = vst [vmem:[%s6320] ss:$2 sm:$0xff] %v6304
    %s6322 = scalar_lea.vmem [#allocation1], 16
    %6323 = vst [vmem:[%s6322] ss:$2 sm:$0xff] %v6305
    %s6324 = scalar_lea.vmem [#allocation1], 17
    %6325 = vst [vmem:[%s6324] ss:$2 sm:$0xff] %v6306
    %s6326 = scalar_lea.vmem [#allocation1], 32
    %6327 = vst [vmem:[%s6326] ss:$2 sm:$0xff] %v6307
    %s6328 = scalar_lea.vmem [#allocation1], 33
    %6329 = vst [vmem:[%s6328] ss:$2 sm:$0xff] %v6308
    %s6330 = scalar_lea.vmem [#allocation1], 48
    %6331 = vst [vmem:[%s6330] ss:$2 sm:$0xff] %v6309
    %s6332 = scalar_lea.vmem [#allocation1], 49
    %6333 = vst [vmem:[%s6332] ss:$2 sm:$0xff] %v6310
    %v6334 = vld.sshfl [vmem:[#allocation1] sm:$0xff pattern:$0x75316420]
    %v6335 = vld.sshfl [vmem:[#allocation1 + $0x10] sm:$0xff pattern:$0x75316420]
    %v6336 = vld.sshfl [vmem:[#allocation1 + $0x20] sm:$0xff pattern:$0x75316420]
    %v6337 = vld.sshfl [vmem:[#allocation1 + $0x30] sm:$0xff pattern:$0x75316420]
    %6342 = vst.msk [vmem:[#allocation3 + $0x8] sm:$0xff] %vm494, %v6334
    %6343 = vst.msk [vmem:[#allocation3 + $0x30] sm:$0xff] %vm494, %v6335
    %6344 = vst.msk [vmem:[#allocation3 + $0x58] sm:$0xff] %vm494, %v6336
    %6345 = vst.msk [vmem:[#allocation3 + $0x80] sm:$0xff] %vm494, %v6337
    %v6346 = vld [vmem:[%s6119] sm:$0xf]
    %v6347 = vld [vmem:[%s6119 + $0x8] sm:$0xf]
    %v6348 = vld [vmem:[%s6119 + $0x10] sm:$0xf]
    %v6349 = vld [vmem:[%s6119 + $0x18] sm:$0xf]
    %v6350 = vld [vmem:[%s6119 + $0x30] sm:$0xf]
    %v6351 = vld [vmem:[%s6119 + $0x38] sm:$0xf]
    %v6352 = vld [vmem:[%s6119 + $0x40] sm:$0xf]
    %v6353 = vld [vmem:[%s6119 + $0x48] sm:$0xf]
    %6362 = vst [vmem:[#allocation1] ss:$2 sm:$0xff] %v6346
    %s6363 = scalar_lea.vmem [#allocation1], 1
    %6364 = vst [vmem:[%s6363] ss:$2 sm:$0xff] %v6347
    %s6365 = scalar_lea.vmem [#allocation1], 16
    %6366 = vst [vmem:[%s6365] ss:$2 sm:$0xff] %v6348
    %s6367 = scalar_lea.vmem [#allocation1], 17
    %6368 = vst [vmem:[%s6367] ss:$2 sm:$0xff] %v6349
    %s6369 = scalar_lea.vmem [#allocation1], 32
    %6370 = vst [vmem:[%s6369] ss:$2 sm:$0xff] %v6350
    %s6371 = scalar_lea.vmem [#allocation1], 33
    %6372 = vst [vmem:[%s6371] ss:$2 sm:$0xff] %v6351
    %s6373 = scalar_lea.vmem [#allocation1], 48
    %6374 = vst [vmem:[%s6373] ss:$2 sm:$0xff] %v6352
    %s6375 = scalar_lea.vmem [#allocation1], 49
    %6376 = vst [vmem:[%s6375] ss:$2 sm:$0xff] %v6353
    %v6377 = vld.sshfl [vmem:[#allocation1] sm:$0xff pattern:$0x75316420]
    %v6378 = vld.sshfl [vmem:[#allocation1 + $0x10] sm:$0xff pattern:$0x75316420]
    %v6379 = vld.sshfl [vmem:[#allocation1 + $0x20] sm:$0xff pattern:$0x75316420]
    %v6380 = vld.sshfl [vmem:[#allocation1 + $0x30] sm:$0xff pattern:$0x75316420]
    %6381 = vrot.lane.b32.xlu0 %v6377, 64
    %v6382 = vpop.permute.xlu0 %6381
    %6383 = vrot.lane.b32.xlu0 %v6378, 64
    %v6384 = vpop.permute.xlu0 %6383
    %6385 = vrot.lane.b32.xlu0 %v6379, 64
    %v6386 = vpop.permute.xlu0 %6385
    %6387 = vrot.lane.b32.xlu0 %v6380, 64
    %v6388 = vpop.permute.xlu0 %6387
    %6393 = vst.msk [vmem:[#allocation3 + $0x8] sm:$0xff] %vm4290, %v6382
    %6394 = vst.msk [vmem:[#allocation3 + $0x30] sm:$0xff] %vm4290, %v6384
    %6395 = vst.msk [vmem:[#allocation3 + $0x58] sm:$0xff] %vm4290, %v6386
    %6396 = vst.msk [vmem:[#allocation3 + $0x80] sm:$0xff] %vm4290, %v6388
    %v6397 = vld [vmem:[%s6119 + $0x1] sm:$0xf]
    %v6398 = vld [vmem:[%s6119 + $0x9] sm:$0xf]
    %v6399 = vld [vmem:[%s6119 + $0x11] sm:$0xf]
    %v6400 = vld [vmem:[%s6119 + $0x19] sm:$0xf]
    %v6401 = vld [vmem:[%s6119 + $0x31] sm:$0xf]
    %v6402 = vld [vmem:[%s6119 + $0x39] sm:$0xf]
    %v6403 = vld [vmem:[%s6119 + $0x41] sm:$0xf]
    %v6404 = vld [vmem:[%s6119 + $0x49] sm:$0xf]
    %6413 = vst [vmem:[#allocation1] ss:$2 sm:$0xff] %v6397
    %s6414 = scalar_lea.vmem [#allocation1], 1
    %6415 = vst [vmem:[%s6414] ss:$2 sm:$0xff] %v6398
    %s6416 = scalar_lea.vmem [#allocation1], 16
    %6417 = vst [vmem:[%s6416] ss:$2 sm:$0xff] %v6399
    %s6418 = scalar_lea.vmem [#allocation1], 17
    %6419 = vst [vmem:[%s6418] ss:$2 sm:$0xff] %v6400
    %s6420 = scalar_lea.vmem [#allocation1], 32
    %6421 = vst [vmem:[%s6420] ss:$2 sm:$0xff] %v6401
    %s6422 = scalar_lea.vmem [#allocation1], 33
    %6423 = vst [vmem:[%s6422] ss:$2 sm:$0xff] %v6402
    %s6424 = scalar_lea.vmem [#allocation1], 48
    %6425 = vst [vmem:[%s6424] ss:$2 sm:$0xff] %v6403
    %s6426 = scalar_lea.vmem [#allocation1], 49
    %6427 = vst [vmem:[%s6426] ss:$2 sm:$0xff] %v6404
    %v6428 = vld.sshfl [vmem:[#allocation1] sm:$0xff pattern:$0x75316420]
    %v6429 = vld.sshfl [vmem:[#allocation1 + $0x10] sm:$0xff pattern:$0x75316420]
    %v6430 = vld.sshfl [vmem:[#allocation1 + $0x20] sm:$0xff pattern:$0x75316420]
    %v6431 = vld.sshfl [vmem:[#allocation1 + $0x30] sm:$0xff pattern:$0x75316420]
    %6436 = vst.msk [vmem:[#allocation3 + $0x10] sm:$0xff] %vm494, %v6428
    %6437 = vst.msk [vmem:[#allocation3 + $0x38] sm:$0xff] %vm494, %v6429
    %6438 = vst.msk [vmem:[#allocation3 + $0x60] sm:$0xff] %vm494, %v6430
    %6439 = vst.msk [vmem:[#allocation3 + $0x88] sm:$0xff] %vm494, %v6431
    %v6440 = vld [vmem:[%s6119 + $0x2] sm:$0xf]
    %v6441 = vld [vmem:[%s6119 + $0xa] sm:$0xf]
    %v6442 = vld [vmem:[%s6119 + $0x12] sm:$0xf]
    %v6443 = vld [vmem:[%s6119 + $0x1a] sm:$0xf]
    %v6444 = vld [vmem:[%s6119 + $0x32] sm:$0xf]
    %v6445 = vld [vmem:[%s6119 + $0x3a] sm:$0xf]
    %v6446 = vld [vmem:[%s6119 + $0x42] sm:$0xf]
    %v6447 = vld [vmem:[%s6119 + $0x4a] sm:$0xf]
    %6456 = vst [vmem:[#allocation1] ss:$2 sm:$0xff] %v6440
    %s6457 = scalar_lea.vmem [#allocation1], 1
    %6458 = vst [vmem:[%s6457] ss:$2 sm:$0xff] %v6441
    %s6459 = scalar_lea.vmem [#allocation1], 16
    %6460 = vst [vmem:[%s6459] ss:$2 sm:$0xff] %v6442
    %s6461 = scalar_lea.vmem [#allocation1], 17
    %6462 = vst [vmem:[%s6461] ss:$2 sm:$0xff] %v6443
    %s6463 = scalar_lea.vmem [#allocation1], 32
    %6464 = vst [vmem:[%s6463] ss:$2 sm:$0xff] %v6444
    %s6465 = scalar_lea.vmem [#allocation1], 33
    %6466 = vst [vmem:[%s6465] ss:$2 sm:$0xff] %v6445
    %s6467 = scalar_lea.vmem [#allocation1], 48
    %6468 = vst [vmem:[%s6467] ss:$2 sm:$0xff] %v6446
    %s6469 = scalar_lea.vmem [#allocation1], 49
    %6470 = vst [vmem:[%s6469] ss:$2 sm:$0xff] %v6447
    %v6471 = vld.sshfl [vmem:[#allocation1] sm:$0xff pattern:$0x75316420]
    %v6472 = vld.sshfl [vmem:[#allocation1 + $0x10] sm:$0xff pattern:$0x75316420]
    %v6473 = vld.sshfl [vmem:[#allocation1 + $0x20] sm:$0xff pattern:$0x75316420]
    %v6474 = vld.sshfl [vmem:[#allocation1 + $0x30] sm:$0xff pattern:$0x75316420]
    %6475 = vrot.lane.b32.xlu0 %v6471, 64
    %v6476 = vpop.permute.xlu0 %6475
    %6477 = vrot.lane.b32.xlu0 %v6472, 64
    %v6478 = vpop.permute.xlu0 %6477
    %6479 = vrot.lane.b32.xlu0 %v6473, 64
    %v6480 = vpop.permute.xlu0 %6479
    %6481 = vrot.lane.b32.xlu0 %v6474, 64
    %v6482 = vpop.permute.xlu0 %6481
    %6487 = vst.msk [vmem:[#allocation3 + $0x10] sm:$0xff] %vm4290, %v6476
    %6488 = vst.msk [vmem:[#allocation3 + $0x38] sm:$0xff] %vm4290, %v6478
    %6489 = vst.msk [vmem:[#allocation3 + $0x60] sm:$0xff] %vm4290, %v6480
    %6490 = vst.msk [vmem:[#allocation3 + $0x88] sm:$0xff] %vm4290, %v6482
    %s6491 = scalar_lea.vmem [#allocation5], 16
    %v6492 = vld [vmem:[%s6491] sm:$0xf]
    %v6493 = vld [vmem:[%s6491 + $0x8] sm:$0xf]
    %v6494 = vld [vmem:[%s6491 + $0x10] sm:$0xf]
    %v6495 = vld [vmem:[%s6491 + $0x18] sm:$0xf]
    %v6496 = vld [vmem:[%s6491 + $0x30] sm:$0xf]
    %v6497 = vld [vmem:[%s6491 + $0x38] sm:$0xf]
    %v6498 = vld [vmem:[%s6491 + $0x40] sm:$0xf]
    %v6499 = vld [vmem:[%s6491 + $0x48] sm:$0xf]
    %6508 = vst [vmem:[#allocation1] ss:$2 sm:$0xff] %v6492
    %s6509 = scalar_lea.vmem [#allocation1], 1
    %6510 = vst [vmem:[%s6509] ss:$2 sm:$0xff] %v6493
    %s6511 = scalar_lea.vmem [#allocation1], 16
    %6512 = vst [vmem:[%s6511] ss:$2 sm:$0xff] %v6494
    %s6513 = scalar_lea.vmem [#allocation1], 17
    %6514 = vst [vmem:[%s6513] ss:$2 sm:$0xff] %v6495
    %s6515 = scalar_lea.vmem [#allocation1], 32
    %6516 = vst [vmem:[%s6515] ss:$2 sm:$0xff] %v6496
    %s6517 = scalar_lea.vmem [#allocation1], 33
    %6518 = vst [vmem:[%s6517] ss:$2 sm:$0xff] %v6497
    %s6519 = scalar_lea.vmem [#allocation1], 48
    %6520 = vst [vmem:[%s6519] ss:$2 sm:$0xff] %v6498
    %s6521 = scalar_lea.vmem [#allocation1], 49
    %6522 = vst [vmem:[%s6521] ss:$2 sm:$0xff] %v6499
    %v6523 = vld.sshfl [vmem:[#allocation1] sm:$0xff pattern:$0x75316420]
    %v6524 = vld.sshfl [vmem:[#allocation1 + $0x10] sm:$0xff pattern:$0x75316420]
    %v6525 = vld.sshfl [vmem:[#allocation1 + $0x20] sm:$0xff pattern:$0x75316420]
    %v6526 = vld.sshfl [vmem:[#allocation1 + $0x30] sm:$0xff pattern:$0x75316420]
    %6531 = vst.msk [vmem:[#allocation3 + $0x18] sm:$0xff] %vm494, %v6523
    %6532 = vst.msk [vmem:[#allocation3 + $0x40] sm:$0xff] %vm494, %v6524
    %6533 = vst.msk [vmem:[#allocation3 + $0x68] sm:$0xff] %vm494, %v6525
    %6534 = vst.msk [vmem:[#allocation3 + $0x90] sm:$0xff] %vm494, %v6526
    %v6535 = vld [vmem:[%s6491 + $0x1] sm:$0xf]
    %v6536 = vld [vmem:[%s6491 + $0x9] sm:$0xf]
    %v6537 = vld [vmem:[%s6491 + $0x11] sm:$0xf]
    %v6538 = vld [vmem:[%s6491 + $0x19] sm:$0xf]
    %v6539 = vld [vmem:[%s6491 + $0x31] sm:$0xf]
    %v6540 = vld [vmem:[%s6491 + $0x39] sm:$0xf]
    %v6541 = vld [vmem:[%s6491 + $0x41] sm:$0xf]
    %v6542 = vld [vmem:[%s6491 + $0x49] sm:$0xf]
    %6551 = vst [vmem:[#allocation1] ss:$2 sm:$0xff] %v6535
    %s6552 = scalar_lea.vmem [#allocation1], 1
    %6553 = vst [vmem:[%s6552] ss:$2 sm:$0xff] %v6536
    %s6554 = scalar_lea.vmem [#allocation1], 16
    %6555 = vst [vmem:[%s6554] ss:$2 sm:$0xff] %v6537
    %s6556 = scalar_lea.vmem [#allocation1], 17
    %6557 = vst [vmem:[%s6556] ss:$2 sm:$0xff] %v6538
    %s6558 = scalar_lea.vmem [#allocation1], 32
    %6559 = vst [vmem:[%s6558] ss:$2 sm:$0xff] %v6539
    %s6560 = scalar_lea.vmem [#allocation1], 33
    %6561 = vst [vmem:[%s6560] ss:$2 sm:$0xff] %v6540
    %s6562 = scalar_lea.vmem [#allocation1], 48
    %6563 = vst [vmem:[%s6562] ss:$2 sm:$0xff] %v6541
    %s6564 = scalar_lea.vmem [#allocation1], 49
    %6565 = vst [vmem:[%s6564] ss:$2 sm:$0xff] %v6542
    %v6566 = vld.sshfl [vmem:[#allocation1] sm:$0xff pattern:$0x75316420]
    %v6567 = vld.sshfl [vmem:[#allocation1 + $0x10] sm:$0xff pattern:$0x75316420]
    %v6568 = vld.sshfl [vmem:[#allocation1 + $0x20] sm:$0xff pattern:$0x75316420]
    %v6569 = vld.sshfl [vmem:[#allocation1 + $0x30] sm:$0xff pattern:$0x75316420]
    %6570 = vrot.lane.b32.xlu0 %v6566, 64
    %v6571 = vpop.permute.xlu0 %6570
    %6572 = vrot.lane.b32.xlu0 %v6567, 64
    %v6573 = vpop.permute.xlu0 %6572
    %6574 = vrot.lane.b32.xlu0 %v6568, 64
    %v6575 = vpop.permute.xlu0 %6574
    %6576 = vrot.lane.b32.xlu0 %v6569, 64
    %v6577 = vpop.permute.xlu0 %6576
    %6582 = vst.msk [vmem:[#allocation3 + $0x18] sm:$0xff] %vm4290, %v6571
    %6583 = vst.msk [vmem:[#allocation3 + $0x40] sm:$0xff] %vm4290, %v6573
    %6584 = vst.msk [vmem:[#allocation3 + $0x68] sm:$0xff] %vm4290, %v6575
    %6585 = vst.msk [vmem:[#allocation3 + $0x90] sm:$0xff] %vm4290, %v6577
    %v6586 = vld [vmem:[%s6491 + $0x2] sm:$0xf]
    %v6587 = vld [vmem:[%s6491 + $0xa] sm:$0xf]
    %v6588 = vld [vmem:[%s6491 + $0x12] sm:$0xf]
    %v6589 = vld [vmem:[%s6491 + $0x1a] sm:$0xf]
    %v6590 = vld [vmem:[%s6491 + $0x32] sm:$0xf]
    %v6591 = vld [vmem:[%s6491 + $0x3a] sm:$0xf]
    %v6592 = vld [vmem:[%s6491 + $0x42] sm:$0xf]
    %v6593 = vld [vmem:[%s6491 + $0x4a] sm:$0xf]
    %6602 = vst [vmem:[#allocation1] ss:$2 sm:$0xff] %v6586
    %s6603 = scalar_lea.vmem [#allocation1], 1
    %6604 = vst [vmem:[%s6603] ss:$2 sm:$0xff] %v6587
    %s6605 = scalar_lea.vmem [#allocation1], 16
    %6606 = vst [vmem:[%s6605] ss:$2 sm:$0xff] %v6588
    %s6607 = scalar_lea.vmem [#allocation1], 17
    %6608 = vst [vmem:[%s6607] ss:$2 sm:$0xff] %v6589
    %s6609 = scalar_lea.vmem [#allocation1], 32
    %6610 = vst [vmem:[%s6609] ss:$2 sm:$0xff] %v6590
    %s6611 = scalar_lea.vmem [#allocation1], 33
    %6612 = vst [vmem:[%s6611] ss:$2 sm:$0xff] %v6591
    %s6613 = scalar_lea.vmem [#allocation1], 48
    %6614 = vst [vmem:[%s6613] ss:$2 sm:$0xff] %v6592
    %s6615 = scalar_lea.vmem [#allocation1], 49
    %6616 = vst [vmem:[%s6615] ss:$2 sm:$0xff] %v6593
    %v6617 = vld.sshfl [vmem:[#allocation1] sm:$0xff pattern:$0x75316420]
    %v6618 = vld.sshfl [vmem:[#allocation1 + $0x10] sm:$0xff pattern:$0x75316420]
    %v6619 = vld.sshfl [vmem:[#allocation1 + $0x20] sm:$0xff pattern:$0x75316420]
    %v6620 = vld.sshfl [vmem:[#allocation1 + $0x30] sm:$0xff pattern:$0x75316420]
    %6625 = vst.msk [vmem:[#allocation3 + $0x20] sm:$0xff] %vm494, %v6617
    %6626 = vst.msk [vmem:[#allocation3 + $0x48] sm:$0xff] %vm494, %v6618
    %6627 = vst.msk [vmem:[#allocation3 + $0x70] sm:$0xff] %vm494, %v6619
    %6628 = vst.msk [vmem:[#allocation3 + $0x98] sm:$0xff] %vm494, %v6620
    %v6629 = vld [vmem:[#allocation3] sm:$0xff]
    %v6630 = vld [vmem:[#allocation3 + $0x8] sm:$0xff]
    %v6631 = vld [vmem:[#allocation3 + $0x10] sm:$0xff]
    %v6632 = vld [vmem:[#allocation3 + $0x18] sm:$0xff]
    %v6633 = vld [vmem:[#allocation3 + $0x20] sm:$0xff]
    %v6634 = vld [vmem:[#allocation3 + $0x28] sm:$0xff]
    %v6635 = vld [vmem:[#allocation3 + $0x30] sm:$0xff]
    %v6636 = vld [vmem:[#allocation3 + $0x38] sm:$0xff]
    %v6637 = vld [vmem:[#allocation3 + $0x40] sm:$0xff]
    %v6638 = vld [vmem:[#allocation3 + $0x48] sm:$0xff]
    %v6639 = vld [vmem:[#allocation3 + $0x50] sm:$0xff]
    %v6640 = vld [vmem:[#allocation3 + $0x58] sm:$0xff]
    %v6641 = vld [vmem:[#allocation3 + $0x60] sm:$0xff]
    %v6642 = vld [vmem:[#allocation3 + $0x68] sm:$0xff]
    %v6643 = vld [vmem:[#allocation3 + $0x70] sm:$0xff]
    %v6644 = vld [vmem:[#allocation3 + $0x78] sm:$0xff]
    %v6645 = vld [vmem:[#allocation3 + $0x80] sm:$0xff]
    %v6646 = vld [vmem:[#allocation3 + $0x88] sm:$0xff]
    %v6647 = vld [vmem:[#allocation3 + $0x90] sm:$0xff]
    %v6648 = vld [vmem:[#allocation3 + $0x98] sm:$0xff]
    %v6649 = vld [vmem:[%s3] sm:$0xff]
    %v6650 = vld [vmem:[%s3 + $0x8] sm:$0xff]
    %v6651 = vld [vmem:[%s3 + $0x10] sm:$0xff]
    %v6652 = vld [vmem:[%s3 + $0x18] sm:$0xff]
    %v6653 = vld [vmem:[%s3 + $0x20] sm:$0xff]
    %v6654 = vld [vmem:[%s3 + $0x28] sm:$0xff]
    %v6655 = vld [vmem:[%s3 + $0x30] sm:$0xff]
    %v6656 = vld [vmem:[%s3 + $0x38] sm:$0xff]
    %v6657 = vld [vmem:[%s3 + $0x40] sm:$0xff]
    %v6658 = vld [vmem:[%s3 + $0x48] sm:$0xff]
    %v6659 = vld [vmem:[%s3 + $0x50] sm:$0xff]
    %v6660 = vld [vmem:[%s3 + $0x58] sm:$0xff]
    %v6661 = vld [vmem:[%s3 + $0x60] sm:$0xff]
    %v6662 = vld [vmem:[%s3 + $0x68] sm:$0xff]
    %v6663 = vld [vmem:[%s3 + $0x70] sm:$0xff]
    %v6664 = vld [vmem:[%s3 + $0x78] sm:$0xff]
    %v6665 = vld [vmem:[%s3 + $0x80] sm:$0xff]
    %v6666 = vld [vmem:[%s3 + $0x88] sm:$0xff]
    %v6667 = vld [vmem:[%s3 + $0x90] sm:$0xff]
    %v6668 = vld [vmem:[%s3 + $0x98] sm:$0xff]
    %v6669 = vld [vmem:[%s3 + $0xa0] sm:$0xff]
    %v6670 = vld [vmem:[%s3 + $0xa8] sm:$0xff]
    %v6671 = vld [vmem:[%s3 + $0xb0] sm:$0xff]
    %v6672 = vld [vmem:[%s3 + $0xb8] sm:$0xff]
    %v6673 = vld [vmem:[%s3 + $0xc0] sm:$0xff]
    %v6674 = vld [vmem:[%s3 + $0xc8] sm:$0xff]
    %v6675 = vld [vmem:[%s3 + $0xd0] sm:$0xff]
    %v6676 = vld [vmem:[%s3 + $0xd8] sm:$0xff]
    %v6677 = vld [vmem:[%s3 + $0xe0] sm:$0xff]
    %v6678 = vld [vmem:[%s3 + $0xe8] sm:$0xff]
    %v6679 = vld [vmem:[%s3 + $0xf0] sm:$0xff]
    %v6680 = vld [vmem:[%s3 + $0xf8] sm:$0xff]
    %v6681 = vld [vmem:[%s3 + $0x100] sm:$0xff]
    %v6682 = vld [vmem:[%s3 + $0x108] sm:$0xff]
    %v6683 = vld [vmem:[%s3 + $0x110] sm:$0xff]
    %v6684 = vld [vmem:[%s3 + $0x118] sm:$0xff]
    %v6685 = vld [vmem:[%s3 + $0x120] sm:$0xff]
    %v6686 = vld [vmem:[%s3 + $0x128] sm:$0xff]
    %v6687 = vld [vmem:[%s3 + $0x130] sm:$0xff]
    %v6688 = vld [vmem:[%s3 + $0x138] sm:$0xff]
    %v6689 = vld [vmem:[%s3 + $0x140] sm:$0xff]
    %v6690 = vld [vmem:[%s3 + $0x148] sm:$0xff]
    %v6691 = vld [vmem:[%s3 + $0x150] sm:$0xff]
    %v6692 = vld [vmem:[%s3 + $0x158] sm:$0xff]
    %v6693 = vld [vmem:[%s3 + $0x160] sm:$0xff]
    %v6694 = vld [vmem:[%s3 + $0x168] sm:$0xff]
    %v6695 = vld [vmem:[%s3 + $0x170] sm:$0xff]
    %v6696 = vld [vmem:[%s3 + $0x178] sm:$0xff]
    %v6697 = vld [vmem:[%s3 + $0x180] sm:$0xff]
    %v6698 = vld [vmem:[%s3 + $0x188] sm:$0xff]
    %v6699 = vld [vmem:[%s3 + $0x190] sm:$0xff]
    %v6700 = vld [vmem:[%s3 + $0x198] sm:$0xff]
    %v6701 = vld [vmem:[%s3 + $0x1a0] sm:$0xff]
    %v6702 = vld [vmem:[%s3 + $0x1a8] sm:$0xff]
    %v6703 = vld [vmem:[%s3 + $0x1b0] sm:$0xff]
    %v6704 = vld [vmem:[%s3 + $0x1b8] sm:$0xff]
    %v6705 = vld [vmem:[%s3 + $0x1c0] sm:$0xff]
    %v6706 = vld [vmem:[%s3 + $0x1c8] sm:$0xff]
    %v6707 = vld [vmem:[%s3 + $0x1d0] sm:$0xff]
    %v6708 = vld [vmem:[%s3 + $0x1d8] sm:$0xff]
    %v6709 = vld [vmem:[%s3 + $0x1e0] sm:$0xff]
    %v6710 = vld [vmem:[%s3 + $0x1e8] sm:$0xff]
    %v6711 = vld [vmem:[%s3 + $0x1f0] sm:$0xff]
    %v6712 = vld [vmem:[%s3 + $0x1f8] sm:$0xff]
    %v6713 = vld [vmem:[%s3 + $0x200] sm:$0xff]
    %v6714 = vld [vmem:[%s3 + $0x208] sm:$0xff]
    %v6715 = vld [vmem:[%s3 + $0x210] sm:$0xff]
    %v6716 = vld [vmem:[%s3 + $0x218] sm:$0xff]
    %v6717 = vld [vmem:[%s3 + $0x220] sm:$0xff]
    %v6718 = vld [vmem:[%s3 + $0x228] sm:$0xff]
    %v6719 = vld [vmem:[%s3 + $0x230] sm:$0xff]
    %v6720 = vld [vmem:[%s3 + $0x238] sm:$0xff]
    %v6722 = vsel %vm494, %v6633, 0
    %v6725 = vsel %vm494, %v6638, 0
    %v6728 = vsel %vm494, %v6643, 0
    %v6731 = vsel %vm494, %v6648, 0
    %6733 = vmatpush.msra.mxu0 %v6664
    %6734 = vmatpush.msra.mxu0 %v6663
    %6735 = vmatpush.msra.mxu0 %v6662
    %6736 = vmatpush.msra.mxu0 %v6661
    %6737 = vmatpush.msra.mxu0 %v6660
    %6738 = vmatpush.msra.mxu0 %v6659
    %6739 = vmatpush.msra.mxu0 %v6658
    %6740 = vmatpush.msra.mxu0 %v6657
    %6741 = vmatpush.msra.mxu0 %v6656
    %6742 = vmatpush.msra.mxu0 %v6655
    %6743 = vmatpush.msra.mxu0 %v6654
    %6744 = vmatpush.msra.mxu0 %v6653
    %6745 = vmatpush.msra.mxu0 %v6652
    %6746 = vmatpush.msra.mxu0 %v6651
    %6747 = vmatpush.msra.mxu0 %v6650
    %6748 = vmatpush.msra.mxu0 %v6649
    %6749 = vmatmul.f32.gmra.mxu0 %v6629
    %v6750 = vpop.f32.mrf.mxu0
    %v6751 = vadd.f32 0.0, %v6750
    %6752 = vmatmul.f32.gmra.mxu0 %v6634
    %v6753 = vpop.f32.mrf.mxu0
    %v6754 = vadd.f32 0.0, %v6753
    %6755 = vmatmul.f32.gmra.mxu0 %v6639
    %v6756 = vpop.f32.mrf.mxu0
    %v6757 = vadd.f32 0.0, %v6756
    %6758 = vmatmul.f32.gmra.mxu0 %v6644
    %v6759 = vpop.f32.mrf.mxu0
    %v6760 = vadd.f32 0.0, %v6759
    %6761 = vdwg.mxu0
    %6762 = vmatpush.msra.mxu0 %v6680
    %6763 = vmatpush.msra.mxu0 %v6679
    %6764 = vmatpush.msra.mxu0 %v6678
    %6765 = vmatpush.msra.mxu0 %v6677
    %6766 = vmatpush.msra.mxu0 %v6676
    %6767 = vmatpush.msra.mxu0 %v6675
    %6768 = vmatpush.msra.mxu0 %v6674
    %6769 = vmatpush.msra.mxu0 %v6673
    %6770 = vmatpush.msra.mxu0 %v6672
    %6771 = vmatpush.msra.mxu0 %v6671
    %6772 = vmatpush.msra.mxu0 %v6670
    %6773 = vmatpush.msra.mxu0 %v6669
    %6774 = vmatpush.msra.mxu0 %v6668
    %6775 = vmatpush.msra.mxu0 %v6667
    %6776 = vmatpush.msra.mxu0 %v6666
    %6777 = vmatpush.msra.mxu0 %v6665
    %6778 = vmatmul.f32.gmra.mxu0 %v6630
    %v6779 = vpop.f32.mrf.mxu0
    %v6780 = vadd.f32 %v6751, %v6779
    %6781 = vmatmul.f32.gmra.mxu0 %v6635
    %v6782 = vpop.f32.mrf.mxu0
    %v6783 = vadd.f32 %v6754, %v6782
    %6784 = vmatmul.f32.gmra.mxu0 %v6640
    %v6785 = vpop.f32.mrf.mxu0
    %v6786 = vadd.f32 %v6757, %v6785
    %6787 = vmatmul.f32.gmra.mxu0 %v6645
    %v6788 = vpop.f32.mrf.mxu0
    %v6789 = vadd.f32 %v6760, %v6788
    %6790 = vdwg.mxu0
    %6791 = vmatpush.msra.mxu0 %v6696
    %6792 = vmatpush.msra.mxu0 %v6695
    %6793 = vmatpush.msra.mxu0 %v6694
    %6794 = vmatpush.msra.mxu0 %v6693
    %6795 = vmatpush.msra.mxu0 %v6692
    %6796 = vmatpush.msra.mxu0 %v6691
    %6797 = vmatpush.msra.mxu0 %v6690
    %6798 = vmatpush.msra.mxu0 %v6689
    %6799 = vmatpush.msra.mxu0 %v6688
    %6800 = vmatpush.msra.mxu0 %v6687
    %6801 = vmatpush.msra.mxu0 %v6686
    %6802 = vmatpush.msra.mxu0 %v6685
    %6803 = vmatpush.msra.mxu0 %v6684
    %6804 = vmatpush.msra.mxu0 %v6683
    %6805 = vmatpush.msra.mxu0 %v6682
    %6806 = vmatpush.msra.mxu0 %v6681
    %6807 = vmatmul.f32.gmra.mxu0 %v6631
    %v6808 = vpop.f32.mrf.mxu0
    %v6809 = vadd.f32 %v6780, %v6808
    %6810 = vmatmul.f32.gmra.mxu0 %v6636
    %v6811 = vpop.f32.mrf.mxu0
    %v6812 = vadd.f32 %v6783, %v6811
    %6813 = vmatmul.f32.gmra.mxu0 %v6641
    %v6814 = vpop.f32.mrf.mxu0
    %v6815 = vadd.f32 %v6786, %v6814
    %6816 = vmatmul.f32.gmra.mxu0 %v6646
    %v6817 = vpop.f32.mrf.mxu0
    %v6818 = vadd.f32 %v6789, %v6817
    %6819 = vdwg.mxu0
    %6820 = vmatpush.msra.mxu0 %v6712
    %6821 = vmatpush.msra.mxu0 %v6711
    %6822 = vmatpush.msra.mxu0 %v6710
    %6823 = vmatpush.msra.mxu0 %v6709
    %6824 = vmatpush.msra.mxu0 %v6708
    %6825 = vmatpush.msra.mxu0 %v6707
    %6826 = vmatpush.msra.mxu0 %v6706
    %6827 = vmatpush.msra.mxu0 %v6705
    %6828 = vmatpush.msra.mxu0 %v6704
    %6829 = vmatpush.msra.mxu0 %v6703
    %6830 = vmatpush.msra.mxu0 %v6702
    %6831 = vmatpush.msra.mxu0 %v6701
    %6832 = vmatpush.msra.mxu0 %v6700
    %6833 = vmatpush.msra.mxu0 %v6699
    %6834 = vmatpush.msra.mxu0 %v6698
    %6835 = vmatpush.msra.mxu0 %v6697
    %6836 = vmatmul.f32.gmra.mxu0 %v6632
    %v6837 = vpop.f32.mrf.mxu0
    %v6838 = vadd.f32 %v6809, %v6837
    %6839 = vmatmul.f32.gmra.mxu0 %v6637
    %v6840 = vpop.f32.mrf.mxu0
    %v6841 = vadd.f32 %v6812, %v6840
    %6842 = vmatmul.f32.gmra.mxu0 %v6642
    %v6843 = vpop.f32.mrf.mxu0
    %v6844 = vadd.f32 %v6815, %v6843
    %6845 = vmatmul.f32.gmra.mxu0 %v6647
    %v6846 = vpop.f32.mrf.mxu0
    %v6847 = vadd.f32 %v6818, %v6846
    %6848 = vdwg.mxu0
    %6849 = vmatpush.msra.mxu0 0.0
    %6850 = vmatpush.msra.mxu0 0.0
    %6851 = vmatpush.msra.mxu0 0.0
    %6852 = vmatpush.msra.mxu0 0.0
    %6853 = vmatpush.msra.mxu0 0.0
    %6854 = vmatpush.msra.mxu0 0.0
    %6855 = vmatpush.msra.mxu0 0.0
    %6856 = vmatpush.msra.mxu0 0.0
    %6857 = vmatpush.msra.mxu0 %v6720
    %6858 = vmatpush.msra.mxu0 %v6719
    %6859 = vmatpush.msra.mxu0 %v6718
    %6860 = vmatpush.msra.mxu0 %v6717
    %6861 = vmatpush.msra.mxu0 %v6716
    %6862 = vmatpush.msra.mxu0 %v6715
    %6863 = vmatpush.msra.mxu0 %v6714
    %6864 = vmatpush.msra.mxu0 %v6713
    %6865 = vmatmul.f32.gmra.mxu0 %v6722
    %v6866 = vpop.f32.mrf.mxu0
    %v6867 = vadd.f32 %v6838, %v6866
    %6868 = vmatmul.f32.gmra.mxu0 %v6725
    %v6869 = vpop.f32.mrf.mxu0
    %v6870 = vadd.f32 %v6841, %v6869
    %6871 = vmatmul.f32.gmra.mxu0 %v6728
    %v6872 = vpop.f32.mrf.mxu0
    %v6873 = vadd.f32 %v6844, %v6872
    %6874 = vmatmul.f32.gmra.mxu0 %v6731
    %v6875 = vpop.f32.mrf.mxu0
    %v6876 = vadd.f32 %v6847, %v6875
    %6877 = vdwg.mxu0
    %6878 = vst.msk [vmem:[#allocation2] sm:$0xff] %vm494, %v6867
    %6879 = vst.msk [vmem:[#allocation2 + $0x8] sm:$0xff] %vm494, %v6870
    %6880 = vst.msk [vmem:[#allocation2 + $0x10] sm:$0xff] %vm494, %v6873
    %6881 = vst.msk [vmem:[#allocation2 + $0x18] sm:$0xff] %vm494, %v6876
    %v6882 = vld [vmem:[#allocation2] sm:$0xff]
    %v6883 = vld [vmem:[#allocation2 + $0x8] sm:$0xff]
    %v6884 = vld [vmem:[#allocation2 + $0x10] sm:$0xff]
    %v6885 = vld [vmem:[#allocation2 + $0x18] sm:$0xff]
    %v6886 = vsel %vm494, %v6882, 0.0
    %v6887 = vsel %vm494, %v6883, 0.0
    %v6888 = vadd.f32 %v6886, %v6887
    %v6889 = vsel %vm494, %v6884, 0.0
    %v6890 = vadd.f32 %v6888, %v6889
    %v6891 = vsel %vm494, %v6885, 0.0
    %v6892 = vadd.f32 %v6890, %v6891
    %v6893 = vrot.slane %v6892, 4
    %v6894 = vadd.f32 %v6892, %v6893
    %v6895 = vrot.slane %v6894, 2
    %v6896 = vadd.f32 %v6894, %v6895
    %v6897 = vrot.slane %v6896, 1
    %v6898 = vadd.f32 %v6896, %v6897
    %v6899 = vmul.f32 %v6898, 0.03125
    %v6900 = vmul.f32 %v6882, %v6882
    %v6901 = vmul.f32 %v6883, %v6883
    %v6902 = vmul.f32 %v6884, %v6884
    %v6903 = vmul.f32 %v6885, %v6885
    %v6904 = vsel %vm494, %v6900, 0.0
    %v6905 = vsel %vm494, %v6901, 0.0
    %v6906 = vadd.f32 %v6904, %v6905
    %v6907 = vsel %vm494, %v6902, 0.0
    %v6908 = vadd.f32 %v6906, %v6907
    %v6909 = vsel %vm494, %v6903, 0.0
    %v6910 = vadd.f32 %v6908, %v6909
    %v6911 = vrot.slane %v6910, 4
    %v6912 = vadd.f32 %v6910, %v6911
    %v6913 = vrot.slane %v6912, 2
    %v6914 = vadd.f32 %v6912, %v6913
    %v6915 = vrot.slane %v6914, 1
    %v6916 = vadd.f32 %v6914, %v6915
    %v6917 = vmul.f32 %v6916, 0.03125
    %v6918 = vmul.f32 %v6899, %v6899
    %v6919 = vsub.f32 %v6917, %v6918
    %v6920 = vld [vmem:[%s5 + $0x4] sm:$0x1]
    %v6921 = vld [vmem:[%s5 + $0x5] sm:$0x1]
    %v6922 = vadd.f32 %v6919, 1e-05
    %v6923 = vrsqrt.pop %v6922
    %v6924 = vmul.f32 %v6923, %v6922
    %v6925 = vmul.f32 %v6924, %v6923
    %v6926 = vmul.f32 0.5, %v6925
    %v6927 = vsub.f32 1.5, %v6926
    %v6928 = vmul.f32 %v6923, %v6927
    %vm6929 = vweird.f32 %v6922
    %vm6930 = vweird.f32 %v6923
    %vm6931 = vmor %vm6929, %vm6930
    %v6932 = vsel %vm6931, %v6923, %v6928
    %v6933 = vmul.f32 %v6932, %v6920
    %v6934 = vmul.f32 %v6899, %v6933
    %v6935 = vsub.f32 %v6921, %v6934
    %v6936 = vperm.slane %v6933, 0
    %v6937 = vmul.f32 %v6882, %v6936
    %v6938 = vmul.f32 %v6883, %v6936
    %v6939 = vmul.f32 %v6884, %v6936
    %v6940 = vmul.f32 %v6885, %v6936
    %v6941 = vperm.slane %v6935, 0
    %v6942 = vadd.f32 %v6937, %v6941
    %v6943 = vadd.f32 %v6938, %v6941
    %v6944 = vadd.f32 %v6939, %v6941
    %v6945 = vadd.f32 %v6940, %v6941
    %v6950 = vrot.slane %v6942, 2
    %v6951 = vrot.slane %v6942, 4
    %v6952 = vrot.slane %v6942, 6
    %v6953 = vrot.slane %v6943, 2
    %v6954 = vrot.slane %v6943, 4
    %v6955 = vrot.slane %v6943, 6
    %v6956 = vrot.slane %v6944, 2
    %v6957 = vrot.slane %v6944, 4
    %v6958 = vrot.slane %v6944, 6
    %v6959 = vrot.slane %v6945, 2
    %v6960 = vrot.slane %v6945, 4
    %v6961 = vrot.slane %v6945, 6
    %v6974 = vsel %vm1551, %v6942, -inf
    %v6975 = vrot.slane %v6974, 4
    %v6976 = vmax.f32 %v6974, %v6975
    %v6977 = vrot.slane %v6976, 2
    %v6978 = vmax.f32 %v6976, %v6977
    %v6979 = vrot.slane %v6978, 1
    %v6980 = vmax.f32 %v6978, %v6979
    %v6981 = vsel %vm1551, %v6950, -inf
    %v6982 = vrot.slane %v6981, 4
    %v6983 = vmax.f32 %v6981, %v6982
    %v6984 = vrot.slane %v6983, 2
    %v6985 = vmax.f32 %v6983, %v6984
    %v6986 = vrot.slane %v6985, 1
    %v6987 = vmax.f32 %v6985, %v6986
    %v6988 = vsel %vm1551, %v6951, -inf
    %v6989 = vrot.slane %v6988, 4
    %v6990 = vmax.f32 %v6988, %v6989
    %v6991 = vrot.slane %v6990, 2
    %v6992 = vmax.f32 %v6990, %v6991
    %v6993 = vrot.slane %v6992, 1
    %v6994 = vmax.f32 %v6992, %v6993
    %v6995 = vsel %vm1551, %v6952, -inf
    %v6996 = vrot.slane %v6995, 4
    %v6997 = vmax.f32 %v6995, %v6996
    %v6998 = vrot.slane %v6997, 2
    %v6999 = vmax.f32 %v6997, %v6998
    %v7000 = vrot.slane %v6999, 1
    %v7001 = vmax.f32 %v6999, %v7000
    %v7002 = vsel %vm1551, %v6943, -inf
    %v7003 = vrot.slane %v7002, 4
    %v7004 = vmax.f32 %v7002, %v7003
    %v7005 = vrot.slane %v7004, 2
    %v7006 = vmax.f32 %v7004, %v7005
    %v7007 = vrot.slane %v7006, 1
    %v7008 = vmax.f32 %v7006, %v7007
    %v7009 = vsel %vm1551, %v6953, -inf
    %v7010 = vrot.slane %v7009, 4
    %v7011 = vmax.f32 %v7009, %v7010
    %v7012 = vrot.slane %v7011, 2
    %v7013 = vmax.f32 %v7011, %v7012
    %v7014 = vrot.slane %v7013, 1
    %v7015 = vmax.f32 %v7013, %v7014
    %v7016 = vsel %vm1551, %v6954, -inf
    %v7017 = vrot.slane %v7016, 4
    %v7018 = vmax.f32 %v7016, %v7017
    %v7019 = vrot.slane %v7018, 2
    %v7020 = vmax.f32 %v7018, %v7019
    %v7021 = vrot.slane %v7020, 1
    %v7022 = vmax.f32 %v7020, %v7021
    %v7023 = vsel %vm1551, %v6955, -inf
    %v7024 = vrot.slane %v7023, 4
    %v7025 = vmax.f32 %v7023, %v7024
    %v7026 = vrot.slane %v7025, 2
    %v7027 = vmax.f32 %v7025, %v7026
    %v7028 = vrot.slane %v7027, 1
    %v7029 = vmax.f32 %v7027, %v7028
    %v7030 = vsel %vm1551, %v6944, -inf
    %v7031 = vrot.slane %v7030, 4
    %v7032 = vmax.f32 %v7030, %v7031
    %v7033 = vrot.slane %v7032, 2
    %v7034 = vmax.f32 %v7032, %v7033
    %v7035 = vrot.slane %v7034, 1
    %v7036 = vmax.f32 %v7034, %v7035
    %v7037 = vsel %vm1551, %v6956, -inf
    %v7038 = vrot.slane %v7037, 4
    %v7039 = vmax.f32 %v7037, %v7038
    %v7040 = vrot.slane %v7039, 2
    %v7041 = vmax.f32 %v7039, %v7040
    %v7042 = vrot.slane %v7041, 1
    %v7043 = vmax.f32 %v7041, %v7042
    %v7044 = vsel %vm1551, %v6957, -inf
    %v7045 = vrot.slane %v7044, 4
    %v7046 = vmax.f32 %v7044, %v7045
    %v7047 = vrot.slane %v7046, 2
    %v7048 = vmax.f32 %v7046, %v7047
    %v7049 = vrot.slane %v7048, 1
    %v7050 = vmax.f32 %v7048, %v7049
    %v7051 = vsel %vm1551, %v6958, -inf
    %v7052 = vrot.slane %v7051, 4
    %v7053 = vmax.f32 %v7051, %v7052
    %v7054 = vrot.slane %v7053, 2
    %v7055 = vmax.f32 %v7053, %v7054
    %v7056 = vrot.slane %v7055, 1
    %v7057 = vmax.f32 %v7055, %v7056
    %v7058 = vsel %vm1551, %v6945, -inf
    %v7059 = vrot.slane %v7058, 4
    %v7060 = vmax.f32 %v7058, %v7059
    %v7061 = vrot.slane %v7060, 2
    %v7062 = vmax.f32 %v7060, %v7061
    %v7063 = vrot.slane %v7062, 1
    %v7064 = vmax.f32 %v7062, %v7063
    %v7065 = vsel %vm1551, %v6959, -inf
    %v7066 = vrot.slane %v7065, 4
    %v7067 = vmax.f32 %v7065, %v7066
    %v7068 = vrot.slane %v7067, 2
    %v7069 = vmax.f32 %v7067, %v7068
    %v7070 = vrot.slane %v7069, 1
    %v7071 = vmax.f32 %v7069, %v7070
    %v7072 = vsel %vm1551, %v6960, -inf
    %v7073 = vrot.slane %v7072, 4
    %v7074 = vmax.f32 %v7072, %v7073
    %v7075 = vrot.slane %v7074, 2
    %v7076 = vmax.f32 %v7074, %v7075
    %v7077 = vrot.slane %v7076, 1
    %v7078 = vmax.f32 %v7076, %v7077
    %v7079 = vsel %vm1551, %v6961, -inf
    %v7080 = vrot.slane %v7079, 4
    %v7081 = vmax.f32 %v7079, %v7080
    %v7082 = vrot.slane %v7081, 2
    %v7083 = vmax.f32 %v7081, %v7082
    %v7084 = vrot.slane %v7083, 1
    %v7085 = vmax.f32 %v7083, %v7084
    %v7086 = vsel %vm494, %v6980, -inf
    %v7087 = vsel %vm494, %v6994, -inf
    %v7088 = vmax.f32 %v7086, %v7087
    %v7089 = vsel %vm494, %v6987, -inf
    %v7090 = vsel %vm494, %v7001, -inf
    %v7091 = vmax.f32 %v7089, %v7090
    %v7092 = vsel %vm494, %v7008, -inf
    %v7093 = vsel %vm494, %v7022, -inf
    %v7094 = vmax.f32 %v7092, %v7093
    %v7095 = vsel %vm494, %v7015, -inf
    %v7096 = vsel %vm494, %v7029, -inf
    %v7097 = vmax.f32 %v7095, %v7096
    %v7098 = vsel %vm494, %v7036, -inf
    %v7099 = vsel %vm494, %v7050, -inf
    %v7100 = vmax.f32 %v7098, %v7099
    %v7101 = vsel %vm494, %v7043, -inf
    %v7102 = vsel %vm494, %v7057, -inf
    %v7103 = vmax.f32 %v7101, %v7102
    %v7104 = vsel %vm494, %v7064, -inf
    %v7105 = vsel %vm494, %v7078, -inf
    %v7106 = vmax.f32 %v7104, %v7105
    %v7107 = vsel %vm494, %v7071, -inf
    %v7108 = vsel %vm494, %v7085, -inf
    %v7109 = vmax.f32 %v7107, %v7108
    %v7110 = vmax.f32 %v7088, 0.0
    %v7111 = vmax.f32 %v7091, 0.0
    %v7112 = vmax.f32 %v7094, 0.0
    %v7113 = vmax.f32 %v7097, 0.0
    %v7114 = vmax.f32 %v7100, 0.0
    %v7115 = vmax.f32 %v7103, 0.0
    %v7116 = vmax.f32 %v7106, 0.0
    %v7117 = vmax.f32 %v7109, 0.0
    %7118 = vst.msk [vmem:[#allocation6] sm:$0xf] %vm6200, 0.0
    %7119 = vst.msk [vmem:[#allocation6 + $0x10] sm:$0xf] %vm6200, 0.0
    %s7120 = scalar_lea.vmem [#allocation6], 12
    %7121 = vst.msk [vmem:[%s7120] sm:$0xf] %vm6200, 0.0
    %7122 = vst.msk [vmem:[%s7120 + $0x10] sm:$0xf] %vm6200, 0.0
    %s7123 = scalar_lea.vmem [#allocation6], 4
    %7124 = vst.msk [vmem:[%s7123] sm:$0x1] %vm3866, 0.0
    %7125 = vst.msk [vmem:[%s7123 + $0x4] sm:$0x1] %vm3866, 0.0
    %7126 = vst.msk [vmem:[%s7123 + $0x10] sm:$0x1] %vm3866, 0.0
    %7127 = vst.msk [vmem:[%s7123 + $0x14] sm:$0x1] %vm3866, 0.0
    %7128 = vst.msk [vmem:[%s7123 + $0x3] sm:$0x1] %vm3866, 0.0
    %7129 = vst.msk [vmem:[%s7123 + $0x7] sm:$0x1] %vm3866, 0.0
    %7130 = vst.msk [vmem:[%s7123 + $0x13] sm:$0x1] %vm3866, 0.0
    %7131 = vst.msk [vmem:[%s7123 + $0x17] sm:$0x1] %vm3866, 0.0
    %v7140 = vsel %vm4027, %v7111, %v7110
    %v7141 = vsel %vm4027, %v7113, %v7112
    %v7142 = vsel %vm4027, %v7115, %v7114
    %v7143 = vsel %vm4027, %v7117, %v7116
    %7148 = vst.msk [vmem:[%s7123 + $0x1] sm:$0x3] %vm1551, %v7140
    %7149 = vst.msk [vmem:[%s7123 + $0x5] sm:$0x3] %vm1551, %v7141
    %7150 = vst.msk [vmem:[%s7123 + $0x11] sm:$0x3] %vm1551, %v7142
    %7151 = vst.msk [vmem:[%s7123 + $0x15] sm:$0x3] %vm1551, %v7143
    %v7152 = vld [vmem:[#allocation6] sm:$0x3]
    %v7153 = vld [vmem:[#allocation6 + $0x4] sm:$0x3]
    %v7154 = vld [vmem:[#allocation6 + $0x10] sm:$0x3]
    %v7155 = vld [vmem:[#allocation6 + $0x14] sm:$0x3]
    %7160 = vst [vmem:[#allocation1] ss:$4 sm:$0xff] %v7152
    %s7161 = scalar_lea.vmem [#allocation1], 1
    %7162 = vst [vmem:[%s7161] ss:$4 sm:$0xff] %v7153
    %s7163 = scalar_lea.vmem [#allocation1], 2
    %7164 = vst [vmem:[%s7163] ss:$4 sm:$0xff] %v7154
    %s7165 = scalar_lea.vmem [#allocation1], 3
    %7166 = vst [vmem:[%s7165] ss:$4 sm:$0xff] %v7155
    %v7167 = vld.sshfl [vmem:[#allocation1] sm:$0xff pattern:$0x73625140]
    %7169 = vst.msk [vmem:[#allocation3] sm:$0xff] %vm494, %v7167
    %v7170 = vld [vmem:[#allocation6 + $0x1] sm:$0x3]
    %v7171 = vld [vmem:[#allocation6 + $0x5] sm:$0x3]
    %v7172 = vld [vmem:[#allocation6 + $0x11] sm:$0x3]
    %v7173 = vld [vmem:[#allocation6 + $0x15] sm:$0x3]
    %7178 = vst [vmem:[#allocation1] ss:$4 sm:$0xff] %v7170
    %s7179 = scalar_lea.vmem [#allocation1], 1
    %7180 = vst [vmem:[%s7179] ss:$4 sm:$0xff] %v7171
    %s7181 = scalar_lea.vmem [#allocation1], 2
    %7182 = vst [vmem:[%s7181] ss:$4 sm:$0xff] %v7172
    %s7183 = scalar_lea.vmem [#allocation1], 3
    %7184 = vst [vmem:[%s7183] ss:$4 sm:$0xff] %v7173
    %v7185 = vld.sshfl [vmem:[#allocation1] sm:$0xff pattern:$0x73625140]
    %7186 = vrot.lane.b32.xlu0 %v7185, 64
    %v7187 = vpop.permute.xlu0 %7186
    %7189 = vst.msk [vmem:[#allocation3] sm:$0xff] %vm4290, %v7187
    %v7190 = vld [vmem:[#allocation6 + $0x2] sm:$0x3]
    %v7191 = vld [vmem:[#allocation6 + $0x6] sm:$0x3]
    %v7192 = vld [vmem:[#allocation6 + $0x12] sm:$0x3]
    %v7193 = vld [vmem:[#allocation6 + $0x16] sm:$0x3]
    %7198 = vst [vmem:[#allocation1] ss:$4 sm:$0xff] %v7190
    %s7199 = scalar_lea.vmem [#allocation1], 1
    %7200 = vst [vmem:[%s7199] ss:$4 sm:$0xff] %v7191
    %s7201 = scalar_lea.vmem [#allocation1], 2
    %7202 = vst [vmem:[%s7201] ss:$4 sm:$0xff] %v7192
    %s7203 = scalar_lea.vmem [#allocation1], 3
    %7204 = vst [vmem:[%s7203] ss:$4 sm:$0xff] %v7193
    %v7205 = vld.sshfl [vmem:[#allocation1] sm:$0xff pattern:$0x73625140]
    %7207 = vst.msk [vmem:[#allocation3 + $0x8] sm:$0xff] %vm494, %v7205
    %v7208 = vld [vmem:[%s7123] sm:$0x3]
    %v7209 = vld [vmem:[%s7123 + $0x4] sm:$0x3]
    %v7210 = vld [vmem:[%s7123 + $0x10] sm:$0x3]
    %v7211 = vld [vmem:[%s7123 + $0x14] sm:$0x3]
    %7216 = vst [vmem:[#allocation1] ss:$4 sm:$0xff] %v7208
    %s7217 = scalar_lea.vmem [#allocation1], 1
    %7218 = vst [vmem:[%s7217] ss:$4 sm:$0xff] %v7209
    %s7219 = scalar_lea.vmem [#allocation1], 2
    %7220 = vst [vmem:[%s7219] ss:$4 sm:$0xff] %v7210
    %s7221 = scalar_lea.vmem [#allocation1], 3
    %7222 = vst [vmem:[%s7221] ss:$4 sm:$0xff] %v7211
    %v7223 = vld.sshfl [vmem:[#allocation1] sm:$0xff pattern:$0x73625140]
    %7224 = vrot.lane.b32.xlu0 %v7223, 64
    %v7225 = vpop.permute.xlu0 %7224
    %7227 = vst.msk [vmem:[#allocation3 + $0x8] sm:$0xff] %vm4290, %v7225
    %v7228 = vld [vmem:[%s7123 + $0x1] sm:$0x3]
    %v7229 = vld [vmem:[%s7123 + $0x5] sm:$0x3]
    %v7230 = vld [vmem:[%s7123 + $0x11] sm:$0x3]
    %v7231 = vld [vmem:[%s7123 + $0x15] sm:$0x3]
    %7236 = vst [vmem:[#allocation1] ss:$4 sm:$0xff] %v7228
    %s7237 = scalar_lea.vmem [#allocation1], 1
    %7238 = vst [vmem:[%s7237] ss:$4 sm:$0xff] %v7229
    %s7239 = scalar_lea.vmem [#allocation1], 2
    %7240 = vst [vmem:[%s7239] ss:$4 sm:$0xff] %v7230
    %s7241 = scalar_lea.vmem [#allocation1], 3
    %7242 = vst [vmem:[%s7241] ss:$4 sm:$0xff] %v7231
    %v7243 = vld.sshfl [vmem:[#allocation1] sm:$0xff pattern:$0x73625140]
    %7245 = vst.msk [vmem:[#allocation3 + $0x10] sm:$0xff] %vm494, %v7243
    %v7246 = vld [vmem:[%s7123 + $0x2] sm:$0x3]
    %v7247 = vld [vmem:[%s7123 + $0x6] sm:$0x3]
    %v7248 = vld [vmem:[%s7123 + $0x12] sm:$0x3]
    %v7249 = vld [vmem:[%s7123 + $0x16] sm:$0x3]
    %7254 = vst [vmem:[#allocation1] ss:$4 sm:$0xff] %v7246
    %s7255 = scalar_lea.vmem [#allocation1], 1
    %7256 = vst [vmem:[%s7255] ss:$4 sm:$0xff] %v7247
    %s7257 = scalar_lea.vmem [#allocation1], 2
    %7258 = vst [vmem:[%s7257] ss:$4 sm:$0xff] %v7248
    %s7259 = scalar_lea.vmem [#allocation1], 3
    %7260 = vst [vmem:[%s7259] ss:$4 sm:$0xff] %v7249
    %v7261 = vld.sshfl [vmem:[#allocation1] sm:$0xff pattern:$0x73625140]
    %7262 = vrot.lane.b32.xlu0 %v7261, 64
    %v7263 = vpop.permute.xlu0 %7262
    %7265 = vst.msk [vmem:[#allocation3 + $0x10] sm:$0xff] %vm4290, %v7263
    %s7266 = scalar_lea.vmem [#allocation6], 8
    %v7267 = vld [vmem:[%s7266] sm:$0x3]
    %v7268 = vld [vmem:[%s7266 + $0x4] sm:$0x3]
    %v7269 = vld [vmem:[%s7266 + $0x10] sm:$0x3]
    %v7270 = vld [vmem:[%s7266 + $0x14] sm:$0x3]
    %7275 = vst [vmem:[#allocation1] ss:$4 sm:$0xff] %v7267
    %s7276 = scalar_lea.vmem [#allocation1], 1
    %7277 = vst [vmem:[%s7276] ss:$4 sm:$0xff] %v7268
    %s7278 = scalar_lea.vmem [#allocation1], 2
    %7279 = vst [vmem:[%s7278] ss:$4 sm:$0xff] %v7269
    %s7280 = scalar_lea.vmem [#allocation1], 3
    %7281 = vst [vmem:[%s7280] ss:$4 sm:$0xff] %v7270
    %v7282 = vld.sshfl [vmem:[#allocation1] sm:$0xff pattern:$0x73625140]
    %7284 = vst.msk [vmem:[#allocation3 + $0x18] sm:$0xff] %vm494, %v7282
    %v7285 = vld [vmem:[%s7266 + $0x1] sm:$0x3]
    %v7286 = vld [vmem:[%s7266 + $0x5] sm:$0x3]
    %v7287 = vld [vmem:[%s7266 + $0x11] sm:$0x3]
    %v7288 = vld [vmem:[%s7266 + $0x15] sm:$0x3]
    %7293 = vst [vmem:[#allocation1] ss:$4 sm:$0xff] %v7285
    %s7294 = scalar_lea.vmem [#allocation1], 1
    %7295 = vst [vmem:[%s7294] ss:$4 sm:$0xff] %v7286
    %s7296 = scalar_lea.vmem [#allocation1], 2
    %7297 = vst [vmem:[%s7296] ss:$4 sm:$0xff] %v7287
    %s7298 = scalar_lea.vmem [#allocation1], 3
    %7299 = vst [vmem:[%s7298] ss:$4 sm:$0xff] %v7288
    %v7300 = vld.sshfl [vmem:[#allocation1] sm:$0xff pattern:$0x73625140]
    %7301 = vrot.lane.b32.xlu0 %v7300, 64
    %v7302 = vpop.permute.xlu0 %7301
    %7304 = vst.msk [vmem:[#allocation3 + $0x18] sm:$0xff] %vm4290, %v7302
    %v7305 = vld [vmem:[%s7266 + $0x2] sm:$0x3]
    %v7306 = vld [vmem:[%s7266 + $0x6] sm:$0x3]
    %v7307 = vld [vmem:[%s7266 + $0x12] sm:$0x3]
    %v7308 = vld [vmem:[%s7266 + $0x16] sm:$0x3]
    %7313 = vst [vmem:[#allocation1] ss:$4 sm:$0xff] %v7305
    %s7314 = scalar_lea.vmem [#allocation1], 1
    %7315 = vst [vmem:[%s7314] ss:$4 sm:$0xff] %v7306
    %s7316 = scalar_lea.vmem [#allocation1], 2
    %7317 = vst [vmem:[%s7316] ss:$4 sm:$0xff] %v7307
    %s7318 = scalar_lea.vmem [#allocation1], 3
    %7319 = vst [vmem:[%s7318] ss:$4 sm:$0xff] %v7308
    %v7320 = vld.sshfl [vmem:[#allocation1] sm:$0xff pattern:$0x73625140]
    %7322 = vst.msk [vmem:[#allocation3 + $0x20] sm:$0xff] %vm494, %v7320
    %v7323 = vld [vmem:[#allocation3] sm:$0xff]
    %v7324 = vld [vmem:[#allocation3 + $0x8] sm:$0xff]
    %v7325 = vld [vmem:[#allocation3 + $0x10] sm:$0xff]
    %v7326 = vld [vmem:[#allocation3 + $0x18] sm:$0xff]
    %v7327 = vld [vmem:[#allocation3 + $0x20] sm:$0xff]
    %v7328 = vld [vmem:[%s4] sm:$0xff]
    %v7329 = vld [vmem:[%s4 + $0x8] sm:$0xff]
    %v7330 = vld [vmem:[%s4 + $0x10] sm:$0xff]
    %v7331 = vld [vmem:[%s4 + $0x18] sm:$0xff]
    %v7332 = vld [vmem:[%s4 + $0x20] sm:$0xff]
    %v7333 = vld [vmem:[%s4 + $0x28] sm:$0xff]
    %v7334 = vld [vmem:[%s4 + $0x30] sm:$0xff]
    %v7335 = vld [vmem:[%s4 + $0x38] sm:$0xff]
    %v7336 = vld [vmem:[%s4 + $0x40] sm:$0xff]
    %v7337 = vld [vmem:[%s4 + $0x48] sm:$0xff]
    %v7338 = vld [vmem:[%s4 + $0x50] sm:$0xff]
    %v7339 = vld [vmem:[%s4 + $0x58] sm:$0xff]
    %v7340 = vld [vmem:[%s4 + $0x60] sm:$0xff]
    %v7341 = vld [vmem:[%s4 + $0x68] sm:$0xff]
    %v7342 = vld [vmem:[%s4 + $0x70] sm:$0xff]
    %v7343 = vld [vmem:[%s4 + $0x78] sm:$0xff]
    %v7344 = vld [vmem:[%s4 + $0x80] sm:$0xff]
    %v7345 = vld [vmem:[%s4 + $0x88] sm:$0xff]
    %v7346 = vld [vmem:[%s4 + $0x90] sm:$0xff]
    %v7347 = vld [vmem:[%s4 + $0x98] sm:$0xff]
    %v7348 = vld [vmem:[%s4 + $0xa0] sm:$0xff]
    %v7349 = vld [vmem:[%s4 + $0xa8] sm:$0xff]
    %v7350 = vld [vmem:[%s4 + $0xb0] sm:$0xff]
    %v7351 = vld [vmem:[%s4 + $0xb8] sm:$0xff]
    %v7352 = vld [vmem:[%s4 + $0xc0] sm:$0xff]
    %v7353 = vld [vmem:[%s4 + $0xc8] sm:$0xff]
    %v7354 = vld [vmem:[%s4 + $0xd0] sm:$0xff]
    %v7355 = vld [vmem:[%s4 + $0xd8] sm:$0xff]
    %v7356 = vld [vmem:[%s4 + $0xe0] sm:$0xff]
    %v7357 = vld [vmem:[%s4 + $0xe8] sm:$0xff]
    %v7358 = vld [vmem:[%s4 + $0xf0] sm:$0xff]
    %v7359 = vld [vmem:[%s4 + $0xf8] sm:$0xff]
    %v7360 = vld [vmem:[%s4 + $0x100] sm:$0xff]
    %v7361 = vld [vmem:[%s4 + $0x108] sm:$0xff]
    %v7362 = vld [vmem:[%s4 + $0x110] sm:$0xff]
    %v7363 = vld [vmem:[%s4 + $0x118] sm:$0xff]
    %v7364 = vld [vmem:[%s4 + $0x120] sm:$0xff]
    %v7365 = vld [vmem:[%s4 + $0x128] sm:$0xff]
    %v7366 = vld [vmem:[%s4 + $0x130] sm:$0xff]
    %v7367 = vld [vmem:[%s4 + $0x138] sm:$0xff]
    %v7368 = vld [vmem:[%s4 + $0x140] sm:$0xff]
    %v7369 = vld [vmem:[%s4 + $0x148] sm:$0xff]
    %v7370 = vld [vmem:[%s4 + $0x150] sm:$0xff]
    %v7371 = vld [vmem:[%s4 + $0x158] sm:$0xff]
    %v7372 = vld [vmem:[%s4 + $0x160] sm:$0xff]
    %v7373 = vld [vmem:[%s4 + $0x168] sm:$0xff]
    %v7374 = vld [vmem:[%s4 + $0x170] sm:$0xff]
    %v7375 = vld [vmem:[%s4 + $0x178] sm:$0xff]
    %v7376 = vld [vmem:[%s4 + $0x180] sm:$0xff]
    %v7377 = vld [vmem:[%s4 + $0x188] sm:$0xff]
    %v7378 = vld [vmem:[%s4 + $0x190] sm:$0xff]
    %v7379 = vld [vmem:[%s4 + $0x198] sm:$0xff]
    %v7380 = vld [vmem:[%s4 + $0x1a0] sm:$0xff]
    %v7381 = vld [vmem:[%s4 + $0x1a8] sm:$0xff]
    %v7382 = vld [vmem:[%s4 + $0x1b0] sm:$0xff]
    %v7383 = vld [vmem:[%s4 + $0x1b8] sm:$0xff]
    %v7384 = vld [vmem:[%s4 + $0x1c0] sm:$0xff]
    %v7385 = vld [vmem:[%s4 + $0x1c8] sm:$0xff]
    %v7386 = vld [vmem:[%s4 + $0x1d0] sm:$0xff]
    %v7387 = vld [vmem:[%s4 + $0x1d8] sm:$0xff]
    %v7388 = vld [vmem:[%s4 + $0x1e0] sm:$0xff]
    %v7389 = vld [vmem:[%s4 + $0x1e8] sm:$0xff]
    %v7390 = vld [vmem:[%s4 + $0x1f0] sm:$0xff]
    %v7391 = vld [vmem:[%s4 + $0x1f8] sm:$0xff]
    %v7392 = vld [vmem:[%s4 + $0x200] sm:$0xff]
    %v7393 = vld [vmem:[%s4 + $0x208] sm:$0xff]
    %v7394 = vld [vmem:[%s4 + $0x210] sm:$0xff]
    %v7395 = vld [vmem:[%s4 + $0x218] sm:$0xff]
    %v7396 = vld [vmem:[%s4 + $0x220] sm:$0xff]
    %v7397 = vld [vmem:[%s4 + $0x228] sm:$0xff]
    %v7398 = vld [vmem:[%s4 + $0x230] sm:$0xff]
    %v7399 = vld [vmem:[%s4 + $0x238] sm:$0xff]
    %v7401 = vsel %vm494, %v7327, 0
    %7403 = vmatpush.msra.mxu0 %v7343
    %7404 = vmatpush.msra.mxu0 %v7342
    %7405 = vmatpush.msra.mxu0 %v7341
    %7406 = vmatpush.msra.mxu0 %v7340
    %7407 = vmatpush.msra.mxu0 %v7339
    %7408 = vmatpush.msra.mxu0 %v7338
    %7409 = vmatpush.msra.mxu0 %v7337
    %7410 = vmatpush.msra.mxu0 %v7336
    %7411 = vmatpush.msra.mxu0 %v7335
    %7412 = vmatpush.msra.mxu0 %v7334
    %7413 = vmatpush.msra.mxu0 %v7333
    %7414 = vmatpush.msra.mxu0 %v7332
    %7415 = vmatpush.msra.mxu0 %v7331
    %7416 = vmatpush.msra.mxu0 %v7330
    %7417 = vmatpush.msra.mxu0 %v7329
    %7418 = vmatpush.msra.mxu0 %v7328
    %7419 = vmatmul.f32.gmra.mxu0 %v7323
    %v7420 = vpop.f32.mrf.mxu0
    %v7421 = vadd.f32 0.0, %v7420
    %7422 = vdwg.mxu0
    %7423 = vmatpush.msra.mxu0 %v7359
    %7424 = vmatpush.msra.mxu0 %v7358
    %7425 = vmatpush.msra.mxu0 %v7357
    %7426 = vmatpush.msra.mxu0 %v7356
    %7427 = vmatpush.msra.mxu0 %v7355
    %7428 = vmatpush.msra.mxu0 %v7354
    %7429 = vmatpush.msra.mxu0 %v7353
    %7430 = vmatpush.msra.mxu0 %v7352
    %7431 = vmatpush.msra.mxu0 %v7351
    %7432 = vmatpush.msra.mxu0 %v7350
    %7433 = vmatpush.msra.mxu0 %v7349
    %7434 = vmatpush.msra.mxu0 %v7348
    %7435 = vmatpush.msra.mxu0 %v7347
    %7436 = vmatpush.msra.mxu0 %v7346
    %7437 = vmatpush.msra.mxu0 %v7345
    %7438 = vmatpush.msra.mxu0 %v7344
    %7439 = vmatmul.f32.gmra.mxu0 %v7324
    %v7440 = vpop.f32.mrf.mxu0
    %v7441 = vadd.f32 %v7421, %v7440
    %7442 = vdwg.mxu0
    %7443 = vmatpush.msra.mxu0 %v7375
    %7444 = vmatpush.msra.mxu0 %v7374
    %7445 = vmatpush.msra.mxu0 %v7373
    %7446 = vmatpush.msra.mxu0 %v7372
    %7447 = vmatpush.msra.mxu0 %v7371
    %7448 = vmatpush.msra.mxu0 %v7370
    %7449 = vmatpush.msra.mxu0 %v7369
    %7450 = vmatpush.msra.mxu0 %v7368
    %7451 = vmatpush.msra.mxu0 %v7367
    %7452 = vmatpush.msra.mxu0 %v7366
    %7453 = vmatpush.msra.mxu0 %v7365
    %7454 = vmatpush.msra.mxu0 %v7364
    %7455 = vmatpush.msra.mxu0 %v7363
    %7456 = vmatpush.msra.mxu0 %v7362
    %7457 = vmatpush.msra.mxu0 %v7361
    %7458 = vmatpush.msra.mxu0 %v7360
    %7459 = vmatmul.f32.gmra.mxu0 %v7325
    %v7460 = vpop.f32.mrf.mxu0
    %v7461 = vadd.f32 %v7441, %v7460
    %7462 = vdwg.mxu0
    %7463 = vmatpush.msra.mxu0 %v7391
    %7464 = vmatpush.msra.mxu0 %v7390
    %7465 = vmatpush.msra.mxu0 %v7389
    %7466 = vmatpush.msra.mxu0 %v7388
    %7467 = vmatpush.msra.mxu0 %v7387
    %7468 = vmatpush.msra.mxu0 %v7386
    %7469 = vmatpush.msra.mxu0 %v7385
    %7470 = vmatpush.msra.mxu0 %v7384
    %7471 = vmatpush.msra.mxu0 %v7383
    %7472 = vmatpush.msra.mxu0 %v7382
    %7473 = vmatpush.msra.mxu0 %v7381
    %7474 = vmatpush.msra.mxu0 %v7380
    %7475 = vmatpush.msra.mxu0 %v7379
    %7476 = vmatpush.msra.mxu0 %v7378
    %7477 = vmatpush.msra.mxu0 %v7377
    %7478 = vmatpush.msra.mxu0 %v7376
    %7479 = vmatmul.f32.gmra.mxu0 %v7326
    %v7480 = vpop.f32.mrf.mxu0
    %v7481 = vadd.f32 %v7461, %v7480
    %7482 = vdwg.mxu0
    %7483 = vmatpush.msra.mxu0 0.0
    %7484 = vmatpush.msra.mxu0 0.0
    %7485 = vmatpush.msra.mxu0 0.0
    %7486 = vmatpush.msra.mxu0 0.0
    %7487 = vmatpush.msra.mxu0 0.0
    %7488 = vmatpush.msra.mxu0 0.0
    %7489 = vmatpush.msra.mxu0 0.0
    %7490 = vmatpush.msra.mxu0 0.0
    %7491 = vmatpush.msra.mxu0 %v7399
    %7492 = vmatpush.msra.mxu0 %v7398
    %7493 = vmatpush.msra.mxu0 %v7397
    %7494 = vmatpush.msra.mxu0 %v7396
    %7495 = vmatpush.msra.mxu0 %v7395
    %7496 = vmatpush.msra.mxu0 %v7394
    %7497 = vmatpush.msra.mxu0 %v7393
    %7498 = vmatpush.msra.mxu0 %v7392
    %7499 = vmatmul.f32.gmra.mxu0 %v7401
    %v7500 = vpop.f32.mrf.mxu0
    %v7501 = vadd.f32 %v7481, %v7500
    %7502 = vdwg.mxu0
    %7503 = vst.msk [vmem:[#allocation2] sm:$0xff] %vm494, %v7501
    %v7504 = vld [vmem:[#allocation2] sm:$0xff]
    %v7505 = vsel %vm494, %v7504, 0.0
    %v7506 = vrot.slane %v7505, 4
    %v7507 = vadd.f32 %v7505, %v7506
    %v7508 = vrot.slane %v7507, 2
    %v7509 = vadd.f32 %v7507, %v7508
    %v7510 = vrot.slane %v7509, 1
    %v7511 = vadd.f32 %v7509, %v7510
    %v7512 = vmul.f32 %v7511, 0.125
    %v7513 = vmul.f32 %v7504, %v7504
    %v7514 = vsel %vm494, %v7513, 0.0
    %v7515 = vrot.slane %v7514, 4
    %v7516 = vadd.f32 %v7514, %v7515
    %v7517 = vrot.slane %v7516, 2
    %v7518 = vadd.f32 %v7516, %v7517
    %v7519 = vrot.slane %v7518, 1
    %v7520 = vadd.f32 %v7518, %v7519
    %v7521 = vmul.f32 %v7520, 0.125
    %v7522 = vmul.f32 %v7512, %v7512
    %v7523 = vsub.f32 %v7521, %v7522
    %v7524 = vld [vmem:[%s5 + $0x6] sm:$0x1]
    %v7525 = vld [vmem:[%s5 + $0x7] sm:$0x1]
    %v7526 = vadd.f32 %v7523, 1e-05
    %v7527 = vrsqrt.pop %v7526
    %v7528 = vmul.f32 %v7527, %v7526
    %v7529 = vmul.f32 %v7528, %v7527
    %v7530 = vmul.f32 0.5, %v7529
    %v7531 = vsub.f32 1.5, %v7530
    %v7532 = vmul.f32 %v7527, %v7531
    %vm7533 = vweird.f32 %v7526
    %vm7534 = vweird.f32 %v7527
    %vm7535 = vmor %vm7533, %vm7534
    %v7536 = vsel %vm7535, %v7527, %v7532
    %v7537 = vmul.f32 %v7536, %v7524
    %v7538 = vmul.f32 %v7512, %v7537
    %v7539 = vsub.f32 %v7525, %v7538
    %v7540 = vperm.slane %v7537, 0
    %v7541 = vmul.f32 %v7504, %v7540
    %v7542 = vperm.slane %v7539, 0
    %v7543 = vadd.f32 %v7541, %v7542
    %v7545 = vrot.slane %v7543, 2
    %v7546 = vrot.slane %v7543, 4
    %v7547 = vrot.slane %v7543, 6
    %v7551 = vsel %vm1551, %v7543, -inf
    %v7552 = vrot.slane %v7551, 4
    %v7553 = vmax.f32 %v7551, %v7552
    %v7554 = vrot.slane %v7553, 2
    %v7555 = vmax.f32 %v7553, %v7554
    %v7556 = vrot.slane %v7555, 1
    %v7557 = vmax.f32 %v7555, %v7556
    %v7558 = vsel %vm1551, %v7545, -inf
    %v7559 = vrot.slane %v7558, 4
    %v7560 = vmax.f32 %v7558, %v7559
    %v7561 = vrot.slane %v7560, 2
    %v7562 = vmax.f32 %v7560, %v7561
    %v7563 = vrot.slane %v7562, 1
    %v7564 = vmax.f32 %v7562, %v7563
    %v7565 = vsel %vm1551, %v7546, -inf
    %v7566 = vrot.slane %v7565, 4
    %v7567 = vmax.f32 %v7565, %v7566
    %v7568 = vrot.slane %v7567, 2
    %v7569 = vmax.f32 %v7567, %v7568
    %v7570 = vrot.slane %v7569, 1
    %v7571 = vmax.f32 %v7569, %v7570
    %v7572 = vsel %vm1551, %v7547, -inf
    %v7573 = vrot.slane %v7572, 4
    %v7574 = vmax.f32 %v7572, %v7573
    %v7575 = vrot.slane %v7574, 2
    %v7576 = vmax.f32 %v7574, %v7575
    %v7577 = vrot.slane %v7576, 1
    %v7578 = vmax.f32 %v7576, %v7577
    %v7579 = vsel %vm494, %v7557, -inf
    %v7580 = vsel %vm494, %v7564, -inf
    %v7581 = vmax.f32 %v7579, %v7580
    %v7582 = vsel %vm494, %v7571, -inf
    %v7583 = vsel %vm494, %v7578, -inf
    %v7584 = vmax.f32 %v7582, %v7583
    %v7585 = vmax.f32 %v7581, 0.0
    %v7586 = vmax.f32 %v7584, 0.0
    %v7587 = vadd.f32 %v7585, 0.0
    %v7588 = vadd.f32 %v7586, 0.0
    %v7591 = vsel %vm4027, %v7588, %v7587
    %7593 = vst.msk [vmem:[#allocation7] sm:$0x3] %vm1551, %v7591
    // Predicated region
    $region26: #{conv4_forward.1} parent=1 // pred_check
      _
    $region27: #{conv4_forward.1} parent=1 // pred_check_branch
      %7595 = sbr.rel (0) target = $region29
    $region28: #{conv4_forward.1} parent=1 // pred_region
      %7597 = vsyncadd [#allocation8], 0
      %s7599 = sshll.u32 [#allocation7], 4
      %s7600 = int_to_ptr.vmem [resolvable:$true] %s7599
      %s7601 = sshll.u32 %s6, 4
      %s7602 = int_to_ptr.hbm [resolvable:$true] %s7601
      %7604 = dma.vmem_to_hbm [thread:$0]  %s7600, 32, %s7602, [#allocation8]
    $region29: #{conv4_forward.1} parent=1 // pred_fallthru
      _
    // Predicated region
    $region30: #{conv4_forward.1} parent=1 // pred_check
      _
    $region31: #{conv4_forward.1} parent=1 // pred_check_branch
      %7606 = sbr.rel (0) target = $region33
    $region32: #{conv4_forward.1} parent=1 // pred_region
      %7608 = dma.done [#allocation8], 32
    $region33: #{conv4_forward.1} parent=1 // pred_fallthru
      _
    %7609 = vsyncpa [#allocation8], 1

</llo_original>
